<compile_context>
chip_gen: v7x
topology: tpu7x:2x2x1
jax: 0.10.0
libtpu: 0.0.40
codegen_flags: <defaults>
</compile_context>

<pallas_src>
import functools
import math

import jax
import jax.numpy as jnp
import numpy as np
from jax.experimental import pallas as pl
from jax.experimental.pallas import tpu as pltpu

# --- scaled-down "architecture" config (module defaults use 512 / 4096) -----
SPP_PYRAMID = [4, 2, 1]
NUM_CLASSES = 2
NUM_INPUT_CHANNELS = 4          # != 3 -> first conv replaced (Conv2d(4, C, 3, 1, 1))
CONV1_CH = 16
CHANNELS_LAST_LAYER = 32        # scaled down from 512
FC_HIDDEN = 128                 # scaled down from 4096
FC_IN = CHANNELS_LAST_LAYER * sum(l * l for l in SPP_PYRAMID)   # 32 * 21 = 672

# Static spatial plan for the 16x16 input (compile-time constants).
H0 = W0 = 16                    # conv1 spatial size
H1 = W1 = 8                     # after first 2x2 max pool
H2 = W2 = 4                     # after second 2x2 max pool (SPP input)

# Per-image row strides of the stacked VMEM planes (rows = flattened y*w + x,
# channels on the lane axis).
S0 = H0 * W0                    # 256  conv1 output rows / image (no junk cols)
SP1 = S0 // 2                   # 128  pool1 stride-2 selection rows / image
WP1 = W1 + 2                    # 10   padded-plane width for conv2
S1 = (H1 + 2) * WP1 + 4         # 104  padded plane 1 stride / image (mult of 8)
WP2 = W2 + 2                    # 6
S2 = (H2 + 2) * WP2 + 4         # 40   padded plane 2 stride / image
SP2 = S1 // 2                   # 52   pool2 stride-2 selection rows / image
P1_SLACK = 24                   # >= max conv2 tap offset (2*WP1 + 2 = 22)
P2_SLACK = 16                   # >= max conv3 tap offset (2*WP2 + 2 = 14)


# =============================================================================
# Fused Pallas kernel (one grid step == B_TILE images; everything in VMEM)
# =============================================================================
def _fused_forward_kernel(
        x_ref,                        # (B*256, 36)  im2col'd conv1 patches
        cw1_ref, cb1_ref,             # (36, 16),  (1, 16)
        cw2_ref, cb2_ref,             # (144, 32), (1, 32)
        cw3_ref, cb3_ref,             # (288, 32), (1, 32)
        fw1_ref, fb1_ref,             # (672, 128) rows in NHWC-SPP order, (1, 128)
        fw2_ref, fb2_ref,             # (128, 128), (1, 128)
        fw3_ref, fb3_ref,             # (128, 2),   (1, 2)
        out_ref,                      # (B, 4): [softmax | log_softmax]
        a1_ref, pl1_ref, p1_ref, a2_ref, pl2_ref, p2_ref, a3_ref,
        *, b_tile, compute_dtype):
    f32 = jnp.float32
    B = b_tile
    cd = compute_dtype
    c1, c3 = CONV1_CH, CHANNELS_LAST_LAYER

    def zero_span(ref, start, n, c):
        ref[pl.ds(start, n), :] = jnp.zeros((n, c), f32)

    def conv3x3_relu(src_ref, wt_ref, b_ref, dst_ref, m, wp, cin):
        """Conv2d(k=3, s=1, p=1) + ReLU over a stacked, flattened padded plane.

        src rows are b*stride + y*wp + x; the 9 taps are contiguous windows of
        length m starting at ky*wp + kx; M = B*stride stacks all images.
        """
        acc = None
        for k in range(9):
            ky, kx = divmod(k, 3)
            tap = src_ref[pl.ds(ky * wp + kx, m), :].astype(cd)
            wk = wt_ref[k * cin:(k + 1) * cin, :].astype(cd)
            part = jnp.dot(tap, wk, preferred_element_type=f32)
            acc = part if acc is None else acc + part     # MRB-friendly on v7x
        dst_ref[...] = jnp.maximum(acc + b_ref[...], 0.0)

    def pool2x2_select(src_ref, dst_ref, w_in, k):
        """dst[m] = max over the 2x2 window whose top-left flat index is 2*m.

        Because w_in and the per-image stride are even, even flat index <=> even
        x, so 4 whole-plane stride-2 loads + 3 VPU maxes cover every image at
        once (no per-output-row strided loads)."""
        t00 = src_ref[pl.ds(0, k, stride=2), :]
        t01 = src_ref[pl.ds(1, k, stride=2), :]
        t10 = src_ref[pl.ds(w_in, k, stride=2), :]
        t11 = src_ref[pl.ds(w_in + 1, k, stride=2), :]
        dst_ref[pl.ds(0, k), :] = jnp.maximum(jnp.maximum(t00, t01),
                                              jnp.maximum(t10, t11))

    # ---- conv1: single (B*256, 36) x (36, 16) matmul (wrapper did im2col) ---
    a1_ref[...] = jnp.maximum(
        jnp.dot(x_ref[...].astype(cd), cw1_ref[...].astype(cd),
                preferred_element_type=f32) + cb1_ref[...], 0.0)

    # ---- max pool 1 (2x2 / 2) into padded plane p1 --------------------------
    k1 = B * SP1 - 8
    pool2x2_select(a1_ref, pl1_ref, W0, k1)
    for b in range(B):
        base = b * S1
        # halo zeros only (interior is fully overwritten below)
        zero_span(p1_ref, base, WP1 + 1, c1)                         # top row + (1,0)
        for y in range(1, H1):
            zero_span(p1_ref, base + y * WP1 + WP1 - 1, 2, c1)       # (y,9),(y+1,0)
        zero_span(p1_ref, base + (H1 + 1) * WP1 - 1, WP1 + 5, c1)    # (8,9)+bottom+gap
        for py in range(H1):
            p1_ref[pl.ds(base + (py + 1) * WP1 + 1, W1), :] = \
                pl1_ref[pl.ds(b * SP1 + py * W0, W1), :]
    zero_span(p1_ref, B * S1, P1_SLACK, c1)                          # tap slack tail

    # ---- conv2 --------------------------------------------------------------
    conv3x3_relu(p1_ref, cw2_ref, cb2_ref, a2_ref, B * S1, WP1, c1)

    # ---- max pool 2 (2x2 / 2) into padded plane p2 --------------------------
    k2 = B * SP2 - 16
    pool2x2_select(a2_ref, pl2_ref, WP1, k2)
    for b in range(B):
        base = b * S2
        zero_span(p2_ref, base, WP2 + 1, c3)
        for y in range(1, H2):
            zero_span(p2_ref, base + y * WP2 + WP2 - 1, 2, c3)
        zero_span(p2_ref, base + (H2 + 1) * WP2 - 1, WP2 + 5, c3)
        for py in range(H2):
            p2_ref[pl.ds(base + (py + 1) * WP2 + 1, W2), :] = \
                pl2_ref[pl.ds(b * SP2 + py * WP1, W2), :]
    zero_span(p2_ref, B * S2, P2_SLACK, c3)

    # ---- conv3 --------------------------------------------------------------
    conv3x3_relu(p2_ref, cw3_ref, cb3_ref, a3_ref, B * S2, WP2, c3)
    # torchvision VGG's final MaxPool2d is deleted; the SPP layer replaces it.

    # ---- SpatialPyramidPool (max_pool, [4, 2, 1]) -> (B, 672) feature block -
    # One strided load per spatial position gathers that feature for ALL images.
    v = [[a3_ref[pl.ds(oy * WP2 + ox, B, stride=S2), :] for ox in range(W2)]
         for oy in range(H2)]
    feat_list = []
    for oy in range(H2):
        for ox in range(W2):
            feat_list.append(v[oy][ox])                      # level 4 (identity)
    lvl2 = []
    for py in range(2):
        for px in range(2):
            m = jnp.maximum(jnp.maximum(v[2 * py][2 * px], v[2 * py][2 * px + 1]),
                            jnp.maximum(v[2 * py + 1][2 * px], v[2 * py + 1][2 * px + 1]))
            lvl2.append(m)
            feat_list.append(m)                              # level 2 (2x2 max)
    feat_list.append(jnp.maximum(jnp.maximum(lvl2[0], lvl2[1]),
                                 jnp.maximum(lvl2[2], lvl2[3])))   # level 1 (global)
    feats = jnp.concatenate(feat_list, axis=-1)              # (B, 672), NHWC order

    # ---- classifier: real (B,K)x(K,N) matmuls (fc1 rows pre-permuted) -------
    # TODO(synk): Dropout(p=drop_percentage) layers are identity (eval-mode forward).
    h1 = jnp.dot(feats.astype(cd), fw1_ref[...].astype(cd),
                 preferred_element_type=f32) + fb1_ref[...]
    h1 = jnp.maximum(h1, 0.0)
    h2 = jnp.dot(h1.astype(cd), fw2_ref[...].astype(cd),
                 preferred_element_type=f32) + fb2_ref[...]
    h2 = jnp.maximum(h2, 0.0)
    logits = jnp.dot(h2.astype(cd), fw3_ref[...].astype(cd),
                     preferred_element_type=f32) + fb3_ref[...]      # (B, 2)

    # softmax / log_softmax over dim=1 (f32, divide-free, exact path);
    # packed into one (B, 4) output -> one store / one writeback per step.
    z = logits - jnp.max(logits, axis=-1, keepdims=True)
    lse = jnp.log(jnp.sum(jnp.exp(z), axis=-1, keepdims=True))
    lsm = z - lse
    out_ref[...] = jnp.concatenate([jnp.exp(lsm), lsm], axis=-1)


def _build_forward(num_steps, b_tile, compute_dtype):
    B = b_tile
    kernel = functools.partial(_fused_forward_kernel, b_tile=B,
                               compute_dtype=compute_dtype)

    def wfull(shape):
        return pl.BlockSpec(shape, lambda s: (0, 0))     # weights stay resident

    in_specs = [
        pl.BlockSpec((None, B * S0, 9 * NUM_INPUT_CHANNELS), lambda s: (s, 0, 0)),
        wfull((9 * NUM_INPUT_CHANNELS, CONV1_CH)), wfull((1, CONV1_CH)),
        wfull((9 * CONV1_CH, CHANNELS_LAST_LAYER)), wfull((1, CHANNELS_LAST_LAYER)),
        wfull((9 * CHANNELS_LAST_LAYER, CHANNELS_LAST_LAYER)),
        wfull((1, CHANNELS_LAST_LAYER)),
        wfull((FC_IN, FC_HIDDEN)), wfull((1, FC_HIDDEN)),
        wfull((FC_HIDDEN, FC_HIDDEN)), wfull((1, FC_HIDDEN)),
        wfull((FC_HIDDEN, NUM_CLASSES)), wfull((1, NUM_CLASSES)),
    ]
    out_specs = pl.BlockSpec((None, B, 2 * NUM_CLASSES), lambda s: (s, 0, 0))
    out_shape = jax.ShapeDtypeStruct((num_steps, B, 2 * NUM_CLASSES), jnp.float32)
    scratch_shapes = [
        pltpu.VMEM((B * S0, CONV1_CH), jnp.float32),                  # a1
        pltpu.VMEM((B * SP1, CONV1_CH), jnp.float32),                 # pool1 select
        pltpu.VMEM((B * S1 + P1_SLACK, CONV1_CH), jnp.float32),       # padded p1
        pltpu.VMEM((B * S1, CHANNELS_LAST_LAYER), jnp.float32),       # a2
        pltpu.VMEM((B * SP2, CHANNELS_LAST_LAYER), jnp.float32),      # pool2 select
        pltpu.VMEM((B * S2 + P2_SLACK, CHANNELS_LAST_LAYER), jnp.float32),  # padded p2
        pltpu.VMEM((B * S2, CHANNELS_LAST_LAYER), jnp.float32),       # a3
    ]
    # NOTE: for very large B_TILE on v7x (64 MiB VMEM) size the scratch against
    # vmem_limit_bytes; at the default tile sizes this is only ~100 KB/step.
    return pl.pallas_call(
        kernel,
        out_shape=out_shape,
        grid=(num_steps,),
        in_specs=in_specs,
        out_specs=out_specs,
        scratch_shapes=scratch_shapes,
        compiler_params=pltpu.CompilerParams(
            dimension_semantics=("parallel",)),
    )


# =============================================================================
# JAX wrapper (layout glue + one-time conv1 im2col) + parameter prep
# =============================================================================
def degenerate_slice_detector_forward(prepared, x_nchw, *,
                                      compute_dtype=jnp.float32, batch_tile=None):
    # NOTE: compute_dtype=jnp.bfloat16 feeds bf16 MXU operands (f32 accumulation);
    #       default f32 preserves the original module's numerics. Keep f32 on v5e
    #       elementwise paths regardless (no bf16 VALU there).
    b = x_nchw.shape[0]
    if batch_tile is None:
        batch_tile = max(1, min(b, 8))
    pad_b = (-b) % batch_tile
    bp = b + pad_b
    num_steps = bp // batch_tile

    # Layout glue (tiny, once per forward): NCHW -> NHWC, zero-pad spatially,
    # im2col for conv1 (9 shifted 16x16 views concatenated on channels),
    # flatten per image to (256, 36) rows and tile the batch.
    x = jnp.transpose(x_nchw, (0, 2, 3, 1)).astype(jnp.float32)
    if pad_b:
        x = jnp.pad(x, ((0, pad_b), (0, 0), (0, 0), (0, 0)))
    xp = jnp.pad(x, ((0, 0), (1, 1), (1, 1), (0, 0)))
    patches = jnp.concatenate(
        [xp[:, ky:ky + H0, kx:kx + W0, :] for ky in range(3) for kx in range(3)],
        axis=-1)                                             # (bp, 16, 16, 36)
    patches = patches.reshape(num_steps, batch_tile * S0, 9 * NUM_INPUT_CHANNELS)

    out = _build_forward(num_steps, batch_tile, compute_dtype)(
        patches,
        prepared['conv1_w'], prepared['conv1_b'],
        prepared['conv2_w'], prepared['conv2_b'],
        prepared['conv3_w'], prepared['conv3_b'],
        prepared['fc1_w'], prepared['fc1_b'],
        prepared['fc2_w'], prepared['fc2_b'],
        prepared['fc3_w'], prepared['fc3_b'])
    out = out.reshape(bp, 2 * NUM_CLASSES)[:b]
    return {'softmax': out[:, :NUM_CLASSES], 'log_softmax': out[:, NUM_CLASSES:]}


def _fc1_row_permutation():
    """Row permutation mapping our (y, x, c)-ordered SPP features onto the
    PyTorch .view(bs, -1) order (channel-major per pyramid level)."""
    perm = []
    offset = 0
    for level in SPP_PYRAMID:
        p = level * level
        block = np.arange(CHANNELS_LAST_LAYER * p).reshape(CHANNELS_LAST_LAYER, p)
        perm.append(offset + block.T.reshape(-1))   # position-major, channel-minor
        offset += CHANNELS_LAST_LAYER * p
    return np.concatenate(perm)


def prepare_params(params, *, compute_dtype=jnp.float32):
    """One-time host-side reshape (and optional bf16 cast) of PyTorch-layout
    params into kernel layout; biases stay f32 (added to f32 accumulators)."""
    wd = compute_dtype
    prep = {
        'conv1_w': params['conv1_w'].reshape(9 * NUM_INPUT_CHANNELS,
                                             CONV1_CH).astype(wd),
        'conv2_w': params['conv2_w'].reshape(9 * CONV1_CH,
                                             CHANNELS_LAST_LAYER).astype(wd),
        'conv3_w': params['conv3_w'].reshape(9 * CHANNELS_LAST_LAYER,
                                             CHANNELS_LAST_LAYER).astype(wd),
        # Permute fc1 rows once so the kernel can consume SPP features in
        # natural NHWC order (removes the NCHW flatten transpose).
        'fc1_w': params['fc1_w'][jnp.asarray(_fc1_row_permutation()), :].astype(wd),
        'fc2_w': params['fc2_w'].astype(wd),
        'fc3_w': params['fc3_w'].astype(wd),
    }
    for name in ('conv1_b', 'conv2_b', 'conv3_b', 'fc1_b', 'fc2_b', 'fc3_b'):
        prep[name] = params[name].reshape(1, -1).astype(jnp.float32)
    return prep


# =============================================================================
# Deterministic parameter init (mirrors _initialize_weights)
# =============================================================================
def init_params(key):
    ks = jax.random.split(key, 6)

    def conv_init(k, cin, cout):
        std = math.sqrt(2.0 / (3 * 3 * cout))        # n = kh*kw*out_channels
        w = std * jax.random.normal(k, (3, 3, cin, cout), dtype=jnp.float32)
        return w, jnp.zeros((cout,), dtype=jnp.float32)

    def linear_init(k, fin, fout):
        w = 0.01 * jax.random.normal(k, (fin, fout), dtype=jnp.float32)
        return w, jnp.zeros((fout,), dtype=jnp.float32)

    c1w, c1b = conv_init(ks[0], NUM_INPUT_CHANNELS, CONV1_CH)
    c2w, c2b = conv_init(ks[1], CONV1_CH, CHANNELS_LAST_LAYER)
    c3w, c3b = conv_init(ks[2], CHANNELS_LAST_LAYER, CHANNELS_LAST_LAYER)
    f1w, f1b = linear_init(ks[3], FC_IN, FC_HIDDEN)
    f2w, f2b = linear_init(ks[4], FC_HIDDEN, FC_HIDDEN)
    f3w, f3b = linear_init(ks[5], FC_HIDDEN, NUM_CLASSES)
    return dict(conv1_w=c1w, conv1_b=c1b, conv2_w=c2w, conv2_b=c2b,
                conv3_w=c3w, conv3_b=c3b,
                fc1_w=f1w, fc1_b=f1b, fc2_w=f2w, fc2_b=f2b, fc3_w=f3w, fc3_b=f3b)


if __name__ == "__main__":
    key = jax.random.PRNGKey(0)
    kx, kp = jax.random.split(key)
    B = 2
    x = jax.random.normal(kx, (B, NUM_INPUT_CHANNELS, H0, W0), dtype=jnp.float32)
    params = init_params(kp)
    prepared = prepare_params(params)

    fwd = jax.jit(degenerate_slice_detector_forward)
    out = fwd(prepared, x)
    jax.block_until_ready(out)

    assert out['softmax'].shape == (B, NUM_CLASSES)
    assert out['log_softmax'].shape == (B, NUM_CLASSES)
    # softmax rows sum to 1; log_softmax == log(softmax)
    assert bool(jnp.allclose(jnp.sum(out['softmax'], axis=1), 1.0, atol=1e-5))
    assert bool(jnp.allclose(jnp.log(out['softmax']), out['log_softmax'], atol=1e-5))
    print("KERNEL_OK")
</pallas_src>

<mosaic_0001>
module attributes {stable_mosaic.version = 11 : i64} {
  func.func @_fused_forward_kernel(%arg0: i32, %arg1: memref<1x512x36xf32, #tpu.memory_space<vmem>>, %arg2: memref<36x16xf32, #tpu.memory_space<vmem>>, %arg3: memref<1x16xf32, #tpu.memory_space<vmem>>, %arg4: memref<144x32xf32, #tpu.memory_space<vmem>>, %arg5: memref<1x32xf32, #tpu.memory_space<vmem>>, %arg6: memref<288x32xf32, #tpu.memory_space<vmem>>, %arg7: memref<1x32xf32, #tpu.memory_space<vmem>>, %arg8: memref<672x128xf32, #tpu.memory_space<vmem>>, %arg9: memref<1x128xf32, #tpu.memory_space<vmem>>, %arg10: memref<128x128xf32, #tpu.memory_space<vmem>>, %arg11: memref<1x128xf32, #tpu.memory_space<vmem>>, %arg12: memref<128x2xf32, #tpu.memory_space<vmem>>, %arg13: memref<1x2xf32, #tpu.memory_space<vmem>>, %arg14: memref<1x2x4xf32, #tpu.memory_space<vmem>>, %arg15: memref<512x16xf32, #tpu.memory_space<vmem>>, %arg16: memref<256x16xf32, #tpu.memory_space<vmem>>, %arg17: memref<232x16xf32, #tpu.memory_space<vmem>>, %arg18: memref<208x32xf32, #tpu.memory_space<vmem>>, %arg19: memref<104x32xf32, #tpu.memory_space<vmem>>, %arg20: memref<96x32xf32, #tpu.memory_space<vmem>>, %arg21: memref<80x32xf32, #tpu.memory_space<vmem>>) attributes {dimension_semantics = [#tpu.dimension_semantics<parallel>], iteration_bounds = array<i64: 1>, scalar_prefetch = 0 : i64, scratch_operands = 7 : i64, tpu.core_type = #tpu.core_type<tc>, window_params = [{transform_indices = @transform_0, window_bounds = array<i64: 1, 512, 36>}, {pipeline_mode = #tpu.pipeline_mode<synchronous>, transform_indices = @transform_1, window_bounds = array<i64: 36, 16>}, {pipeline_mode = #tpu.pipeline_mode<synchronous>, transform_indices = @transform_2, window_bounds = array<i64: 1, 16>}, {pipeline_mode = #tpu.pipeline_mode<synchronous>, transform_indices = @transform_3, window_bounds = array<i64: 144, 32>}, {pipeline_mode = #tpu.pipeline_mode<synchronous>, transform_indices = @transform_4, window_bounds = array<i64: 1, 32>}, {pipeline_mode = #tpu.pipeline_mode<synchronous>, transform_indices = @transform_5, window_bounds = array<i64: 288, 32>}, {pipeline_mode = #tpu.pipeline_mode<synchronous>, transform_indices = @transform_6, window_bounds = array<i64: 1, 32>}, {pipeline_mode = #tpu.pipeline_mode<synchronous>, transform_indices = @transform_7, window_bounds = array<i64: 672, 128>}, {pipeline_mode = #tpu.pipeline_mode<synchronous>, transform_indices = @transform_8, window_bounds = array<i64: 1, 128>}, {pipeline_mode = #tpu.pipeline_mode<synchronous>, transform_indices = @transform_9, window_bounds = array<i64: 128, 128>}, {pipeline_mode = #tpu.pipeline_mode<synchronous>, transform_indices = @transform_10, window_bounds = array<i64: 1, 128>}, {pipeline_mode = #tpu.pipeline_mode<synchronous>, transform_indices = @transform_11, window_bounds = array<i64: 128, 2>}, {pipeline_mode = #tpu.pipeline_mode<synchronous>, transform_indices = @transform_12, window_bounds = array<i64: 1, 2>}, {transform_indices = @transform_13, window_bounds = array<i64: 1, 2, 4>}]} {
    %c0 = arith.constant 0 : index
    %c0_0 = arith.constant 0 : index
    %c0_1 = arith.constant 0 : index
    %0 = vector.load %arg1[%c0, %c0_0, %c0_1] : memref<1x512x36xf32, #tpu.memory_space<vmem>>, vector<1x512x36xf32>
    %1 = vector.shape_cast %0 : vector<1x512x36xf32> to vector<512x36xf32>
    %c0_2 = arith.constant 0 : index
    %c0_3 = arith.constant 0 : index
    %2 = vector.load %arg2[%c0_2, %c0_3] : memref<36x16xf32, #tpu.memory_space<vmem>>, vector<36x16xf32>
    %cst = arith.constant dense<0.000000e+00> : vector<512x16xf32>
    %3 = tpu.matmul %1, %2, %cst {dimension_numbers = #tpu.dot_dimension_numbers<[1], [0], [0], [1], [0, 0, 1, 1], [], []>} : vector<512x36xf32>, vector<36x16xf32>, vector<512x16xf32> -> vector<512x16xf32>
    %c0_4 = arith.constant 0 : index
    %c0_5 = arith.constant 0 : index
    %4 = vector.load %arg3[%c0_4, %c0_5] : memref<1x16xf32, #tpu.memory_space<vmem>>, vector<1x16xf32>
    %5 = vector.broadcast %4 : vector<1x16xf32> to vector<512x16xf32>
    %6 = arith.addf %3, %5 : vector<512x16xf32>
    %cst_6 = arith.constant 0.000000e+00 : f32
    %7 = vector.broadcast %cst_6 : f32 to vector<512x16xf32>
    %8 = arith.maximumf %6, %7 : vector<512x16xf32>
    %c0_7 = arith.constant 0 : index
    %c0_8 = arith.constant 0 : index
    %9 = vector.load %arg15[%c0_7, %c0_8] : memref<512x16xf32, #tpu.memory_space<vmem>>, vector<512x16xf32>
    tpu.vector_store %arg15[%c0_7, %c0_8], %8 {strides = array<i32>} : memref<512x16xf32, #tpu.memory_space<vmem>>, vector<512x16xf32>,
    %c0_9 = arith.constant 0 : index
    %c0_10 = arith.constant 0 : index
    %10 = tpu.strided_load %arg15[%c0_9, %c0_10] {strides = array<i32: 2, 1>} : memref<512x16xf32, #tpu.memory_space<vmem>>, vector<248x16xf32>
    %c1 = arith.constant 1 : index
    %c0_11 = arith.constant 0 : index
    %11 = tpu.strided_load %arg15[%c1, %c0_11] {strides = array<i32: 2, 1>} : memref<512x16xf32, #tpu.memory_space<vmem>>, vector<248x16xf32>
    %c16 = arith.constant 16 : index
    %c0_12 = arith.constant 0 : index
    %12 = tpu.strided_load %arg15[%c16, %c0_12] {strides = array<i32: 2, 1>} : memref<512x16xf32, #tpu.memory_space<vmem>>, vector<248x16xf32>
    %c17 = arith.constant 17 : index
    %c0_13 = arith.constant 0 : index
    %13 = tpu.strided_load %arg15[%c17, %c0_13] {strides = array<i32: 2, 1>} : memref<512x16xf32, #tpu.memory_space<vmem>>, vector<248x16xf32>
    %14 = arith.maximumf %10, %11 : vector<248x16xf32>
    %15 = arith.maximumf %12, %13 : vector<248x16xf32>
    %16 = arith.maximumf %14, %15 : vector<248x16xf32>
    %c0_14 = arith.constant 0 : index
    %c0_15 = arith.constant 0 : index
    %17 = vector.load %arg16[%c0_14, %c0_15] : memref<256x16xf32, #tpu.memory_space<vmem>>, vector<248x16xf32>
    tpu.vector_store %arg16[%c0_14, %c0_15], %16 {strides = array<i32>} : memref<256x16xf32, #tpu.memory_space<vmem>>, vector<248x16xf32>,
    %cst_16 = arith.constant 0.000000e+00 : f32
    %18 = vector.broadcast %cst_16 : f32 to vector<11x16xf32>
    %c0_17 = arith.constant 0 : index
    %c0_18 = arith.constant 0 : index
    %19 = vector.load %arg17[%c0_17, %c0_18] : memref<232x16xf32, #tpu.memory_space<vmem>>, vector<11x16xf32>
    tpu.vector_store %arg17[%c0_17, %c0_18], %18 {strides = array<i32>} : memref<232x16xf32, #tpu.memory_space<vmem>>, vector<11x16xf32>,
    %cst_19 = arith.constant 0.000000e+00 : f32
    %20 = vector.broadcast %cst_19 : f32 to vector<2x16xf32>
    %c19 = arith.constant 19 : index
    %c0_20 = arith.constant 0 : index
    %21 = vector.load %arg17[%c19, %c0_20] : memref<232x16xf32, #tpu.memory_space<vmem>>, vector<2x16xf32>
    tpu.vector_store %arg17[%c19, %c0_20], %20 {strides = array<i32>} : memref<232x16xf32, #tpu.memory_space<vmem>>, vector<2x16xf32>,
    %cst_21 = arith.constant 0.000000e+00 : f32
    %22 = vector.broadcast %cst_21 : f32 to vector<2x16xf32>
    %c29 = arith.constant 29 : index
    %c0_22 = arith.constant 0 : index
    %23 = vector.load %arg17[%c29, %c0_22] : memref<232x16xf32, #tpu.memory_space<vmem>>, vector<2x16xf32>
    tpu.vector_store %arg17[%c29, %c0_22], %22 {strides = array<i32>} : memref<232x16xf32, #tpu.memory_space<vmem>>, vector<2x16xf32>,
    %cst_23 = arith.constant 0.000000e+00 : f32
    %24 = vector.broadcast %cst_23 : f32 to vector<2x16xf32>
    %c39 = arith.constant 39 : index
    %c0_24 = arith.constant 0 : index
    %25 = vector.load %arg17[%c39, %c0_24] : memref<232x16xf32, #tpu.memory_space<vmem>>, vector<2x16xf32>
    tpu.vector_store %arg17[%c39, %c0_24], %24 {strides = array<i32>} : memref<232x16xf32, #tpu.memory_space<vmem>>, vector<2x16xf32>,
    %cst_25 = arith.constant 0.000000e+00 : f32
    %26 = vector.broadcast %cst_25 : f32 to vector<2x16xf32>
    %c49 = arith.constant 49 : index
    %c0_26 = arith.constant 0 : index
    %27 = vector.load %arg17[%c49, %c0_26] : memref<232x16xf32, #tpu.memory_space<vmem>>, vector<2x16xf32>
    tpu.vector_store %arg17[%c49, %c0_26], %26 {strides = array<i32>} : memref<232x16xf32, #tpu.memory_space<vmem>>, vector<2x16xf32>,
    %cst_27 = arith.constant 0.000000e+00 : f32
    %28 = vector.broadcast %cst_27 : f32 to vector<2x16xf32>
    %c59 = arith.constant 59 : index
    %c0_28 = arith.constant 0 : index
    %29 = vector.load %arg17[%c59, %c0_28] : memref<232x16xf32, #tpu.memory_space<vmem>>, vector<2x16xf32>
    tpu.vector_store %arg17[%c59, %c0_28], %28 {strides = array<i32>} : memref<232x16xf32, #tpu.memory_space<vmem>>, vector<2x16xf32>,
    %cst_29 = arith.constant 0.000000e+00 : f32
    %30 = vector.broadcast %cst_29 : f32 to vector<2x16xf32>
    %c69 = arith.constant 69 : index
    %c0_30 = arith.constant 0 : index
    %31 = vector.load %arg17[%c69, %c0_30] : memref<232x16xf32, #tpu.memory_space<vmem>>, vector<2x16xf32>
    tpu.vector_store %arg17[%c69, %c0_30], %30 {strides = array<i32>} : memref<232x16xf32, #tpu.memory_space<vmem>>, vector<2x16xf32>,
    %cst_31 = arith.constant 0.000000e+00 : f32
    %32 = vector.broadcast %cst_31 : f32 to vector<2x16xf32>
    %c79 = arith.constant 79 : index
    %c0_32 = arith.constant 0 : index
    %33 = vector.load %arg17[%c79, %c0_32] : memref<232x16xf32, #tpu.memory_space<vmem>>, vector<2x16xf32>
    tpu.vector_store %arg17[%c79, %c0_32], %32 {strides = array<i32>} : memref<232x16xf32, #tpu.memory_space<vmem>>, vector<2x16xf32>,
    %cst_33 = arith.constant 0.000000e+00 : f32
    %34 = vector.broadcast %cst_33 : f32 to vector<15x16xf32>
    %c89 = arith.constant 89 : index
    %c0_34 = arith.constant 0 : index
    %35 = vector.load %arg17[%c89, %c0_34] : memref<232x16xf32, #tpu.memory_space<vmem>>, vector<15x16xf32>
    tpu.vector_store %arg17[%c89, %c0_34], %34 {strides = array<i32>} : memref<232x16xf32, #tpu.memory_space<vmem>>, vector<15x16xf32>,
    %c0_35 = arith.constant 0 : index
    %c0_36 = arith.constant 0 : index
    %36 = vector.load %arg16[%c0_35, %c0_36] : memref<256x16xf32, #tpu.memory_space<vmem>>, vector<8x16xf32>
    %c11 = arith.constant 11 : index
    %c0_37 = arith.constant 0 : index
    %37 = vector.load %arg17[%c11, %c0_37] : memref<232x16xf32, #tpu.memory_space<vmem>>, vector<8x16xf32>
    tpu.vector_store %arg17[%c11, %c0_37], %36 {strides = array<i32>} : memref<232x16xf32, #tpu.memory_space<vmem>>, vector<8x16xf32>,
    %c16_38 = arith.constant 16 : index
    %c0_39 = arith.constant 0 : index
    %38 = vector.load %arg16[%c16_38, %c0_39] : memref<256x16xf32, #tpu.memory_space<vmem>>, vector<8x16xf32>
    %c21 = arith.constant 21 : index
    %c0_40 = arith.constant 0 : index
    %39 = vector.load %arg17[%c21, %c0_40] : memref<232x16xf32, #tpu.memory_space<vmem>>, vector<8x16xf32>
    tpu.vector_store %arg17[%c21, %c0_40], %38 {strides = array<i32>} : memref<232x16xf32, #tpu.memory_space<vmem>>, vector<8x16xf32>,
    %c32 = arith.constant 32 : index
    %c0_41 = arith.constant 0 : index
    %40 = vector.load %arg16[%c32, %c0_41] : memref<256x16xf32, #tpu.memory_space<vmem>>, vector<8x16xf32>
    %c31 = arith.constant 31 : index
    %c0_42 = arith.constant 0 : index
    %41 = vector.load %arg17[%c31, %c0_42] : memref<232x16xf32, #tpu.memory_space<vmem>>, vector<8x16xf32>
    tpu.vector_store %arg17[%c31, %c0_42], %40 {strides = array<i32>} : memref<232x16xf32, #tpu.memory_space<vmem>>, vector<8x16xf32>,
    %c48 = arith.constant 48 : index
    %c0_43 = arith.constant 0 : index
    %42 = vector.load %arg16[%c48, %c0_43] : memref<256x16xf32, #tpu.memory_space<vmem>>, vector<8x16xf32>
    %c41 = arith.constant 41 : index
    %c0_44 = arith.constant 0 : index
    %43 = vector.load %arg17[%c41, %c0_44] : memref<232x16xf32, #tpu.memory_space<vmem>>, vector<8x16xf32>
    tpu.vector_store %arg17[%c41, %c0_44], %42 {strides = array<i32>} : memref<232x16xf32, #tpu.memory_space<vmem>>, vector<8x16xf32>,
    %c64 = arith.constant 64 : index
    %c0_45 = arith.constant 0 : index
    %44 = vector.load %arg16[%c64, %c0_45] : memref<256x16xf32, #tpu.memory_space<vmem>>, vector<8x16xf32>
    %c51 = arith.constant 51 : index
    %c0_46 = arith.constant 0 : index
    %45 = vector.load %arg17[%c51, %c0_46] : memref<232x16xf32, #tpu.memory_space<vmem>>, vector<8x16xf32>
    tpu.vector_store %arg17[%c51, %c0_46], %44 {strides = array<i32>} : memref<232x16xf32, #tpu.memory_space<vmem>>, vector<8x16xf32>,
    %c80 = arith.constant 80 : index
    %c0_47 = arith.constant 0 : index
    %46 = vector.load %arg16[%c80, %c0_47] : memref<256x16xf32, #tpu.memory_space<vmem>>, vector<8x16xf32>
    %c61 = arith.constant 61 : index
    %c0_48 = arith.constant 0 : index
    %47 = vector.load %arg17[%c61, %c0_48] : memref<232x16xf32, #tpu.memory_space<vmem>>, vector<8x16xf32>
    tpu.vector_store %arg17[%c61, %c0_48], %46 {strides = array<i32>} : memref<232x16xf32, #tpu.memory_space<vmem>>, vector<8x16xf32>,
    %c96 = arith.constant 96 : index
    %c0_49 = arith.constant 0 : index
    %48 = vector.load %arg16[%c96, %c0_49] : memref<256x16xf32, #tpu.memory_space<vmem>>, vector<8x16xf32>
    %c71 = arith.constant 71 : index
    %c0_50 = arith.constant 0 : index
    %49 = vector.load %arg17[%c71, %c0_50] : memref<232x16xf32, #tpu.memory_space<vmem>>, vector<8x16xf32>
    tpu.vector_store %arg17[%c71, %c0_50], %48 {strides = array<i32>} : memref<232x16xf32, #tpu.memory_space<vmem>>, vector<8x16xf32>,
    %c112 = arith.constant 112 : index
    %c0_51 = arith.constant 0 : index
    %50 = vector.load %arg16[%c112, %c0_51] : memref<256x16xf32, #tpu.memory_space<vmem>>, vector<8x16xf32>
    %c81 = arith.constant 81 : index
    %c0_52 = arith.constant 0 : index
    %51 = vector.load %arg17[%c81, %c0_52] : memref<232x16xf32, #tpu.memory_space<vmem>>, vector<8x16xf32>
    tpu.vector_store %arg17[%c81, %c0_52], %50 {strides = array<i32>} : memref<232x16xf32, #tpu.memory_space<vmem>>, vector<8x16xf32>,
    %cst_53 = arith.constant 0.000000e+00 : f32
    %52 = vector.broadcast %cst_53 : f32 to vector<11x16xf32>
    %c104 = arith.constant 104 : index
    %c0_54 = arith.constant 0 : index
    %53 = vector.load %arg17[%c104, %c0_54] : memref<232x16xf32, #tpu.memory_space<vmem>>, vector<11x16xf32>
    tpu.vector_store %arg17[%c104, %c0_54], %52 {strides = array<i32>} : memref<232x16xf32, #tpu.memory_space<vmem>>, vector<11x16xf32>,
    %cst_55 = arith.constant 0.000000e+00 : f32
    %54 = vector.broadcast %cst_55 : f32 to vector<2x16xf32>
    %c123 = arith.constant 123 : index
    %c0_56 = arith.constant 0 : index
    %55 = vector.load %arg17[%c123, %c0_56] : memref<232x16xf32, #tpu.memory_space<vmem>>, vector<2x16xf32>
    tpu.vector_store %arg17[%c123, %c0_56], %54 {strides = array<i32>} : memref<232x16xf32, #tpu.memory_space<vmem>>, vector<2x16xf32>,
    %cst_57 = arith.constant 0.000000e+00 : f32
    %56 = vector.broadcast %cst_57 : f32 to vector<2x16xf32>
    %c133 = arith.constant 133 : index
    %c0_58 = arith.constant 0 : index
    %57 = vector.load %arg17[%c133, %c0_58] : memref<232x16xf32, #tpu.memory_space<vmem>>, vector<2x16xf32>
    tpu.vector_store %arg17[%c133, %c0_58], %56 {strides = array<i32>} : memref<232x16xf32, #tpu.memory_space<vmem>>, vector<2x16xf32>,
    %cst_59 = arith.constant 0.000000e+00 : f32
    %58 = vector.broadcast %cst_59 : f32 to vector<2x16xf32>
    %c143 = arith.constant 143 : index
    %c0_60 = arith.constant 0 : index
    %59 = vector.load %arg17[%c143, %c0_60] : memref<232x16xf32, #tpu.memory_space<vmem>>, vector<2x16xf32>
    tpu.vector_store %arg17[%c143, %c0_60], %58 {strides = array<i32>} : memref<232x16xf32, #tpu.memory_space<vmem>>, vector<2x16xf32>,
    %cst_61 = arith.constant 0.000000e+00 : f32
    %60 = vector.broadcast %cst_61 : f32 to vector<2x16xf32>
    %c153 = arith.constant 153 : index
    %c0_62 = arith.constant 0 : index
    %61 = vector.load %arg17[%c153, %c0_62] : memref<232x16xf32, #tpu.memory_space<vmem>>, vector<2x16xf32>
    tpu.vector_store %arg17[%c153, %c0_62], %60 {strides = array<i32>} : memref<232x16xf32, #tpu.memory_space<vmem>>, vector<2x16xf32>,
    %cst_63 = arith.constant 0.000000e+00 : f32
    %62 = vector.broadcast %cst_63 : f32 to vector<2x16xf32>
    %c163 = arith.constant 163 : index
    %c0_64 = arith.constant 0 : index
    %63 = vector.load %arg17[%c163, %c0_64] : memref<232x16xf32, #tpu.memory_space<vmem>>, vector<2x16xf32>
    tpu.vector_store %arg17[%c163, %c0_64], %62 {strides = array<i32>} : memref<232x16xf32, #tpu.memory_space<vmem>>, vector<2x16xf32>,
    %cst_65 = arith.constant 0.000000e+00 : f32
    %64 = vector.broadcast %cst_65 : f32 to vector<2x16xf32>
    %c173 = arith.constant 173 : index
    %c0_66 = arith.constant 0 : index
    %65 = vector.load %arg17[%c173, %c0_66] : memref<232x16xf32, #tpu.memory_space<vmem>>, vector<2x16xf32>
    tpu.vector_store %arg17[%c173, %c0_66], %64 {strides = array<i32>} : memref<232x16xf32, #tpu.memory_space<vmem>>, vector<2x16xf32>,
    %cst_67 = arith.constant 0.000000e+00 : f32
    %66 = vector.broadcast %cst_67 : f32 to vector<2x16xf32>
    %c183 = arith.constant 183 : index
    %c0_68 = arith.constant 0 : index
    %67 = vector.load %arg17[%c183, %c0_68] : memref<232x16xf32, #tpu.memory_space<vmem>>, vector<2x16xf32>
    tpu.vector_store %arg17[%c183, %c0_68], %66 {strides = array<i32>} : memref<232x16xf32, #tpu.memory_space<vmem>>, vector<2x16xf32>,
    %cst_69 = arith.constant 0.000000e+00 : f32
    %68 = vector.broadcast %cst_69 : f32 to vector<15x16xf32>
    %c193 = arith.constant 193 : index
    %c0_70 = arith.constant 0 : index
    %69 = vector.load %arg17[%c193, %c0_70] : memref<232x16xf32, #tpu.memory_space<vmem>>, vector<15x16xf32>
    tpu.vector_store %arg17[%c193, %c0_70], %68 {strides = array<i32>} : memref<232x16xf32, #tpu.memory_space<vmem>>, vector<15x16xf32>,
    %c128 = arith.constant 128 : index
    %c0_71 = arith.constant 0 : index
    %70 = vector.load %arg16[%c128, %c0_71] : memref<256x16xf32, #tpu.memory_space<vmem>>, vector<8x16xf32>
    %c115 = arith.constant 115 : index
    %c0_72 = arith.constant 0 : index
    %71 = vector.load %arg17[%c115, %c0_72] : memref<232x16xf32, #tpu.memory_space<vmem>>, vector<8x16xf32>
    tpu.vector_store %arg17[%c115, %c0_72], %70 {strides = array<i32>} : memref<232x16xf32, #tpu.memory_space<vmem>>, vector<8x16xf32>,
    %c144 = arith.constant 144 : index
    %c0_73 = arith.constant 0 : index
    %72 = vector.load %arg16[%c144, %c0_73] : memref<256x16xf32, #tpu.memory_space<vmem>>, vector<8x16xf32>
    %c125 = arith.constant 125 : index
    %c0_74 = arith.constant 0 : index
    %73 = vector.load %arg17[%c125, %c0_74] : memref<232x16xf32, #tpu.memory_space<vmem>>, vector<8x16xf32>
    tpu.vector_store %arg17[%c125, %c0_74], %72 {strides = array<i32>} : memref<232x16xf32, #tpu.memory_space<vmem>>, vector<8x16xf32>,
    %c160 = arith.constant 160 : index
    %c0_75 = arith.constant 0 : index
    %74 = vector.load %arg16[%c160, %c0_75] : memref<256x16xf32, #tpu.memory_space<vmem>>, vector<8x16xf32>
    %c135 = arith.constant 135 : index
    %c0_76 = arith.constant 0 : index
    %75 = vector.load %arg17[%c135, %c0_76] : memref<232x16xf32, #tpu.memory_space<vmem>>, vector<8x16xf32>
    tpu.vector_store %arg17[%c135, %c0_76], %74 {strides = array<i32>} : memref<232x16xf32, #tpu.memory_space<vmem>>, vector<8x16xf32>,
    %c176 = arith.constant 176 : index
    %c0_77 = arith.constant 0 : index
    %76 = vector.load %arg16[%c176, %c0_77] : memref<256x16xf32, #tpu.memory_space<vmem>>, vector<8x16xf32>
    %c145 = arith.constant 145 : index
    %c0_78 = arith.constant 0 : index
    %77 = vector.load %arg17[%c145, %c0_78] : memref<232x16xf32, #tpu.memory_space<vmem>>, vector<8x16xf32>
    tpu.vector_store %arg17[%c145, %c0_78], %76 {strides = array<i32>} : memref<232x16xf32, #tpu.memory_space<vmem>>, vector<8x16xf32>,
    %c192 = arith.constant 192 : index
    %c0_79 = arith.constant 0 : index
    %78 = vector.load %arg16[%c192, %c0_79] : memref<256x16xf32, #tpu.memory_space<vmem>>, vector<8x16xf32>
    %c155 = arith.constant 155 : index
    %c0_80 = arith.constant 0 : index
    %79 = vector.load %arg17[%c155, %c0_80] : memref<232x16xf32, #tpu.memory_space<vmem>>, vector<8x16xf32>
    tpu.vector_store %arg17[%c155, %c0_80], %78 {strides = array<i32>} : memref<232x16xf32, #tpu.memory_space<vmem>>, vector<8x16xf32>,
    %c208 = arith.constant 208 : index
    %c0_81 = arith.constant 0 : index
    %80 = vector.load %arg16[%c208, %c0_81] : memref<256x16xf32, #tpu.memory_space<vmem>>, vector<8x16xf32>
    %c165 = arith.constant 165 : index
    %c0_82 = arith.constant 0 : index
    %81 = vector.load %arg17[%c165, %c0_82] : memref<232x16xf32, #tpu.memory_space<vmem>>, vector<8x16xf32>
    tpu.vector_store %arg17[%c165, %c0_82], %80 {strides = array<i32>} : memref<232x16xf32, #tpu.memory_space<vmem>>, vector<8x16xf32>,
    %c224 = arith.constant 224 : index
    %c0_83 = arith.constant 0 : index
    %82 = vector.load %arg16[%c224, %c0_83] : memref<256x16xf32, #tpu.memory_space<vmem>>, vector<8x16xf32>
    %c175 = arith.constant 175 : index
    %c0_84 = arith.constant 0 : index
    %83 = vector.load %arg17[%c175, %c0_84] : memref<232x16xf32, #tpu.memory_space<vmem>>, vector<8x16xf32>
    tpu.vector_store %arg17[%c175, %c0_84], %82 {strides = array<i32>} : memref<232x16xf32, #tpu.memory_space<vmem>>, vector<8x16xf32>,
    %c240 = arith.constant 240 : index
    %c0_85 = arith.constant 0 : index
    %84 = vector.load %arg16[%c240, %c0_85] : memref<256x16xf32, #tpu.memory_space<vmem>>, vector<8x16xf32>
    %c185 = arith.constant 185 : index
    %c0_86 = arith.constant 0 : index
    %85 = vector.load %arg17[%c185, %c0_86] : memref<232x16xf32, #tpu.memory_space<vmem>>, vector<8x16xf32>
    tpu.vector_store %arg17[%c185, %c0_86], %84 {strides = array<i32>} : memref<232x16xf32, #tpu.memory_space<vmem>>, vector<8x16xf32>,
    %cst_87 = arith.constant 0.000000e+00 : f32
    %86 = vector.broadcast %cst_87 : f32 to vector<24x16xf32>
    %c208_88 = arith.constant 208 : index
    %c0_89 = arith.constant 0 : index
    %87 = vector.load %arg17[%c208_88, %c0_89] : memref<232x16xf32, #tpu.memory_space<vmem>>, vector<24x16xf32>
    tpu.vector_store %arg17[%c208_88, %c0_89], %86 {strides = array<i32>} : memref<232x16xf32, #tpu.memory_space<vmem>>, vector<24x16xf32>,
    %c0_90 = arith.constant 0 : index
    %c0_91 = arith.constant 0 : index
    %88 = vector.load %arg17[%c0_90, %c0_91] : memref<232x16xf32, #tpu.memory_space<vmem>>, vector<208x16xf32>
    %c0_92 = arith.constant 0 : index
    %c0_93 = arith.constant 0 : index
    %89 = vector.load %arg4[%c0_92, %c0_93] : memref<144x32xf32, #tpu.memory_space<vmem>>, vector<16x32xf32>
    %cst_94 = arith.constant dense<0.000000e+00> : vector<208x32xf32>
    %90 = tpu.matmul %88, %89, %cst_94 {dimension_numbers = #tpu.dot_dimension_numbers<[1], [0], [0], [1], [0, 0, 1, 1], [], []>} : vector<208x16xf32>, vector<16x32xf32>, vector<208x32xf32> -> vector<208x32xf32>
    %c1_95 = arith.constant 1 : index
    %c0_96 = arith.constant 0 : index
    %91 = vector.load %arg17[%c1_95, %c0_96] : memref<232x16xf32, #tpu.memory_space<vmem>>, vector<208x16xf32>
    %c16_97 = arith.constant 16 : index
    %c0_98 = arith.constant 0 : index
    %92 = vector.load %arg4[%c16_97, %c0_98] : memref<144x32xf32, #tpu.memory_space<vmem>>, vector<16x32xf32>
    %cst_99 = arith.constant dense<0.000000e+00> : vector<208x32xf32>
    %93 = tpu.matmul %91, %92, %cst_99 {dimension_numbers = #tpu.dot_dimension_numbers<[1], [0], [0], [1], [0, 0, 1, 1], [], []>} : vector<208x16xf32>, vector<16x32xf32>, vector<208x32xf32> -> vector<208x32xf32>
    %94 = arith.addf %90, %93 : vector<208x32xf32>
    %c2 = arith.constant 2 : index
    %c0_100 = arith.constant 0 : index
    %95 = vector.load %arg17[%c2, %c0_100] : memref<232x16xf32, #tpu.memory_space<vmem>>, vector<208x16xf32>
    %c32_101 = arith.constant 32 : index
    %c0_102 = arith.constant 0 : index
    %96 = vector.load %arg4[%c32_101, %c0_102] : memref<144x32xf32, #tpu.memory_space<vmem>>, vector<16x32xf32>
    %cst_103 = arith.constant dense<0.000000e+00> : vector<208x32xf32>
    %97 = tpu.matmul %95, %96, %cst_103 {dimension_numbers = #tpu.dot_dimension_numbers<[1], [0], [0], [1], [0, 0, 1, 1], [], []>} : vector<208x16xf32>, vector<16x32xf32>, vector<208x32xf32> -> vector<208x32xf32>
    %98 = arith.addf %94, %97 : vector<208x32xf32>
    %c10 = arith.constant 10 : index
    %c0_104 = arith.constant 0 : index
    %99 = vector.load %arg17[%c10, %c0_104] : memref<232x16xf32, #tpu.memory_space<vmem>>, vector<208x16xf32>
    %c48_105 = arith.constant 48 : index
    %c0_106 = arith.constant 0 : index
    %100 = vector.load %arg4[%c48_105, %c0_106] : memref<144x32xf32, #tpu.memory_space<vmem>>, vector<16x32xf32>
    %cst_107 = arith.constant dense<0.000000e+00> : vector<208x32xf32>
    %101 = tpu.matmul %99, %100, %cst_107 {dimension_numbers = #tpu.dot_dimension_numbers<[1], [0], [0], [1], [0, 0, 1, 1], [], []>} : vector<208x16xf32>, vector<16x32xf32>, vector<208x32xf32> -> vector<208x32xf32>
    %102 = arith.addf %98, %101 : vector<208x32xf32>
    %c11_108 = arith.constant 11 : index
    %c0_109 = arith.constant 0 : index
    %103 = vector.load %arg17[%c11_108, %c0_109] : memref<232x16xf32, #tpu.memory_space<vmem>>, vector<208x16xf32>
    %c64_110 = arith.constant 64 : index
    %c0_111 = arith.constant 0 : index
    %104 = vector.load %arg4[%c64_110, %c0_111] : memref<144x32xf32, #tpu.memory_space<vmem>>, vector<16x32xf32>
    %cst_112 = arith.constant dense<0.000000e+00> : vector<208x32xf32>
    %105 = tpu.matmul %103, %104, %cst_112 {dimension_numbers = #tpu.dot_dimension_numbers<[1], [0], [0], [1], [0, 0, 1, 1], [], []>} : vector<208x16xf32>, vector<16x32xf32>, vector<208x32xf32> -> vector<208x32xf32>
    %106 = arith.addf %102, %105 : vector<208x32xf32>
    %c12 = arith.constant 12 : index
    %c0_113 = arith.constant 0 : index
    %107 = vector.load %arg17[%c12, %c0_113] : memref<232x16xf32, #tpu.memory_space<vmem>>, vector<208x16xf32>
    %c80_114 = arith.constant 80 : index
    %c0_115 = arith.constant 0 : index
    %108 = vector.load %arg4[%c80_114, %c0_115] : memref<144x32xf32, #tpu.memory_space<vmem>>, vector<16x32xf32>
    %cst_116 = arith.constant dense<0.000000e+00> : vector<208x32xf32>
    %109 = tpu.matmul %107, %108, %cst_116 {dimension_numbers = #tpu.dot_dimension_numbers<[1], [0], [0], [1], [0, 0, 1, 1], [], []>} : vector<208x16xf32>, vector<16x32xf32>, vector<208x32xf32> -> vector<208x32xf32>
    %110 = arith.addf %106, %109 : vector<208x32xf32>
    %c20 = arith.constant 20 : index
    %c0_117 = arith.constant 0 : index
    %111 = vector.load %arg17[%c20, %c0_117] : memref<232x16xf32, #tpu.memory_space<vmem>>, vector<208x16xf32>
    %c96_118 = arith.constant 96 : index
    %c0_119 = arith.constant 0 : index
    %112 = vector.load %arg4[%c96_118, %c0_119] : memref<144x32xf32, #tpu.memory_space<vmem>>, vector<16x32xf32>
    %cst_120 = arith.constant dense<0.000000e+00> : vector<208x32xf32>
    %113 = tpu.matmul %111, %112, %cst_120 {dimension_numbers = #tpu.dot_dimension_numbers<[1], [0], [0], [1], [0, 0, 1, 1], [], []>} : vector<208x16xf32>, vector<16x32xf32>, vector<208x32xf32> -> vector<208x32xf32>
    %114 = arith.addf %110, %113 : vector<208x32xf32>
    %c21_121 = arith.constant 21 : index
    %c0_122 = arith.constant 0 : index
    %115 = vector.load %arg17[%c21_121, %c0_122] : memref<232x16xf32, #tpu.memory_space<vmem>>, vector<208x16xf32>
    %c112_123 = arith.constant 112 : index
    %c0_124 = arith.constant 0 : index
    %116 = vector.load %arg4[%c112_123, %c0_124] : memref<144x32xf32, #tpu.memory_space<vmem>>, vector<16x32xf32>
    %cst_125 = arith.constant dense<0.000000e+00> : vector<208x32xf32>
    %117 = tpu.matmul %115, %116, %cst_125 {dimension_numbers = #tpu.dot_dimension_numbers<[1], [0], [0], [1], [0, 0, 1, 1], [], []>} : vector<208x16xf32>, vector<16x32xf32>, vector<208x32xf32> -> vector<208x32xf32>
    %118 = arith.addf %114, %117 : vector<208x32xf32>
    %c22 = arith.constant 22 : index
    %c0_126 = arith.constant 0 : index
    %119 = vector.load %arg17[%c22, %c0_126] : memref<232x16xf32, #tpu.memory_space<vmem>>, vector<208x16xf32>
    %c128_127 = arith.constant 128 : index
    %c0_128 = arith.constant 0 : index
    %120 = vector.load %arg4[%c128_127, %c0_128] : memref<144x32xf32, #tpu.memory_space<vmem>>, vector<16x32xf32>
    %cst_129 = arith.constant dense<0.000000e+00> : vector<208x32xf32>
    %121 = tpu.matmul %119, %120, %cst_129 {dimension_numbers = #tpu.dot_dimension_numbers<[1], [0], [0], [1], [0, 0, 1, 1], [], []>} : vector<208x16xf32>, vector<16x32xf32>, vector<208x32xf32> -> vector<208x32xf32>
    %122 = arith.addf %118, %121 : vector<208x32xf32>
    %c0_130 = arith.constant 0 : index
    %c0_131 = arith.constant 0 : index
    %123 = vector.load %arg5[%c0_130, %c0_131] : memref<1x32xf32, #tpu.memory_space<vmem>>, vector<1x32xf32>
    %124 = vector.broadcast %123 : vector<1x32xf32> to vector<208x32xf32>
    %125 = arith.addf %122, %124 : vector<208x32xf32>
    %cst_132 = arith.constant 0.000000e+00 : f32
    %126 = vector.broadcast %cst_132 : f32 to vector<208x32xf32>
    %127 = arith.maximumf %125, %126 : vector<208x32xf32>
    %c0_133 = arith.constant 0 : index
    %c0_134 = arith.constant 0 : index
    %128 = vector.load %arg18[%c0_133, %c0_134] : memref<208x32xf32, #tpu.memory_space<vmem>>, vector<208x32xf32>
    tpu.vector_store %arg18[%c0_133, %c0_134], %127 {strides = array<i32>} : memref<208x32xf32, #tpu.memory_space<vmem>>, vector<208x32xf32>,
    %c0_135 = arith.constant 0 : index
    %c0_136 = arith.constant 0 : index
    %129 = tpu.strided_load %arg18[%c0_135, %c0_136] {strides = array<i32: 2, 1>} : memref<208x32xf32, #tpu.memory_space<vmem>>, vector<88x32xf32>
    %c1_137 = arith.constant 1 : index
    %c0_138 = arith.constant 0 : index
    %130 = tpu.strided_load %arg18[%c1_137, %c0_138] {strides = array<i32: 2, 1>} : memref<208x32xf32, #tpu.memory_space<vmem>>, vector<88x32xf32>
    %c10_139 = arith.constant 10 : index
    %c0_140 = arith.constant 0 : index
    %131 = tpu.strided_load %arg18[%c10_139, %c0_140] {strides = array<i32: 2, 1>} : memref<208x32xf32, #tpu.memory_space<vmem>>, vector<88x32xf32>
    %c11_141 = arith.constant 11 : index
    %c0_142 = arith.constant 0 : index
    %132 = tpu.strided_load %arg18[%c11_141, %c0_142] {strides = array<i32: 2, 1>} : memref<208x32xf32, #tpu.memory_space<vmem>>, vector<88x32xf32>
    %133 = arith.maximumf %129, %130 : vector<88x32xf32>
    %134 = arith.maximumf %131, %132 : vector<88x32xf32>
    %135 = arith.maximumf %133, %134 : vector<88x32xf32>
    %c0_143 = arith.constant 0 : index
    %c0_144 = arith.constant 0 : index
    %136 = vector.load %arg19[%c0_143, %c0_144] : memref<104x32xf32, #tpu.memory_space<vmem>>, vector<88x32xf32>
    tpu.vector_store %arg19[%c0_143, %c0_144], %135 {strides = array<i32>} : memref<104x32xf32, #tpu.memory_space<vmem>>, vector<88x32xf32>,
    %cst_145 = arith.constant 0.000000e+00 : f32
    %137 = vector.broadcast %cst_145 : f32 to vector<7x32xf32>
    %c0_146 = arith.constant 0 : index
    %c0_147 = arith.constant 0 : index
    %138 = vector.load %arg20[%c0_146, %c0_147] : memref<96x32xf32, #tpu.memory_space<vmem>>, vector<7x32xf32>
    tpu.vector_store %arg20[%c0_146, %c0_147], %137 {strides = array<i32>} : memref<96x32xf32, #tpu.memory_space<vmem>>, vector<7x32xf32>,
    %cst_148 = arith.constant 0.000000e+00 : f32
    %139 = vector.broadcast %cst_148 : f32 to vector<2x32xf32>
    %c11_149 = arith.constant 11 : index
    %c0_150 = arith.constant 0 : index
    %140 = vector.load %arg20[%c11_149, %c0_150] : memref<96x32xf32, #tpu.memory_space<vmem>>, vector<2x32xf32>
    tpu.vector_store %arg20[%c11_149, %c0_150], %139 {strides = array<i32>} : memref<96x32xf32, #tpu.memory_space<vmem>>, vector<2x32xf32>,
    %cst_151 = arith.constant 0.000000e+00 : f32
    %141 = vector.broadcast %cst_151 : f32 to vector<2x32xf32>
    %c17_152 = arith.constant 17 : index
    %c0_153 = arith.constant 0 : index
    %142 = vector.load %arg20[%c17_152, %c0_153] : memref<96x32xf32, #tpu.memory_space<vmem>>, vector<2x32xf32>
    tpu.vector_store %arg20[%c17_152, %c0_153], %141 {strides = array<i32>} : memref<96x32xf32, #tpu.memory_space<vmem>>, vector<2x32xf32>,
    %cst_154 = arith.constant 0.000000e+00 : f32
    %143 = vector.broadcast %cst_154 : f32 to vector<2x32xf32>
    %c23 = arith.constant 23 : index
    %c0_155 = arith.constant 0 : index
    %144 = vector.load %arg20[%c23, %c0_155] : memref<96x32xf32, #tpu.memory_space<vmem>>, vector<2x32xf32>
    tpu.vector_store %arg20[%c23, %c0_155], %143 {strides = array<i32>} : memref<96x32xf32, #tpu.memory_space<vmem>>, vector<2x32xf32>,
    %cst_156 = arith.constant 0.000000e+00 : f32
    %145 = vector.broadcast %cst_156 : f32 to vector<11x32xf32>
    %c29_157 = arith.constant 29 : index
    %c0_158 = arith.constant 0 : index
    %146 = vector.load %arg20[%c29_157, %c0_158] : memref<96x32xf32, #tpu.memory_space<vmem>>, vector<11x32xf32>
    tpu.vector_store %arg20[%c29_157, %c0_158], %145 {strides = array<i32>} : memref<96x32xf32, #tpu.memory_space<vmem>>, vector<11x32xf32>,
    %c0_159 = arith.constant 0 : index
    %c0_160 = arith.constant 0 : index
    %147 = vector.load %arg19[%c0_159, %c0_160] : memref<104x32xf32, #tpu.memory_space<vmem>>, vector<4x32xf32>
    %c7 = arith.constant 7 : index
    %c0_161 = arith.constant 0 : index
    %148 = vector.load %arg20[%c7, %c0_161] : memref<96x32xf32, #tpu.memory_space<vmem>>, vector<4x32xf32>
    tpu.vector_store %arg20[%c7, %c0_161], %147 {strides = array<i32>} : memref<96x32xf32, #tpu.memory_space<vmem>>, vector<4x32xf32>,
    %c10_162 = arith.constant 10 : index
    %c0_163 = arith.constant 0 : index
    %149 = vector.load %arg19[%c10_162, %c0_163] : memref<104x32xf32, #tpu.memory_space<vmem>>, vector<4x32xf32>
    %c13 = arith.constant 13 : index
    %c0_164 = arith.constant 0 : index
    %150 = vector.load %arg20[%c13, %c0_164] : memref<96x32xf32, #tpu.memory_space<vmem>>, vector<4x32xf32>
    tpu.vector_store %arg20[%c13, %c0_164], %149 {strides = array<i32>} : memref<96x32xf32, #tpu.memory_space<vmem>>, vector<4x32xf32>,
    %c20_165 = arith.constant 20 : index
    %c0_166 = arith.constant 0 : index
    %151 = vector.load %arg19[%c20_165, %c0_166] : memref<104x32xf32, #tpu.memory_space<vmem>>, vector<4x32xf32>
    %c19_167 = arith.constant 19 : index
    %c0_168 = arith.constant 0 : index
    %152 = vector.load %arg20[%c19_167, %c0_168] : memref<96x32xf32, #tpu.memory_space<vmem>>, vector<4x32xf32>
    tpu.vector_store %arg20[%c19_167, %c0_168], %151 {strides = array<i32>} : memref<96x32xf32, #tpu.memory_space<vmem>>, vector<4x32xf32>,
    %c30 = arith.constant 30 : index
    %c0_169 = arith.constant 0 : index
    %153 = vector.load %arg19[%c30, %c0_169] : memref<104x32xf32, #tpu.memory_space<vmem>>, vector<4x32xf32>
    %c25 = arith.constant 25 : index
    %c0_170 = arith.constant 0 : index
    %154 = vector.load %arg20[%c25, %c0_170] : memref<96x32xf32, #tpu.memory_space<vmem>>, vector<4x32xf32>
    tpu.vector_store %arg20[%c25, %c0_170], %153 {strides = array<i32>} : memref<96x32xf32, #tpu.memory_space<vmem>>, vector<4x32xf32>,
    %cst_171 = arith.constant 0.000000e+00 : f32
    %155 = vector.broadcast %cst_171 : f32 to vector<7x32xf32>
    %c40 = arith.constant 40 : index
    %c0_172 = arith.constant 0 : index
    %156 = vector.load %arg20[%c40, %c0_172] : memref<96x32xf32, #tpu.memory_space<vmem>>, vector<7x32xf32>
    tpu.vector_store %arg20[%c40, %c0_172], %155 {strides = array<i32>} : memref<96x32xf32, #tpu.memory_space<vmem>>, vector<7x32xf32>,
    %cst_173 = arith.constant 0.000000e+00 : f32
    %157 = vector.broadcast %cst_173 : f32 to vector<2x32xf32>
    %c51_174 = arith.constant 51 : index
    %c0_175 = arith.constant 0 : index
    %158 = vector.load %arg20[%c51_174, %c0_175] : memref<96x32xf32, #tpu.memory_space<vmem>>, vector<2x32xf32>
    tpu.vector_store %arg20[%c51_174, %c0_175], %157 {strides = array<i32>} : memref<96x32xf32, #tpu.memory_space<vmem>>, vector<2x32xf32>,
    %cst_176 = arith.constant 0.000000e+00 : f32
    %159 = vector.broadcast %cst_176 : f32 to vector<2x32xf32>
    %c57 = arith.constant 57 : index
    %c0_177 = arith.constant 0 : index
    %160 = vector.load %arg20[%c57, %c0_177] : memref<96x32xf32, #tpu.memory_space<vmem>>, vector<2x32xf32>
    tpu.vector_store %arg20[%c57, %c0_177], %159 {strides = array<i32>} : memref<96x32xf32, #tpu.memory_space<vmem>>, vector<2x32xf32>,
    %cst_178 = arith.constant 0.000000e+00 : f32
    %161 = vector.broadcast %cst_178 : f32 to vector<2x32xf32>
    %c63 = arith.constant 63 : index
    %c0_179 = arith.constant 0 : index
    %162 = vector.load %arg20[%c63, %c0_179] : memref<96x32xf32, #tpu.memory_space<vmem>>, vector<2x32xf32>
    tpu.vector_store %arg20[%c63, %c0_179], %161 {strides = array<i32>} : memref<96x32xf32, #tpu.memory_space<vmem>>, vector<2x32xf32>,
    %cst_180 = arith.constant 0.000000e+00 : f32
    %163 = vector.broadcast %cst_180 : f32 to vector<11x32xf32>
    %c69_181 = arith.constant 69 : index
    %c0_182 = arith.constant 0 : index
    %164 = vector.load %arg20[%c69_181, %c0_182] : memref<96x32xf32, #tpu.memory_space<vmem>>, vector<11x32xf32>
    tpu.vector_store %arg20[%c69_181, %c0_182], %163 {strides = array<i32>} : memref<96x32xf32, #tpu.memory_space<vmem>>, vector<11x32xf32>,
    %c52 = arith.constant 52 : index
    %c0_183 = arith.constant 0 : index
    %165 = vector.load %arg19[%c52, %c0_183] : memref<104x32xf32, #tpu.memory_space<vmem>>, vector<4x32xf32>
    %c47 = arith.constant 47 : index
    %c0_184 = arith.constant 0 : index
    %166 = vector.load %arg20[%c47, %c0_184] : memref<96x32xf32, #tpu.memory_space<vmem>>, vector<4x32xf32>
    tpu.vector_store %arg20[%c47, %c0_184], %165 {strides = array<i32>} : memref<96x32xf32, #tpu.memory_space<vmem>>, vector<4x32xf32>,
    %c62 = arith.constant 62 : index
    %c0_185 = arith.constant 0 : index
    %167 = vector.load %arg19[%c62, %c0_185] : memref<104x32xf32, #tpu.memory_space<vmem>>, vector<4x32xf32>
    %c53 = arith.constant 53 : index
    %c0_186 = arith.constant 0 : index
    %168 = vector.load %arg20[%c53, %c0_186] : memref<96x32xf32, #tpu.memory_space<vmem>>, vector<4x32xf32>
    tpu.vector_store %arg20[%c53, %c0_186], %167 {strides = array<i32>} : memref<96x32xf32, #tpu.memory_space<vmem>>, vector<4x32xf32>,
    %c72 = arith.constant 72 : index
    %c0_187 = arith.constant 0 : index
    %169 = vector.load %arg19[%c72, %c0_187] : memref<104x32xf32, #tpu.memory_space<vmem>>, vector<4x32xf32>
    %c59_188 = arith.constant 59 : index
    %c0_189 = arith.constant 0 : index
    %170 = vector.load %arg20[%c59_188, %c0_189] : memref<96x32xf32, #tpu.memory_space<vmem>>, vector<4x32xf32>
    tpu.vector_store %arg20[%c59_188, %c0_189], %169 {strides = array<i32>} : memref<96x32xf32, #tpu.memory_space<vmem>>, vector<4x32xf32>,
    %c82 = arith.constant 82 : index
    %c0_190 = arith.constant 0 : index
    %171 = vector.load %arg19[%c82, %c0_190] : memref<104x32xf32, #tpu.memory_space<vmem>>, vector<4x32xf32>
    %c65 = arith.constant 65 : index
    %c0_191 = arith.constant 0 : index
    %172 = vector.load %arg20[%c65, %c0_191] : memref<96x32xf32, #tpu.memory_space<vmem>>, vector<4x32xf32>
    tpu.vector_store %arg20[%c65, %c0_191], %171 {strides = array<i32>} : memref<96x32xf32, #tpu.memory_space<vmem>>, vector<4x32xf32>,
    %cst_192 = arith.constant 0.000000e+00 : f32
    %173 = vector.broadcast %cst_192 : f32 to vector<16x32xf32>
    %c80_193 = arith.constant 80 : index
    %c0_194 = arith.constant 0 : index
    %174 = vector.load %arg20[%c80_193, %c0_194] : memref<96x32xf32, #tpu.memory_space<vmem>>, vector<16x32xf32>
    tpu.vector_store %arg20[%c80_193, %c0_194], %173 {strides = array<i32>} : memref<96x32xf32, #tpu.memory_space<vmem>>, vector<16x32xf32>,
    %c0_195 = arith.constant 0 : index
    %c0_196 = arith.constant 0 : index
    %175 = vector.load %arg20[%c0_195, %c0_196] : memref<96x32xf32, #tpu.memory_space<vmem>>, vector<80x32xf32>
    %c0_197 = arith.constant 0 : index
    %c0_198 = arith.constant 0 : index
    %176 = vector.load %arg6[%c0_197, %c0_198] : memref<288x32xf32, #tpu.memory_space<vmem>>, vector<32x32xf32>
    %cst_199 = arith.constant dense<0.000000e+00> : vector<80x32xf32>
    %177 = tpu.matmul %175, %176, %cst_199 {dimension_numbers = #tpu.dot_dimension_numbers<[1], [0], [0], [1], [0, 0, 1, 1], [], []>} : vector<80x32xf32>, vector<32x32xf32>, vector<80x32xf32> -> vector<80x32xf32>
    %c1_200 = arith.constant 1 : index
    %c0_201 = arith.constant 0 : index
    %178 = vector.load %arg20[%c1_200, %c0_201] : memref<96x32xf32, #tpu.memory_space<vmem>>, vector<80x32xf32>
    %c32_202 = arith.constant 32 : index
    %c0_203 = arith.constant 0 : index
    %179 = vector.load %arg6[%c32_202, %c0_203] : memref<288x32xf32, #tpu.memory_space<vmem>>, vector<32x32xf32>
    %cst_204 = arith.constant dense<0.000000e+00> : vector<80x32xf32>
    %180 = tpu.matmul %178, %179, %cst_204 {dimension_numbers = #tpu.dot_dimension_numbers<[1], [0], [0], [1], [0, 0, 1, 1], [], []>} : vector<80x32xf32>, vector<32x32xf32>, vector<80x32xf32> -> vector<80x32xf32>
    %181 = arith.addf %177, %180 : vector<80x32xf32>
    %c2_205 = arith.constant 2 : index
    %c0_206 = arith.constant 0 : index
    %182 = vector.load %arg20[%c2_205, %c0_206] : memref<96x32xf32, #tpu.memory_space<vmem>>, vector<80x32xf32>
    %c64_207 = arith.constant 64 : index
    %c0_208 = arith.constant 0 : index
    %183 = vector.load %arg6[%c64_207, %c0_208] : memref<288x32xf32, #tpu.memory_space<vmem>>, vector<32x32xf32>
    %cst_209 = arith.constant dense<0.000000e+00> : vector<80x32xf32>
    %184 = tpu.matmul %182, %183, %cst_209 {dimension_numbers = #tpu.dot_dimension_numbers<[1], [0], [0], [1], [0, 0, 1, 1], [], []>} : vector<80x32xf32>, vector<32x32xf32>, vector<80x32xf32> -> vector<80x32xf32>
    %185 = arith.addf %181, %184 : vector<80x32xf32>
    %c6 = arith.constant 6 : index
    %c0_210 = arith.constant 0 : index
    %186 = vector.load %arg20[%c6, %c0_210] : memref<96x32xf32, #tpu.memory_space<vmem>>, vector<80x32xf32>
    %c96_211 = arith.constant 96 : index
    %c0_212 = arith.constant 0 : index
    %187 = vector.load %arg6[%c96_211, %c0_212] : memref<288x32xf32, #tpu.memory_space<vmem>>, vector<32x32xf32>
    %cst_213 = arith.constant dense<0.000000e+00> : vector<80x32xf32>
    %188 = tpu.matmul %186, %187, %cst_213 {dimension_numbers = #tpu.dot_dimension_numbers<[1], [0], [0], [1], [0, 0, 1, 1], [], []>} : vector<80x32xf32>, vector<32x32xf32>, vector<80x32xf32> -> vector<80x32xf32>
    %189 = arith.addf %185, %188 : vector<80x32xf32>
    %c7_214 = arith.constant 7 : index
    %c0_215 = arith.constant 0 : index
    %190 = vector.load %arg20[%c7_214, %c0_215] : memref<96x32xf32, #tpu.memory_space<vmem>>, vector<80x32xf32>
    %c128_216 = arith.constant 128 : index
    %c0_217 = arith.constant 0 : index
    %191 = vector.load %arg6[%c128_216, %c0_217] : memref<288x32xf32, #tpu.memory_space<vmem>>, vector<32x32xf32>
    %cst_218 = arith.constant dense<0.000000e+00> : vector<80x32xf32>
    %192 = tpu.matmul %190, %191, %cst_218 {dimension_numbers = #tpu.dot_dimension_numbers<[1], [0], [0], [1], [0, 0, 1, 1], [], []>} : vector<80x32xf32>, vector<32x32xf32>, vector<80x32xf32> -> vector<80x32xf32>
    %193 = arith.addf %189, %192 : vector<80x32xf32>
    %c8 = arith.constant 8 : index
    %c0_219 = arith.constant 0 : index
    %194 = vector.load %arg20[%c8, %c0_219] : memref<96x32xf32, #tpu.memory_space<vmem>>, vector<80x32xf32>
    %c160_220 = arith.constant 160 : index
    %c0_221 = arith.constant 0 : index
    %195 = vector.load %arg6[%c160_220, %c0_221] : memref<288x32xf32, #tpu.memory_space<vmem>>, vector<32x32xf32>
    %cst_222 = arith.constant dense<0.000000e+00> : vector<80x32xf32>
    %196 = tpu.matmul %194, %195, %cst_222 {dimension_numbers = #tpu.dot_dimension_numbers<[1], [0], [0], [1], [0, 0, 1, 1], [], []>} : vector<80x32xf32>, vector<32x32xf32>, vector<80x32xf32> -> vector<80x32xf32>
    %197 = arith.addf %193, %196 : vector<80x32xf32>
    %c12_223 = arith.constant 12 : index
    %c0_224 = arith.constant 0 : index
    %198 = vector.load %arg20[%c12_223, %c0_224] : memref<96x32xf32, #tpu.memory_space<vmem>>, vector<80x32xf32>
    %c192_225 = arith.constant 192 : index
    %c0_226 = arith.constant 0 : index
    %199 = vector.load %arg6[%c192_225, %c0_226] : memref<288x32xf32, #tpu.memory_space<vmem>>, vector<32x32xf32>
    %cst_227 = arith.constant dense<0.000000e+00> : vector<80x32xf32>
    %200 = tpu.matmul %198, %199, %cst_227 {dimension_numbers = #tpu.dot_dimension_numbers<[1], [0], [0], [1], [0, 0, 1, 1], [], []>} : vector<80x32xf32>, vector<32x32xf32>, vector<80x32xf32> -> vector<80x32xf32>
    %201 = arith.addf %197, %200 : vector<80x32xf32>
    %c13_228 = arith.constant 13 : index
    %c0_229 = arith.constant 0 : index
    %202 = vector.load %arg20[%c13_228, %c0_229] : memref<96x32xf32, #tpu.memory_space<vmem>>, vector<80x32xf32>
    %c224_230 = arith.constant 224 : index
    %c0_231 = arith.constant 0 : index
    %203 = vector.load %arg6[%c224_230, %c0_231] : memref<288x32xf32, #tpu.memory_space<vmem>>, vector<32x32xf32>
    %cst_232 = arith.constant dense<0.000000e+00> : vector<80x32xf32>
    %204 = tpu.matmul %202, %203, %cst_232 {dimension_numbers = #tpu.dot_dimension_numbers<[1], [0], [0], [1], [0, 0, 1, 1], [], []>} : vector<80x32xf32>, vector<32x32xf32>, vector<80x32xf32> -> vector<80x32xf32>
    %205 = arith.addf %201, %204 : vector<80x32xf32>
    %c14 = arith.constant 14 : index
    %c0_233 = arith.constant 0 : index
    %206 = vector.load %arg20[%c14, %c0_233] : memref<96x32xf32, #tpu.memory_space<vmem>>, vector<80x32xf32>
    %c256 = arith.constant 256 : index
    %c0_234 = arith.constant 0 : index
    %207 = vector.load %arg6[%c256, %c0_234] : memref<288x32xf32, #tpu.memory_space<vmem>>, vector<32x32xf32>
    %cst_235 = arith.constant dense<0.000000e+00> : vector<80x32xf32>
    %208 = tpu.matmul %206, %207, %cst_235 {dimension_numbers = #tpu.dot_dimension_numbers<[1], [0], [0], [1], [0, 0, 1, 1], [], []>} : vector<80x32xf32>, vector<32x32xf32>, vector<80x32xf32> -> vector<80x32xf32>
    %209 = arith.addf %205, %208 : vector<80x32xf32>
    %c0_236 = arith.constant 0 : index
    %c0_237 = arith.constant 0 : index
    %210 = vector.load %arg7[%c0_236, %c0_237] : memref<1x32xf32, #tpu.memory_space<vmem>>, vector<1x32xf32>
    %211 = vector.broadcast %210 : vector<1x32xf32> to vector<80x32xf32>
    %212 = arith.addf %209, %211 : vector<80x32xf32>
    %cst_238 = arith.constant 0.000000e+00 : f32
    %213 = vector.broadcast %cst_238 : f32 to vector<80x32xf32>
    %214 = arith.maximumf %212, %213 : vector<80x32xf32>
    %c0_239 = arith.constant 0 : index
    %c0_240 = arith.constant 0 : index
    %215 = vector.load %arg21[%c0_239, %c0_240] : memref<80x32xf32, #tpu.memory_space<vmem>>, vector<80x32xf32>
    tpu.vector_store %arg21[%c0_239, %c0_240], %214 {strides = array<i32>} : memref<80x32xf32, #tpu.memory_space<vmem>>, vector<80x32xf32>,
    %c0_241 = arith.constant 0 : index
    %c0_242 = arith.constant 0 : index
    %216 = tpu.strided_load %arg21[%c0_241, %c0_242] {strides = array<i32: 40, 1>} : memref<80x32xf32, #tpu.memory_space<vmem>>, vector<2x32xf32>
    %c1_243 = arith.constant 1 : index
    %c0_244 = arith.constant 0 : index
    %217 = tpu.strided_load %arg21[%c1_243, %c0_244] {strides = array<i32: 40, 1>} : memref<80x32xf32, #tpu.memory_space<vmem>>, vector<2x32xf32>
    %c2_245 = arith.constant 2 : index
    %c0_246 = arith.constant 0 : index
    %218 = tpu.strided_load %arg21[%c2_245, %c0_246] {strides = array<i32: 40, 1>} : memref<80x32xf32, #tpu.memory_space<vmem>>, vector<2x32xf32>
    %c3 = arith.constant 3 : index
    %c0_247 = arith.constant 0 : index
    %219 = tpu.strided_load %arg21[%c3, %c0_247] {strides = array<i32: 40, 1>} : memref<80x32xf32, #tpu.memory_space<vmem>>, vector<2x32xf32>
    %c6_248 = arith.constant 6 : index
    %c0_249 = arith.constant 0 : index
    %220 = tpu.strided_load %arg21[%c6_248, %c0_249] {strides = array<i32: 40, 1>} : memref<80x32xf32, #tpu.memory_space<vmem>>, vector<2x32xf32>
    %c7_250 = arith.constant 7 : index
    %c0_251 = arith.constant 0 : index
    %221 = tpu.strided_load %arg21[%c7_250, %c0_251] {strides = array<i32: 40, 1>} : memref<80x32xf32, #tpu.memory_space<vmem>>, vector<2x32xf32>
    %c8_252 = arith.constant 8 : index
    %c0_253 = arith.constant 0 : index
    %222 = tpu.strided_load %arg21[%c8_252, %c0_253] {strides = array<i32: 40, 1>} : memref<80x32xf32, #tpu.memory_space<vmem>>, vector<2x32xf32>
    %c9 = arith.constant 9 : index
    %c0_254 = arith.constant 0 : index
    %223 = tpu.strided_load %arg21[%c9, %c0_254] {strides = array<i32: 40, 1>} : memref<80x32xf32, #tpu.memory_space<vmem>>, vector<2x32xf32>
    %c12_255 = arith.constant 12 : index
    %c0_256 = arith.constant 0 : index
    %224 = tpu.strided_load %arg21[%c12_255, %c0_256] {strides = array<i32: 40, 1>} : memref<80x32xf32, #tpu.memory_space<vmem>>, vector<2x32xf32>
    %c13_257 = arith.constant 13 : index
    %c0_258 = arith.constant 0 : index
    %225 = tpu.strided_load %arg21[%c13_257, %c0_258] {strides = array<i32: 40, 1>} : memref<80x32xf32, #tpu.memory_space<vmem>>, vector<2x32xf32>
    %c14_259 = arith.constant 14 : index
    %c0_260 = arith.constant 0 : index
    %226 = tpu.strided_load %arg21[%c14_259, %c0_260] {strides = array<i32: 40, 1>} : memref<80x32xf32, #tpu.memory_space<vmem>>, vector<2x32xf32>
    %c15 = arith.constant 15 : index
    %c0_261 = arith.constant 0 : index
    %227 = tpu.strided_load %arg21[%c15, %c0_261] {strides = array<i32: 40, 1>} : memref<80x32xf32, #tpu.memory_space<vmem>>, vector<2x32xf32>
    %c18 = arith.constant 18 : index
    %c0_262 = arith.constant 0 : index
    %228 = tpu.strided_load %arg21[%c18, %c0_262] {strides = array<i32: 40, 1>} : memref<80x32xf32, #tpu.memory_space<vmem>>, vector<2x32xf32>
    %c19_263 = arith.constant 19 : index
    %c0_264 = arith.constant 0 : index
    %229 = tpu.strided_load %arg21[%c19_263, %c0_264] {strides = array<i32: 40, 1>} : memref<80x32xf32, #tpu.memory_space<vmem>>, vector<2x32xf32>
    %c20_265 = arith.constant 20 : index
    %c0_266 = arith.constant 0 : index
    %230 = tpu.strided_load %arg21[%c20_265, %c0_266] {strides = array<i32: 40, 1>} : memref<80x32xf32, #tpu.memory_space<vmem>>, vector<2x32xf32>
    %c21_267 = arith.constant 21 : index
    %c0_268 = arith.constant 0 : index
    %231 = tpu.strided_load %arg21[%c21_267, %c0_268] {strides = array<i32: 40, 1>} : memref<80x32xf32, #tpu.memory_space<vmem>>, vector<2x32xf32>
    %232 = arith.maximumf %216, %217 : vector<2x32xf32>
    %233 = arith.maximumf %220, %221 : vector<2x32xf32>
    %234 = arith.maximumf %232, %233 : vector<2x32xf32>
    %235 = arith.maximumf %218, %219 : vector<2x32xf32>
    %236 = arith.maximumf %222, %223 : vector<2x32xf32>
    %237 = arith.maximumf %235, %236 : vector<2x32xf32>
    %238 = arith.maximumf %224, %225 : vector<2x32xf32>
    %239 = arith.maximumf %228, %229 : vector<2x32xf32>
    %240 = arith.maximumf %238, %239 : vector<2x32xf32>
    %241 = arith.maximumf %226, %227 : vector<2x32xf32>
    %242 = arith.maximumf %230, %231 : vector<2x32xf32>
    %243 = arith.maximumf %241, %242 : vector<2x32xf32>
    %244 = arith.maximumf %234, %237 : vector<2x32xf32>
    %245 = arith.maximumf %240, %243 : vector<2x32xf32>
    %246 = arith.maximumf %244, %245 : vector<2x32xf32>
    %247 = tpu.concatenate %216, %217, %218, %219, %220, %221, %222, %223, %224, %225, %226, %227, %228, %229, %230, %231 in 1 : vector<2x32xf32>, vector<2x32xf32>, vector<2x32xf32>, vector<2x32xf32>, vector<2x32xf32>, vector<2x32xf32>, vector<2x32xf32>, vector<2x32xf32>, vector<2x32xf32>, vector<2x32xf32>, vector<2x32xf32>, vector<2x32xf32>, vector<2x32xf32>, vector<2x32xf32>, vector<2x32xf32>, vector<2x32xf32> -> vector<2x512xf32>
    %248 = tpu.concatenate %234, %237, %240, %243, %246 in 1 : vector<2x32xf32>, vector<2x32xf32>, vector<2x32xf32>, vector<2x32xf32>, vector<2x32xf32> -> vector<2x160xf32>
    %249 = tpu.concatenate %247, %248 in 1 : vector<2x512xf32>, vector<2x160xf32> -> vector<2x672xf32>
    %c0_269 = arith.constant 0 : index
    %c0_270 = arith.constant 0 : index
    %250 = vector.load %arg8[%c0_269, %c0_270] : memref<672x128xf32, #tpu.memory_space<vmem>>, vector<672x128xf32>
    %cst_271 = arith.constant dense<0.000000e+00> : vector<2x128xf32>
    %251 = tpu.matmul %249, %250, %cst_271 {dimension_numbers = #tpu.dot_dimension_numbers<[1], [0], [0], [1], [0, 0, 1, 1], [], []>} : vector<2x672xf32>, vector<672x128xf32>, vector<2x128xf32> -> vector<2x128xf32>
    %c0_272 = arith.constant 0 : index
    %c0_273 = arith.constant 0 : index
    %252 = vector.load %arg9[%c0_272, %c0_273] : memref<1x128xf32, #tpu.memory_space<vmem>>, vector<1x128xf32>
    %253 = vector.broadcast %252 : vector<1x128xf32> to vector<2x128xf32>
    %254 = arith.addf %251, %253 : vector<2x128xf32>
    %cst_274 = arith.constant 0.000000e+00 : f32
    %255 = vector.broadcast %cst_274 : f32 to vector<2x128xf32>
    %256 = arith.maximumf %254, %255 : vector<2x128xf32>
    %c0_275 = arith.constant 0 : index
    %c0_276 = arith.constant 0 : index
    %257 = vector.load %arg10[%c0_275, %c0_276] : memref<128x128xf32, #tpu.memory_space<vmem>>, vector<128x128xf32>
    %cst_277 = arith.constant dense<0.000000e+00> : vector<2x128xf32>
    %258 = tpu.matmul %256, %257, %cst_277 {dimension_numbers = #tpu.dot_dimension_numbers<[1], [0], [0], [1], [0, 0, 1, 1], [], []>} : vector<2x128xf32>, vector<128x128xf32>, vector<2x128xf32> -> vector<2x128xf32>
    %c0_278 = arith.constant 0 : index
    %c0_279 = arith.constant 0 : index
    %259 = vector.load %arg11[%c0_278, %c0_279] : memref<1x128xf32, #tpu.memory_space<vmem>>, vector<1x128xf32>
    %260 = vector.broadcast %259 : vector<1x128xf32> to vector<2x128xf32>
    %261 = arith.addf %258, %260 : vector<2x128xf32>
    %cst_280 = arith.constant 0.000000e+00 : f32
    %262 = vector.broadcast %cst_280 : f32 to vector<2x128xf32>
    %263 = arith.maximumf %261, %262 : vector<2x128xf32>
    %c0_281 = arith.constant 0 : index
    %c0_282 = arith.constant 0 : index
    %264 = vector.load %arg12[%c0_281, %c0_282] : memref<128x2xf32, #tpu.memory_space<vmem>>, vector<128x2xf32>
    %cst_283 = arith.constant dense<0.000000e+00> : vector<2x2xf32>
    %265 = tpu.matmul %263, %264, %cst_283 {dimension_numbers = #tpu.dot_dimension_numbers<[1], [0], [0], [1], [0, 0, 1, 1], [], []>} : vector<2x128xf32>, vector<128x2xf32>, vector<2x2xf32> -> vector<2x2xf32>
    %c0_284 = arith.constant 0 : index
    %c0_285 = arith.constant 0 : index
    %266 = vector.load %arg13[%c0_284, %c0_285] : memref<1x2xf32, #tpu.memory_space<vmem>>, vector<1x2xf32>
    %267 = vector.broadcast %266 : vector<1x2xf32> to vector<2x2xf32>
    %268 = arith.addf %265, %267 : vector<2x2xf32>
    %cst_286 = arith.constant dense<0xFF800000> : vector<2xf32>
    %269 = vector.multi_reduction <maximumf>, %268, %cst_286 [1] : vector<2x2xf32> to vector<2xf32>
    %270 = vector.shape_cast %269 : vector<2xf32> to vector<2x1xf32>
    %271 = vector.broadcast %270 : vector<2x1xf32> to vector<2x2xf32>
    %272 = arith.subf %268, %271 : vector<2x2xf32>
    %273 = math.exp %272 : vector<2x2xf32>
    %cst_287 = arith.constant dense<0.000000e+00> : vector<2xf32>
    %274 = vector.multi_reduction <add>, %273, %cst_287 [1] : vector<2x2xf32> to vector<2xf32>
    %275 = vector.shape_cast %274 : vector<2xf32> to vector<2x1xf32>
    %276 = math.log %275 : vector<2x1xf32>
    %277 = vector.broadcast %276 : vector<2x1xf32> to vector<2x2xf32>
    %278 = arith.subf %272, %277 : vector<2x2xf32>
    %279 = math.exp %278 : vector<2x2xf32>
    %280 = tpu.concatenate %279, %278 in 1 : vector<2x2xf32>, vector<2x2xf32> -> vector<2x4xf32>
    %c0_288 = arith.constant 0 : index
    %c0_289 = arith.constant 0 : index
    %c0_290 = arith.constant 0 : index
    %281 = vector.load %arg14[%c0_288, %c0_289, %c0_290] : memref<1x2x4xf32, #tpu.memory_space<vmem>>, vector<1x2x4xf32>
    %282 = vector.shape_cast %281 : vector<1x2x4xf32> to vector<2x4xf32>
    %283 = vector.shape_cast %280 : vector<2x4xf32> to vector<1x2x4xf32>
    tpu.vector_store %arg14[%c0_288, %c0_289, %c0_290], %283 {strides = array<i32>} : memref<1x2x4xf32, #tpu.memory_space<vmem>>, vector<1x2x4xf32>,
    return
  }
  func.func @transform_0(%arg0: i32) -> (i32, i32, i32) {
    %c0_i32 = arith.constant 0 : i32
    %c0_i32_0 = arith.constant 0 : i32
    %c0_i32_1 = arith.constant 0 : i32
    return %arg0, %c0_i32, %c0_i32_0 : i32, i32, i32
  }
  func.func @transform_1(%arg0: i32) -> (i32, i32) {
    %c0_i32 = arith.constant 0 : i32
    %c0_i32_0 = arith.constant 0 : i32
    %c0_i32_1 = arith.constant 0 : i32
    return %c0_i32, %c0_i32_0 : i32, i32
  }
  func.func @transform_2(%arg0: i32) -> (i32, i32) {
    %c0_i32 = arith.constant 0 : i32
    %c0_i32_0 = arith.constant 0 : i32
    %c0_i32_1 = arith.constant 0 : i32
    return %c0_i32, %c0_i32_0 : i32, i32
  }
  func.func @transform_3(%arg0: i32) -> (i32, i32) {
    %c0_i32 = arith.constant 0 : i32
    %c0_i32_0 = arith.constant 0 : i32
    %c0_i32_1 = arith.constant 0 : i32
    return %c0_i32, %c0_i32_0 : i32, i32
  }
  func.func @transform_4(%arg0: i32) -> (i32, i32) {
    %c0_i32 = arith.constant 0 : i32
    %c0_i32_0 = arith.constant 0 : i32
    %c0_i32_1 = arith.constant 0 : i32
    return %c0_i32, %c0_i32_0 : i32, i32
  }
  func.func @transform_5(%arg0: i32) -> (i32, i32) {
    %c0_i32 = arith.constant 0 : i32
    %c0_i32_0 = arith.constant 0 : i32
    %c0_i32_1 = arith.constant 0 : i32
    return %c0_i32, %c0_i32_0 : i32, i32
  }
  func.func @transform_6(%arg0: i32) -> (i32, i32) {
    %c0_i32 = arith.constant 0 : i32
    %c0_i32_0 = arith.constant 0 : i32
    %c0_i32_1 = arith.constant 0 : i32
    return %c0_i32, %c0_i32_0 : i32, i32
  }
  func.func @transform_7(%arg0: i32) -> (i32, i32) {
    %c0_i32 = arith.constant 0 : i32
    %c0_i32_0 = arith.constant 0 : i32
    %c0_i32_1 = arith.constant 0 : i32
    return %c0_i32, %c0_i32_0 : i32, i32
  }
  func.func @transform_8(%arg0: i32) -> (i32, i32) {
    %c0_i32 = arith.constant 0 : i32
    %c0_i32_0 = arith.constant 0 : i32
    %c0_i32_1 = arith.constant 0 : i32
    return %c0_i32, %c0_i32_0 : i32, i32
  }
  func.func @transform_9(%arg0: i32) -> (i32, i32) {
    %c0_i32 = arith.constant 0 : i32
    %c0_i32_0 = arith.constant 0 : i32
    %c0_i32_1 = arith.constant 0 : i32
    return %c0_i32, %c0_i32_0 : i32, i32
  }
  func.func @transform_10(%arg0: i32) -> (i32, i32) {
    %c0_i32 = arith.constant 0 : i32
    %c0_i32_0 = arith.constant 0 : i32
    %c0_i32_1 = arith.constant 0 : i32
    return %c0_i32, %c0_i32_0 : i32, i32
  }
  func.func @transform_11(%arg0: i32) -> (i32, i32) {
    %c0_i32 = arith.constant 0 : i32
    %c0_i32_0 = arith.constant 0 : i32
    %c0_i32_1 = arith.constant 0 : i32
    return %c0_i32, %c0_i32_0 : i32, i32
  }
  func.func @transform_12(%arg0: i32) -> (i32, i32) {
    %c0_i32 = arith.constant 0 : i32
    %c0_i32_0 = arith.constant 0 : i32
    %c0_i32_1 = arith.constant 0 : i32
    return %c0_i32, %c0_i32_0 : i32, i32
  }
  func.func @transform_13(%arg0: i32) -> (i32, i32, i32) {
    %c0_i32 = arith.constant 0 : i32
    %c0_i32_0 = arith.constant 0 : i32
    %c0_i32_1 = arith.constant 0 : i32
    return %arg0, %c0_i32, %c0_i32_0 : i32, i32, i32
  }
}

</mosaic_0001>

<llo_original>
// kernel: degenerate_slice_detector_forward.1
$region0: #{degenerate_slice_detector_forward.1}
  #allocation0 [shape = 'u32[]', space=smem, size = 0x4, offset = 0x4, fixed_abs, tag = 'smem constant byte address 0x4 - core index']
  #allocation1 [shape = 'u32[144,128]{1,0:T(1,128)}', space=vmem, size = 0x12000, scoped, tag = 'internal scratch']
  #allocation2 [shape = 'f32[512,16]{1,0:T(8,128)}', space=vmem, size = 0x40000, scoped, tag = 'scratch operand']
  #allocation3 [shape = 'f32[256,16]{1,0:T(8,128)}', space=vmem, size = 0x20000, scoped, tag = 'scratch operand']
  #allocation4 [shape = 'f32[232,16]{1,0:T(8,128)}', space=vmem, size = 0x1d000, scoped, tag = 'scratch operand']
  #allocation5 [shape = 'f32[208,32]{1,0:T(8,128)}', space=vmem, size = 0x1a000, scoped, tag = 'scratch operand']
  #allocation6 [shape = 'f32[104,32]{1,0:T(8,128)}', space=vmem, size = 0xd000, scoped, tag = 'scratch operand']
  #allocation7 [shape = 'f32[96,32]{1,0:T(8,128)}', space=vmem, size = 0xc000, scoped, tag = 'scratch operand']
  #allocation8 [shape = 'f32[80,32]{1,0:T(8,128)}', space=vmem, size = 0xa000, scoped, tag = 'scratch operand']
  %s0 = inlined_call_operand.vmem [shape: f32[1,512,36], index: 0, kind: input, shape index: {}]
  %s1 = inlined_call_operand.vmem [shape: f32[36,16], index: 1, kind: input, shape index: {}]
  %s2 = inlined_call_operand.vmem [shape: f32[1,16], index: 2, kind: input, shape index: {}]
  %s3 = inlined_call_operand.vmem [shape: f32[144,32], index: 3, kind: input, shape index: {}]
  %s4 = inlined_call_operand.vmem [shape: f32[1,32], index: 4, kind: input, shape index: {}]
  %s5 = inlined_call_operand.vmem [shape: f32[288,32], index: 5, kind: input, shape index: {}]
  %s6 = inlined_call_operand.vmem [shape: f32[1,32], index: 6, kind: input, shape index: {}]
  %s7 = inlined_call_operand.vmem [shape: f32[672,128], index: 7, kind: input, shape index: {}]
  %s8 = inlined_call_operand.vmem [shape: f32[1,128], index: 8, kind: input, shape index: {}]
  %s9 = inlined_call_operand.vmem [shape: f32[128,128], index: 9, kind: input, shape index: {}]
  %s10 = inlined_call_operand.vmem [shape: f32[1,128], index: 10, kind: input, shape index: {}]
  %s11 = inlined_call_operand.vmem [shape: f32[128,2], index: 11, kind: input, shape index: {}]
  %s12 = inlined_call_operand.vmem [shape: f32[1,2], index: 12, kind: input, shape index: {}]
  %s13 = inlined_call_operand.vmem [shape: f32[1,2,4], index: 13, kind: output, shape index: {}]
  %s14 = sld [smem:[#allocation0]]
  $region62: #{degenerate_slice_detector_forward.1} parent=0
    _
  %s16 = ssub.s32 1, %s14
  %s17 = scalar_select 0, %s16, %s14
  // Predicated region
  $region2: #{degenerate_slice_detector_forward.1} parent=0 // pred_check
    _
  $region3: #{degenerate_slice_detector_forward.1} parent=0 // pred_check_branch
    %19 = sbr.rel (0) target = $region5
  $region4: #{degenerate_slice_detector_forward.1} parent=0 // pred_region
    _
  $region5: #{degenerate_slice_detector_forward.1} parent=0 // pred_fallthru
    _
  // Predicated region
  $region6: #{degenerate_slice_detector_forward.1} parent=0 // pred_check
    _
  $region7: #{degenerate_slice_detector_forward.1} parent=0 // pred_check_branch
    %21 = sbr.rel (0) target = $region9
  $region8: #{degenerate_slice_detector_forward.1} parent=0 // pred_region
    _
  $region9: #{degenerate_slice_detector_forward.1} parent=0 // pred_fallthru
    _
  // Predicated region
  $region10: #{degenerate_slice_detector_forward.1} parent=0 // pred_check
    _
  $region11: #{degenerate_slice_detector_forward.1} parent=0 // pred_check_branch
    %23 = sbr.rel (0) target = $region13
  $region12: #{degenerate_slice_detector_forward.1} parent=0 // pred_region
    _
  $region13: #{degenerate_slice_detector_forward.1} parent=0 // pred_fallthru
    _
  // Predicated region
  $region14: #{degenerate_slice_detector_forward.1} parent=0 // pred_check
    _
  $region15: #{degenerate_slice_detector_forward.1} parent=0 // pred_check_branch
    %25 = sbr.rel (0) target = $region17
  $region16: #{degenerate_slice_detector_forward.1} parent=0 // pred_region
    _
  $region17: #{degenerate_slice_detector_forward.1} parent=0 // pred_fallthru
    _
  // Predicated region
  $region18: #{degenerate_slice_detector_forward.1} parent=0 // pred_check
    _
  $region19: #{degenerate_slice_detector_forward.1} parent=0 // pred_check_branch
    %27 = sbr.rel (0) target = $region21
  $region20: #{degenerate_slice_detector_forward.1} parent=0 // pred_region
    _
  $region21: #{degenerate_slice_detector_forward.1} parent=0 // pred_fallthru
    _
  // Predicated region
  $region22: #{degenerate_slice_detector_forward.1} parent=0 // pred_check
    _
  $region23: #{degenerate_slice_detector_forward.1} parent=0 // pred_check_branch
    %29 = sbr.rel (0) target = $region25
  $region24: #{degenerate_slice_detector_forward.1} parent=0 // pred_region
    _
  $region25: #{degenerate_slice_detector_forward.1} parent=0 // pred_fallthru
    _
  // Predicated region
  $region26: #{degenerate_slice_detector_forward.1} parent=0 // pred_check
    _
  $region27: #{degenerate_slice_detector_forward.1} parent=0 // pred_check_branch
    %31 = sbr.rel (0) target = $region29
  $region28: #{degenerate_slice_detector_forward.1} parent=0 // pred_region
    _
  $region29: #{degenerate_slice_detector_forward.1} parent=0 // pred_fallthru
    _
  // Predicated region
  $region30: #{degenerate_slice_detector_forward.1} parent=0 // pred_check
    _
  $region31: #{degenerate_slice_detector_forward.1} parent=0 // pred_check_branch
    %33 = sbr.rel (0) target = $region33
  $region32: #{degenerate_slice_detector_forward.1} parent=0 // pred_region
    _
  $region33: #{degenerate_slice_detector_forward.1} parent=0 // pred_fallthru
    _
  // Predicated region
  $region34: #{degenerate_slice_detector_forward.1} parent=0 // pred_check
    _
  $region35: #{degenerate_slice_detector_forward.1} parent=0 // pred_check_branch
    %35 = sbr.rel (0) target = $region37
  $region36: #{degenerate_slice_detector_forward.1} parent=0 // pred_region
    _
  $region37: #{degenerate_slice_detector_forward.1} parent=0 // pred_fallthru
    _
  // Predicated region
  $region38: #{degenerate_slice_detector_forward.1} parent=0 // pred_check
    _
  $region39: #{degenerate_slice_detector_forward.1} parent=0 // pred_check_branch
    %37 = sbr.rel (0) target = $region41
  $region40: #{degenerate_slice_detector_forward.1} parent=0 // pred_region
    _
  $region41: #{degenerate_slice_detector_forward.1} parent=0 // pred_fallthru
    _
  // Predicated region
  $region42: #{degenerate_slice_detector_forward.1} parent=0 // pred_check
    _
  $region43: #{degenerate_slice_detector_forward.1} parent=0 // pred_check_branch
    %39 = sbr.rel (0) target = $region45
  $region44: #{degenerate_slice_detector_forward.1} parent=0 // pred_region
    _
  $region45: #{degenerate_slice_detector_forward.1} parent=0 // pred_fallthru
    _
  // Predicated region
  $region46: #{degenerate_slice_detector_forward.1} parent=0 // pred_check
    _
  $region47: #{degenerate_slice_detector_forward.1} parent=0 // pred_check_branch
    %41 = sbr.rel (0) target = $region49
  $region48: #{degenerate_slice_detector_forward.1} parent=0 // pred_region
    _
  $region49: #{degenerate_slice_detector_forward.1} parent=0 // pred_fallthru
    _
  // Predicated region
  $region50: #{degenerate_slice_detector_forward.1} parent=0 // pred_check
    _
  $region51: #{degenerate_slice_detector_forward.1} parent=0 // pred_check_branch
    %43 = sbr.rel (0) target = $region53
  $region52: #{degenerate_slice_detector_forward.1} parent=0 // pred_region
    _
  $region53: #{degenerate_slice_detector_forward.1} parent=0 // pred_fallthru
    _
  %v44 = vld [vmem:[%s0] sm:$0xff]
  %v45 = vld [vmem:[%s0 + $0x8] sm:$0xff]
  %v46 = vld [vmem:[%s0 + $0x10] sm:$0xff]
  %v47 = vld [vmem:[%s0 + $0x18] sm:$0xff]
  %v48 = vld [vmem:[%s0 + $0x20] sm:$0xff]
  %v49 = vld [vmem:[%s0 + $0x28] sm:$0xff]
  %v50 = vld [vmem:[%s0 + $0x30] sm:$0xff]
  %v51 = vld [vmem:[%s0 + $0x38] sm:$0xff]
  %v52 = vld [vmem:[%s0 + $0x40] sm:$0xff]
  %v53 = vld [vmem:[%s0 + $0x48] sm:$0xff]
  %v54 = vld [vmem:[%s0 + $0x50] sm:$0xff]
  %v55 = vld [vmem:[%s0 + $0x58] sm:$0xff]
  %v56 = vld [vmem:[%s0 + $0x60] sm:$0xff]
  %v57 = vld [vmem:[%s0 + $0x68] sm:$0xff]
  %v58 = vld [vmem:[%s0 + $0x70] sm:$0xff]
  %v59 = vld [vmem:[%s0 + $0x78] sm:$0xff]
  %v60 = vld [vmem:[%s0 + $0x80] sm:$0xff]
  %v61 = vld [vmem:[%s0 + $0x88] sm:$0xff]
  %v62 = vld [vmem:[%s0 + $0x90] sm:$0xff]
  %v63 = vld [vmem:[%s0 + $0x98] sm:$0xff]
  %v64 = vld [vmem:[%s0 + $0xa0] sm:$0xff]
  %v65 = vld [vmem:[%s0 + $0xa8] sm:$0xff]
  %v66 = vld [vmem:[%s0 + $0xb0] sm:$0xff]
  %v67 = vld [vmem:[%s0 + $0xb8] sm:$0xff]
  %v68 = vld [vmem:[%s0 + $0xc0] sm:$0xff]
  %v69 = vld [vmem:[%s0 + $0xc8] sm:$0xff]
  %v70 = vld [vmem:[%s0 + $0xd0] sm:$0xff]
  %v71 = vld [vmem:[%s0 + $0xd8] sm:$0xff]
  %v72 = vld [vmem:[%s0 + $0xe0] sm:$0xff]
  %v73 = vld [vmem:[%s0 + $0xe8] sm:$0xff]
  %v74 = vld [vmem:[%s0 + $0xf0] sm:$0xff]
  %v75 = vld [vmem:[%s0 + $0xf8] sm:$0xff]
  %v76 = vld [vmem:[%s0 + $0x100] sm:$0xff]
  %v77 = vld [vmem:[%s0 + $0x108] sm:$0xff]
  %v78 = vld [vmem:[%s0 + $0x110] sm:$0xff]
  %v79 = vld [vmem:[%s0 + $0x118] sm:$0xff]
  %v80 = vld [vmem:[%s0 + $0x120] sm:$0xff]
  %v81 = vld [vmem:[%s0 + $0x128] sm:$0xff]
  %v82 = vld [vmem:[%s0 + $0x130] sm:$0xff]
  %v83 = vld [vmem:[%s0 + $0x138] sm:$0xff]
  %v84 = vld [vmem:[%s0 + $0x140] sm:$0xff]
  %v85 = vld [vmem:[%s0 + $0x148] sm:$0xff]
  %v86 = vld [vmem:[%s0 + $0x150] sm:$0xff]
  %v87 = vld [vmem:[%s0 + $0x158] sm:$0xff]
  %v88 = vld [vmem:[%s0 + $0x160] sm:$0xff]
  %v89 = vld [vmem:[%s0 + $0x168] sm:$0xff]
  %v90 = vld [vmem:[%s0 + $0x170] sm:$0xff]
  %v91 = vld [vmem:[%s0 + $0x178] sm:$0xff]
  %v92 = vld [vmem:[%s0 + $0x180] sm:$0xff]
  %v93 = vld [vmem:[%s0 + $0x188] sm:$0xff]
  %v94 = vld [vmem:[%s0 + $0x190] sm:$0xff]
  %v95 = vld [vmem:[%s0 + $0x198] sm:$0xff]
  %v96 = vld [vmem:[%s0 + $0x1a0] sm:$0xff]
  %v97 = vld [vmem:[%s0 + $0x1a8] sm:$0xff]
  %v98 = vld [vmem:[%s0 + $0x1b0] sm:$0xff]
  %v99 = vld [vmem:[%s0 + $0x1b8] sm:$0xff]
  %v100 = vld [vmem:[%s0 + $0x1c0] sm:$0xff]
  %v101 = vld [vmem:[%s0 + $0x1c8] sm:$0xff]
  %v102 = vld [vmem:[%s0 + $0x1d0] sm:$0xff]
  %v103 = vld [vmem:[%s0 + $0x1d8] sm:$0xff]
  %v104 = vld [vmem:[%s0 + $0x1e0] sm:$0xff]
  %v105 = vld [vmem:[%s0 + $0x1e8] sm:$0xff]
  %v106 = vld [vmem:[%s0 + $0x1f0] sm:$0xff]
  %v107 = vld [vmem:[%s0 + $0x1f8] sm:$0xff]
  %v108 = vld [vmem:[%s1] sm:$0xff]
  %v109 = vld [vmem:[%s1 + $0x8] sm:$0xff]
  %v110 = vld [vmem:[%s1 + $0x10] sm:$0xff]
  %v111 = vld [vmem:[%s1 + $0x18] sm:$0xff]
  %v112 = vld [vmem:[%s1 + $0x20] sm:$0xf]
  %v113 = vld [vmem:[%s2] sm:$0x1]
  %v115 = vlaneseq
  %v116 = vshrl.u32 %v115, 7
  %v117 = vsub.s32 0, %v116
  %v118 = vrot.slane %v113, %v117
  %vm120 = vcmask 293888
  %v122 = vsel %vm120, %v44, 0
  %v125 = vsel %vm120, %v45, 0
  %v128 = vsel %vm120, %v46, 0
  %v131 = vsel %vm120, %v47, 0
  %v134 = vsel %vm120, %v48, 0
  %v137 = vsel %vm120, %v49, 0
  %v140 = vsel %vm120, %v50, 0
  %v143 = vsel %vm120, %v51, 0
  %v146 = vsel %vm120, %v52, 0
  %v149 = vsel %vm120, %v53, 0
  %v152 = vsel %vm120, %v54, 0
  %v155 = vsel %vm120, %v55, 0
  %v158 = vsel %vm120, %v56, 0
  %v161 = vsel %vm120, %v57, 0
  %v164 = vsel %vm120, %v58, 0
  %v167 = vsel %vm120, %v59, 0
  %v170 = vsel %vm120, %v60, 0
  %v173 = vsel %vm120, %v61, 0
  %v176 = vsel %vm120, %v62, 0
  %v179 = vsel %vm120, %v63, 0
  %v182 = vsel %vm120, %v64, 0
  %v185 = vsel %vm120, %v65, 0
  %v188 = vsel %vm120, %v66, 0
  %v191 = vsel %vm120, %v67, 0
  %v194 = vsel %vm120, %v68, 0
  %v197 = vsel %vm120, %v69, 0
  %v200 = vsel %vm120, %v70, 0
  %v203 = vsel %vm120, %v71, 0
  %v206 = vsel %vm120, %v72, 0
  %v209 = vsel %vm120, %v73, 0
  %v212 = vsel %vm120, %v74, 0
  %v215 = vsel %vm120, %v75, 0
  %v218 = vsel %vm120, %v76, 0
  %v221 = vsel %vm120, %v77, 0
  %v224 = vsel %vm120, %v78, 0
  %v227 = vsel %vm120, %v79, 0
  %v230 = vsel %vm120, %v80, 0
  %v233 = vsel %vm120, %v81, 0
  %v236 = vsel %vm120, %v82, 0
  %v239 = vsel %vm120, %v83, 0
  %v242 = vsel %vm120, %v84, 0
  %v245 = vsel %vm120, %v85, 0
  %v248 = vsel %vm120, %v86, 0
  %v251 = vsel %vm120, %v87, 0
  %v254 = vsel %vm120, %v88, 0
  %v257 = vsel %vm120, %v89, 0
  %v260 = vsel %vm120, %v90, 0
  %v263 = vsel %vm120, %v91, 0
  %v266 = vsel %vm120, %v92, 0
  %v269 = vsel %vm120, %v93, 0
  %v272 = vsel %vm120, %v94, 0
  %v275 = vsel %vm120, %v95, 0
  %v278 = vsel %vm120, %v96, 0
  %v281 = vsel %vm120, %v97, 0
  %v284 = vsel %vm120, %v98, 0
  %v287 = vsel %vm120, %v99, 0
  %v290 = vsel %vm120, %v100, 0
  %v293 = vsel %vm120, %v101, 0
  %v296 = vsel %vm120, %v102, 0
  %v299 = vsel %vm120, %v103, 0
  %v302 = vsel %vm120, %v104, 0
  %v305 = vsel %vm120, %v105, 0
  %v308 = vsel %vm120, %v106, 0
  %v311 = vsel %vm120, %v107, 0
  %vm313 = vcmask 1043456
  %v315 = vsel %vm313, %v112, 0
  %317 = vmatprep.subr.mxu0 0.0
  %318 = vmatpush1.msra.mxu0 %v108
  %319 = vmatprep.subr.mxu0 0.0
  %320 = vmatpush1.msra.mxu0 %v109
  %321 = vmatprep.subr.mxu0 0.0
  %322 = vmatpush1.msra.mxu0 %v110
  %323 = vmatprep.subr.mxu0 0.0
  %324 = vmatpush1.msra.mxu0 %v111
  %325 = vmatprep.subr.mxu0 0.0
  %326 = vmatpush1.msra.mxu0 %v315
  %327 = vmatprep.subr.mxu0 0.0
  %328 = vmatpush1.msra.mxu0 0.0
  %329 = vmatprep.subr.mxu0 0.0
  %330 = vmatpush1.msra.mxu0 0.0
  %331 = vmatprep.subr.mxu0 0.0
  %332 = vmatpush1.msra.mxu0 0.0
  %333 = vmatprep.subr.mxu0 0.0
  %334 = vmatpush1.msra.mxu0 0.0
  %335 = vmatprep.subr.mxu0 0.0
  %336 = vmatpush1.msra.mxu0 0.0
  %337 = vmatprep.subr.mxu0 0.0
  %338 = vmatpush1.msra.mxu0 0.0
  %339 = vmatprep.subr.mxu0 0.0
  %340 = vmatpush1.msra.mxu0 0.0
  %341 = vmatprep.subr.mxu0 0.0
  %342 = vmatpush1.msra.mxu0 0.0
  %343 = vmatprep.subr.mxu0 0.0
  %344 = vmatpush1.msra.mxu0 0.0
  %345 = vmatprep.subr.mxu0 0.0
  %346 = vmatpush1.msra.mxu0 0.0
  %347 = vmatprep.subr.mxu0 0.0
  %348 = vmatpush1.msra.mxu0 0.0
  %349 = vmatprep.subr.mxu0 0.0
  %350 = vmatpush1.msra.mxu0 0.0
  %351 = vmatprep.subr.mxu0 0.0
  %352 = vmatpush1.msra.mxu0 0.0
  %353 = vmatprep.subr.mxu0 0.0
  %354 = vmatpush1.msra.mxu0 0.0
  %355 = vmatprep.subr.mxu0 0.0
  %356 = vmatpush1.msra.mxu0 0.0
  %357 = vmatprep.subr.mxu0 0.0
  %358 = vmatpush1.msra.mxu0 0.0
  %359 = vmatprep.subr.mxu0 0.0
  %360 = vmatpush1.msra.mxu0 0.0
  %361 = vmatprep.subr.mxu0 0.0
  %362 = vmatpush1.msra.mxu0 0.0
  %363 = vmatprep.subr.mxu0 0.0
  %364 = vmatpush1.msra.mxu0 0.0
  %365 = vmatprep.subr.mxu0 0.0
  %366 = vmatpush1.msra.mxu0 0.0
  %367 = vmatprep.subr.mxu0 0.0
  %368 = vmatpush1.msra.mxu0 0.0
  %369 = vmatprep.subr.mxu0 0.0
  %370 = vmatpush1.msra.mxu0 0.0
  %371 = vmatprep.subr.mxu0 0.0
  %372 = vmatpush1.msra.mxu0 0.0
  %373 = vmatprep.subr.mxu0 0.0
  %374 = vmatpush1.msra.mxu0 0.0
  %375 = vmatprep.subr.mxu0 0.0
  %376 = vmatpush1.msra.mxu0 0.0
  %377 = vmatprep.subr.mxu0 0.0
  %378 = vmatpush1.msra.mxu0 0.0
  %379 = vmatprep.subr.mxu0 0.0
  %380 = vmatpush1.msra.mxu0 0.0
  %381 = vmatprep.mubr.f32.mxu0 0.0
  %382 = vmatmul.mubr.f32.gmra.mrb[0].mxu0 %v122
  %v383 = vpop.f32.mrb[0].mxu0
  %v384 = vadd.f32 %v118, %v383
  %v385 = vpop.f32.mrb[0].mxu0
  %386 = vmatprep.mubr.f32.mxu0 0.0
  %387 = vmatmul.mubr.f32.gmra.mrb[0].mxu0 %v125
  %v388 = vpop.f32.mrb[0].mxu0
  %v389 = vadd.f32 %v118, %v388
  %v390 = vpop.f32.mrb[0].mxu0
  %391 = vmatprep.mubr.f32.mxu0 0.0
  %392 = vmatmul.mubr.f32.gmra.mrb[0].mxu0 %v128
  %v393 = vpop.f32.mrb[0].mxu0
  %v394 = vadd.f32 %v118, %v393
  %v395 = vpop.f32.mrb[0].mxu0
  %396 = vmatprep.mubr.f32.mxu0 0.0
  %397 = vmatmul.mubr.f32.gmra.mrb[0].mxu0 %v131
  %v398 = vpop.f32.mrb[0].mxu0
  %v399 = vadd.f32 %v118, %v398
  %v400 = vpop.f32.mrb[0].mxu0
  %401 = vmatprep.mubr.f32.mxu0 0.0
  %402 = vmatmul.mubr.f32.gmra.mrb[0].mxu0 %v134
  %v403 = vpop.f32.mrb[0].mxu0
  %v404 = vadd.f32 %v118, %v403
  %v405 = vpop.f32.mrb[0].mxu0
  %406 = vmatprep.mubr.f32.mxu0 0.0
  %407 = vmatmul.mubr.f32.gmra.mrb[0].mxu0 %v137
  %v408 = vpop.f32.mrb[0].mxu0
  %v409 = vadd.f32 %v118, %v408
  %v410 = vpop.f32.mrb[0].mxu0
  %411 = vmatprep.mubr.f32.mxu0 0.0
  %412 = vmatmul.mubr.f32.gmra.mrb[0].mxu0 %v140
  %v413 = vpop.f32.mrb[0].mxu0
  %v414 = vadd.f32 %v118, %v413
  %v415 = vpop.f32.mrb[0].mxu0
  %416 = vmatprep.mubr.f32.mxu0 0.0
  %417 = vmatmul.mubr.f32.gmra.mrb[0].mxu0 %v143
  %v418 = vpop.f32.mrb[0].mxu0
  %v419 = vadd.f32 %v118, %v418
  %v420 = vpop.f32.mrb[0].mxu0
  %421 = vmatprep.mubr.f32.mxu0 0.0
  %422 = vmatmul.mubr.f32.gmra.mrb[0].mxu0 %v146
  %v423 = vpop.f32.mrb[0].mxu0
  %v424 = vadd.f32 %v118, %v423
  %v425 = vpop.f32.mrb[0].mxu0
  %426 = vmatprep.mubr.f32.mxu0 0.0
  %427 = vmatmul.mubr.f32.gmra.mrb[0].mxu0 %v149
  %v428 = vpop.f32.mrb[0].mxu0
  %v429 = vadd.f32 %v118, %v428
  %v430 = vpop.f32.mrb[0].mxu0
  %431 = vmatprep.mubr.f32.mxu0 0.0
  %432 = vmatmul.mubr.f32.gmra.mrb[0].mxu0 %v152
  %v433 = vpop.f32.mrb[0].mxu0
  %v434 = vadd.f32 %v118, %v433
  %v435 = vpop.f32.mrb[0].mxu0
  %436 = vmatprep.mubr.f32.mxu0 0.0
  %437 = vmatmul.mubr.f32.gmra.mrb[0].mxu0 %v155
  %v438 = vpop.f32.mrb[0].mxu0
  %v439 = vadd.f32 %v118, %v438
  %v440 = vpop.f32.mrb[0].mxu0
  %441 = vmatprep.mubr.f32.mxu0 0.0
  %442 = vmatmul.mubr.f32.gmra.mrb[0].mxu0 %v158
  %v443 = vpop.f32.mrb[0].mxu0
  %v444 = vadd.f32 %v118, %v443
  %v445 = vpop.f32.mrb[0].mxu0
  %446 = vmatprep.mubr.f32.mxu0 0.0
  %447 = vmatmul.mubr.f32.gmra.mrb[0].mxu0 %v161
  %v448 = vpop.f32.mrb[0].mxu0
  %v449 = vadd.f32 %v118, %v448
  %v450 = vpop.f32.mrb[0].mxu0
  %451 = vmatprep.mubr.f32.mxu0 0.0
  %452 = vmatmul.mubr.f32.gmra.mrb[0].mxu0 %v164
  %v453 = vpop.f32.mrb[0].mxu0
  %v454 = vadd.f32 %v118, %v453
  %v455 = vpop.f32.mrb[0].mxu0
  %456 = vmatprep.mubr.f32.mxu0 0.0
  %457 = vmatmul.mubr.f32.gmra.mrb[0].mxu0 %v167
  %v458 = vpop.f32.mrb[0].mxu0
  %v459 = vadd.f32 %v118, %v458
  %v460 = vpop.f32.mrb[0].mxu0
  %461 = vmatprep.mubr.f32.mxu0 0.0
  %462 = vmatmul.mubr.f32.gmra.mrb[0].mxu0 %v170
  %v463 = vpop.f32.mrb[0].mxu0
  %v464 = vadd.f32 %v118, %v463
  %v465 = vpop.f32.mrb[0].mxu0
  %466 = vmatprep.mubr.f32.mxu0 0.0
  %467 = vmatmul.mubr.f32.gmra.mrb[0].mxu0 %v173
  %v468 = vpop.f32.mrb[0].mxu0
  %v469 = vadd.f32 %v118, %v468
  %v470 = vpop.f32.mrb[0].mxu0
  %471 = vmatprep.mubr.f32.mxu0 0.0
  %472 = vmatmul.mubr.f32.gmra.mrb[0].mxu0 %v176
  %v473 = vpop.f32.mrb[0].mxu0
  %v474 = vadd.f32 %v118, %v473
  %v475 = vpop.f32.mrb[0].mxu0
  %476 = vmatprep.mubr.f32.mxu0 0.0
  %477 = vmatmul.mubr.f32.gmra.mrb[0].mxu0 %v179
  %v478 = vpop.f32.mrb[0].mxu0
  %v479 = vadd.f32 %v118, %v478
  %v480 = vpop.f32.mrb[0].mxu0
  %481 = vmatprep.mubr.f32.mxu0 0.0
  %482 = vmatmul.mubr.f32.gmra.mrb[0].mxu0 %v182
  %v483 = vpop.f32.mrb[0].mxu0
  %v484 = vadd.f32 %v118, %v483
  %v485 = vpop.f32.mrb[0].mxu0
  %486 = vmatprep.mubr.f32.mxu0 0.0
  %487 = vmatmul.mubr.f32.gmra.mrb[0].mxu0 %v185
  %v488 = vpop.f32.mrb[0].mxu0
  %v489 = vadd.f32 %v118, %v488
  %v490 = vpop.f32.mrb[0].mxu0
  %491 = vmatprep.mubr.f32.mxu0 0.0
  %492 = vmatmul.mubr.f32.gmra.mrb[0].mxu0 %v188
  %v493 = vpop.f32.mrb[0].mxu0
  %v494 = vadd.f32 %v118, %v493
  %v495 = vpop.f32.mrb[0].mxu0
  %496 = vmatprep.mubr.f32.mxu0 0.0
  %497 = vmatmul.mubr.f32.gmra.mrb[0].mxu0 %v191
  %v498 = vpop.f32.mrb[0].mxu0
  %v499 = vadd.f32 %v118, %v498
  %v500 = vpop.f32.mrb[0].mxu0
  %501 = vmatprep.mubr.f32.mxu0 0.0
  %502 = vmatmul.mubr.f32.gmra.mrb[0].mxu0 %v194
  %v503 = vpop.f32.mrb[0].mxu0
  %v504 = vadd.f32 %v118, %v503
  %v505 = vpop.f32.mrb[0].mxu0
  %506 = vmatprep.mubr.f32.mxu0 0.0
  %507 = vmatmul.mubr.f32.gmra.mrb[0].mxu0 %v197
  %v508 = vpop.f32.mrb[0].mxu0
  %v509 = vadd.f32 %v118, %v508
  %v510 = vpop.f32.mrb[0].mxu0
  %511 = vmatprep.mubr.f32.mxu0 0.0
  %512 = vmatmul.mubr.f32.gmra.mrb[0].mxu0 %v200
  %v513 = vpop.f32.mrb[0].mxu0
  %v514 = vadd.f32 %v118, %v513
  %v515 = vpop.f32.mrb[0].mxu0
  %516 = vmatprep.mubr.f32.mxu0 0.0
  %517 = vmatmul.mubr.f32.gmra.mrb[0].mxu0 %v203
  %v518 = vpop.f32.mrb[0].mxu0
  %v519 = vadd.f32 %v118, %v518
  %v520 = vpop.f32.mrb[0].mxu0
  %521 = vmatprep.mubr.f32.mxu0 0.0
  %522 = vmatmul.mubr.f32.gmra.mrb[0].mxu0 %v206
  %v523 = vpop.f32.mrb[0].mxu0
  %v524 = vadd.f32 %v118, %v523
  %v525 = vpop.f32.mrb[0].mxu0
  %526 = vmatprep.mubr.f32.mxu0 0.0
  %527 = vmatmul.mubr.f32.gmra.mrb[0].mxu0 %v209
  %v528 = vpop.f32.mrb[0].mxu0
  %v529 = vadd.f32 %v118, %v528
  %v530 = vpop.f32.mrb[0].mxu0
  %531 = vmatprep.mubr.f32.mxu0 0.0
  %532 = vmatmul.mubr.f32.gmra.mrb[0].mxu0 %v212
  %v533 = vpop.f32.mrb[0].mxu0
  %v534 = vadd.f32 %v118, %v533
  %v535 = vpop.f32.mrb[0].mxu0
  %536 = vmatprep.mubr.f32.mxu0 0.0
  %537 = vmatmul.mubr.f32.gmra.mrb[0].mxu0 %v215
  %v538 = vpop.f32.mrb[0].mxu0
  %v539 = vadd.f32 %v118, %v538
  %v540 = vpop.f32.mrb[0].mxu0
  %541 = vmatprep.mubr.f32.mxu0 0.0
  %542 = vmatmul.mubr.f32.gmra.mrb[0].mxu0 %v218
  %v543 = vpop.f32.mrb[0].mxu0
  %v544 = vadd.f32 %v118, %v543
  %v545 = vpop.f32.mrb[0].mxu0
  %546 = vmatprep.mubr.f32.mxu0 0.0
  %547 = vmatmul.mubr.f32.gmra.mrb[0].mxu0 %v221
  %v548 = vpop.f32.mrb[0].mxu0
  %v549 = vadd.f32 %v118, %v548
  %v550 = vpop.f32.mrb[0].mxu0
  %551 = vmatprep.mubr.f32.mxu0 0.0
  %552 = vmatmul.mubr.f32.gmra.mrb[0].mxu0 %v224
  %v553 = vpop.f32.mrb[0].mxu0
  %v554 = vadd.f32 %v118, %v553
  %v555 = vpop.f32.mrb[0].mxu0
  %556 = vmatprep.mubr.f32.mxu0 0.0
  %557 = vmatmul.mubr.f32.gmra.mrb[0].mxu0 %v227
  %v558 = vpop.f32.mrb[0].mxu0
  %v559 = vadd.f32 %v118, %v558
  %v560 = vpop.f32.mrb[0].mxu0
  %561 = vmatprep.mubr.f32.mxu0 0.0
  %562 = vmatmul.mubr.f32.gmra.mrb[0].mxu0 %v230
  %v563 = vpop.f32.mrb[0].mxu0
  %v564 = vadd.f32 %v118, %v563
  %v565 = vpop.f32.mrb[0].mxu0
  %566 = vmatprep.mubr.f32.mxu0 0.0
  %567 = vmatmul.mubr.f32.gmra.mrb[0].mxu0 %v233
  %v568 = vpop.f32.mrb[0].mxu0
  %v569 = vadd.f32 %v118, %v568
  %v570 = vpop.f32.mrb[0].mxu0
  %571 = vmatprep.mubr.f32.mxu0 0.0
  %572 = vmatmul.mubr.f32.gmra.mrb[0].mxu0 %v236
  %v573 = vpop.f32.mrb[0].mxu0
  %v574 = vadd.f32 %v118, %v573
  %v575 = vpop.f32.mrb[0].mxu0
  %576 = vmatprep.mubr.f32.mxu0 0.0
  %577 = vmatmul.mubr.f32.gmra.mrb[0].mxu0 %v239
  %v578 = vpop.f32.mrb[0].mxu0
  %v579 = vadd.f32 %v118, %v578
  %v580 = vpop.f32.mrb[0].mxu0
  %581 = vmatprep.mubr.f32.mxu0 0.0
  %582 = vmatmul.mubr.f32.gmra.mrb[0].mxu0 %v242
  %v583 = vpop.f32.mrb[0].mxu0
  %v584 = vadd.f32 %v118, %v583
  %v585 = vpop.f32.mrb[0].mxu0
  %586 = vmatprep.mubr.f32.mxu0 0.0
  %587 = vmatmul.mubr.f32.gmra.mrb[0].mxu0 %v245
  %v588 = vpop.f32.mrb[0].mxu0
  %v589 = vadd.f32 %v118, %v588
  %v590 = vpop.f32.mrb[0].mxu0
  %591 = vmatprep.mubr.f32.mxu0 0.0
  %592 = vmatmul.mubr.f32.gmra.mrb[0].mxu0 %v248
  %v593 = vpop.f32.mrb[0].mxu0
  %v594 = vadd.f32 %v118, %v593
  %v595 = vpop.f32.mrb[0].mxu0
  %596 = vmatprep.mubr.f32.mxu0 0.0
  %597 = vmatmul.mubr.f32.gmra.mrb[0].mxu0 %v251
  %v598 = vpop.f32.mrb[0].mxu0
  %v599 = vadd.f32 %v118, %v598
  %v600 = vpop.f32.mrb[0].mxu0
  %601 = vmatprep.mubr.f32.mxu0 0.0
  %602 = vmatmul.mubr.f32.gmra.mrb[0].mxu0 %v254
  %v603 = vpop.f32.mrb[0].mxu0
  %v604 = vadd.f32 %v118, %v603
  %v605 = vpop.f32.mrb[0].mxu0
  %606 = vmatprep.mubr.f32.mxu0 0.0
  %607 = vmatmul.mubr.f32.gmra.mrb[0].mxu0 %v257
  %v608 = vpop.f32.mrb[0].mxu0
  %v609 = vadd.f32 %v118, %v608
  %v610 = vpop.f32.mrb[0].mxu0
  %611 = vmatprep.mubr.f32.mxu0 0.0
  %612 = vmatmul.mubr.f32.gmra.mrb[0].mxu0 %v260
  %v613 = vpop.f32.mrb[0].mxu0
  %v614 = vadd.f32 %v118, %v613
  %v615 = vpop.f32.mrb[0].mxu0
  %616 = vmatprep.mubr.f32.mxu0 0.0
  %617 = vmatmul.mubr.f32.gmra.mrb[0].mxu0 %v263
  %v618 = vpop.f32.mrb[0].mxu0
  %v619 = vadd.f32 %v118, %v618
  %v620 = vpop.f32.mrb[0].mxu0
  %621 = vmatprep.mubr.f32.mxu0 0.0
  %622 = vmatmul.mubr.f32.gmra.mrb[0].mxu0 %v266
  %v623 = vpop.f32.mrb[0].mxu0
  %v624 = vadd.f32 %v118, %v623
  %v625 = vpop.f32.mrb[0].mxu0
  %626 = vmatprep.mubr.f32.mxu0 0.0
  %627 = vmatmul.mubr.f32.gmra.mrb[0].mxu0 %v269
  %v628 = vpop.f32.mrb[0].mxu0
  %v629 = vadd.f32 %v118, %v628
  %v630 = vpop.f32.mrb[0].mxu0
  %631 = vmatprep.mubr.f32.mxu0 0.0
  %632 = vmatmul.mubr.f32.gmra.mrb[0].mxu0 %v272
  %v633 = vpop.f32.mrb[0].mxu0
  %v634 = vadd.f32 %v118, %v633
  %v635 = vpop.f32.mrb[0].mxu0
  %636 = vmatprep.mubr.f32.mxu0 0.0
  %637 = vmatmul.mubr.f32.gmra.mrb[0].mxu0 %v275
  %v638 = vpop.f32.mrb[0].mxu0
  %v639 = vadd.f32 %v118, %v638
  %v640 = vpop.f32.mrb[0].mxu0
  %641 = vmatprep.mubr.f32.mxu0 0.0
  %642 = vmatmul.mubr.f32.gmra.mrb[0].mxu0 %v278
  %v643 = vpop.f32.mrb[0].mxu0
  %v644 = vadd.f32 %v118, %v643
  %v645 = vpop.f32.mrb[0].mxu0
  %646 = vmatprep.mubr.f32.mxu0 0.0
  %647 = vmatmul.mubr.f32.gmra.mrb[0].mxu0 %v281
  %v648 = vpop.f32.mrb[0].mxu0
  %v649 = vadd.f32 %v118, %v648
  %v650 = vpop.f32.mrb[0].mxu0
  %651 = vmatprep.mubr.f32.mxu0 0.0
  %652 = vmatmul.mubr.f32.gmra.mrb[0].mxu0 %v284
  %v653 = vpop.f32.mrb[0].mxu0
  %v654 = vadd.f32 %v118, %v653
  %v655 = vpop.f32.mrb[0].mxu0
  %656 = vmatprep.mubr.f32.mxu0 0.0
  %657 = vmatmul.mubr.f32.gmra.mrb[0].mxu0 %v287
  %v658 = vpop.f32.mrb[0].mxu0
  %v659 = vadd.f32 %v118, %v658
  %v660 = vpop.f32.mrb[0].mxu0
  %661 = vmatprep.mubr.f32.mxu0 0.0
  %662 = vmatmul.mubr.f32.gmra.mrb[0].mxu0 %v290
  %v663 = vpop.f32.mrb[0].mxu0
  %v664 = vadd.f32 %v118, %v663
  %v665 = vpop.f32.mrb[0].mxu0
  %666 = vmatprep.mubr.f32.mxu0 0.0
  %667 = vmatmul.mubr.f32.gmra.mrb[0].mxu0 %v293
  %v668 = vpop.f32.mrb[0].mxu0
  %v669 = vadd.f32 %v118, %v668
  %v670 = vpop.f32.mrb[0].mxu0
  %671 = vmatprep.mubr.f32.mxu0 0.0
  %672 = vmatmul.mubr.f32.gmra.mrb[0].mxu0 %v296
  %v673 = vpop.f32.mrb[0].mxu0
  %v674 = vadd.f32 %v118, %v673
  %v675 = vpop.f32.mrb[0].mxu0
  %676 = vmatprep.mubr.f32.mxu0 0.0
  %677 = vmatmul.mubr.f32.gmra.mrb[0].mxu0 %v299
  %v678 = vpop.f32.mrb[0].mxu0
  %v679 = vadd.f32 %v118, %v678
  %v680 = vpop.f32.mrb[0].mxu0
  %681 = vmatprep.mubr.f32.mxu0 0.0
  %682 = vmatmul.mubr.f32.gmra.mrb[0].mxu0 %v302
  %v683 = vpop.f32.mrb[0].mxu0
  %v684 = vadd.f32 %v118, %v683
  %v685 = vpop.f32.mrb[0].mxu0
  %686 = vmatprep.mubr.f32.mxu0 0.0
  %687 = vmatmul.mubr.f32.gmra.mrb[0].mxu0 %v305
  %v688 = vpop.f32.mrb[0].mxu0
  %v689 = vadd.f32 %v118, %v688
  %v690 = vpop.f32.mrb[0].mxu0
  %691 = vmatprep.mubr.f32.mxu0 0.0
  %692 = vmatmul.mubr.f32.gmra.mrb[0].mxu0 %v308
  %v693 = vpop.f32.mrb[0].mxu0
  %v694 = vadd.f32 %v118, %v693
  %v695 = vpop.f32.mrb[0].mxu0
  %696 = vmatprep.mubr.f32.mxu0 0.0
  %697 = vmatmul.mubr.f32.gmra.mrb[0].mxu0 %v311
  %v698 = vpop.f32.mrb[0].mxu0
  %v699 = vadd.f32 %v118, %v698
  %v700 = vpop.f32.mrb[0].mxu0
  %701 = vdwg.mxu0
  %v702 = vmax.f32 %v384, 0.0
  %v703 = vmax.f32 %v389, 0.0
  %v704 = vmax.f32 %v394, 0.0
  %v705 = vmax.f32 %v399, 0.0
  %v706 = vmax.f32 %v404, 0.0
  %v707 = vmax.f32 %v409, 0.0
  %v708 = vmax.f32 %v414, 0.0
  %v709 = vmax.f32 %v419, 0.0
  %v710 = vmax.f32 %v424, 0.0
  %v711 = vmax.f32 %v429, 0.0
  %v712 = vmax.f32 %v434, 0.0
  %v713 = vmax.f32 %v439, 0.0
  %v714 = vmax.f32 %v444, 0.0
  %v715 = vmax.f32 %v449, 0.0
  %v716 = vmax.f32 %v454, 0.0
  %v717 = vmax.f32 %v459, 0.0
  %v718 = vmax.f32 %v464, 0.0
  %v719 = vmax.f32 %v469, 0.0
  %v720 = vmax.f32 %v474, 0.0
  %v721 = vmax.f32 %v479, 0.0
  %v722 = vmax.f32 %v484, 0.0
  %v723 = vmax.f32 %v489, 0.0
  %v724 = vmax.f32 %v494, 0.0
  %v725 = vmax.f32 %v499, 0.0
  %v726 = vmax.f32 %v504, 0.0
  %v727 = vmax.f32 %v509, 0.0
  %v728 = vmax.f32 %v514, 0.0
  %v729 = vmax.f32 %v519, 0.0
  %v730 = vmax.f32 %v524, 0.0
  %v731 = vmax.f32 %v529, 0.0
  %v732 = vmax.f32 %v534, 0.0
  %v733 = vmax.f32 %v539, 0.0
  %v734 = vmax.f32 %v544, 0.0
  %v735 = vmax.f32 %v549, 0.0
  %v736 = vmax.f32 %v554, 0.0
  %v737 = vmax.f32 %v559, 0.0
  %v738 = vmax.f32 %v564, 0.0
  %v739 = vmax.f32 %v569, 0.0
  %v740 = vmax.f32 %v574, 0.0
  %v741 = vmax.f32 %v579, 0.0
  %v742 = vmax.f32 %v584, 0.0
  %v743 = vmax.f32 %v589, 0.0
  %v744 = vmax.f32 %v594, 0.0
  %v745 = vmax.f32 %v599, 0.0
  %v746 = vmax.f32 %v604, 0.0
  %v747 = vmax.f32 %v609, 0.0
  %v748 = vmax.f32 %v614, 0.0
  %v749 = vmax.f32 %v619, 0.0
  %v750 = vmax.f32 %v624, 0.0
  %v751 = vmax.f32 %v629, 0.0
  %v752 = vmax.f32 %v634, 0.0
  %v753 = vmax.f32 %v639, 0.0
  %v754 = vmax.f32 %v644, 0.0
  %v755 = vmax.f32 %v649, 0.0
  %v756 = vmax.f32 %v654, 0.0
  %v757 = vmax.f32 %v659, 0.0
  %v758 = vmax.f32 %v664, 0.0
  %v759 = vmax.f32 %v669, 0.0
  %v760 = vmax.f32 %v674, 0.0
  %v761 = vmax.f32 %v679, 0.0
  %v762 = vmax.f32 %v684, 0.0
  %v763 = vmax.f32 %v689, 0.0
  %v764 = vmax.f32 %v694, 0.0
  %v765 = vmax.f32 %v699, 0.0
  %vm766 = vcmask 130048
  %767 = vst.msk [vmem:[#allocation2] sm:$0xff] %vm766, %v702
  %768 = vst.msk [vmem:[#allocation2 + $0x8] sm:$0xff] %vm766, %v703
  %769 = vst.msk [vmem:[#allocation2 + $0x10] sm:$0xff] %vm766, %v704
  %770 = vst.msk [vmem:[#allocation2 + $0x18] sm:$0xff] %vm766, %v705
  %771 = vst.msk [vmem:[#allocation2 + $0x20] sm:$0xff] %vm766, %v706
  %772 = vst.msk [vmem:[#allocation2 + $0x28] sm:$0xff] %vm766, %v707
  %773 = vst.msk [vmem:[#allocation2 + $0x30] sm:$0xff] %vm766, %v708
  %774 = vst.msk [vmem:[#allocation2 + $0x38] sm:$0xff] %vm766, %v709
  %775 = vst.msk [vmem:[#allocation2 + $0x40] sm:$0xff] %vm766, %v710
  %776 = vst.msk [vmem:[#allocation2 + $0x48] sm:$0xff] %vm766, %v711
  %777 = vst.msk [vmem:[#allocation2 + $0x50] sm:$0xff] %vm766, %v712
  %778 = vst.msk [vmem:[#allocation2 + $0x58] sm:$0xff] %vm766, %v713
  %779 = vst.msk [vmem:[#allocation2 + $0x60] sm:$0xff] %vm766, %v714
  %780 = vst.msk [vmem:[#allocation2 + $0x68] sm:$0xff] %vm766, %v715
  %781 = vst.msk [vmem:[#allocation2 + $0x70] sm:$0xff] %vm766, %v716
  %782 = vst.msk [vmem:[#allocation2 + $0x78] sm:$0xff] %vm766, %v717
  %783 = vst.msk [vmem:[#allocation2 + $0x80] sm:$0xff] %vm766, %v718
  %784 = vst.msk [vmem:[#allocation2 + $0x88] sm:$0xff] %vm766, %v719
  %785 = vst.msk [vmem:[#allocation2 + $0x90] sm:$0xff] %vm766, %v720
  %786 = vst.msk [vmem:[#allocation2 + $0x98] sm:$0xff] %vm766, %v721
  %787 = vst.msk [vmem:[#allocation2 + $0xa0] sm:$0xff] %vm766, %v722
  %788 = vst.msk [vmem:[#allocation2 + $0xa8] sm:$0xff] %vm766, %v723
  %789 = vst.msk [vmem:[#allocation2 + $0xb0] sm:$0xff] %vm766, %v724
  %790 = vst.msk [vmem:[#allocation2 + $0xb8] sm:$0xff] %vm766, %v725
  %791 = vst.msk [vmem:[#allocation2 + $0xc0] sm:$0xff] %vm766, %v726
  %792 = vst.msk [vmem:[#allocation2 + $0xc8] sm:$0xff] %vm766, %v727
  %793 = vst.msk [vmem:[#allocation2 + $0xd0] sm:$0xff] %vm766, %v728
  %794 = vst.msk [vmem:[#allocation2 + $0xd8] sm:$0xff] %vm766, %v729
  %795 = vst.msk [vmem:[#allocation2 + $0xe0] sm:$0xff] %vm766, %v730
  %796 = vst.msk [vmem:[#allocation2 + $0xe8] sm:$0xff] %vm766, %v731
  %797 = vst.msk [vmem:[#allocation2 + $0xf0] sm:$0xff] %vm766, %v732
  %798 = vst.msk [vmem:[#allocation2 + $0xf8] sm:$0xff] %vm766, %v733
  %799 = vst.msk [vmem:[#allocation2 + $0x100] sm:$0xff] %vm766, %v734
  %800 = vst.msk [vmem:[#allocation2 + $0x108] sm:$0xff] %vm766, %v735
  %801 = vst.msk [vmem:[#allocation2 + $0x110] sm:$0xff] %vm766, %v736
  %802 = vst.msk [vmem:[#allocation2 + $0x118] sm:$0xff] %vm766, %v737
  %803 = vst.msk [vmem:[#allocation2 + $0x120] sm:$0xff] %vm766, %v738
  %804 = vst.msk [vmem:[#allocation2 + $0x128] sm:$0xff] %vm766, %v739
  %805 = vst.msk [vmem:[#allocation2 + $0x130] sm:$0xff] %vm766, %v740
  %806 = vst.msk [vmem:[#allocation2 + $0x138] sm:$0xff] %vm766, %v741
  %807 = vst.msk [vmem:[#allocation2 + $0x140] sm:$0xff] %vm766, %v742
  %808 = vst.msk [vmem:[#allocation2 + $0x148] sm:$0xff] %vm766, %v743
  %809 = vst.msk [vmem:[#allocation2 + $0x150] sm:$0xff] %vm766, %v744
  %810 = vst.msk [vmem:[#allocation2 + $0x158] sm:$0xff] %vm766, %v745
  %811 = vst.msk [vmem:[#allocation2 + $0x160] sm:$0xff] %vm766, %v746
  %812 = vst.msk [vmem:[#allocation2 + $0x168] sm:$0xff] %vm766, %v747
  %813 = vst.msk [vmem:[#allocation2 + $0x170] sm:$0xff] %vm766, %v748
  %814 = vst.msk [vmem:[#allocation2 + $0x178] sm:$0xff] %vm766, %v749
  %815 = vst.msk [vmem:[#allocation2 + $0x180] sm:$0xff] %vm766, %v750
  %816 = vst.msk [vmem:[#allocation2 + $0x188] sm:$0xff] %vm766, %v751
  %817 = vst.msk [vmem:[#allocation2 + $0x190] sm:$0xff] %vm766, %v752
  %818 = vst.msk [vmem:[#allocation2 + $0x198] sm:$0xff] %vm766, %v753
  %819 = vst.msk [vmem:[#allocation2 + $0x1a0] sm:$0xff] %vm766, %v754
  %820 = vst.msk [vmem:[#allocation2 + $0x1a8] sm:$0xff] %vm766, %v755
  %821 = vst.msk [vmem:[#allocation2 + $0x1b0] sm:$0xff] %vm766, %v756
  %822 = vst.msk [vmem:[#allocation2 + $0x1b8] sm:$0xff] %vm766, %v757
  %823 = vst.msk [vmem:[#allocation2 + $0x1c0] sm:$0xff] %vm766, %v758
  %824 = vst.msk [vmem:[#allocation2 + $0x1c8] sm:$0xff] %vm766, %v759
  %825 = vst.msk [vmem:[#allocation2 + $0x1d0] sm:$0xff] %vm766, %v760
  %826 = vst.msk [vmem:[#allocation2 + $0x1d8] sm:$0xff] %vm766, %v761
  %827 = vst.msk [vmem:[#allocation2 + $0x1e0] sm:$0xff] %vm766, %v762
  %828 = vst.msk [vmem:[#allocation2 + $0x1e8] sm:$0xff] %vm766, %v763
  %829 = vst.msk [vmem:[#allocation2 + $0x1f0] sm:$0xff] %vm766, %v764
  %830 = vst.msk [vmem:[#allocation2 + $0x1f8] sm:$0xff] %vm766, %v765
  %v831 = vld [vmem:[#allocation2] ss:$2 sm:$0xff]
  %s832 = scalar_lea.vmem [#allocation2], 16
  %v833 = vld [vmem:[%s832] ss:$2 sm:$0xff]
  %s834 = scalar_lea.vmem [#allocation2], 32
  %v835 = vld [vmem:[%s834] ss:$2 sm:$0xff]
  %s836 = scalar_lea.vmem [#allocation2], 48
  %v837 = vld [vmem:[%s836] ss:$2 sm:$0xff]
  %s838 = scalar_lea.vmem [#allocation2], 64
  %v839 = vld [vmem:[%s838] ss:$2 sm:$0xff]
  %s840 = scalar_lea.vmem [#allocation2], 80
  %v841 = vld [vmem:[%s840] ss:$2 sm:$0xff]
  %s842 = scalar_lea.vmem [#allocation2], 96
  %v843 = vld [vmem:[%s842] ss:$2 sm:$0xff]
  %s844 = scalar_lea.vmem [#allocation2], 112
  %v845 = vld [vmem:[%s844] ss:$2 sm:$0xff]
  %s846 = scalar_lea.vmem [#allocation2], 128
  %v847 = vld [vmem:[%s846] ss:$2 sm:$0xff]
  %s848 = scalar_lea.vmem [#allocation2], 144
  %v849 = vld [vmem:[%s848] ss:$2 sm:$0xff]
  %s850 = scalar_lea.vmem [#allocation2], 160
  %v851 = vld [vmem:[%s850] ss:$2 sm:$0xff]
  %s852 = scalar_lea.vmem [#allocation2], 176
  %v853 = vld [vmem:[%s852] ss:$2 sm:$0xff]
  %s854 = scalar_lea.vmem [#allocation2], 192
  %v855 = vld [vmem:[%s854] ss:$2 sm:$0xff]
  %s856 = scalar_lea.vmem [#allocation2], 208
  %v857 = vld [vmem:[%s856] ss:$2 sm:$0xff]
  %s858 = scalar_lea.vmem [#allocation2], 224
  %v859 = vld [vmem:[%s858] ss:$2 sm:$0xff]
  %s860 = scalar_lea.vmem [#allocation2], 240
  %v861 = vld [vmem:[%s860] ss:$2 sm:$0xff]
  %s862 = scalar_lea.vmem [#allocation2], 256
  %v863 = vld [vmem:[%s862] ss:$2 sm:$0xff]
  %s864 = scalar_lea.vmem [#allocation2], 272
  %v865 = vld [vmem:[%s864] ss:$2 sm:$0xff]
  %s866 = scalar_lea.vmem [#allocation2], 288
  %v867 = vld [vmem:[%s866] ss:$2 sm:$0xff]
  %s868 = scalar_lea.vmem [#allocation2], 304
  %v869 = vld [vmem:[%s868] ss:$2 sm:$0xff]
  %s870 = scalar_lea.vmem [#allocation2], 320
  %v871 = vld [vmem:[%s870] ss:$2 sm:$0xff]
  %s872 = scalar_lea.vmem [#allocation2], 336
  %v873 = vld [vmem:[%s872] ss:$2 sm:$0xff]
  %s874 = scalar_lea.vmem [#allocation2], 352
  %v875 = vld [vmem:[%s874] ss:$2 sm:$0xff]
  %s876 = scalar_lea.vmem [#allocation2], 368
  %v877 = vld [vmem:[%s876] ss:$2 sm:$0xff]
  %s878 = scalar_lea.vmem [#allocation2], 384
  %v879 = vld [vmem:[%s878] ss:$2 sm:$0xff]
  %s880 = scalar_lea.vmem [#allocation2], 400
  %v881 = vld [vmem:[%s880] ss:$2 sm:$0xff]
  %s882 = scalar_lea.vmem [#allocation2], 416
  %v883 = vld [vmem:[%s882] ss:$2 sm:$0xff]
  %s884 = scalar_lea.vmem [#allocation2], 432
  %v885 = vld [vmem:[%s884] ss:$2 sm:$0xff]
  %s886 = scalar_lea.vmem [#allocation2], 448
  %v887 = vld [vmem:[%s886] ss:$2 sm:$0xff]
  %s888 = scalar_lea.vmem [#allocation2], 464
  %v889 = vld [vmem:[%s888] ss:$2 sm:$0xff]
  %s890 = scalar_lea.vmem [#allocation2], 480
  %v891 = vld [vmem:[%s890] ss:$2 sm:$0xff]
  %s892 = scalar_lea.vmem [#allocation2], 1
  %v893 = vld [vmem:[%s892] ss:$2 sm:$0xff]
  %s894 = scalar_lea.vmem [#allocation2], 17
  %v895 = vld [vmem:[%s894] ss:$2 sm:$0xff]
  %s896 = scalar_lea.vmem [#allocation2], 33
  %v897 = vld [vmem:[%s896] ss:$2 sm:$0xff]
  %s898 = scalar_lea.vmem [#allocation2], 49
  %v899 = vld [vmem:[%s898] ss:$2 sm:$0xff]
  %s900 = scalar_lea.vmem [#allocation2], 65
  %v901 = vld [vmem:[%s900] ss:$2 sm:$0xff]
  %s902 = scalar_lea.vmem [#allocation2], 81
  %v903 = vld [vmem:[%s902] ss:$2 sm:$0xff]
  %s904 = scalar_lea.vmem [#allocation2], 97
  %v905 = vld [vmem:[%s904] ss:$2 sm:$0xff]
  %s906 = scalar_lea.vmem [#allocation2], 113
  %v907 = vld [vmem:[%s906] ss:$2 sm:$0xff]
  %s908 = scalar_lea.vmem [#allocation2], 129
  %v909 = vld [vmem:[%s908] ss:$2 sm:$0xff]
  %s910 = scalar_lea.vmem [#allocation2], 145
  %v911 = vld [vmem:[%s910] ss:$2 sm:$0xff]
  %s912 = scalar_lea.vmem [#allocation2], 161
  %v913 = vld [vmem:[%s912] ss:$2 sm:$0xff]
  %s914 = scalar_lea.vmem [#allocation2], 177
  %v915 = vld [vmem:[%s914] ss:$2 sm:$0xff]
  %s916 = scalar_lea.vmem [#allocation2], 193
  %v917 = vld [vmem:[%s916] ss:$2 sm:$0xff]
  %s918 = scalar_lea.vmem [#allocation2], 209
  %v919 = vld [vmem:[%s918] ss:$2 sm:$0xff]
  %s920 = scalar_lea.vmem [#allocation2], 225
  %v921 = vld [vmem:[%s920] ss:$2 sm:$0xff]
  %s922 = scalar_lea.vmem [#allocation2], 241
  %v923 = vld [vmem:[%s922] ss:$2 sm:$0xff]
  %s924 = scalar_lea.vmem [#allocation2], 257
  %v925 = vld [vmem:[%s924] ss:$2 sm:$0xff]
  %s926 = scalar_lea.vmem [#allocation2], 273
  %v927 = vld [vmem:[%s926] ss:$2 sm:$0xff]
  %s928 = scalar_lea.vmem [#allocation2], 289
  %v929 = vld [vmem:[%s928] ss:$2 sm:$0xff]
  %s930 = scalar_lea.vmem [#allocation2], 305
  %v931 = vld [vmem:[%s930] ss:$2 sm:$0xff]
  %s932 = scalar_lea.vmem [#allocation2], 321
  %v933 = vld [vmem:[%s932] ss:$2 sm:$0xff]
  %s934 = scalar_lea.vmem [#allocation2], 337
  %v935 = vld [vmem:[%s934] ss:$2 sm:$0xff]
  %s936 = scalar_lea.vmem [#allocation2], 353
  %v937 = vld [vmem:[%s936] ss:$2 sm:$0xff]
  %s938 = scalar_lea.vmem [#allocation2], 369
  %v939 = vld [vmem:[%s938] ss:$2 sm:$0xff]
  %s940 = scalar_lea.vmem [#allocation2], 385
  %v941 = vld [vmem:[%s940] ss:$2 sm:$0xff]
  %s942 = scalar_lea.vmem [#allocation2], 401
  %v943 = vld [vmem:[%s942] ss:$2 sm:$0xff]
  %s944 = scalar_lea.vmem [#allocation2], 417
  %v945 = vld [vmem:[%s944] ss:$2 sm:$0xff]
  %s946 = scalar_lea.vmem [#allocation2], 433
  %v947 = vld [vmem:[%s946] ss:$2 sm:$0xff]
  %s948 = scalar_lea.vmem [#allocation2], 449
  %v949 = vld [vmem:[%s948] ss:$2 sm:$0xff]
  %s950 = scalar_lea.vmem [#allocation2], 465
  %v951 = vld [vmem:[%s950] ss:$2 sm:$0xff]
  %s952 = scalar_lea.vmem [#allocation2], 481
  %v953 = vld [vmem:[%s952] ss:$2 sm:$0xff]
  %s954 = scalar_lea.vmem [#allocation2], 496
  %v955 = vld [vmem:[%s954] ss:$2 sm:$0xff]
  %s956 = scalar_lea.vmem [#allocation2], 497
  %v957 = vld [vmem:[%s956] ss:$2 sm:$0xff]
  %v958 = vmax.f32 %v831, %v893
  %v959 = vmax.f32 %v833, %v895
  %v960 = vmax.f32 %v835, %v897
  %v961 = vmax.f32 %v837, %v899
  %v962 = vmax.f32 %v839, %v901
  %v963 = vmax.f32 %v841, %v903
  %v964 = vmax.f32 %v843, %v905
  %v965 = vmax.f32 %v845, %v907
  %v966 = vmax.f32 %v847, %v909
  %v967 = vmax.f32 %v849, %v911
  %v968 = vmax.f32 %v851, %v913
  %v969 = vmax.f32 %v853, %v915
  %v970 = vmax.f32 %v855, %v917
  %v971 = vmax.f32 %v857, %v919
  %v972 = vmax.f32 %v859, %v921
  %v973 = vmax.f32 %v861, %v923
  %v974 = vmax.f32 %v863, %v925
  %v975 = vmax.f32 %v865, %v927
  %v976 = vmax.f32 %v867, %v929
  %v977 = vmax.f32 %v869, %v931
  %v978 = vmax.f32 %v871, %v933
  %v979 = vmax.f32 %v873, %v935
  %v980 = vmax.f32 %v875, %v937
  %v981 = vmax.f32 %v877, %v939
  %v982 = vmax.f32 %v879, %v941
  %v983 = vmax.f32 %v881, %v943
  %v984 = vmax.f32 %v883, %v945
  %v985 = vmax.f32 %v885, %v947
  %v986 = vmax.f32 %v887, %v949
  %v987 = vmax.f32 %v889, %v951
  %v988 = vmax.f32 %v891, %v953
  %v989 = vmax.f32 %v955, %v957
  %v990 = vmax.f32 %v958, %v959
  %v991 = vmax.f32 %v959, %v960
  %v992 = vmax.f32 %v960, %v961
  %v993 = vmax.f32 %v961, %v962
  %v994 = vmax.f32 %v962, %v963
  %v995 = vmax.f32 %v963, %v964
  %v996 = vmax.f32 %v964, %v965
  %v997 = vmax.f32 %v965, %v966
  %v998 = vmax.f32 %v966, %v967
  %v999 = vmax.f32 %v967, %v968
  %v1000 = vmax.f32 %v968, %v969
  %v1001 = vmax.f32 %v969, %v970
  %v1002 = vmax.f32 %v970, %v971
  %v1003 = vmax.f32 %v971, %v972
  %v1004 = vmax.f32 %v972, %v973
  %v1005 = vmax.f32 %v973, %v974
  %v1006 = vmax.f32 %v974, %v975
  %v1007 = vmax.f32 %v975, %v976
  %v1008 = vmax.f32 %v976, %v977
  %v1009 = vmax.f32 %v977, %v978
  %v1010 = vmax.f32 %v978, %v979
  %v1011 = vmax.f32 %v979, %v980
  %v1012 = vmax.f32 %v980, %v981
  %v1013 = vmax.f32 %v981, %v982
  %v1014 = vmax.f32 %v982, %v983
  %v1015 = vmax.f32 %v983, %v984
  %v1016 = vmax.f32 %v984, %v985
  %v1017 = vmax.f32 %v985, %v986
  %v1018 = vmax.f32 %v986, %v987
  %v1019 = vmax.f32 %v987, %v988
  %v1020 = vmax.f32 %v988, %v989
  %1021 = vst.msk [vmem:[#allocation3] sm:$0xff] %vm766, %v990
  %1022 = vst.msk [vmem:[#allocation3 + $0x8] sm:$0xff] %vm766, %v991
  %1023 = vst.msk [vmem:[#allocation3 + $0x10] sm:$0xff] %vm766, %v992
  %1024 = vst.msk [vmem:[#allocation3 + $0x18] sm:$0xff] %vm766, %v993
  %1025 = vst.msk [vmem:[#allocation3 + $0x20] sm:$0xff] %vm766, %v994
  %1026 = vst.msk [vmem:[#allocation3 + $0x28] sm:$0xff] %vm766, %v995
  %1027 = vst.msk [vmem:[#allocation3 + $0x30] sm:$0xff] %vm766, %v996
  %1028 = vst.msk [vmem:[#allocation3 + $0x38] sm:$0xff] %vm766, %v997
  %1029 = vst.msk [vmem:[#allocation3 + $0x40] sm:$0xff] %vm766, %v998
  %1030 = vst.msk [vmem:[#allocation3 + $0x48] sm:$0xff] %vm766, %v999
  %1031 = vst.msk [vmem:[#allocation3 + $0x50] sm:$0xff] %vm766, %v1000
  %1032 = vst.msk [vmem:[#allocation3 + $0x58] sm:$0xff] %vm766, %v1001
  %1033 = vst.msk [vmem:[#allocation3 + $0x60] sm:$0xff] %vm766, %v1002
  %1034 = vst.msk [vmem:[#allocation3 + $0x68] sm:$0xff] %vm766, %v1003
  %1035 = vst.msk [vmem:[#allocation3 + $0x70] sm:$0xff] %vm766, %v1004
  %1036 = vst.msk [vmem:[#allocation3 + $0x78] sm:$0xff] %vm766, %v1005
  %1037 = vst.msk [vmem:[#allocation3 + $0x80] sm:$0xff] %vm766, %v1006
  %1038 = vst.msk [vmem:[#allocation3 + $0x88] sm:$0xff] %vm766, %v1007
  %1039 = vst.msk [vmem:[#allocation3 + $0x90] sm:$0xff] %vm766, %v1008
  %1040 = vst.msk [vmem:[#allocation3 + $0x98] sm:$0xff] %vm766, %v1009
  %1041 = vst.msk [vmem:[#allocation3 + $0xa0] sm:$0xff] %vm766, %v1010
  %1042 = vst.msk [vmem:[#allocation3 + $0xa8] sm:$0xff] %vm766, %v1011
  %1043 = vst.msk [vmem:[#allocation3 + $0xb0] sm:$0xff] %vm766, %v1012
  %1044 = vst.msk [vmem:[#allocation3 + $0xb8] sm:$0xff] %vm766, %v1013
  %1045 = vst.msk [vmem:[#allocation3 + $0xc0] sm:$0xff] %vm766, %v1014
  %1046 = vst.msk [vmem:[#allocation3 + $0xc8] sm:$0xff] %vm766, %v1015
  %1047 = vst.msk [vmem:[#allocation3 + $0xd0] sm:$0xff] %vm766, %v1016
  %1048 = vst.msk [vmem:[#allocation3 + $0xd8] sm:$0xff] %vm766, %v1017
  %1049 = vst.msk [vmem:[#allocation3 + $0xe0] sm:$0xff] %vm766, %v1018
  %1050 = vst.msk [vmem:[#allocation3 + $0xe8] sm:$0xff] %vm766, %v1019
  %1051 = vst.msk [vmem:[#allocation3 + $0xf0] sm:$0xff] %vm766, %v1020
  %1052 = vst.msk [vmem:[#allocation4] sm:$0xff] %vm766, 0.0
  %vm1053 = vcmask 124928
  %1054 = vst.msk [vmem:[#allocation4 + $0x8] sm:$0x7] %vm1053, 0.0
  %vm1055 = vcmask 123904
  %1056 = vst.msk [vmem:[#allocation4 + $0x13] sm:$0x3] %vm1055, 0.0
  %1057 = vst.msk [vmem:[#allocation4 + $0x1d] sm:$0x3] %vm1055, 0.0
  %1058 = vst.msk [vmem:[#allocation4 + $0x27] sm:$0x3] %vm1055, 0.0
  %1059 = vst.msk [vmem:[#allocation4 + $0x31] sm:$0x3] %vm1055, 0.0
  %1060 = vst.msk [vmem:[#allocation4 + $0x3b] sm:$0x3] %vm1055, 0.0
  %1061 = vst.msk [vmem:[#allocation4 + $0x45] sm:$0x3] %vm1055, 0.0
  %1062 = vst.msk [vmem:[#allocation4 + $0x4f] sm:$0x3] %vm1055, 0.0
  %1063 = vst.msk [vmem:[#allocation4 + $0x59] sm:$0xff] %vm766, 0.0
  %vm1064 = vcmask 129024
  %1065 = vst.msk [vmem:[#allocation4 + $0x61] sm:$0x7f] %vm1064, 0.0
  %v1066 = vld [vmem:[#allocation3] sm:$0xff]
  %1067 = vst.msk [vmem:[#allocation4 + $0xb] sm:$0xff] %vm766, %v1066
  %v1068 = vld [vmem:[#allocation3 + $0x10] sm:$0xff]
  %1069 = vst.msk [vmem:[#allocation4 + $0x15] sm:$0xff] %vm766, %v1068
  %v1070 = vld [vmem:[#allocation3 + $0x20] sm:$0xff]
  %1071 = vst.msk [vmem:[#allocation4 + $0x1f] sm:$0xff] %vm766, %v1070
  %v1072 = vld [vmem:[#allocation3 + $0x30] sm:$0xff]
  %1073 = vst.msk [vmem:[#allocation4 + $0x29] sm:$0xff] %vm766, %v1072
  %v1074 = vld [vmem:[#allocation3 + $0x40] sm:$0xff]
  %1075 = vst.msk [vmem:[#allocation4 + $0x33] sm:$0xff] %vm766, %v1074
  %v1076 = vld [vmem:[#allocation3 + $0x50] sm:$0xff]
  %1077 = vst.msk [vmem:[#allocation4 + $0x3d] sm:$0xff] %vm766, %v1076
  %v1078 = vld [vmem:[#allocation3 + $0x60] sm:$0xff]
  %1079 = vst.msk [vmem:[#allocation4 + $0x47] sm:$0xff] %vm766, %v1078
  %v1080 = vld [vmem:[#allocation3 + $0x70] sm:$0xff]
  %1081 = vst.msk [vmem:[#allocation4 + $0x51] sm:$0xff] %vm766, %v1080
  %1082 = vst.msk [vmem:[#allocation4 + $0x68] sm:$0xff] %vm766, 0.0
  %1083 = vst.msk [vmem:[#allocation4 + $0x70] sm:$0x7] %vm1053, 0.0
  %1084 = vst.msk [vmem:[#allocation4 + $0x7b] sm:$0x3] %vm1055, 0.0
  %1085 = vst.msk [vmem:[#allocation4 + $0x85] sm:$0x3] %vm1055, 0.0
  %1086 = vst.msk [vmem:[#allocation4 + $0x8f] sm:$0x3] %vm1055, 0.0
  %1087 = vst.msk [vmem:[#allocation4 + $0x99] sm:$0x3] %vm1055, 0.0
  %1088 = vst.msk [vmem:[#allocation4 + $0xa3] sm:$0x3] %vm1055, 0.0
  %1089 = vst.msk [vmem:[#allocation4 + $0xad] sm:$0x3] %vm1055, 0.0
  %1090 = vst.msk [vmem:[#allocation4 + $0xb7] sm:$0x3] %vm1055, 0.0
  %1091 = vst.msk [vmem:[#allocation4 + $0xc1] sm:$0xff] %vm766, 0.0
  %1092 = vst.msk [vmem:[#allocation4 + $0xc9] sm:$0x7f] %vm1064, 0.0
  %v1093 = vld [vmem:[#allocation3 + $0x80] sm:$0xff]
  %1094 = vst.msk [vmem:[#allocation4 + $0x73] sm:$0xff] %vm766, %v1093
  %v1095 = vld [vmem:[#allocation3 + $0x90] sm:$0xff]
  %1096 = vst.msk [vmem:[#allocation4 + $0x7d] sm:$0xff] %vm766, %v1095
  %v1097 = vld [vmem:[#allocation3 + $0xa0] sm:$0xff]
  %1098 = vst.msk [vmem:[#allocation4 + $0x87] sm:$0xff] %vm766, %v1097
  %v1099 = vld [vmem:[#allocation3 + $0xb0] sm:$0xff]
  %1100 = vst.msk [vmem:[#allocation4 + $0x91] sm:$0xff] %vm766, %v1099
  %v1101 = vld [vmem:[#allocation3 + $0xc0] sm:$0xff]
  %1102 = vst.msk [vmem:[#allocation4 + $0x9b] sm:$0xff] %vm766, %v1101
  %v1103 = vld [vmem:[#allocation3 + $0xd0] sm:$0xff]
  %1104 = vst.msk [vmem:[#allocation4 + $0xa5] sm:$0xff] %vm766, %v1103
  %v1105 = vld [vmem:[#allocation3 + $0xe0] sm:$0xff]
  %1106 = vst.msk [vmem:[#allocation4 + $0xaf] sm:$0xff] %vm766, %v1105
  %v1107 = vld [vmem:[#allocation3 + $0xf0] sm:$0xff]
  %1108 = vst.msk [vmem:[#allocation4 + $0xb9] sm:$0xff] %vm766, %v1107
  %1109 = vst.msk [vmem:[#allocation4 + $0xd0] sm:$0xff] %vm766, 0.0
  %1110 = vst.msk [vmem:[#allocation4 + $0xd8] sm:$0xff] %vm766, 0.0
  %1111 = vst.msk [vmem:[#allocation4 + $0xe0] sm:$0xff] %vm766, 0.0
  %v1112 = vld [vmem:[#allocation4] sm:$0xff]
  %v1113 = vld [vmem:[#allocation4 + $0x8] sm:$0xff]
  %v1114 = vld [vmem:[#allocation4 + $0x10] sm:$0xff]
  %v1115 = vld [vmem:[#allocation4 + $0x18] sm:$0xff]
  %v1116 = vld [vmem:[#allocation4 + $0x20] sm:$0xff]
  %v1117 = vld [vmem:[#allocation4 + $0x28] sm:$0xff]
  %v1118 = vld [vmem:[#allocation4 + $0x30] sm:$0xff]
  %v1119 = vld [vmem:[#allocation4 + $0x38] sm:$0xff]
  %v1120 = vld [vmem:[#allocation4 + $0x40] sm:$0xff]
  %v1121 = vld [vmem:[#allocation4 + $0x48] sm:$0xff]
  %v1122 = vld [vmem:[#allocation4 + $0x50] sm:$0xff]
  %v1123 = vld [vmem:[#allocation4 + $0x58] sm:$0xff]
  %v1124 = vld [vmem:[#allocation4 + $0x60] sm:$0xff]
  %v1125 = vld [vmem:[#allocation4 + $0x68] sm:$0xff]
  %v1126 = vld [vmem:[#allocation4 + $0x70] sm:$0xff]
  %v1127 = vld [vmem:[#allocation4 + $0x78] sm:$0xff]
  %v1128 = vld [vmem:[#allocation4 + $0x80] sm:$0xff]
  %v1129 = vld [vmem:[#allocation4 + $0x88] sm:$0xff]
  %v1130 = vld [vmem:[#allocation4 + $0x90] sm:$0xff]
  %v1131 = vld [vmem:[#allocation4 + $0x98] sm:$0xff]
  %v1132 = vld [vmem:[#allocation4 + $0xa0] sm:$0xff]
  %v1133 = vld [vmem:[#allocation4 + $0xa8] sm:$0xff]
  %v1134 = vld [vmem:[#allocation4 + $0xb0] sm:$0xff]
  %v1135 = vld [vmem:[#allocation4 + $0xb8] sm:$0xff]
  %v1136 = vld [vmem:[#allocation4 + $0xc0] sm:$0xff]
  %v1137 = vld [vmem:[#allocation4 + $0xc8] sm:$0xff]
  %v1138 = vld [vmem:[%s3] sm:$0xff]
  %v1139 = vld [vmem:[%s3 + $0x8] sm:$0xff]
  %v1140 = vld [vmem:[#allocation4 + $0x1] sm:$0xff]
  %v1141 = vld [vmem:[#allocation4 + $0x9] sm:$0xff]
  %v1142 = vld [vmem:[#allocation4 + $0x11] sm:$0xff]
  %v1143 = vld [vmem:[#allocation4 + $0x19] sm:$0xff]
  %v1144 = vld [vmem:[#allocation4 + $0x21] sm:$0xff]
  %v1145 = vld [vmem:[#allocation4 + $0x29] sm:$0xff]
  %v1146 = vld [vmem:[#allocation4 + $0x31] sm:$0xff]
  %v1147 = vld [vmem:[#allocation4 + $0x39] sm:$0xff]
  %v1148 = vld [vmem:[#allocation4 + $0x41] sm:$0xff]
  %v1149 = vld [vmem:[#allocation4 + $0x49] sm:$0xff]
  %v1150 = vld [vmem:[#allocation4 + $0x51] sm:$0xff]
  %v1151 = vld [vmem:[#allocation4 + $0x59] sm:$0xff]
  %v1152 = vld [vmem:[#allocation4 + $0x61] sm:$0xff]
  %v1153 = vld [vmem:[#allocation4 + $0x69] sm:$0xff]
  %v1154 = vld [vmem:[#allocation4 + $0x71] sm:$0xff]
  %v1155 = vld [vmem:[#allocation4 + $0x79] sm:$0xff]
  %v1156 = vld [vmem:[#allocation4 + $0x81] sm:$0xff]
  %v1157 = vld [vmem:[#allocation4 + $0x89] sm:$0xff]
  %v1158 = vld [vmem:[#allocation4 + $0x91] sm:$0xff]
  %v1159 = vld [vmem:[#allocation4 + $0x99] sm:$0xff]
  %v1160 = vld [vmem:[#allocation4 + $0xa1] sm:$0xff]
  %v1161 = vld [vmem:[#allocation4 + $0xa9] sm:$0xff]
  %v1162 = vld [vmem:[#allocation4 + $0xb1] sm:$0xff]
  %v1163 = vld [vmem:[#allocation4 + $0xb9] sm:$0xff]
  %v1164 = vld [vmem:[#allocation4 + $0xc1] sm:$0xff]
  %v1165 = vld [vmem:[#allocation4 + $0xc9] sm:$0xff]
  %v1166 = vld [vmem:[%s3 + $0x10] sm:$0xff]
  %v1167 = vld [vmem:[%s3 + $0x18] sm:$0xff]
  %v1169 = vsel %vm766, %v1140, 0
  %v1172 = vsel %vm766, %v1141, 0
  %v1175 = vsel %vm766, %v1142, 0
  %v1178 = vsel %vm766, %v1143, 0
  %v1181 = vsel %vm766, %v1144, 0
  %v1184 = vsel %vm766, %v1145, 0
  %v1187 = vsel %vm766, %v1146, 0
  %v1190 = vsel %vm766, %v1147, 0
  %v1193 = vsel %vm766, %v1148, 0
  %v1196 = vsel %vm766, %v1149, 0
  %v1199 = vsel %vm766, %v1150, 0
  %v1202 = vsel %vm766, %v1151, 0
  %v1205 = vsel %vm766, %v1152, 0
  %v1208 = vsel %vm766, %v1153, 0
  %v1211 = vsel %vm766, %v1154, 0
  %v1214 = vsel %vm766, %v1155, 0
  %v1217 = vsel %vm766, %v1156, 0
  %v1220 = vsel %vm766, %v1157, 0
  %v1223 = vsel %vm766, %v1158, 0
  %v1226 = vsel %vm766, %v1159, 0
  %v1229 = vsel %vm766, %v1160, 0
  %v1232 = vsel %vm766, %v1161, 0
  %v1235 = vsel %vm766, %v1162, 0
  %v1238 = vsel %vm766, %v1163, 0
  %v1241 = vsel %vm766, %v1164, 0
  %v1244 = vsel %vm766, %v1165, 0
  %1246 = vmatprep.subr.mxu0 0.0
  %1247 = vmatpush1.msra.mxu0 %v1166
  %1248 = vmatprep.subr.mxu0 0.0
  %1249 = vmatpush1.msra.mxu0 %v1167
  %1250 = vmatprep.subr.mxu0 0.0
  %1251 = vmatpush1.msra.mxu0 0.0
  %1252 = vmatprep.subr.mxu0 0.0
  %1253 = vmatpush1.msra.mxu0 0.0
  %1254 = vmatprep.subr.mxu0 0.0
  %1255 = vmatpush1.msra.mxu0 0.0
  %1256 = vmatprep.subr.mxu0 0.0
  %1257 = vmatpush1.msra.mxu0 0.0
  %1258 = vmatprep.subr.mxu0 0.0
  %1259 = vmatpush1.msra.mxu0 0.0
  %1260 = vmatprep.subr.mxu0 0.0
  %1261 = vmatpush1.msra.mxu0 0.0
  %1262 = vmatprep.subr.mxu0 0.0
  %1263 = vmatpush1.msra.mxu0 0.0
  %1264 = vmatprep.subr.mxu0 0.0
  %1265 = vmatpush1.msra.mxu0 0.0
  %1266 = vmatprep.subr.mxu0 0.0
  %1267 = vmatpush1.msra.mxu0 0.0
  %1268 = vmatprep.subr.mxu0 0.0
  %1269 = vmatpush1.msra.mxu0 0.0
  %1270 = vmatprep.subr.mxu0 0.0
  %1271 = vmatpush1.msra.mxu0 0.0
  %1272 = vmatprep.subr.mxu0 0.0
  %1273 = vmatpush1.msra.mxu0 0.0
  %1274 = vmatprep.subr.mxu0 0.0
  %1275 = vmatpush1.msra.mxu0 0.0
  %1276 = vmatprep.subr.mxu0 0.0
  %1277 = vmatpush1.msra.mxu0 0.0
  %1278 = vmatprep.subr.mxu0 0.0
  %1279 = vmatpush1.msra.mxu0 0.0
  %1280 = vmatprep.subr.mxu0 0.0
  %1281 = vmatpush1.msra.mxu0 0.0
  %1282 = vmatprep.subr.mxu0 0.0
  %1283 = vmatpush1.msra.mxu0 0.0
  %1284 = vmatprep.subr.mxu0 0.0
  %1285 = vmatpush1.msra.mxu0 0.0
  %1286 = vmatprep.subr.mxu0 0.0
  %1287 = vmatpush1.msra.mxu0 0.0
  %1288 = vmatprep.subr.mxu0 0.0
  %1289 = vmatpush1.msra.mxu0 0.0
  %1290 = vmatprep.subr.mxu0 0.0
  %1291 = vmatpush1.msra.mxu0 0.0
  %1292 = vmatprep.subr.mxu0 0.0
  %1293 = vmatpush1.msra.mxu0 0.0
  %1294 = vmatprep.subr.mxu0 0.0
  %1295 = vmatpush1.msra.mxu0 0.0
  %1296 = vmatprep.subr.mxu0 0.0
  %1297 = vmatpush1.msra.mxu0 0.0
  %1298 = vmatprep.subr.mxu0 0.0
  %1299 = vmatpush1.msra.mxu0 0.0
  %1300 = vmatprep.subr.mxu0 0.0
  %1301 = vmatpush1.msra.mxu0 0.0
  %1302 = vmatprep.subr.mxu0 0.0
  %1303 = vmatpush1.msra.mxu0 0.0
  %1304 = vmatprep.subr.mxu0 0.0
  %1305 = vmatpush1.msra.mxu0 0.0
  %1306 = vmatprep.subr.mxu0 0.0
  %1307 = vmatpush1.msra.mxu0 0.0
  %1308 = vmatprep.subr.mxu0 0.0
  %1309 = vmatpush1.msra.mxu0 0.0
  %1310 = vmatprep.mubr.f32.mxu0 0.0
  %1311 = vmatmul.mubr.f32.gmra.mrb[0].mxu0 %v1169
  %v1312 = vpop.f32.mrb[0].mxu0
  %v1313 = vadd.f32 0.0, %v1312
  %v1314 = vpop.f32.mrb[0].mxu0
  %1315 = vmatprep.mubr.f32.mxu0 0.0
  %1316 = vmatmul.mubr.f32.gmra.mrb[0].mxu0 %v1172
  %v1317 = vpop.f32.mrb[0].mxu0
  %v1318 = vadd.f32 0.0, %v1317
  %v1319 = vpop.f32.mrb[0].mxu0
  %1320 = vmatprep.mubr.f32.mxu0 0.0
  %1321 = vmatmul.mubr.f32.gmra.mrb[0].mxu0 %v1175
  %v1322 = vpop.f32.mrb[0].mxu0
  %v1323 = vadd.f32 0.0, %v1322
  %v1324 = vpop.f32.mrb[0].mxu0
  %1325 = vmatprep.mubr.f32.mxu0 0.0
  %1326 = vmatmul.mubr.f32.gmra.mrb[0].mxu0 %v1178
  %v1327 = vpop.f32.mrb[0].mxu0
  %v1328 = vadd.f32 0.0, %v1327
  %v1329 = vpop.f32.mrb[0].mxu0
  %1330 = vmatprep.mubr.f32.mxu0 0.0
  %1331 = vmatmul.mubr.f32.gmra.mrb[0].mxu0 %v1181
  %v1332 = vpop.f32.mrb[0].mxu0
  %v1333 = vadd.f32 0.0, %v1332
  %v1334 = vpop.f32.mrb[0].mxu0
  %1335 = vmatprep.mubr.f32.mxu0 0.0
  %1336 = vmatmul.mubr.f32.gmra.mrb[0].mxu0 %v1184
  %v1337 = vpop.f32.mrb[0].mxu0
  %v1338 = vadd.f32 0.0, %v1337
  %v1339 = vpop.f32.mrb[0].mxu0
  %1340 = vmatprep.mubr.f32.mxu0 0.0
  %1341 = vmatmul.mubr.f32.gmra.mrb[0].mxu0 %v1187
  %v1342 = vpop.f32.mrb[0].mxu0
  %v1343 = vadd.f32 0.0, %v1342
  %v1344 = vpop.f32.mrb[0].mxu0
  %1345 = vmatprep.mubr.f32.mxu0 0.0
  %1346 = vmatmul.mubr.f32.gmra.mrb[0].mxu0 %v1190
  %v1347 = vpop.f32.mrb[0].mxu0
  %v1348 = vadd.f32 0.0, %v1347
  %v1349 = vpop.f32.mrb[0].mxu0
  %1350 = vmatprep.mubr.f32.mxu0 0.0
  %1351 = vmatmul.mubr.f32.gmra.mrb[0].mxu0 %v1193
  %v1352 = vpop.f32.mrb[0].mxu0
  %v1353 = vadd.f32 0.0, %v1352
  %v1354 = vpop.f32.mrb[0].mxu0
  %1355 = vmatprep.mubr.f32.mxu0 0.0
  %1356 = vmatmul.mubr.f32.gmra.mrb[0].mxu0 %v1196
  %v1357 = vpop.f32.mrb[0].mxu0
  %v1358 = vadd.f32 0.0, %v1357
  %v1359 = vpop.f32.mrb[0].mxu0
  %1360 = vmatprep.mubr.f32.mxu0 0.0
  %1361 = vmatmul.mubr.f32.gmra.mrb[0].mxu0 %v1199
  %v1362 = vpop.f32.mrb[0].mxu0
  %v1363 = vadd.f32 0.0, %v1362
  %v1364 = vpop.f32.mrb[0].mxu0
  %1365 = vmatprep.mubr.f32.mxu0 0.0
  %1366 = vmatmul.mubr.f32.gmra.mrb[0].mxu0 %v1202
  %v1367 = vpop.f32.mrb[0].mxu0
  %v1368 = vadd.f32 0.0, %v1367
  %v1369 = vpop.f32.mrb[0].mxu0
  %1370 = vmatprep.mubr.f32.mxu0 0.0
  %1371 = vmatmul.mubr.f32.gmra.mrb[0].mxu0 %v1205
  %v1372 = vpop.f32.mrb[0].mxu0
  %v1373 = vadd.f32 0.0, %v1372
  %v1374 = vpop.f32.mrb[0].mxu0
  %1375 = vmatprep.mubr.f32.mxu0 0.0
  %1376 = vmatmul.mubr.f32.gmra.mrb[0].mxu0 %v1208
  %v1377 = vpop.f32.mrb[0].mxu0
  %v1378 = vadd.f32 0.0, %v1377
  %v1379 = vpop.f32.mrb[0].mxu0
  %1380 = vmatprep.mubr.f32.mxu0 0.0
  %1381 = vmatmul.mubr.f32.gmra.mrb[0].mxu0 %v1211
  %v1382 = vpop.f32.mrb[0].mxu0
  %v1383 = vadd.f32 0.0, %v1382
  %v1384 = vpop.f32.mrb[0].mxu0
  %1385 = vmatprep.mubr.f32.mxu0 0.0
  %1386 = vmatmul.mubr.f32.gmra.mrb[0].mxu0 %v1214
  %v1387 = vpop.f32.mrb[0].mxu0
  %v1388 = vadd.f32 0.0, %v1387
  %v1389 = vpop.f32.mrb[0].mxu0
  %1390 = vmatprep.mubr.f32.mxu0 0.0
  %1391 = vmatmul.mubr.f32.gmra.mrb[0].mxu0 %v1217
  %v1392 = vpop.f32.mrb[0].mxu0
  %v1393 = vadd.f32 0.0, %v1392
  %v1394 = vpop.f32.mrb[0].mxu0
  %1395 = vmatprep.mubr.f32.mxu0 0.0
  %1396 = vmatmul.mubr.f32.gmra.mrb[0].mxu0 %v1220
  %v1397 = vpop.f32.mrb[0].mxu0
  %v1398 = vadd.f32 0.0, %v1397
  %v1399 = vpop.f32.mrb[0].mxu0
  %1400 = vmatprep.mubr.f32.mxu0 0.0
  %1401 = vmatmul.mubr.f32.gmra.mrb[0].mxu0 %v1223
  %v1402 = vpop.f32.mrb[0].mxu0
  %v1403 = vadd.f32 0.0, %v1402
  %v1404 = vpop.f32.mrb[0].mxu0
  %1405 = vmatprep.mubr.f32.mxu0 0.0
  %1406 = vmatmul.mubr.f32.gmra.mrb[0].mxu0 %v1226
  %v1407 = vpop.f32.mrb[0].mxu0
  %v1408 = vadd.f32 0.0, %v1407
  %v1409 = vpop.f32.mrb[0].mxu0
  %1410 = vmatprep.mubr.f32.mxu0 0.0
  %1411 = vmatmul.mubr.f32.gmra.mrb[0].mxu0 %v1229
  %v1412 = vpop.f32.mrb[0].mxu0
  %v1413 = vadd.f32 0.0, %v1412
  %v1414 = vpop.f32.mrb[0].mxu0
  %1415 = vmatprep.mubr.f32.mxu0 0.0
  %1416 = vmatmul.mubr.f32.gmra.mrb[0].mxu0 %v1232
  %v1417 = vpop.f32.mrb[0].mxu0
  %v1418 = vadd.f32 0.0, %v1417
  %v1419 = vpop.f32.mrb[0].mxu0
  %1420 = vmatprep.mubr.f32.mxu0 0.0
  %1421 = vmatmul.mubr.f32.gmra.mrb[0].mxu0 %v1235
  %v1422 = vpop.f32.mrb[0].mxu0
  %v1423 = vadd.f32 0.0, %v1422
  %v1424 = vpop.f32.mrb[0].mxu0
  %1425 = vmatprep.mubr.f32.mxu0 0.0
  %1426 = vmatmul.mubr.f32.gmra.mrb[0].mxu0 %v1238
  %v1427 = vpop.f32.mrb[0].mxu0
  %v1428 = vadd.f32 0.0, %v1427
  %v1429 = vpop.f32.mrb[0].mxu0
  %1430 = vmatprep.mubr.f32.mxu0 0.0
  %1431 = vmatmul.mubr.f32.gmra.mrb[0].mxu0 %v1241
  %v1432 = vpop.f32.mrb[0].mxu0
  %v1433 = vadd.f32 0.0, %v1432
  %v1434 = vpop.f32.mrb[0].mxu0
  %1435 = vmatprep.mubr.f32.mxu0 0.0
  %1436 = vmatmul.mubr.f32.gmra.mrb[0].mxu0 %v1244
  %v1437 = vpop.f32.mrb[0].mxu0
  %v1438 = vadd.f32 0.0, %v1437
  %v1439 = vpop.f32.mrb[0].mxu0
  %1440 = vdwg.mxu0
  %v1442 = vsel %vm766, %v1112, 0
  %v1445 = vsel %vm766, %v1113, 0
  %v1448 = vsel %vm766, %v1114, 0
  %v1451 = vsel %vm766, %v1115, 0
  %v1454 = vsel %vm766, %v1116, 0
  %v1457 = vsel %vm766, %v1117, 0
  %v1460 = vsel %vm766, %v1118, 0
  %v1463 = vsel %vm766, %v1119, 0
  %v1466 = vsel %vm766, %v1120, 0
  %v1469 = vsel %vm766, %v1121, 0
  %v1472 = vsel %vm766, %v1122, 0
  %v1475 = vsel %vm766, %v1123, 0
  %v1478 = vsel %vm766, %v1124, 0
  %v1481 = vsel %vm766, %v1125, 0
  %v1484 = vsel %vm766, %v1126, 0
  %v1487 = vsel %vm766, %v1127, 0
  %v1490 = vsel %vm766, %v1128, 0
  %v1493 = vsel %vm766, %v1129, 0
  %v1496 = vsel %vm766, %v1130, 0
  %v1499 = vsel %vm766, %v1131, 0
  %v1502 = vsel %vm766, %v1132, 0
  %v1505 = vsel %vm766, %v1133, 0
  %v1508 = vsel %vm766, %v1134, 0
  %v1511 = vsel %vm766, %v1135, 0
  %v1514 = vsel %vm766, %v1136, 0
  %v1517 = vsel %vm766, %v1137, 0
  %1519 = vmatprep.subr.mxu0 0.0
  %1520 = vmatpush1.msra.mxu0 %v1138
  %1521 = vmatprep.subr.mxu0 0.0
  %1522 = vmatpush1.msra.mxu0 %v1139
  %1523 = vmatprep.subr.mxu0 0.0
  %1524 = vmatpush1.msra.mxu0 0.0
  %1525 = vmatprep.subr.mxu0 0.0
  %1526 = vmatpush1.msra.mxu0 0.0
  %1527 = vmatprep.subr.mxu0 0.0
  %1528 = vmatpush1.msra.mxu0 0.0
  %1529 = vmatprep.subr.mxu0 0.0
  %1530 = vmatpush1.msra.mxu0 0.0
  %1531 = vmatprep.subr.mxu0 0.0
  %1532 = vmatpush1.msra.mxu0 0.0
  %1533 = vmatprep.subr.mxu0 0.0
  %1534 = vmatpush1.msra.mxu0 0.0
  %1535 = vmatprep.subr.mxu0 0.0
  %1536 = vmatpush1.msra.mxu0 0.0
  %1537 = vmatprep.subr.mxu0 0.0
  %1538 = vmatpush1.msra.mxu0 0.0
  %1539 = vmatprep.subr.mxu0 0.0
  %1540 = vmatpush1.msra.mxu0 0.0
  %1541 = vmatprep.subr.mxu0 0.0
  %1542 = vmatpush1.msra.mxu0 0.0
  %1543 = vmatprep.subr.mxu0 0.0
  %1544 = vmatpush1.msra.mxu0 0.0
  %1545 = vmatprep.subr.mxu0 0.0
  %1546 = vmatpush1.msra.mxu0 0.0
  %1547 = vmatprep.subr.mxu0 0.0
  %1548 = vmatpush1.msra.mxu0 0.0
  %1549 = vmatprep.subr.mxu0 0.0
  %1550 = vmatpush1.msra.mxu0 0.0
  %1551 = vmatprep.subr.mxu0 0.0
  %1552 = vmatpush1.msra.mxu0 0.0
  %1553 = vmatprep.subr.mxu0 0.0
  %1554 = vmatpush1.msra.mxu0 0.0
  %1555 = vmatprep.subr.mxu0 0.0
  %1556 = vmatpush1.msra.mxu0 0.0
  %1557 = vmatprep.subr.mxu0 0.0
  %1558 = vmatpush1.msra.mxu0 0.0
  %1559 = vmatprep.subr.mxu0 0.0
  %1560 = vmatpush1.msra.mxu0 0.0
  %1561 = vmatprep.subr.mxu0 0.0
  %1562 = vmatpush1.msra.mxu0 0.0
  %1563 = vmatprep.subr.mxu0 0.0
  %1564 = vmatpush1.msra.mxu0 0.0
  %1565 = vmatprep.subr.mxu0 0.0
  %1566 = vmatpush1.msra.mxu0 0.0
  %1567 = vmatprep.subr.mxu0 0.0
  %1568 = vmatpush1.msra.mxu0 0.0
  %1569 = vmatprep.subr.mxu0 0.0
  %1570 = vmatpush1.msra.mxu0 0.0
  %1571 = vmatprep.subr.mxu0 0.0
  %1572 = vmatpush1.msra.mxu0 0.0
  %1573 = vmatprep.subr.mxu0 0.0
  %1574 = vmatpush1.msra.mxu0 0.0
  %1575 = vmatprep.subr.mxu0 0.0
  %1576 = vmatpush1.msra.mxu0 0.0
  %1577 = vmatprep.subr.mxu0 0.0
  %1578 = vmatpush1.msra.mxu0 0.0
  %1579 = vmatprep.subr.mxu0 0.0
  %1580 = vmatpush1.msra.mxu0 0.0
  %1581 = vmatprep.subr.mxu0 0.0
  %1582 = vmatpush1.msra.mxu0 0.0
  %1583 = vmatprep.mubr.f32.mxu0 0.0
  %1584 = vmatmul.mubr.f32.gmra.mrb[0].mxu0 %v1442
  %v1585 = vpop.f32.mrb[0].mxu0
  %v1586 = vadd.f32 %v1313, %v1585
  %v1587 = vpop.f32.mrb[0].mxu0
  %1588 = vmatprep.mubr.f32.mxu0 0.0
  %1589 = vmatmul.mubr.f32.gmra.mrb[0].mxu0 %v1445
  %v1590 = vpop.f32.mrb[0].mxu0
  %v1591 = vadd.f32 %v1318, %v1590
  %v1592 = vpop.f32.mrb[0].mxu0
  %1593 = vmatprep.mubr.f32.mxu0 0.0
  %1594 = vmatmul.mubr.f32.gmra.mrb[0].mxu0 %v1448
  %v1595 = vpop.f32.mrb[0].mxu0
  %v1596 = vadd.f32 %v1323, %v1595
  %v1597 = vpop.f32.mrb[0].mxu0
  %1598 = vmatprep.mubr.f32.mxu0 0.0
  %1599 = vmatmul.mubr.f32.gmra.mrb[0].mxu0 %v1451
  %v1600 = vpop.f32.mrb[0].mxu0
  %v1601 = vadd.f32 %v1328, %v1600
  %v1602 = vpop.f32.mrb[0].mxu0
  %1603 = vmatprep.mubr.f32.mxu0 0.0
  %1604 = vmatmul.mubr.f32.gmra.mrb[0].mxu0 %v1454
  %v1605 = vpop.f32.mrb[0].mxu0
  %v1606 = vadd.f32 %v1333, %v1605
  %v1607 = vpop.f32.mrb[0].mxu0
  %1608 = vmatprep.mubr.f32.mxu0 0.0
  %1609 = vmatmul.mubr.f32.gmra.mrb[0].mxu0 %v1457
  %v1610 = vpop.f32.mrb[0].mxu0
  %v1611 = vadd.f32 %v1338, %v1610
  %v1612 = vpop.f32.mrb[0].mxu0
  %1613 = vmatprep.mubr.f32.mxu0 0.0
  %1614 = vmatmul.mubr.f32.gmra.mrb[0].mxu0 %v1460
  %v1615 = vpop.f32.mrb[0].mxu0
  %v1616 = vadd.f32 %v1343, %v1615
  %v1617 = vpop.f32.mrb[0].mxu0
  %1618 = vmatprep.mubr.f32.mxu0 0.0
  %1619 = vmatmul.mubr.f32.gmra.mrb[0].mxu0 %v1463
  %v1620 = vpop.f32.mrb[0].mxu0
  %v1621 = vadd.f32 %v1348, %v1620
  %v1622 = vpop.f32.mrb[0].mxu0
  %1623 = vmatprep.mubr.f32.mxu0 0.0
  %1624 = vmatmul.mubr.f32.gmra.mrb[0].mxu0 %v1466
  %v1625 = vpop.f32.mrb[0].mxu0
  %v1626 = vadd.f32 %v1353, %v1625
  %v1627 = vpop.f32.mrb[0].mxu0
  %1628 = vmatprep.mubr.f32.mxu0 0.0
  %1629 = vmatmul.mubr.f32.gmra.mrb[0].mxu0 %v1469
  %v1630 = vpop.f32.mrb[0].mxu0
  %v1631 = vadd.f32 %v1358, %v1630
  %v1632 = vpop.f32.mrb[0].mxu0
  %1633 = vmatprep.mubr.f32.mxu0 0.0
  %1634 = vmatmul.mubr.f32.gmra.mrb[0].mxu0 %v1472
  %v1635 = vpop.f32.mrb[0].mxu0
  %v1636 = vadd.f32 %v1363, %v1635
  %v1637 = vpop.f32.mrb[0].mxu0
  %1638 = vmatprep.mubr.f32.mxu0 0.0
  %1639 = vmatmul.mubr.f32.gmra.mrb[0].mxu0 %v1475
  %v1640 = vpop.f32.mrb[0].mxu0
  %v1641 = vadd.f32 %v1368, %v1640
  %v1642 = vpop.f32.mrb[0].mxu0
  %1643 = vmatprep.mubr.f32.mxu0 0.0
  %1644 = vmatmul.mubr.f32.gmra.mrb[0].mxu0 %v1478
  %v1645 = vpop.f32.mrb[0].mxu0
  %v1646 = vadd.f32 %v1373, %v1645
  %v1647 = vpop.f32.mrb[0].mxu0
  %1648 = vmatprep.mubr.f32.mxu0 0.0
  %1649 = vmatmul.mubr.f32.gmra.mrb[0].mxu0 %v1481
  %v1650 = vpop.f32.mrb[0].mxu0
  %v1651 = vadd.f32 %v1378, %v1650
  %v1652 = vpop.f32.mrb[0].mxu0
  %1653 = vmatprep.mubr.f32.mxu0 0.0
  %1654 = vmatmul.mubr.f32.gmra.mrb[0].mxu0 %v1484
  %v1655 = vpop.f32.mrb[0].mxu0
  %v1656 = vadd.f32 %v1383, %v1655
  %v1657 = vpop.f32.mrb[0].mxu0
  %1658 = vmatprep.mubr.f32.mxu0 0.0
  %1659 = vmatmul.mubr.f32.gmra.mrb[0].mxu0 %v1487
  %v1660 = vpop.f32.mrb[0].mxu0
  %v1661 = vadd.f32 %v1388, %v1660
  %v1662 = vpop.f32.mrb[0].mxu0
  %1663 = vmatprep.mubr.f32.mxu0 0.0
  %1664 = vmatmul.mubr.f32.gmra.mrb[0].mxu0 %v1490
  %v1665 = vpop.f32.mrb[0].mxu0
  %v1666 = vadd.f32 %v1393, %v1665
  %v1667 = vpop.f32.mrb[0].mxu0
  %1668 = vmatprep.mubr.f32.mxu0 0.0
  %1669 = vmatmul.mubr.f32.gmra.mrb[0].mxu0 %v1493
  %v1670 = vpop.f32.mrb[0].mxu0
  %v1671 = vadd.f32 %v1398, %v1670
  %v1672 = vpop.f32.mrb[0].mxu0
  %1673 = vmatprep.mubr.f32.mxu0 0.0
  %1674 = vmatmul.mubr.f32.gmra.mrb[0].mxu0 %v1496
  %v1675 = vpop.f32.mrb[0].mxu0
  %v1676 = vadd.f32 %v1403, %v1675
  %v1677 = vpop.f32.mrb[0].mxu0
  %1678 = vmatprep.mubr.f32.mxu0 0.0
  %1679 = vmatmul.mubr.f32.gmra.mrb[0].mxu0 %v1499
  %v1680 = vpop.f32.mrb[0].mxu0
  %v1681 = vadd.f32 %v1408, %v1680
  %v1682 = vpop.f32.mrb[0].mxu0
  %1683 = vmatprep.mubr.f32.mxu0 0.0
  %1684 = vmatmul.mubr.f32.gmra.mrb[0].mxu0 %v1502
  %v1685 = vpop.f32.mrb[0].mxu0
  %v1686 = vadd.f32 %v1413, %v1685
  %v1687 = vpop.f32.mrb[0].mxu0
  %1688 = vmatprep.mubr.f32.mxu0 0.0
  %1689 = vmatmul.mubr.f32.gmra.mrb[0].mxu0 %v1505
  %v1690 = vpop.f32.mrb[0].mxu0
  %v1691 = vadd.f32 %v1418, %v1690
  %v1692 = vpop.f32.mrb[0].mxu0
  %1693 = vmatprep.mubr.f32.mxu0 0.0
  %1694 = vmatmul.mubr.f32.gmra.mrb[0].mxu0 %v1508
  %v1695 = vpop.f32.mrb[0].mxu0
  %v1696 = vadd.f32 %v1423, %v1695
  %v1697 = vpop.f32.mrb[0].mxu0
  %1698 = vmatprep.mubr.f32.mxu0 0.0
  %1699 = vmatmul.mubr.f32.gmra.mrb[0].mxu0 %v1511
  %v1700 = vpop.f32.mrb[0].mxu0
  %v1701 = vadd.f32 %v1428, %v1700
  %v1702 = vpop.f32.mrb[0].mxu0
  %1703 = vmatprep.mubr.f32.mxu0 0.0
  %1704 = vmatmul.mubr.f32.gmra.mrb[0].mxu0 %v1514
  %v1705 = vpop.f32.mrb[0].mxu0
  %v1706 = vadd.f32 %v1433, %v1705
  %v1707 = vpop.f32.mrb[0].mxu0
  %1708 = vmatprep.mubr.f32.mxu0 0.0
  %1709 = vmatmul.mubr.f32.gmra.mrb[0].mxu0 %v1517
  %v1710 = vpop.f32.mrb[0].mxu0
  %v1711 = vadd.f32 %v1438, %v1710
  %v1712 = vpop.f32.mrb[0].mxu0
  %1713 = vdwg.mxu0
  %v1714 = vld [vmem:[#allocation4 + $0x2] sm:$0xff]
  %v1715 = vld [vmem:[#allocation4 + $0xa] sm:$0xff]
  %v1716 = vld [vmem:[#allocation4 + $0x12] sm:$0xff]
  %v1717 = vld [vmem:[#allocation4 + $0x1a] sm:$0xff]
  %v1718 = vld [vmem:[#allocation4 + $0x22] sm:$0xff]
  %v1719 = vld [vmem:[#allocation4 + $0x2a] sm:$0xff]
  %v1720 = vld [vmem:[#allocation4 + $0x32] sm:$0xff]
  %v1721 = vld [vmem:[#allocation4 + $0x3a] sm:$0xff]
  %v1722 = vld [vmem:[#allocation4 + $0x42] sm:$0xff]
  %v1723 = vld [vmem:[#allocation4 + $0x4a] sm:$0xff]
  %v1724 = vld [vmem:[#allocation4 + $0x52] sm:$0xff]
  %v1725 = vld [vmem:[#allocation4 + $0x5a] sm:$0xff]
  %v1726 = vld [vmem:[#allocation4 + $0x62] sm:$0xff]
  %v1727 = vld [vmem:[#allocation4 + $0x6a] sm:$0xff]
  %v1728 = vld [vmem:[#allocation4 + $0x72] sm:$0xff]
  %v1729 = vld [vmem:[#allocation4 + $0x7a] sm:$0xff]
  %v1730 = vld [vmem:[#allocation4 + $0x82] sm:$0xff]
  %v1731 = vld [vmem:[#allocation4 + $0x8a] sm:$0xff]
  %v1732 = vld [vmem:[#allocation4 + $0x92] sm:$0xff]
  %v1733 = vld [vmem:[#allocation4 + $0x9a] sm:$0xff]
  %v1734 = vld [vmem:[#allocation4 + $0xa2] sm:$0xff]
  %v1735 = vld [vmem:[#allocation4 + $0xaa] sm:$0xff]
  %v1736 = vld [vmem:[#allocation4 + $0xb2] sm:$0xff]
  %v1737 = vld [vmem:[#allocation4 + $0xba] sm:$0xff]
  %v1738 = vld [vmem:[#allocation4 + $0xc2] sm:$0xff]
  %v1739 = vld [vmem:[#allocation4 + $0xca] sm:$0xff]
  %v1740 = vld [vmem:[%s3 + $0x20] sm:$0xff]
  %v1741 = vld [vmem:[%s3 + $0x28] sm:$0xff]
  %v1743 = vsel %vm766, %v1714, 0
  %v1746 = vsel %vm766, %v1715, 0
  %v1749 = vsel %vm766, %v1716, 0
  %v1752 = vsel %vm766, %v1717, 0
  %v1755 = vsel %vm766, %v1718, 0
  %v1758 = vsel %vm766, %v1719, 0
  %v1761 = vsel %vm766, %v1720, 0
  %v1764 = vsel %vm766, %v1721, 0
  %v1767 = vsel %vm766, %v1722, 0
  %v1770 = vsel %vm766, %v1723, 0
  %v1773 = vsel %vm766, %v1724, 0
  %v1776 = vsel %vm766, %v1725, 0
  %v1779 = vsel %vm766, %v1726, 0
  %v1782 = vsel %vm766, %v1727, 0
  %v1785 = vsel %vm766, %v1728, 0
  %v1788 = vsel %vm766, %v1729, 0
  %v1791 = vsel %vm766, %v1730, 0
  %v1794 = vsel %vm766, %v1731, 0
  %v1797 = vsel %vm766, %v1732, 0
  %v1800 = vsel %vm766, %v1733, 0
  %v1803 = vsel %vm766, %v1734, 0
  %v1806 = vsel %vm766, %v1735, 0
  %v1809 = vsel %vm766, %v1736, 0
  %v1812 = vsel %vm766, %v1737, 0
  %v1815 = vsel %vm766, %v1738, 0
  %v1818 = vsel %vm766, %v1739, 0
  %1820 = vmatprep.subr.mxu0 0.0
  %1821 = vmatpush1.msra.mxu0 %v1740
  %1822 = vmatprep.subr.mxu0 0.0
  %1823 = vmatpush1.msra.mxu0 %v1741
  %1824 = vmatprep.subr.mxu0 0.0
  %1825 = vmatpush1.msra.mxu0 0.0
  %1826 = vmatprep.subr.mxu0 0.0
  %1827 = vmatpush1.msra.mxu0 0.0
  %1828 = vmatprep.subr.mxu0 0.0
  %1829 = vmatpush1.msra.mxu0 0.0
  %1830 = vmatprep.subr.mxu0 0.0
  %1831 = vmatpush1.msra.mxu0 0.0
  %1832 = vmatprep.subr.mxu0 0.0
  %1833 = vmatpush1.msra.mxu0 0.0
  %1834 = vmatprep.subr.mxu0 0.0
  %1835 = vmatpush1.msra.mxu0 0.0
  %1836 = vmatprep.subr.mxu0 0.0
  %1837 = vmatpush1.msra.mxu0 0.0
  %1838 = vmatprep.subr.mxu0 0.0
  %1839 = vmatpush1.msra.mxu0 0.0
  %1840 = vmatprep.subr.mxu0 0.0
  %1841 = vmatpush1.msra.mxu0 0.0
  %1842 = vmatprep.subr.mxu0 0.0
  %1843 = vmatpush1.msra.mxu0 0.0
  %1844 = vmatprep.subr.mxu0 0.0
  %1845 = vmatpush1.msra.mxu0 0.0
  %1846 = vmatprep.subr.mxu0 0.0
  %1847 = vmatpush1.msra.mxu0 0.0
  %1848 = vmatprep.subr.mxu0 0.0
  %1849 = vmatpush1.msra.mxu0 0.0
  %1850 = vmatprep.subr.mxu0 0.0
  %1851 = vmatpush1.msra.mxu0 0.0
  %1852 = vmatprep.subr.mxu0 0.0
  %1853 = vmatpush1.msra.mxu0 0.0
  %1854 = vmatprep.subr.mxu0 0.0
  %1855 = vmatpush1.msra.mxu0 0.0
  %1856 = vmatprep.subr.mxu0 0.0
  %1857 = vmatpush1.msra.mxu0 0.0
  %1858 = vmatprep.subr.mxu0 0.0
  %1859 = vmatpush1.msra.mxu0 0.0
  %1860 = vmatprep.subr.mxu0 0.0
  %1861 = vmatpush1.msra.mxu0 0.0
  %1862 = vmatprep.subr.mxu0 0.0
  %1863 = vmatpush1.msra.mxu0 0.0
  %1864 = vmatprep.subr.mxu0 0.0
  %1865 = vmatpush1.msra.mxu0 0.0
  %1866 = vmatprep.subr.mxu0 0.0
  %1867 = vmatpush1.msra.mxu0 0.0
  %1868 = vmatprep.subr.mxu0 0.0
  %1869 = vmatpush1.msra.mxu0 0.0
  %1870 = vmatprep.subr.mxu0 0.0
  %1871 = vmatpush1.msra.mxu0 0.0
  %1872 = vmatprep.subr.mxu0 0.0
  %1873 = vmatpush1.msra.mxu0 0.0
  %1874 = vmatprep.subr.mxu0 0.0
  %1875 = vmatpush1.msra.mxu0 0.0
  %1876 = vmatprep.subr.mxu0 0.0
  %1877 = vmatpush1.msra.mxu0 0.0
  %1878 = vmatprep.subr.mxu0 0.0
  %1879 = vmatpush1.msra.mxu0 0.0
  %1880 = vmatprep.subr.mxu0 0.0
  %1881 = vmatpush1.msra.mxu0 0.0
  %1882 = vmatprep.subr.mxu0 0.0
  %1883 = vmatpush1.msra.mxu0 0.0
  %1884 = vmatprep.mubr.f32.mxu0 0.0
  %1885 = vmatmul.mubr.f32.gmra.mrb[0].mxu0 %v1743
  %v1886 = vpop.f32.mrb[0].mxu0
  %v1887 = vadd.f32 0.0, %v1886
  %v1888 = vpop.f32.mrb[0].mxu0
  %1889 = vmatprep.mubr.f32.mxu0 0.0
  %1890 = vmatmul.mubr.f32.gmra.mrb[0].mxu0 %v1746
  %v1891 = vpop.f32.mrb[0].mxu0
  %v1892 = vadd.f32 0.0, %v1891
  %v1893 = vpop.f32.mrb[0].mxu0
  %1894 = vmatprep.mubr.f32.mxu0 0.0
  %1895 = vmatmul.mubr.f32.gmra.mrb[0].mxu0 %v1749
  %v1896 = vpop.f32.mrb[0].mxu0
  %v1897 = vadd.f32 0.0, %v1896
  %v1898 = vpop.f32.mrb[0].mxu0
  %1899 = vmatprep.mubr.f32.mxu0 0.0
  %1900 = vmatmul.mubr.f32.gmra.mrb[0].mxu0 %v1752
  %v1901 = vpop.f32.mrb[0].mxu0
  %v1902 = vadd.f32 0.0, %v1901
  %v1903 = vpop.f32.mrb[0].mxu0
  %1904 = vmatprep.mubr.f32.mxu0 0.0
  %1905 = vmatmul.mubr.f32.gmra.mrb[0].mxu0 %v1755
  %v1906 = vpop.f32.mrb[0].mxu0
  %v1907 = vadd.f32 0.0, %v1906
  %v1908 = vpop.f32.mrb[0].mxu0
  %1909 = vmatprep.mubr.f32.mxu0 0.0
  %1910 = vmatmul.mubr.f32.gmra.mrb[0].mxu0 %v1758
  %v1911 = vpop.f32.mrb[0].mxu0
  %v1912 = vadd.f32 0.0, %v1911
  %v1913 = vpop.f32.mrb[0].mxu0
  %1914 = vmatprep.mubr.f32.mxu0 0.0
  %1915 = vmatmul.mubr.f32.gmra.mrb[0].mxu0 %v1761
  %v1916 = vpop.f32.mrb[0].mxu0
  %v1917 = vadd.f32 0.0, %v1916
  %v1918 = vpop.f32.mrb[0].mxu0
  %1919 = vmatprep.mubr.f32.mxu0 0.0
  %1920 = vmatmul.mubr.f32.gmra.mrb[0].mxu0 %v1764
  %v1921 = vpop.f32.mrb[0].mxu0
  %v1922 = vadd.f32 0.0, %v1921
  %v1923 = vpop.f32.mrb[0].mxu0
  %1924 = vmatprep.mubr.f32.mxu0 0.0
  %1925 = vmatmul.mubr.f32.gmra.mrb[0].mxu0 %v1767
  %v1926 = vpop.f32.mrb[0].mxu0
  %v1927 = vadd.f32 0.0, %v1926
  %v1928 = vpop.f32.mrb[0].mxu0
  %1929 = vmatprep.mubr.f32.mxu0 0.0
  %1930 = vmatmul.mubr.f32.gmra.mrb[0].mxu0 %v1770
  %v1931 = vpop.f32.mrb[0].mxu0
  %v1932 = vadd.f32 0.0, %v1931
  %v1933 = vpop.f32.mrb[0].mxu0
  %1934 = vmatprep.mubr.f32.mxu0 0.0
  %1935 = vmatmul.mubr.f32.gmra.mrb[0].mxu0 %v1773
  %v1936 = vpop.f32.mrb[0].mxu0
  %v1937 = vadd.f32 0.0, %v1936
  %v1938 = vpop.f32.mrb[0].mxu0
  %1939 = vmatprep.mubr.f32.mxu0 0.0
  %1940 = vmatmul.mubr.f32.gmra.mrb[0].mxu0 %v1776
  %v1941 = vpop.f32.mrb[0].mxu0
  %v1942 = vadd.f32 0.0, %v1941
  %v1943 = vpop.f32.mrb[0].mxu0
  %1944 = vmatprep.mubr.f32.mxu0 0.0
  %1945 = vmatmul.mubr.f32.gmra.mrb[0].mxu0 %v1779
  %v1946 = vpop.f32.mrb[0].mxu0
  %v1947 = vadd.f32 0.0, %v1946
  %v1948 = vpop.f32.mrb[0].mxu0
  %1949 = vmatprep.mubr.f32.mxu0 0.0
  %1950 = vmatmul.mubr.f32.gmra.mrb[0].mxu0 %v1782
  %v1951 = vpop.f32.mrb[0].mxu0
  %v1952 = vadd.f32 0.0, %v1951
  %v1953 = vpop.f32.mrb[0].mxu0
  %1954 = vmatprep.mubr.f32.mxu0 0.0
  %1955 = vmatmul.mubr.f32.gmra.mrb[0].mxu0 %v1785
  %v1956 = vpop.f32.mrb[0].mxu0
  %v1957 = vadd.f32 0.0, %v1956
  %v1958 = vpop.f32.mrb[0].mxu0
  %1959 = vmatprep.mubr.f32.mxu0 0.0
  %1960 = vmatmul.mubr.f32.gmra.mrb[0].mxu0 %v1788
  %v1961 = vpop.f32.mrb[0].mxu0
  %v1962 = vadd.f32 0.0, %v1961
  %v1963 = vpop.f32.mrb[0].mxu0
  %1964 = vmatprep.mubr.f32.mxu0 0.0
  %1965 = vmatmul.mubr.f32.gmra.mrb[0].mxu0 %v1791
  %v1966 = vpop.f32.mrb[0].mxu0
  %v1967 = vadd.f32 0.0, %v1966
  %v1968 = vpop.f32.mrb[0].mxu0
  %1969 = vmatprep.mubr.f32.mxu0 0.0
  %1970 = vmatmul.mubr.f32.gmra.mrb[0].mxu0 %v1794
  %v1971 = vpop.f32.mrb[0].mxu0
  %v1972 = vadd.f32 0.0, %v1971
  %v1973 = vpop.f32.mrb[0].mxu0
  %1974 = vmatprep.mubr.f32.mxu0 0.0
  %1975 = vmatmul.mubr.f32.gmra.mrb[0].mxu0 %v1797
  %v1976 = vpop.f32.mrb[0].mxu0
  %v1977 = vadd.f32 0.0, %v1976
  %v1978 = vpop.f32.mrb[0].mxu0
  %1979 = vmatprep.mubr.f32.mxu0 0.0
  %1980 = vmatmul.mubr.f32.gmra.mrb[0].mxu0 %v1800
  %v1981 = vpop.f32.mrb[0].mxu0
  %v1982 = vadd.f32 0.0, %v1981
  %v1983 = vpop.f32.mrb[0].mxu0
  %1984 = vmatprep.mubr.f32.mxu0 0.0
  %1985 = vmatmul.mubr.f32.gmra.mrb[0].mxu0 %v1803
  %v1986 = vpop.f32.mrb[0].mxu0
  %v1987 = vadd.f32 0.0, %v1986
  %v1988 = vpop.f32.mrb[0].mxu0
  %1989 = vmatprep.mubr.f32.mxu0 0.0
  %1990 = vmatmul.mubr.f32.gmra.mrb[0].mxu0 %v1806
  %v1991 = vpop.f32.mrb[0].mxu0
  %v1992 = vadd.f32 0.0, %v1991
  %v1993 = vpop.f32.mrb[0].mxu0
  %1994 = vmatprep.mubr.f32.mxu0 0.0
  %1995 = vmatmul.mubr.f32.gmra.mrb[0].mxu0 %v1809
  %v1996 = vpop.f32.mrb[0].mxu0
  %v1997 = vadd.f32 0.0, %v1996
  %v1998 = vpop.f32.mrb[0].mxu0
  %1999 = vmatprep.mubr.f32.mxu0 0.0
  %2000 = vmatmul.mubr.f32.gmra.mrb[0].mxu0 %v1812
  %v2001 = vpop.f32.mrb[0].mxu0
  %v2002 = vadd.f32 0.0, %v2001
  %v2003 = vpop.f32.mrb[0].mxu0
  %2004 = vmatprep.mubr.f32.mxu0 0.0
  %2005 = vmatmul.mubr.f32.gmra.mrb[0].mxu0 %v1815
  %v2006 = vpop.f32.mrb[0].mxu0
  %v2007 = vadd.f32 0.0, %v2006
  %v2008 = vpop.f32.mrb[0].mxu0
  %2009 = vmatprep.mubr.f32.mxu0 0.0
  %2010 = vmatmul.mubr.f32.gmra.mrb[0].mxu0 %v1818
  %v2011 = vpop.f32.mrb[0].mxu0
  %v2012 = vadd.f32 0.0, %v2011
  %v2013 = vpop.f32.mrb[0].mxu0
  %2014 = vdwg.mxu0
  %v2015 = vadd.f32 %v1586, %v1887
  %v2016 = vadd.f32 %v1591, %v1892
  %v2017 = vadd.f32 %v1596, %v1897
  %v2018 = vadd.f32 %v1601, %v1902
  %v2019 = vadd.f32 %v1606, %v1907
  %v2020 = vadd.f32 %v1611, %v1912
  %v2021 = vadd.f32 %v1616, %v1917
  %v2022 = vadd.f32 %v1621, %v1922
  %v2023 = vadd.f32 %v1626, %v1927
  %v2024 = vadd.f32 %v1631, %v1932
  %v2025 = vadd.f32 %v1636, %v1937
  %v2026 = vadd.f32 %v1641, %v1942
  %v2027 = vadd.f32 %v1646, %v1947
  %v2028 = vadd.f32 %v1651, %v1952
  %v2029 = vadd.f32 %v1656, %v1957
  %v2030 = vadd.f32 %v1661, %v1962
  %v2031 = vadd.f32 %v1666, %v1967
  %v2032 = vadd.f32 %v1671, %v1972
  %v2033 = vadd.f32 %v1676, %v1977
  %v2034 = vadd.f32 %v1681, %v1982
  %v2035 = vadd.f32 %v1686, %v1987
  %v2036 = vadd.f32 %v1691, %v1992
  %v2037 = vadd.f32 %v1696, %v1997
  %v2038 = vadd.f32 %v1701, %v2002
  %v2039 = vadd.f32 %v1706, %v2007
  %v2040 = vadd.f32 %v1711, %v2012
  %v2041 = vld [vmem:[#allocation4 + $0xa] sm:$0xff]
  %v2042 = vld [vmem:[#allocation4 + $0x12] sm:$0xff]
  %v2043 = vld [vmem:[#allocation4 + $0x1a] sm:$0xff]
  %v2044 = vld [vmem:[#allocation4 + $0x22] sm:$0xff]
  %v2045 = vld [vmem:[#allocation4 + $0x2a] sm:$0xff]
  %v2046 = vld [vmem:[#allocation4 + $0x32] sm:$0xff]
  %v2047 = vld [vmem:[#allocation4 + $0x3a] sm:$0xff]
  %v2048 = vld [vmem:[#allocation4 + $0x42] sm:$0xff]
  %v2049 = vld [vmem:[#allocation4 + $0x4a] sm:$0xff]
  %v2050 = vld [vmem:[#allocation4 + $0x52] sm:$0xff]
  %v2051 = vld [vmem:[#allocation4 + $0x5a] sm:$0xff]
  %v2052 = vld [vmem:[#allocation4 + $0x62] sm:$0xff]
  %v2053 = vld [vmem:[#allocation4 + $0x6a] sm:$0xff]
  %v2054 = vld [vmem:[#allocation4 + $0x72] sm:$0xff]
  %v2055 = vld [vmem:[#allocation4 + $0x7a] sm:$0xff]
  %v2056 = vld [vmem:[#allocation4 + $0x82] sm:$0xff]
  %v2057 = vld [vmem:[#allocation4 + $0x8a] sm:$0xff]
  %v2058 = vld [vmem:[#allocation4 + $0x92] sm:$0xff]
  %v2059 = vld [vmem:[#allocation4 + $0x9a] sm:$0xff]
  %v2060 = vld [vmem:[#allocation4 + $0xa2] sm:$0xff]
  %v2061 = vld [vmem:[#allocation4 + $0xaa] sm:$0xff]
  %v2062 = vld [vmem:[#allocation4 + $0xb2] sm:$0xff]
  %v2063 = vld [vmem:[#allocation4 + $0xba] sm:$0xff]
  %v2064 = vld [vmem:[#allocation4 + $0xc2] sm:$0xff]
  %v2065 = vld [vmem:[#allocation4 + $0xca] sm:$0xff]
  %v2066 = vld [vmem:[#allocation4 + $0xd2] sm:$0xff]
  %v2067 = vld [vmem:[%s3 + $0x30] sm:$0xff]
  %v2068 = vld [vmem:[%s3 + $0x38] sm:$0xff]
  %v2070 = vsel %vm766, %v2041, 0
  %v2073 = vsel %vm766, %v2042, 0
  %v2076 = vsel %vm766, %v2043, 0
  %v2079 = vsel %vm766, %v2044, 0
  %v2082 = vsel %vm766, %v2045, 0
  %v2085 = vsel %vm766, %v2046, 0
  %v2088 = vsel %vm766, %v2047, 0
  %v2091 = vsel %vm766, %v2048, 0
  %v2094 = vsel %vm766, %v2049, 0
  %v2097 = vsel %vm766, %v2050, 0
  %v2100 = vsel %vm766, %v2051, 0
  %v2103 = vsel %vm766, %v2052, 0
  %v2106 = vsel %vm766, %v2053, 0
  %v2109 = vsel %vm766, %v2054, 0
  %v2112 = vsel %vm766, %v2055, 0
  %v2115 = vsel %vm766, %v2056, 0
  %v2118 = vsel %vm766, %v2057, 0
  %v2121 = vsel %vm766, %v2058, 0
  %v2124 = vsel %vm766, %v2059, 0
  %v2127 = vsel %vm766, %v2060, 0
  %v2130 = vsel %vm766, %v2061, 0
  %v2133 = vsel %vm766, %v2062, 0
  %v2136 = vsel %vm766, %v2063, 0
  %v2139 = vsel %vm766, %v2064, 0
  %v2142 = vsel %vm766, %v2065, 0
  %v2145 = vsel %vm766, %v2066, 0
  %2147 = vmatprep.subr.mxu0 0.0
  %2148 = vmatpush1.msra.mxu0 %v2067
  %2149 = vmatprep.subr.mxu0 0.0
  %2150 = vmatpush1.msra.mxu0 %v2068
  %2151 = vmatprep.subr.mxu0 0.0
  %2152 = vmatpush1.msra.mxu0 0.0
  %2153 = vmatprep.subr.mxu0 0.0
  %2154 = vmatpush1.msra.mxu0 0.0
  %2155 = vmatprep.subr.mxu0 0.0
  %2156 = vmatpush1.msra.mxu0 0.0
  %2157 = vmatprep.subr.mxu0 0.0
  %2158 = vmatpush1.msra.mxu0 0.0
  %2159 = vmatprep.subr.mxu0 0.0
  %2160 = vmatpush1.msra.mxu0 0.0
  %2161 = vmatprep.subr.mxu0 0.0
  %2162 = vmatpush1.msra.mxu0 0.0
  %2163 = vmatprep.subr.mxu0 0.0
  %2164 = vmatpush1.msra.mxu0 0.0
  %2165 = vmatprep.subr.mxu0 0.0
  %2166 = vmatpush1.msra.mxu0 0.0
  %2167 = vmatprep.subr.mxu0 0.0
  %2168 = vmatpush1.msra.mxu0 0.0
  %2169 = vmatprep.subr.mxu0 0.0
  %2170 = vmatpush1.msra.mxu0 0.0
  %2171 = vmatprep.subr.mxu0 0.0
  %2172 = vmatpush1.msra.mxu0 0.0
  %2173 = vmatprep.subr.mxu0 0.0
  %2174 = vmatpush1.msra.mxu0 0.0
  %2175 = vmatprep.subr.mxu0 0.0
  %2176 = vmatpush1.msra.mxu0 0.0
  %2177 = vmatprep.subr.mxu0 0.0
  %2178 = vmatpush1.msra.mxu0 0.0
  %2179 = vmatprep.subr.mxu0 0.0
  %2180 = vmatpush1.msra.mxu0 0.0
  %2181 = vmatprep.subr.mxu0 0.0
  %2182 = vmatpush1.msra.mxu0 0.0
  %2183 = vmatprep.subr.mxu0 0.0
  %2184 = vmatpush1.msra.mxu0 0.0
  %2185 = vmatprep.subr.mxu0 0.0
  %2186 = vmatpush1.msra.mxu0 0.0
  %2187 = vmatprep.subr.mxu0 0.0
  %2188 = vmatpush1.msra.mxu0 0.0
  %2189 = vmatprep.subr.mxu0 0.0
  %2190 = vmatpush1.msra.mxu0 0.0
  %2191 = vmatprep.subr.mxu0 0.0
  %2192 = vmatpush1.msra.mxu0 0.0
  %2193 = vmatprep.subr.mxu0 0.0
  %2194 = vmatpush1.msra.mxu0 0.0
  %2195 = vmatprep.subr.mxu0 0.0
  %2196 = vmatpush1.msra.mxu0 0.0
  %2197 = vmatprep.subr.mxu0 0.0
  %2198 = vmatpush1.msra.mxu0 0.0
  %2199 = vmatprep.subr.mxu0 0.0
  %2200 = vmatpush1.msra.mxu0 0.0
  %2201 = vmatprep.subr.mxu0 0.0
  %2202 = vmatpush1.msra.mxu0 0.0
  %2203 = vmatprep.subr.mxu0 0.0
  %2204 = vmatpush1.msra.mxu0 0.0
  %2205 = vmatprep.subr.mxu0 0.0
  %2206 = vmatpush1.msra.mxu0 0.0
  %2207 = vmatprep.subr.mxu0 0.0
  %2208 = vmatpush1.msra.mxu0 0.0
  %2209 = vmatprep.subr.mxu0 0.0
  %2210 = vmatpush1.msra.mxu0 0.0
  %2211 = vmatprep.mubr.f32.mxu0 0.0
  %2212 = vmatmul.mubr.f32.gmra.mrb[0].mxu0 %v2070
  %v2213 = vpop.f32.mrb[0].mxu0
  %v2214 = vadd.f32 0.0, %v2213
  %v2215 = vpop.f32.mrb[0].mxu0
  %2216 = vmatprep.mubr.f32.mxu0 0.0
  %2217 = vmatmul.mubr.f32.gmra.mrb[0].mxu0 %v2073
  %v2218 = vpop.f32.mrb[0].mxu0
  %v2219 = vadd.f32 0.0, %v2218
  %v2220 = vpop.f32.mrb[0].mxu0
  %2221 = vmatprep.mubr.f32.mxu0 0.0
  %2222 = vmatmul.mubr.f32.gmra.mrb[0].mxu0 %v2076
  %v2223 = vpop.f32.mrb[0].mxu0
  %v2224 = vadd.f32 0.0, %v2223
  %v2225 = vpop.f32.mrb[0].mxu0
  %2226 = vmatprep.mubr.f32.mxu0 0.0
  %2227 = vmatmul.mubr.f32.gmra.mrb[0].mxu0 %v2079
  %v2228 = vpop.f32.mrb[0].mxu0
  %v2229 = vadd.f32 0.0, %v2228
  %v2230 = vpop.f32.mrb[0].mxu0
  %2231 = vmatprep.mubr.f32.mxu0 0.0
  %2232 = vmatmul.mubr.f32.gmra.mrb[0].mxu0 %v2082
  %v2233 = vpop.f32.mrb[0].mxu0
  %v2234 = vadd.f32 0.0, %v2233
  %v2235 = vpop.f32.mrb[0].mxu0
  %2236 = vmatprep.mubr.f32.mxu0 0.0
  %2237 = vmatmul.mubr.f32.gmra.mrb[0].mxu0 %v2085
  %v2238 = vpop.f32.mrb[0].mxu0
  %v2239 = vadd.f32 0.0, %v2238
  %v2240 = vpop.f32.mrb[0].mxu0
  %2241 = vmatprep.mubr.f32.mxu0 0.0
  %2242 = vmatmul.mubr.f32.gmra.mrb[0].mxu0 %v2088
  %v2243 = vpop.f32.mrb[0].mxu0
  %v2244 = vadd.f32 0.0, %v2243
  %v2245 = vpop.f32.mrb[0].mxu0
  %2246 = vmatprep.mubr.f32.mxu0 0.0
  %2247 = vmatmul.mubr.f32.gmra.mrb[0].mxu0 %v2091
  %v2248 = vpop.f32.mrb[0].mxu0
  %v2249 = vadd.f32 0.0, %v2248
  %v2250 = vpop.f32.mrb[0].mxu0
  %2251 = vmatprep.mubr.f32.mxu0 0.0
  %2252 = vmatmul.mubr.f32.gmra.mrb[0].mxu0 %v2094
  %v2253 = vpop.f32.mrb[0].mxu0
  %v2254 = vadd.f32 0.0, %v2253
  %v2255 = vpop.f32.mrb[0].mxu0
  %2256 = vmatprep.mubr.f32.mxu0 0.0
  %2257 = vmatmul.mubr.f32.gmra.mrb[0].mxu0 %v2097
  %v2258 = vpop.f32.mrb[0].mxu0
  %v2259 = vadd.f32 0.0, %v2258
  %v2260 = vpop.f32.mrb[0].mxu0
  %2261 = vmatprep.mubr.f32.mxu0 0.0
  %2262 = vmatmul.mubr.f32.gmra.mrb[0].mxu0 %v2100
  %v2263 = vpop.f32.mrb[0].mxu0
  %v2264 = vadd.f32 0.0, %v2263
  %v2265 = vpop.f32.mrb[0].mxu0
  %2266 = vmatprep.mubr.f32.mxu0 0.0
  %2267 = vmatmul.mubr.f32.gmra.mrb[0].mxu0 %v2103
  %v2268 = vpop.f32.mrb[0].mxu0
  %v2269 = vadd.f32 0.0, %v2268
  %v2270 = vpop.f32.mrb[0].mxu0
  %2271 = vmatprep.mubr.f32.mxu0 0.0
  %2272 = vmatmul.mubr.f32.gmra.mrb[0].mxu0 %v2106
  %v2273 = vpop.f32.mrb[0].mxu0
  %v2274 = vadd.f32 0.0, %v2273
  %v2275 = vpop.f32.mrb[0].mxu0
  %2276 = vmatprep.mubr.f32.mxu0 0.0
  %2277 = vmatmul.mubr.f32.gmra.mrb[0].mxu0 %v2109
  %v2278 = vpop.f32.mrb[0].mxu0
  %v2279 = vadd.f32 0.0, %v2278
  %v2280 = vpop.f32.mrb[0].mxu0
  %2281 = vmatprep.mubr.f32.mxu0 0.0
  %2282 = vmatmul.mubr.f32.gmra.mrb[0].mxu0 %v2112
  %v2283 = vpop.f32.mrb[0].mxu0
  %v2284 = vadd.f32 0.0, %v2283
  %v2285 = vpop.f32.mrb[0].mxu0
  %2286 = vmatprep.mubr.f32.mxu0 0.0
  %2287 = vmatmul.mubr.f32.gmra.mrb[0].mxu0 %v2115
  %v2288 = vpop.f32.mrb[0].mxu0
  %v2289 = vadd.f32 0.0, %v2288
  %v2290 = vpop.f32.mrb[0].mxu0
  %2291 = vmatprep.mubr.f32.mxu0 0.0
  %2292 = vmatmul.mubr.f32.gmra.mrb[0].mxu0 %v2118
  %v2293 = vpop.f32.mrb[0].mxu0
  %v2294 = vadd.f32 0.0, %v2293
  %v2295 = vpop.f32.mrb[0].mxu0
  %2296 = vmatprep.mubr.f32.mxu0 0.0
  %2297 = vmatmul.mubr.f32.gmra.mrb[0].mxu0 %v2121
  %v2298 = vpop.f32.mrb[0].mxu0
  %v2299 = vadd.f32 0.0, %v2298
  %v2300 = vpop.f32.mrb[0].mxu0
  %2301 = vmatprep.mubr.f32.mxu0 0.0
  %2302 = vmatmul.mubr.f32.gmra.mrb[0].mxu0 %v2124
  %v2303 = vpop.f32.mrb[0].mxu0
  %v2304 = vadd.f32 0.0, %v2303
  %v2305 = vpop.f32.mrb[0].mxu0
  %2306 = vmatprep.mubr.f32.mxu0 0.0
  %2307 = vmatmul.mubr.f32.gmra.mrb[0].mxu0 %v2127
  %v2308 = vpop.f32.mrb[0].mxu0
  %v2309 = vadd.f32 0.0, %v2308
  %v2310 = vpop.f32.mrb[0].mxu0
  %2311 = vmatprep.mubr.f32.mxu0 0.0
  %2312 = vmatmul.mubr.f32.gmra.mrb[0].mxu0 %v2130
  %v2313 = vpop.f32.mrb[0].mxu0
  %v2314 = vadd.f32 0.0, %v2313
  %v2315 = vpop.f32.mrb[0].mxu0
  %2316 = vmatprep.mubr.f32.mxu0 0.0
  %2317 = vmatmul.mubr.f32.gmra.mrb[0].mxu0 %v2133
  %v2318 = vpop.f32.mrb[0].mxu0
  %v2319 = vadd.f32 0.0, %v2318
  %v2320 = vpop.f32.mrb[0].mxu0
  %2321 = vmatprep.mubr.f32.mxu0 0.0
  %2322 = vmatmul.mubr.f32.gmra.mrb[0].mxu0 %v2136
  %v2323 = vpop.f32.mrb[0].mxu0
  %v2324 = vadd.f32 0.0, %v2323
  %v2325 = vpop.f32.mrb[0].mxu0
  %2326 = vmatprep.mubr.f32.mxu0 0.0
  %2327 = vmatmul.mubr.f32.gmra.mrb[0].mxu0 %v2139
  %v2328 = vpop.f32.mrb[0].mxu0
  %v2329 = vadd.f32 0.0, %v2328
  %v2330 = vpop.f32.mrb[0].mxu0
  %2331 = vmatprep.mubr.f32.mxu0 0.0
  %2332 = vmatmul.mubr.f32.gmra.mrb[0].mxu0 %v2142
  %v2333 = vpop.f32.mrb[0].mxu0
  %v2334 = vadd.f32 0.0, %v2333
  %v2335 = vpop.f32.mrb[0].mxu0
  %2336 = vmatprep.mubr.f32.mxu0 0.0
  %2337 = vmatmul.mubr.f32.gmra.mrb[0].mxu0 %v2145
  %v2338 = vpop.f32.mrb[0].mxu0
  %v2339 = vadd.f32 0.0, %v2338
  %v2340 = vpop.f32.mrb[0].mxu0
  %2341 = vdwg.mxu0
  %v2342 = vadd.f32 %v2015, %v2214
  %v2343 = vadd.f32 %v2016, %v2219
  %v2344 = vadd.f32 %v2017, %v2224
  %v2345 = vadd.f32 %v2018, %v2229
  %v2346 = vadd.f32 %v2019, %v2234
  %v2347 = vadd.f32 %v2020, %v2239
  %v2348 = vadd.f32 %v2021, %v2244
  %v2349 = vadd.f32 %v2022, %v2249
  %v2350 = vadd.f32 %v2023, %v2254
  %v2351 = vadd.f32 %v2024, %v2259
  %v2352 = vadd.f32 %v2025, %v2264
  %v2353 = vadd.f32 %v2026, %v2269
  %v2354 = vadd.f32 %v2027, %v2274
  %v2355 = vadd.f32 %v2028, %v2279
  %v2356 = vadd.f32 %v2029, %v2284
  %v2357 = vadd.f32 %v2030, %v2289
  %v2358 = vadd.f32 %v2031, %v2294
  %v2359 = vadd.f32 %v2032, %v2299
  %v2360 = vadd.f32 %v2033, %v2304
  %v2361 = vadd.f32 %v2034, %v2309
  %v2362 = vadd.f32 %v2035, %v2314
  %v2363 = vadd.f32 %v2036, %v2319
  %v2364 = vadd.f32 %v2037, %v2324
  %v2365 = vadd.f32 %v2038, %v2329
  %v2366 = vadd.f32 %v2039, %v2334
  %v2367 = vadd.f32 %v2040, %v2339
  %v2368 = vld [vmem:[#allocation4 + $0xb] sm:$0xff]
  %v2369 = vld [vmem:[#allocation4 + $0x13] sm:$0xff]
  %v2370 = vld [vmem:[#allocation4 + $0x1b] sm:$0xff]
  %v2371 = vld [vmem:[#allocation4 + $0x23] sm:$0xff]
  %v2372 = vld [vmem:[#allocation4 + $0x2b] sm:$0xff]
  %v2373 = vld [vmem:[#allocation4 + $0x33] sm:$0xff]
  %v2374 = vld [vmem:[#allocation4 + $0x3b] sm:$0xff]
  %v2375 = vld [vmem:[#allocation4 + $0x43] sm:$0xff]
  %v2376 = vld [vmem:[#allocation4 + $0x4b] sm:$0xff]
  %v2377 = vld [vmem:[#allocation4 + $0x53] sm:$0xff]
  %v2378 = vld [vmem:[#allocation4 + $0x5b] sm:$0xff]
  %v2379 = vld [vmem:[#allocation4 + $0x63] sm:$0xff]
  %v2380 = vld [vmem:[#allocation4 + $0x6b] sm:$0xff]
  %v2381 = vld [vmem:[#allocation4 + $0x73] sm:$0xff]
  %v2382 = vld [vmem:[#allocation4 + $0x7b] sm:$0xff]
  %v2383 = vld [vmem:[#allocation4 + $0x83] sm:$0xff]
  %v2384 = vld [vmem:[#allocation4 + $0x8b] sm:$0xff]
  %v2385 = vld [vmem:[#allocation4 + $0x93] sm:$0xff]
  %v2386 = vld [vmem:[#allocation4 + $0x9b] sm:$0xff]
  %v2387 = vld [vmem:[#allocation4 + $0xa3] sm:$0xff]
  %v2388 = vld [vmem:[#allocation4 + $0xab] sm:$0xff]
  %v2389 = vld [vmem:[#allocation4 + $0xb3] sm:$0xff]
  %v2390 = vld [vmem:[#allocation4 + $0xbb] sm:$0xff]
  %v2391 = vld [vmem:[#allocation4 + $0xc3] sm:$0xff]
  %v2392 = vld [vmem:[#allocation4 + $0xcb] sm:$0xff]
  %v2393 = vld [vmem:[#allocation4 + $0xd3] sm:$0xff]
  %v2394 = vld [vmem:[%s3 + $0x40] sm:$0xff]
  %v2395 = vld [vmem:[%s3 + $0x48] sm:$0xff]
  %v2397 = vsel %vm766, %v2368, 0
  %v2400 = vsel %vm766, %v2369, 0
  %v2403 = vsel %vm766, %v2370, 0
  %v2406 = vsel %vm766, %v2371, 0
  %v2409 = vsel %vm766, %v2372, 0
  %v2412 = vsel %vm766, %v2373, 0
  %v2415 = vsel %vm766, %v2374, 0
  %v2418 = vsel %vm766, %v2375, 0
  %v2421 = vsel %vm766, %v2376, 0
  %v2424 = vsel %vm766, %v2377, 0
  %v2427 = vsel %vm766, %v2378, 0
  %v2430 = vsel %vm766, %v2379, 0
  %v2433 = vsel %vm766, %v2380, 0
  %v2436 = vsel %vm766, %v2381, 0
  %v2439 = vsel %vm766, %v2382, 0
  %v2442 = vsel %vm766, %v2383, 0
  %v2445 = vsel %vm766, %v2384, 0
  %v2448 = vsel %vm766, %v2385, 0
  %v2451 = vsel %vm766, %v2386, 0
  %v2454 = vsel %vm766, %v2387, 0
  %v2457 = vsel %vm766, %v2388, 0
  %v2460 = vsel %vm766, %v2389, 0
  %v2463 = vsel %vm766, %v2390, 0
  %v2466 = vsel %vm766, %v2391, 0
  %v2469 = vsel %vm766, %v2392, 0
  %v2472 = vsel %vm766, %v2393, 0
  %2474 = vmatprep.subr.mxu0 0.0
  %2475 = vmatpush1.msra.mxu0 %v2394
  %2476 = vmatprep.subr.mxu0 0.0
  %2477 = vmatpush1.msra.mxu0 %v2395
  %2478 = vmatprep.subr.mxu0 0.0
  %2479 = vmatpush1.msra.mxu0 0.0
  %2480 = vmatprep.subr.mxu0 0.0
  %2481 = vmatpush1.msra.mxu0 0.0
  %2482 = vmatprep.subr.mxu0 0.0
  %2483 = vmatpush1.msra.mxu0 0.0
  %2484 = vmatprep.subr.mxu0 0.0
  %2485 = vmatpush1.msra.mxu0 0.0
  %2486 = vmatprep.subr.mxu0 0.0
  %2487 = vmatpush1.msra.mxu0 0.0
  %2488 = vmatprep.subr.mxu0 0.0
  %2489 = vmatpush1.msra.mxu0 0.0
  %2490 = vmatprep.subr.mxu0 0.0
  %2491 = vmatpush1.msra.mxu0 0.0
  %2492 = vmatprep.subr.mxu0 0.0
  %2493 = vmatpush1.msra.mxu0 0.0
  %2494 = vmatprep.subr.mxu0 0.0
  %2495 = vmatpush1.msra.mxu0 0.0
  %2496 = vmatprep.subr.mxu0 0.0
  %2497 = vmatpush1.msra.mxu0 0.0
  %2498 = vmatprep.subr.mxu0 0.0
  %2499 = vmatpush1.msra.mxu0 0.0
  %2500 = vmatprep.subr.mxu0 0.0
  %2501 = vmatpush1.msra.mxu0 0.0
  %2502 = vmatprep.subr.mxu0 0.0
  %2503 = vmatpush1.msra.mxu0 0.0
  %2504 = vmatprep.subr.mxu0 0.0
  %2505 = vmatpush1.msra.mxu0 0.0
  %2506 = vmatprep.subr.mxu0 0.0
  %2507 = vmatpush1.msra.mxu0 0.0
  %2508 = vmatprep.subr.mxu0 0.0
  %2509 = vmatpush1.msra.mxu0 0.0
  %2510 = vmatprep.subr.mxu0 0.0
  %2511 = vmatpush1.msra.mxu0 0.0
  %2512 = vmatprep.subr.mxu0 0.0
  %2513 = vmatpush1.msra.mxu0 0.0
  %2514 = vmatprep.subr.mxu0 0.0
  %2515 = vmatpush1.msra.mxu0 0.0
  %2516 = vmatprep.subr.mxu0 0.0
  %2517 = vmatpush1.msra.mxu0 0.0
  %2518 = vmatprep.subr.mxu0 0.0
  %2519 = vmatpush1.msra.mxu0 0.0
  %2520 = vmatprep.subr.mxu0 0.0
  %2521 = vmatpush1.msra.mxu0 0.0
  %2522 = vmatprep.subr.mxu0 0.0
  %2523 = vmatpush1.msra.mxu0 0.0
  %2524 = vmatprep.subr.mxu0 0.0
  %2525 = vmatpush1.msra.mxu0 0.0
  %2526 = vmatprep.subr.mxu0 0.0
  %2527 = vmatpush1.msra.mxu0 0.0
  %2528 = vmatprep.subr.mxu0 0.0
  %2529 = vmatpush1.msra.mxu0 0.0
  %2530 = vmatprep.subr.mxu0 0.0
  %2531 = vmatpush1.msra.mxu0 0.0
  %2532 = vmatprep.subr.mxu0 0.0
  %2533 = vmatpush1.msra.mxu0 0.0
  %2534 = vmatprep.subr.mxu0 0.0
  %2535 = vmatpush1.msra.mxu0 0.0
  %2536 = vmatprep.subr.mxu0 0.0
  %2537 = vmatpush1.msra.mxu0 0.0
  %2538 = vmatprep.mubr.f32.mxu0 0.0
  %2539 = vmatmul.mubr.f32.gmra.mrb[0].mxu0 %v2397
  %v2540 = vpop.f32.mrb[0].mxu0
  %v2541 = vadd.f32 0.0, %v2540
  %v2542 = vpop.f32.mrb[0].mxu0
  %2543 = vmatprep.mubr.f32.mxu0 0.0
  %2544 = vmatmul.mubr.f32.gmra.mrb[0].mxu0 %v2400
  %v2545 = vpop.f32.mrb[0].mxu0
  %v2546 = vadd.f32 0.0, %v2545
  %v2547 = vpop.f32.mrb[0].mxu0
  %2548 = vmatprep.mubr.f32.mxu0 0.0
  %2549 = vmatmul.mubr.f32.gmra.mrb[0].mxu0 %v2403
  %v2550 = vpop.f32.mrb[0].mxu0
  %v2551 = vadd.f32 0.0, %v2550
  %v2552 = vpop.f32.mrb[0].mxu0
  %2553 = vmatprep.mubr.f32.mxu0 0.0
  %2554 = vmatmul.mubr.f32.gmra.mrb[0].mxu0 %v2406
  %v2555 = vpop.f32.mrb[0].mxu0
  %v2556 = vadd.f32 0.0, %v2555
  %v2557 = vpop.f32.mrb[0].mxu0
  %2558 = vmatprep.mubr.f32.mxu0 0.0
  %2559 = vmatmul.mubr.f32.gmra.mrb[0].mxu0 %v2409
  %v2560 = vpop.f32.mrb[0].mxu0
  %v2561 = vadd.f32 0.0, %v2560
  %v2562 = vpop.f32.mrb[0].mxu0
  %2563 = vmatprep.mubr.f32.mxu0 0.0
  %2564 = vmatmul.mubr.f32.gmra.mrb[0].mxu0 %v2412
  %v2565 = vpop.f32.mrb[0].mxu0
  %v2566 = vadd.f32 0.0, %v2565
  %v2567 = vpop.f32.mrb[0].mxu0
  %2568 = vmatprep.mubr.f32.mxu0 0.0
  %2569 = vmatmul.mubr.f32.gmra.mrb[0].mxu0 %v2415
  %v2570 = vpop.f32.mrb[0].mxu0
  %v2571 = vadd.f32 0.0, %v2570
  %v2572 = vpop.f32.mrb[0].mxu0
  %2573 = vmatprep.mubr.f32.mxu0 0.0
  %2574 = vmatmul.mubr.f32.gmra.mrb[0].mxu0 %v2418
  %v2575 = vpop.f32.mrb[0].mxu0
  %v2576 = vadd.f32 0.0, %v2575
  %v2577 = vpop.f32.mrb[0].mxu0
  %2578 = vmatprep.mubr.f32.mxu0 0.0
  %2579 = vmatmul.mubr.f32.gmra.mrb[0].mxu0 %v2421
  %v2580 = vpop.f32.mrb[0].mxu0
  %v2581 = vadd.f32 0.0, %v2580
  %v2582 = vpop.f32.mrb[0].mxu0
  %2583 = vmatprep.mubr.f32.mxu0 0.0
  %2584 = vmatmul.mubr.f32.gmra.mrb[0].mxu0 %v2424
  %v2585 = vpop.f32.mrb[0].mxu0
  %v2586 = vadd.f32 0.0, %v2585
  %v2587 = vpop.f32.mrb[0].mxu0
  %2588 = vmatprep.mubr.f32.mxu0 0.0
  %2589 = vmatmul.mubr.f32.gmra.mrb[0].mxu0 %v2427
  %v2590 = vpop.f32.mrb[0].mxu0
  %v2591 = vadd.f32 0.0, %v2590
  %v2592 = vpop.f32.mrb[0].mxu0
  %2593 = vmatprep.mubr.f32.mxu0 0.0
  %2594 = vmatmul.mubr.f32.gmra.mrb[0].mxu0 %v2430
  %v2595 = vpop.f32.mrb[0].mxu0
  %v2596 = vadd.f32 0.0, %v2595
  %v2597 = vpop.f32.mrb[0].mxu0
  %2598 = vmatprep.mubr.f32.mxu0 0.0
  %2599 = vmatmul.mubr.f32.gmra.mrb[0].mxu0 %v2433
  %v2600 = vpop.f32.mrb[0].mxu0
  %v2601 = vadd.f32 0.0, %v2600
  %v2602 = vpop.f32.mrb[0].mxu0
  %2603 = vmatprep.mubr.f32.mxu0 0.0
  %2604 = vmatmul.mubr.f32.gmra.mrb[0].mxu0 %v2436
  %v2605 = vpop.f32.mrb[0].mxu0
  %v2606 = vadd.f32 0.0, %v2605
  %v2607 = vpop.f32.mrb[0].mxu0
  %2608 = vmatprep.mubr.f32.mxu0 0.0
  %2609 = vmatmul.mubr.f32.gmra.mrb[0].mxu0 %v2439
  %v2610 = vpop.f32.mrb[0].mxu0
  %v2611 = vadd.f32 0.0, %v2610
  %v2612 = vpop.f32.mrb[0].mxu0
  %2613 = vmatprep.mubr.f32.mxu0 0.0
  %2614 = vmatmul.mubr.f32.gmra.mrb[0].mxu0 %v2442
  %v2615 = vpop.f32.mrb[0].mxu0
  %v2616 = vadd.f32 0.0, %v2615
  %v2617 = vpop.f32.mrb[0].mxu0
  %2618 = vmatprep.mubr.f32.mxu0 0.0
  %2619 = vmatmul.mubr.f32.gmra.mrb[0].mxu0 %v2445
  %v2620 = vpop.f32.mrb[0].mxu0
  %v2621 = vadd.f32 0.0, %v2620
  %v2622 = vpop.f32.mrb[0].mxu0
  %2623 = vmatprep.mubr.f32.mxu0 0.0
  %2624 = vmatmul.mubr.f32.gmra.mrb[0].mxu0 %v2448
  %v2625 = vpop.f32.mrb[0].mxu0
  %v2626 = vadd.f32 0.0, %v2625
  %v2627 = vpop.f32.mrb[0].mxu0
  %2628 = vmatprep.mubr.f32.mxu0 0.0
  %2629 = vmatmul.mubr.f32.gmra.mrb[0].mxu0 %v2451
  %v2630 = vpop.f32.mrb[0].mxu0
  %v2631 = vadd.f32 0.0, %v2630
  %v2632 = vpop.f32.mrb[0].mxu0
  %2633 = vmatprep.mubr.f32.mxu0 0.0
  %2634 = vmatmul.mubr.f32.gmra.mrb[0].mxu0 %v2454
  %v2635 = vpop.f32.mrb[0].mxu0
  %v2636 = vadd.f32 0.0, %v2635
  %v2637 = vpop.f32.mrb[0].mxu0
  %2638 = vmatprep.mubr.f32.mxu0 0.0
  %2639 = vmatmul.mubr.f32.gmra.mrb[0].mxu0 %v2457
  %v2640 = vpop.f32.mrb[0].mxu0
  %v2641 = vadd.f32 0.0, %v2640
  %v2642 = vpop.f32.mrb[0].mxu0
  %2643 = vmatprep.mubr.f32.mxu0 0.0
  %2644 = vmatmul.mubr.f32.gmra.mrb[0].mxu0 %v2460
  %v2645 = vpop.f32.mrb[0].mxu0
  %v2646 = vadd.f32 0.0, %v2645
  %v2647 = vpop.f32.mrb[0].mxu0
  %2648 = vmatprep.mubr.f32.mxu0 0.0
  %2649 = vmatmul.mubr.f32.gmra.mrb[0].mxu0 %v2463
  %v2650 = vpop.f32.mrb[0].mxu0
  %v2651 = vadd.f32 0.0, %v2650
  %v2652 = vpop.f32.mrb[0].mxu0
  %2653 = vmatprep.mubr.f32.mxu0 0.0
  %2654 = vmatmul.mubr.f32.gmra.mrb[0].mxu0 %v2466
  %v2655 = vpop.f32.mrb[0].mxu0
  %v2656 = vadd.f32 0.0, %v2655
  %v2657 = vpop.f32.mrb[0].mxu0
  %2658 = vmatprep.mubr.f32.mxu0 0.0
  %2659 = vmatmul.mubr.f32.gmra.mrb[0].mxu0 %v2469
  %v2660 = vpop.f32.mrb[0].mxu0
  %v2661 = vadd.f32 0.0, %v2660
  %v2662 = vpop.f32.mrb[0].mxu0
  %2663 = vmatprep.mubr.f32.mxu0 0.0
  %2664 = vmatmul.mubr.f32.gmra.mrb[0].mxu0 %v2472
  %v2665 = vpop.f32.mrb[0].mxu0
  %v2666 = vadd.f32 0.0, %v2665
  %v2667 = vpop.f32.mrb[0].mxu0
  %2668 = vdwg.mxu0
  %v2669 = vadd.f32 %v2342, %v2541
  %v2670 = vadd.f32 %v2343, %v2546
  %v2671 = vadd.f32 %v2344, %v2551
  %v2672 = vadd.f32 %v2345, %v2556
  %v2673 = vadd.f32 %v2346, %v2561
  %v2674 = vadd.f32 %v2347, %v2566
  %v2675 = vadd.f32 %v2348, %v2571
  %v2676 = vadd.f32 %v2349, %v2576
  %v2677 = vadd.f32 %v2350, %v2581
  %v2678 = vadd.f32 %v2351, %v2586
  %v2679 = vadd.f32 %v2352, %v2591
  %v2680 = vadd.f32 %v2353, %v2596
  %v2681 = vadd.f32 %v2354, %v2601
  %v2682 = vadd.f32 %v2355, %v2606
  %v2683 = vadd.f32 %v2356, %v2611
  %v2684 = vadd.f32 %v2357, %v2616
  %v2685 = vadd.f32 %v2358, %v2621
  %v2686 = vadd.f32 %v2359, %v2626
  %v2687 = vadd.f32 %v2360, %v2631
  %v2688 = vadd.f32 %v2361, %v2636
  %v2689 = vadd.f32 %v2362, %v2641
  %v2690 = vadd.f32 %v2363, %v2646
  %v2691 = vadd.f32 %v2364, %v2651
  %v2692 = vadd.f32 %v2365, %v2656
  %v2693 = vadd.f32 %v2366, %v2661
  %v2694 = vadd.f32 %v2367, %v2666
  %v2695 = vld [vmem:[#allocation4 + $0xc] sm:$0xff]
  %v2696 = vld [vmem:[#allocation4 + $0x14] sm:$0xff]
  %v2697 = vld [vmem:[#allocation4 + $0x1c] sm:$0xff]
  %v2698 = vld [vmem:[#allocation4 + $0x24] sm:$0xff]
  %v2699 = vld [vmem:[#allocation4 + $0x2c] sm:$0xff]
  %v2700 = vld [vmem:[#allocation4 + $0x34] sm:$0xff]
  %v2701 = vld [vmem:[#allocation4 + $0x3c] sm:$0xff]
  %v2702 = vld [vmem:[#allocation4 + $0x44] sm:$0xff]
  %v2703 = vld [vmem:[#allocation4 + $0x4c] sm:$0xff]
  %v2704 = vld [vmem:[#allocation4 + $0x54] sm:$0xff]
  %v2705 = vld [vmem:[#allocation4 + $0x5c] sm:$0xff]
  %v2706 = vld [vmem:[#allocation4 + $0x64] sm:$0xff]
  %v2707 = vld [vmem:[#allocation4 + $0x6c] sm:$0xff]
  %v2708 = vld [vmem:[#allocation4 + $0x74] sm:$0xff]
  %v2709 = vld [vmem:[#allocation4 + $0x7c] sm:$0xff]
  %v2710 = vld [vmem:[#allocation4 + $0x84] sm:$0xff]
  %v2711 = vld [vmem:[#allocation4 + $0x8c] sm:$0xff]
  %v2712 = vld [vmem:[#allocation4 + $0x94] sm:$0xff]
  %v2713 = vld [vmem:[#allocation4 + $0x9c] sm:$0xff]
  %v2714 = vld [vmem:[#allocation4 + $0xa4] sm:$0xff]
  %v2715 = vld [vmem:[#allocation4 + $0xac] sm:$0xff]
  %v2716 = vld [vmem:[#allocation4 + $0xb4] sm:$0xff]
  %v2717 = vld [vmem:[#allocation4 + $0xbc] sm:$0xff]
  %v2718 = vld [vmem:[#allocation4 + $0xc4] sm:$0xff]
  %v2719 = vld [vmem:[#allocation4 + $0xcc] sm:$0xff]
  %v2720 = vld [vmem:[#allocation4 + $0xd4] sm:$0xff]
  %v2721 = vld [vmem:[%s3 + $0x50] sm:$0xff]
  %v2722 = vld [vmem:[%s3 + $0x58] sm:$0xff]
  %v2724 = vsel %vm766, %v2695, 0
  %v2727 = vsel %vm766, %v2696, 0
  %v2730 = vsel %vm766, %v2697, 0
  %v2733 = vsel %vm766, %v2698, 0
  %v2736 = vsel %vm766, %v2699, 0
  %v2739 = vsel %vm766, %v2700, 0
  %v2742 = vsel %vm766, %v2701, 0
  %v2745 = vsel %vm766, %v2702, 0
  %v2748 = vsel %vm766, %v2703, 0
  %v2751 = vsel %vm766, %v2704, 0
  %v2754 = vsel %vm766, %v2705, 0
  %v2757 = vsel %vm766, %v2706, 0
  %v2760 = vsel %vm766, %v2707, 0
  %v2763 = vsel %vm766, %v2708, 0
  %v2766 = vsel %vm766, %v2709, 0
  %v2769 = vsel %vm766, %v2710, 0
  %v2772 = vsel %vm766, %v2711, 0
  %v2775 = vsel %vm766, %v2712, 0
  %v2778 = vsel %vm766, %v2713, 0
  %v2781 = vsel %vm766, %v2714, 0
  %v2784 = vsel %vm766, %v2715, 0
  %v2787 = vsel %vm766, %v2716, 0
  %v2790 = vsel %vm766, %v2717, 0
  %v2793 = vsel %vm766, %v2718, 0
  %v2796 = vsel %vm766, %v2719, 0
  %v2799 = vsel %vm766, %v2720, 0
  %2801 = vmatprep.subr.mxu0 0.0
  %2802 = vmatpush1.msra.mxu0 %v2721
  %2803 = vmatprep.subr.mxu0 0.0
  %2804 = vmatpush1.msra.mxu0 %v2722
  %2805 = vmatprep.subr.mxu0 0.0
  %2806 = vmatpush1.msra.mxu0 0.0
  %2807 = vmatprep.subr.mxu0 0.0
  %2808 = vmatpush1.msra.mxu0 0.0
  %2809 = vmatprep.subr.mxu0 0.0
  %2810 = vmatpush1.msra.mxu0 0.0
  %2811 = vmatprep.subr.mxu0 0.0
  %2812 = vmatpush1.msra.mxu0 0.0
  %2813 = vmatprep.subr.mxu0 0.0
  %2814 = vmatpush1.msra.mxu0 0.0
  %2815 = vmatprep.subr.mxu0 0.0
  %2816 = vmatpush1.msra.mxu0 0.0
  %2817 = vmatprep.subr.mxu0 0.0
  %2818 = vmatpush1.msra.mxu0 0.0
  %2819 = vmatprep.subr.mxu0 0.0
  %2820 = vmatpush1.msra.mxu0 0.0
  %2821 = vmatprep.subr.mxu0 0.0
  %2822 = vmatpush1.msra.mxu0 0.0
  %2823 = vmatprep.subr.mxu0 0.0
  %2824 = vmatpush1.msra.mxu0 0.0
  %2825 = vmatprep.subr.mxu0 0.0
  %2826 = vmatpush1.msra.mxu0 0.0
  %2827 = vmatprep.subr.mxu0 0.0
  %2828 = vmatpush1.msra.mxu0 0.0
  %2829 = vmatprep.subr.mxu0 0.0
  %2830 = vmatpush1.msra.mxu0 0.0
  %2831 = vmatprep.subr.mxu0 0.0
  %2832 = vmatpush1.msra.mxu0 0.0
  %2833 = vmatprep.subr.mxu0 0.0
  %2834 = vmatpush1.msra.mxu0 0.0
  %2835 = vmatprep.subr.mxu0 0.0
  %2836 = vmatpush1.msra.mxu0 0.0
  %2837 = vmatprep.subr.mxu0 0.0
  %2838 = vmatpush1.msra.mxu0 0.0
  %2839 = vmatprep.subr.mxu0 0.0
  %2840 = vmatpush1.msra.mxu0 0.0
  %2841 = vmatprep.subr.mxu0 0.0
  %2842 = vmatpush1.msra.mxu0 0.0
  %2843 = vmatprep.subr.mxu0 0.0
  %2844 = vmatpush1.msra.mxu0 0.0
  %2845 = vmatprep.subr.mxu0 0.0
  %2846 = vmatpush1.msra.mxu0 0.0
  %2847 = vmatprep.subr.mxu0 0.0
  %2848 = vmatpush1.msra.mxu0 0.0
  %2849 = vmatprep.subr.mxu0 0.0
  %2850 = vmatpush1.msra.mxu0 0.0
  %2851 = vmatprep.subr.mxu0 0.0
  %2852 = vmatpush1.msra.mxu0 0.0
  %2853 = vmatprep.subr.mxu0 0.0
  %2854 = vmatpush1.msra.mxu0 0.0
  %2855 = vmatprep.subr.mxu0 0.0
  %2856 = vmatpush1.msra.mxu0 0.0
  %2857 = vmatprep.subr.mxu0 0.0
  %2858 = vmatpush1.msra.mxu0 0.0
  %2859 = vmatprep.subr.mxu0 0.0
  %2860 = vmatpush1.msra.mxu0 0.0
  %2861 = vmatprep.subr.mxu0 0.0
  %2862 = vmatpush1.msra.mxu0 0.0
  %2863 = vmatprep.subr.mxu0 0.0
  %2864 = vmatpush1.msra.mxu0 0.0
  %2865 = vmatprep.mubr.f32.mxu0 0.0
  %2866 = vmatmul.mubr.f32.gmra.mrb[0].mxu0 %v2724
  %v2867 = vpop.f32.mrb[0].mxu0
  %v2868 = vadd.f32 0.0, %v2867
  %v2869 = vpop.f32.mrb[0].mxu0
  %2870 = vmatprep.mubr.f32.mxu0 0.0
  %2871 = vmatmul.mubr.f32.gmra.mrb[0].mxu0 %v2727
  %v2872 = vpop.f32.mrb[0].mxu0
  %v2873 = vadd.f32 0.0, %v2872
  %v2874 = vpop.f32.mrb[0].mxu0
  %2875 = vmatprep.mubr.f32.mxu0 0.0
  %2876 = vmatmul.mubr.f32.gmra.mrb[0].mxu0 %v2730
  %v2877 = vpop.f32.mrb[0].mxu0
  %v2878 = vadd.f32 0.0, %v2877
  %v2879 = vpop.f32.mrb[0].mxu0
  %2880 = vmatprep.mubr.f32.mxu0 0.0
  %2881 = vmatmul.mubr.f32.gmra.mrb[0].mxu0 %v2733
  %v2882 = vpop.f32.mrb[0].mxu0
  %v2883 = vadd.f32 0.0, %v2882
  %v2884 = vpop.f32.mrb[0].mxu0
  %2885 = vmatprep.mubr.f32.mxu0 0.0
  %2886 = vmatmul.mubr.f32.gmra.mrb[0].mxu0 %v2736
  %v2887 = vpop.f32.mrb[0].mxu0
  %v2888 = vadd.f32 0.0, %v2887
  %v2889 = vpop.f32.mrb[0].mxu0
  %2890 = vmatprep.mubr.f32.mxu0 0.0
  %2891 = vmatmul.mubr.f32.gmra.mrb[0].mxu0 %v2739
  %v2892 = vpop.f32.mrb[0].mxu0
  %v2893 = vadd.f32 0.0, %v2892
  %v2894 = vpop.f32.mrb[0].mxu0
  %2895 = vmatprep.mubr.f32.mxu0 0.0
  %2896 = vmatmul.mubr.f32.gmra.mrb[0].mxu0 %v2742
  %v2897 = vpop.f32.mrb[0].mxu0
  %v2898 = vadd.f32 0.0, %v2897
  %v2899 = vpop.f32.mrb[0].mxu0
  %2900 = vmatprep.mubr.f32.mxu0 0.0
  %2901 = vmatmul.mubr.f32.gmra.mrb[0].mxu0 %v2745
  %v2902 = vpop.f32.mrb[0].mxu0
  %v2903 = vadd.f32 0.0, %v2902
  %v2904 = vpop.f32.mrb[0].mxu0
  %2905 = vmatprep.mubr.f32.mxu0 0.0
  %2906 = vmatmul.mubr.f32.gmra.mrb[0].mxu0 %v2748
  %v2907 = vpop.f32.mrb[0].mxu0
  %v2908 = vadd.f32 0.0, %v2907
  %v2909 = vpop.f32.mrb[0].mxu0
  %2910 = vmatprep.mubr.f32.mxu0 0.0
  %2911 = vmatmul.mubr.f32.gmra.mrb[0].mxu0 %v2751
  %v2912 = vpop.f32.mrb[0].mxu0
  %v2913 = vadd.f32 0.0, %v2912
  %v2914 = vpop.f32.mrb[0].mxu0
  %2915 = vmatprep.mubr.f32.mxu0 0.0
  %2916 = vmatmul.mubr.f32.gmra.mrb[0].mxu0 %v2754
  %v2917 = vpop.f32.mrb[0].mxu0
  %v2918 = vadd.f32 0.0, %v2917
  %v2919 = vpop.f32.mrb[0].mxu0
  %2920 = vmatprep.mubr.f32.mxu0 0.0
  %2921 = vmatmul.mubr.f32.gmra.mrb[0].mxu0 %v2757
  %v2922 = vpop.f32.mrb[0].mxu0
  %v2923 = vadd.f32 0.0, %v2922
  %v2924 = vpop.f32.mrb[0].mxu0
  %2925 = vmatprep.mubr.f32.mxu0 0.0
  %2926 = vmatmul.mubr.f32.gmra.mrb[0].mxu0 %v2760
  %v2927 = vpop.f32.mrb[0].mxu0
  %v2928 = vadd.f32 0.0, %v2927
  %v2929 = vpop.f32.mrb[0].mxu0
  %2930 = vmatprep.mubr.f32.mxu0 0.0
  %2931 = vmatmul.mubr.f32.gmra.mrb[0].mxu0 %v2763
  %v2932 = vpop.f32.mrb[0].mxu0
  %v2933 = vadd.f32 0.0, %v2932
  %v2934 = vpop.f32.mrb[0].mxu0
  %2935 = vmatprep.mubr.f32.mxu0 0.0
  %2936 = vmatmul.mubr.f32.gmra.mrb[0].mxu0 %v2766
  %v2937 = vpop.f32.mrb[0].mxu0
  %v2938 = vadd.f32 0.0, %v2937
  %v2939 = vpop.f32.mrb[0].mxu0
  %2940 = vmatprep.mubr.f32.mxu0 0.0
  %2941 = vmatmul.mubr.f32.gmra.mrb[0].mxu0 %v2769
  %v2942 = vpop.f32.mrb[0].mxu0
  %v2943 = vadd.f32 0.0, %v2942
  %v2944 = vpop.f32.mrb[0].mxu0
  %2945 = vmatprep.mubr.f32.mxu0 0.0
  %2946 = vmatmul.mubr.f32.gmra.mrb[0].mxu0 %v2772
  %v2947 = vpop.f32.mrb[0].mxu0
  %v2948 = vadd.f32 0.0, %v2947
  %v2949 = vpop.f32.mrb[0].mxu0
  %2950 = vmatprep.mubr.f32.mxu0 0.0
  %2951 = vmatmul.mubr.f32.gmra.mrb[0].mxu0 %v2775
  %v2952 = vpop.f32.mrb[0].mxu0
  %v2953 = vadd.f32 0.0, %v2952
  %v2954 = vpop.f32.mrb[0].mxu0
  %2955 = vmatprep.mubr.f32.mxu0 0.0
  %2956 = vmatmul.mubr.f32.gmra.mrb[0].mxu0 %v2778
  %v2957 = vpop.f32.mrb[0].mxu0
  %v2958 = vadd.f32 0.0, %v2957
  %v2959 = vpop.f32.mrb[0].mxu0
  %2960 = vmatprep.mubr.f32.mxu0 0.0
  %2961 = vmatmul.mubr.f32.gmra.mrb[0].mxu0 %v2781
  %v2962 = vpop.f32.mrb[0].mxu0
  %v2963 = vadd.f32 0.0, %v2962
  %v2964 = vpop.f32.mrb[0].mxu0
  %2965 = vmatprep.mubr.f32.mxu0 0.0
  %2966 = vmatmul.mubr.f32.gmra.mrb[0].mxu0 %v2784
  %v2967 = vpop.f32.mrb[0].mxu0
  %v2968 = vadd.f32 0.0, %v2967
  %v2969 = vpop.f32.mrb[0].mxu0
  %2970 = vmatprep.mubr.f32.mxu0 0.0
  %2971 = vmatmul.mubr.f32.gmra.mrb[0].mxu0 %v2787
  %v2972 = vpop.f32.mrb[0].mxu0
  %v2973 = vadd.f32 0.0, %v2972
  %v2974 = vpop.f32.mrb[0].mxu0
  %2975 = vmatprep.mubr.f32.mxu0 0.0
  %2976 = vmatmul.mubr.f32.gmra.mrb[0].mxu0 %v2790
  %v2977 = vpop.f32.mrb[0].mxu0
  %v2978 = vadd.f32 0.0, %v2977
  %v2979 = vpop.f32.mrb[0].mxu0
  %2980 = vmatprep.mubr.f32.mxu0 0.0
  %2981 = vmatmul.mubr.f32.gmra.mrb[0].mxu0 %v2793
  %v2982 = vpop.f32.mrb[0].mxu0
  %v2983 = vadd.f32 0.0, %v2982
  %v2984 = vpop.f32.mrb[0].mxu0
  %2985 = vmatprep.mubr.f32.mxu0 0.0
  %2986 = vmatmul.mubr.f32.gmra.mrb[0].mxu0 %v2796
  %v2987 = vpop.f32.mrb[0].mxu0
  %v2988 = vadd.f32 0.0, %v2987
  %v2989 = vpop.f32.mrb[0].mxu0
  %2990 = vmatprep.mubr.f32.mxu0 0.0
  %2991 = vmatmul.mubr.f32.gmra.mrb[0].mxu0 %v2799
  %v2992 = vpop.f32.mrb[0].mxu0
  %v2993 = vadd.f32 0.0, %v2992
  %v2994 = vpop.f32.mrb[0].mxu0
  %2995 = vdwg.mxu0
  %v2996 = vadd.f32 %v2669, %v2868
  %v2997 = vadd.f32 %v2670, %v2873
  %v2998 = vadd.f32 %v2671, %v2878
  %v2999 = vadd.f32 %v2672, %v2883
  %v3000 = vadd.f32 %v2673, %v2888
  %v3001 = vadd.f32 %v2674, %v2893
  %v3002 = vadd.f32 %v2675, %v2898
  %v3003 = vadd.f32 %v2676, %v2903
  %v3004 = vadd.f32 %v2677, %v2908
  %v3005 = vadd.f32 %v2678, %v2913
  %v3006 = vadd.f32 %v2679, %v2918
  %v3007 = vadd.f32 %v2680, %v2923
  %v3008 = vadd.f32 %v2681, %v2928
  %v3009 = vadd.f32 %v2682, %v2933
  %v3010 = vadd.f32 %v2683, %v2938
  %v3011 = vadd.f32 %v2684, %v2943
  %v3012 = vadd.f32 %v2685, %v2948
  %v3013 = vadd.f32 %v2686, %v2953
  %v3014 = vadd.f32 %v2687, %v2958
  %v3015 = vadd.f32 %v2688, %v2963
  %v3016 = vadd.f32 %v2689, %v2968
  %v3017 = vadd.f32 %v2690, %v2973
  %v3018 = vadd.f32 %v2691, %v2978
  %v3019 = vadd.f32 %v2692, %v2983
  %v3020 = vadd.f32 %v2693, %v2988
  %v3021 = vadd.f32 %v2694, %v2993
  %v3022 = vld [vmem:[#allocation4 + $0x14] sm:$0xff]
  %v3023 = vld [vmem:[#allocation4 + $0x1c] sm:$0xff]
  %v3024 = vld [vmem:[#allocation4 + $0x24] sm:$0xff]
  %v3025 = vld [vmem:[#allocation4 + $0x2c] sm:$0xff]
  %v3026 = vld [vmem:[#allocation4 + $0x34] sm:$0xff]
  %v3027 = vld [vmem:[#allocation4 + $0x3c] sm:$0xff]
  %v3028 = vld [vmem:[#allocation4 + $0x44] sm:$0xff]
  %v3029 = vld [vmem:[#allocation4 + $0x4c] sm:$0xff]
  %v3030 = vld [vmem:[#allocation4 + $0x54] sm:$0xff]
  %v3031 = vld [vmem:[#allocation4 + $0x5c] sm:$0xff]
  %v3032 = vld [vmem:[#allocation4 + $0x64] sm:$0xff]
  %v3033 = vld [vmem:[#allocation4 + $0x6c] sm:$0xff]
  %v3034 = vld [vmem:[#allocation4 + $0x74] sm:$0xff]
  %v3035 = vld [vmem:[#allocation4 + $0x7c] sm:$0xff]
  %v3036 = vld [vmem:[#allocation4 + $0x84] sm:$0xff]
  %v3037 = vld [vmem:[#allocation4 + $0x8c] sm:$0xff]
  %v3038 = vld [vmem:[#allocation4 + $0x94] sm:$0xff]
  %v3039 = vld [vmem:[#allocation4 + $0x9c] sm:$0xff]
  %v3040 = vld [vmem:[#allocation4 + $0xa4] sm:$0xff]
  %v3041 = vld [vmem:[#allocation4 + $0xac] sm:$0xff]
  %v3042 = vld [vmem:[#allocation4 + $0xb4] sm:$0xff]
  %v3043 = vld [vmem:[#allocation4 + $0xbc] sm:$0xff]
  %v3044 = vld [vmem:[#allocation4 + $0xc4] sm:$0xff]
  %v3045 = vld [vmem:[#allocation4 + $0xcc] sm:$0xff]
  %v3046 = vld [vmem:[#allocation4 + $0xd4] sm:$0xff]
  %v3047 = vld [vmem:[#allocation4 + $0xdc] sm:$0xff]
  %v3048 = vld [vmem:[%s3 + $0x60] sm:$0xff]
  %v3049 = vld [vmem:[%s3 + $0x68] sm:$0xff]
  %v3051 = vsel %vm766, %v3022, 0
  %v3054 = vsel %vm766, %v3023, 0
  %v3057 = vsel %vm766, %v3024, 0
  %v3060 = vsel %vm766, %v3025, 0
  %v3063 = vsel %vm766, %v3026, 0
  %v3066 = vsel %vm766, %v3027, 0
  %v3069 = vsel %vm766, %v3028, 0
  %v3072 = vsel %vm766, %v3029, 0
  %v3075 = vsel %vm766, %v3030, 0
  %v3078 = vsel %vm766, %v3031, 0
  %v3081 = vsel %vm766, %v3032, 0
  %v3084 = vsel %vm766, %v3033, 0
  %v3087 = vsel %vm766, %v3034, 0
  %v3090 = vsel %vm766, %v3035, 0
  %v3093 = vsel %vm766, %v3036, 0
  %v3096 = vsel %vm766, %v3037, 0
  %v3099 = vsel %vm766, %v3038, 0
  %v3102 = vsel %vm766, %v3039, 0
  %v3105 = vsel %vm766, %v3040, 0
  %v3108 = vsel %vm766, %v3041, 0
  %v3111 = vsel %vm766, %v3042, 0
  %v3114 = vsel %vm766, %v3043, 0
  %v3117 = vsel %vm766, %v3044, 0
  %v3120 = vsel %vm766, %v3045, 0
  %v3123 = vsel %vm766, %v3046, 0
  %v3126 = vsel %vm766, %v3047, 0
  %3128 = vmatprep.subr.mxu0 0.0
  %3129 = vmatpush1.msra.mxu0 %v3048
  %3130 = vmatprep.subr.mxu0 0.0
  %3131 = vmatpush1.msra.mxu0 %v3049
  %3132 = vmatprep.subr.mxu0 0.0
  %3133 = vmatpush1.msra.mxu0 0.0
  %3134 = vmatprep.subr.mxu0 0.0
  %3135 = vmatpush1.msra.mxu0 0.0
  %3136 = vmatprep.subr.mxu0 0.0
  %3137 = vmatpush1.msra.mxu0 0.0
  %3138 = vmatprep.subr.mxu0 0.0
  %3139 = vmatpush1.msra.mxu0 0.0
  %3140 = vmatprep.subr.mxu0 0.0
  %3141 = vmatpush1.msra.mxu0 0.0
  %3142 = vmatprep.subr.mxu0 0.0
  %3143 = vmatpush1.msra.mxu0 0.0
  %3144 = vmatprep.subr.mxu0 0.0
  %3145 = vmatpush1.msra.mxu0 0.0
  %3146 = vmatprep.subr.mxu0 0.0
  %3147 = vmatpush1.msra.mxu0 0.0
  %3148 = vmatprep.subr.mxu0 0.0
  %3149 = vmatpush1.msra.mxu0 0.0
  %3150 = vmatprep.subr.mxu0 0.0
  %3151 = vmatpush1.msra.mxu0 0.0
  %3152 = vmatprep.subr.mxu0 0.0
  %3153 = vmatpush1.msra.mxu0 0.0
  %3154 = vmatprep.subr.mxu0 0.0
  %3155 = vmatpush1.msra.mxu0 0.0
  %3156 = vmatprep.subr.mxu0 0.0
  %3157 = vmatpush1.msra.mxu0 0.0
  %3158 = vmatprep.subr.mxu0 0.0
  %3159 = vmatpush1.msra.mxu0 0.0
  %3160 = vmatprep.subr.mxu0 0.0
  %3161 = vmatpush1.msra.mxu0 0.0
  %3162 = vmatprep.subr.mxu0 0.0
  %3163 = vmatpush1.msra.mxu0 0.0
  %3164 = vmatprep.subr.mxu0 0.0
  %3165 = vmatpush1.msra.mxu0 0.0
  %3166 = vmatprep.subr.mxu0 0.0
  %3167 = vmatpush1.msra.mxu0 0.0
  %3168 = vmatprep.subr.mxu0 0.0
  %3169 = vmatpush1.msra.mxu0 0.0
  %3170 = vmatprep.subr.mxu0 0.0
  %3171 = vmatpush1.msra.mxu0 0.0
  %3172 = vmatprep.subr.mxu0 0.0
  %3173 = vmatpush1.msra.mxu0 0.0
  %3174 = vmatprep.subr.mxu0 0.0
  %3175 = vmatpush1.msra.mxu0 0.0
  %3176 = vmatprep.subr.mxu0 0.0
  %3177 = vmatpush1.msra.mxu0 0.0
  %3178 = vmatprep.subr.mxu0 0.0
  %3179 = vmatpush1.msra.mxu0 0.0
  %3180 = vmatprep.subr.mxu0 0.0
  %3181 = vmatpush1.msra.mxu0 0.0
  %3182 = vmatprep.subr.mxu0 0.0
  %3183 = vmatpush1.msra.mxu0 0.0
  %3184 = vmatprep.subr.mxu0 0.0
  %3185 = vmatpush1.msra.mxu0 0.0
  %3186 = vmatprep.subr.mxu0 0.0
  %3187 = vmatpush1.msra.mxu0 0.0
  %3188 = vmatprep.subr.mxu0 0.0
  %3189 = vmatpush1.msra.mxu0 0.0
  %3190 = vmatprep.subr.mxu0 0.0
  %3191 = vmatpush1.msra.mxu0 0.0
  %3192 = vmatprep.mubr.f32.mxu0 0.0
  %3193 = vmatmul.mubr.f32.gmra.mrb[0].mxu0 %v3051
  %v3194 = vpop.f32.mrb[0].mxu0
  %v3195 = vadd.f32 0.0, %v3194
  %v3196 = vpop.f32.mrb[0].mxu0
  %3197 = vmatprep.mubr.f32.mxu0 0.0
  %3198 = vmatmul.mubr.f32.gmra.mrb[0].mxu0 %v3054
  %v3199 = vpop.f32.mrb[0].mxu0
  %v3200 = vadd.f32 0.0, %v3199
  %v3201 = vpop.f32.mrb[0].mxu0
  %3202 = vmatprep.mubr.f32.mxu0 0.0
  %3203 = vmatmul.mubr.f32.gmra.mrb[0].mxu0 %v3057
  %v3204 = vpop.f32.mrb[0].mxu0
  %v3205 = vadd.f32 0.0, %v3204
  %v3206 = vpop.f32.mrb[0].mxu0
  %3207 = vmatprep.mubr.f32.mxu0 0.0
  %3208 = vmatmul.mubr.f32.gmra.mrb[0].mxu0 %v3060
  %v3209 = vpop.f32.mrb[0].mxu0
  %v3210 = vadd.f32 0.0, %v3209
  %v3211 = vpop.f32.mrb[0].mxu0
  %3212 = vmatprep.mubr.f32.mxu0 0.0
  %3213 = vmatmul.mubr.f32.gmra.mrb[0].mxu0 %v3063
  %v3214 = vpop.f32.mrb[0].mxu0
  %v3215 = vadd.f32 0.0, %v3214
  %v3216 = vpop.f32.mrb[0].mxu0
  %3217 = vmatprep.mubr.f32.mxu0 0.0
  %3218 = vmatmul.mubr.f32.gmra.mrb[0].mxu0 %v3066
  %v3219 = vpop.f32.mrb[0].mxu0
  %v3220 = vadd.f32 0.0, %v3219
  %v3221 = vpop.f32.mrb[0].mxu0
  %3222 = vmatprep.mubr.f32.mxu0 0.0
  %3223 = vmatmul.mubr.f32.gmra.mrb[0].mxu0 %v3069
  %v3224 = vpop.f32.mrb[0].mxu0
  %v3225 = vadd.f32 0.0, %v3224
  %v3226 = vpop.f32.mrb[0].mxu0
  %3227 = vmatprep.mubr.f32.mxu0 0.0
  %3228 = vmatmul.mubr.f32.gmra.mrb[0].mxu0 %v3072
  %v3229 = vpop.f32.mrb[0].mxu0
  %v3230 = vadd.f32 0.0, %v3229
  %v3231 = vpop.f32.mrb[0].mxu0
  %3232 = vmatprep.mubr.f32.mxu0 0.0
  %3233 = vmatmul.mubr.f32.gmra.mrb[0].mxu0 %v3075
  %v3234 = vpop.f32.mrb[0].mxu0
  %v3235 = vadd.f32 0.0, %v3234
  %v3236 = vpop.f32.mrb[0].mxu0
  %3237 = vmatprep.mubr.f32.mxu0 0.0
  %3238 = vmatmul.mubr.f32.gmra.mrb[0].mxu0 %v3078
  %v3239 = vpop.f32.mrb[0].mxu0
  %v3240 = vadd.f32 0.0, %v3239
  %v3241 = vpop.f32.mrb[0].mxu0
  %3242 = vmatprep.mubr.f32.mxu0 0.0
  %3243 = vmatmul.mubr.f32.gmra.mrb[0].mxu0 %v3081
  %v3244 = vpop.f32.mrb[0].mxu0
  %v3245 = vadd.f32 0.0, %v3244
  %v3246 = vpop.f32.mrb[0].mxu0
  %3247 = vmatprep.mubr.f32.mxu0 0.0
  %3248 = vmatmul.mubr.f32.gmra.mrb[0].mxu0 %v3084
  %v3249 = vpop.f32.mrb[0].mxu0
  %v3250 = vadd.f32 0.0, %v3249
  %v3251 = vpop.f32.mrb[0].mxu0
  %3252 = vmatprep.mubr.f32.mxu0 0.0
  %3253 = vmatmul.mubr.f32.gmra.mrb[0].mxu0 %v3087
  %v3254 = vpop.f32.mrb[0].mxu0
  %v3255 = vadd.f32 0.0, %v3254
  %v3256 = vpop.f32.mrb[0].mxu0
  %3257 = vmatprep.mubr.f32.mxu0 0.0
  %3258 = vmatmul.mubr.f32.gmra.mrb[0].mxu0 %v3090
  %v3259 = vpop.f32.mrb[0].mxu0
  %v3260 = vadd.f32 0.0, %v3259
  %v3261 = vpop.f32.mrb[0].mxu0
  %3262 = vmatprep.mubr.f32.mxu0 0.0
  %3263 = vmatmul.mubr.f32.gmra.mrb[0].mxu0 %v3093
  %v3264 = vpop.f32.mrb[0].mxu0
  %v3265 = vadd.f32 0.0, %v3264
  %v3266 = vpop.f32.mrb[0].mxu0
  %3267 = vmatprep.mubr.f32.mxu0 0.0
  %3268 = vmatmul.mubr.f32.gmra.mrb[0].mxu0 %v3096
  %v3269 = vpop.f32.mrb[0].mxu0
  %v3270 = vadd.f32 0.0, %v3269
  %v3271 = vpop.f32.mrb[0].mxu0
  %3272 = vmatprep.mubr.f32.mxu0 0.0
  %3273 = vmatmul.mubr.f32.gmra.mrb[0].mxu0 %v3099
  %v3274 = vpop.f32.mrb[0].mxu0
  %v3275 = vadd.f32 0.0, %v3274
  %v3276 = vpop.f32.mrb[0].mxu0
  %3277 = vmatprep.mubr.f32.mxu0 0.0
  %3278 = vmatmul.mubr.f32.gmra.mrb[0].mxu0 %v3102
  %v3279 = vpop.f32.mrb[0].mxu0
  %v3280 = vadd.f32 0.0, %v3279
  %v3281 = vpop.f32.mrb[0].mxu0
  %3282 = vmatprep.mubr.f32.mxu0 0.0
  %3283 = vmatmul.mubr.f32.gmra.mrb[0].mxu0 %v3105
  %v3284 = vpop.f32.mrb[0].mxu0
  %v3285 = vadd.f32 0.0, %v3284
  %v3286 = vpop.f32.mrb[0].mxu0
  %3287 = vmatprep.mubr.f32.mxu0 0.0
  %3288 = vmatmul.mubr.f32.gmra.mrb[0].mxu0 %v3108
  %v3289 = vpop.f32.mrb[0].mxu0
  %v3290 = vadd.f32 0.0, %v3289
  %v3291 = vpop.f32.mrb[0].mxu0
  %3292 = vmatprep.mubr.f32.mxu0 0.0
  %3293 = vmatmul.mubr.f32.gmra.mrb[0].mxu0 %v3111
  %v3294 = vpop.f32.mrb[0].mxu0
  %v3295 = vadd.f32 0.0, %v3294
  %v3296 = vpop.f32.mrb[0].mxu0
  %3297 = vmatprep.mubr.f32.mxu0 0.0
  %3298 = vmatmul.mubr.f32.gmra.mrb[0].mxu0 %v3114
  %v3299 = vpop.f32.mrb[0].mxu0
  %v3300 = vadd.f32 0.0, %v3299
  %v3301 = vpop.f32.mrb[0].mxu0
  %3302 = vmatprep.mubr.f32.mxu0 0.0
  %3303 = vmatmul.mubr.f32.gmra.mrb[0].mxu0 %v3117
  %v3304 = vpop.f32.mrb[0].mxu0
  %v3305 = vadd.f32 0.0, %v3304
  %v3306 = vpop.f32.mrb[0].mxu0
  %3307 = vmatprep.mubr.f32.mxu0 0.0
  %3308 = vmatmul.mubr.f32.gmra.mrb[0].mxu0 %v3120
  %v3309 = vpop.f32.mrb[0].mxu0
  %v3310 = vadd.f32 0.0, %v3309
  %v3311 = vpop.f32.mrb[0].mxu0
  %3312 = vmatprep.mubr.f32.mxu0 0.0
  %3313 = vmatmul.mubr.f32.gmra.mrb[0].mxu0 %v3123
  %v3314 = vpop.f32.mrb[0].mxu0
  %v3315 = vadd.f32 0.0, %v3314
  %v3316 = vpop.f32.mrb[0].mxu0
  %3317 = vmatprep.mubr.f32.mxu0 0.0
  %3318 = vmatmul.mubr.f32.gmra.mrb[0].mxu0 %v3126
  %v3319 = vpop.f32.mrb[0].mxu0
  %v3320 = vadd.f32 0.0, %v3319
  %v3321 = vpop.f32.mrb[0].mxu0
  %3322 = vdwg.mxu0
  %v3323 = vadd.f32 %v2996, %v3195
  %v3324 = vadd.f32 %v2997, %v3200
  %v3325 = vadd.f32 %v2998, %v3205
  %v3326 = vadd.f32 %v2999, %v3210
  %v3327 = vadd.f32 %v3000, %v3215
  %v3328 = vadd.f32 %v3001, %v3220
  %v3329 = vadd.f32 %v3002, %v3225
  %v3330 = vadd.f32 %v3003, %v3230
  %v3331 = vadd.f32 %v3004, %v3235
  %v3332 = vadd.f32 %v3005, %v3240
  %v3333 = vadd.f32 %v3006, %v3245
  %v3334 = vadd.f32 %v3007, %v3250
  %v3335 = vadd.f32 %v3008, %v3255
  %v3336 = vadd.f32 %v3009, %v3260
  %v3337 = vadd.f32 %v3010, %v3265
  %v3338 = vadd.f32 %v3011, %v3270
  %v3339 = vadd.f32 %v3012, %v3275
  %v3340 = vadd.f32 %v3013, %v3280
  %v3341 = vadd.f32 %v3014, %v3285
  %v3342 = vadd.f32 %v3015, %v3290
  %v3343 = vadd.f32 %v3016, %v3295
  %v3344 = vadd.f32 %v3017, %v3300
  %v3345 = vadd.f32 %v3018, %v3305
  %v3346 = vadd.f32 %v3019, %v3310
  %v3347 = vadd.f32 %v3020, %v3315
  %v3348 = vadd.f32 %v3021, %v3320
  %v3349 = vld [vmem:[#allocation4 + $0x15] sm:$0xff]
  %v3350 = vld [vmem:[#allocation4 + $0x1d] sm:$0xff]
  %v3351 = vld [vmem:[#allocation4 + $0x25] sm:$0xff]
  %v3352 = vld [vmem:[#allocation4 + $0x2d] sm:$0xff]
  %v3353 = vld [vmem:[#allocation4 + $0x35] sm:$0xff]
  %v3354 = vld [vmem:[#allocation4 + $0x3d] sm:$0xff]
  %v3355 = vld [vmem:[#allocation4 + $0x45] sm:$0xff]
  %v3356 = vld [vmem:[#allocation4 + $0x4d] sm:$0xff]
  %v3357 = vld [vmem:[#allocation4 + $0x55] sm:$0xff]
  %v3358 = vld [vmem:[#allocation4 + $0x5d] sm:$0xff]
  %v3359 = vld [vmem:[#allocation4 + $0x65] sm:$0xff]
  %v3360 = vld [vmem:[#allocation4 + $0x6d] sm:$0xff]
  %v3361 = vld [vmem:[#allocation4 + $0x75] sm:$0xff]
  %v3362 = vld [vmem:[#allocation4 + $0x7d] sm:$0xff]
  %v3363 = vld [vmem:[#allocation4 + $0x85] sm:$0xff]
  %v3364 = vld [vmem:[#allocation4 + $0x8d] sm:$0xff]
  %v3365 = vld [vmem:[#allocation4 + $0x95] sm:$0xff]
  %v3366 = vld [vmem:[#allocation4 + $0x9d] sm:$0xff]
  %v3367 = vld [vmem:[#allocation4 + $0xa5] sm:$0xff]
  %v3368 = vld [vmem:[#allocation4 + $0xad] sm:$0xff]
  %v3369 = vld [vmem:[#allocation4 + $0xb5] sm:$0xff]
  %v3370 = vld [vmem:[#allocation4 + $0xbd] sm:$0xff]
  %v3371 = vld [vmem:[#allocation4 + $0xc5] sm:$0xff]
  %v3372 = vld [vmem:[#allocation4 + $0xcd] sm:$0xff]
  %v3373 = vld [vmem:[#allocation4 + $0xd5] sm:$0xff]
  %v3374 = vld [vmem:[#allocation4 + $0xdd] sm:$0xff]
  %v3375 = vld [vmem:[%s3 + $0x70] sm:$0xff]
  %v3376 = vld [vmem:[%s3 + $0x78] sm:$0xff]
  %v3378 = vsel %vm766, %v3349, 0
  %v3381 = vsel %vm766, %v3350, 0
  %v3384 = vsel %vm766, %v3351, 0
  %v3387 = vsel %vm766, %v3352, 0
  %v3390 = vsel %vm766, %v3353, 0
  %v3393 = vsel %vm766, %v3354, 0
  %v3396 = vsel %vm766, %v3355, 0
  %v3399 = vsel %vm766, %v3356, 0
  %v3402 = vsel %vm766, %v3357, 0
  %v3405 = vsel %vm766, %v3358, 0
  %v3408 = vsel %vm766, %v3359, 0
  %v3411 = vsel %vm766, %v3360, 0
  %v3414 = vsel %vm766, %v3361, 0
  %v3417 = vsel %vm766, %v3362, 0
  %v3420 = vsel %vm766, %v3363, 0
  %v3423 = vsel %vm766, %v3364, 0
  %v3426 = vsel %vm766, %v3365, 0
  %v3429 = vsel %vm766, %v3366, 0
  %v3432 = vsel %vm766, %v3367, 0
  %v3435 = vsel %vm766, %v3368, 0
  %v3438 = vsel %vm766, %v3369, 0
  %v3441 = vsel %vm766, %v3370, 0
  %v3444 = vsel %vm766, %v3371, 0
  %v3447 = vsel %vm766, %v3372, 0
  %v3450 = vsel %vm766, %v3373, 0
  %v3453 = vsel %vm766, %v3374, 0
  %3455 = vmatprep.subr.mxu0 0.0
  %3456 = vmatpush1.msra.mxu0 %v3375
  %3457 = vmatprep.subr.mxu0 0.0
  %3458 = vmatpush1.msra.mxu0 %v3376
  %3459 = vmatprep.subr.mxu0 0.0
  %3460 = vmatpush1.msra.mxu0 0.0
  %3461 = vmatprep.subr.mxu0 0.0
  %3462 = vmatpush1.msra.mxu0 0.0
  %3463 = vmatprep.subr.mxu0 0.0
  %3464 = vmatpush1.msra.mxu0 0.0
  %3465 = vmatprep.subr.mxu0 0.0
  %3466 = vmatpush1.msra.mxu0 0.0
  %3467 = vmatprep.subr.mxu0 0.0
  %3468 = vmatpush1.msra.mxu0 0.0
  %3469 = vmatprep.subr.mxu0 0.0
  %3470 = vmatpush1.msra.mxu0 0.0
  %3471 = vmatprep.subr.mxu0 0.0
  %3472 = vmatpush1.msra.mxu0 0.0
  %3473 = vmatprep.subr.mxu0 0.0
  %3474 = vmatpush1.msra.mxu0 0.0
  %3475 = vmatprep.subr.mxu0 0.0
  %3476 = vmatpush1.msra.mxu0 0.0
  %3477 = vmatprep.subr.mxu0 0.0
  %3478 = vmatpush1.msra.mxu0 0.0
  %3479 = vmatprep.subr.mxu0 0.0
  %3480 = vmatpush1.msra.mxu0 0.0
  %3481 = vmatprep.subr.mxu0 0.0
  %3482 = vmatpush1.msra.mxu0 0.0
  %3483 = vmatprep.subr.mxu0 0.0
  %3484 = vmatpush1.msra.mxu0 0.0
  %3485 = vmatprep.subr.mxu0 0.0
  %3486 = vmatpush1.msra.mxu0 0.0
  %3487 = vmatprep.subr.mxu0 0.0
  %3488 = vmatpush1.msra.mxu0 0.0
  %3489 = vmatprep.subr.mxu0 0.0
  %3490 = vmatpush1.msra.mxu0 0.0
  %3491 = vmatprep.subr.mxu0 0.0
  %3492 = vmatpush1.msra.mxu0 0.0
  %3493 = vmatprep.subr.mxu0 0.0
  %3494 = vmatpush1.msra.mxu0 0.0
  %3495 = vmatprep.subr.mxu0 0.0
  %3496 = vmatpush1.msra.mxu0 0.0
  %3497 = vmatprep.subr.mxu0 0.0
  %3498 = vmatpush1.msra.mxu0 0.0
  %3499 = vmatprep.subr.mxu0 0.0
  %3500 = vmatpush1.msra.mxu0 0.0
  %3501 = vmatprep.subr.mxu0 0.0
  %3502 = vmatpush1.msra.mxu0 0.0
  %3503 = vmatprep.subr.mxu0 0.0
  %3504 = vmatpush1.msra.mxu0 0.0
  %3505 = vmatprep.subr.mxu0 0.0
  %3506 = vmatpush1.msra.mxu0 0.0
  %3507 = vmatprep.subr.mxu0 0.0
  %3508 = vmatpush1.msra.mxu0 0.0
  %3509 = vmatprep.subr.mxu0 0.0
  %3510 = vmatpush1.msra.mxu0 0.0
  %3511 = vmatprep.subr.mxu0 0.0
  %3512 = vmatpush1.msra.mxu0 0.0
  %3513 = vmatprep.subr.mxu0 0.0
  %3514 = vmatpush1.msra.mxu0 0.0
  %3515 = vmatprep.subr.mxu0 0.0
  %3516 = vmatpush1.msra.mxu0 0.0
  %3517 = vmatprep.subr.mxu0 0.0
  %3518 = vmatpush1.msra.mxu0 0.0
  %3519 = vmatprep.mubr.f32.mxu0 0.0
  %3520 = vmatmul.mubr.f32.gmra.mrb[0].mxu0 %v3378
  %v3521 = vpop.f32.mrb[0].mxu0
  %v3522 = vadd.f32 0.0, %v3521
  %v3523 = vpop.f32.mrb[0].mxu0
  %3524 = vmatprep.mubr.f32.mxu0 0.0
  %3525 = vmatmul.mubr.f32.gmra.mrb[0].mxu0 %v3381
  %v3526 = vpop.f32.mrb[0].mxu0
  %v3527 = vadd.f32 0.0, %v3526
  %v3528 = vpop.f32.mrb[0].mxu0
  %3529 = vmatprep.mubr.f32.mxu0 0.0
  %3530 = vmatmul.mubr.f32.gmra.mrb[0].mxu0 %v3384
  %v3531 = vpop.f32.mrb[0].mxu0
  %v3532 = vadd.f32 0.0, %v3531
  %v3533 = vpop.f32.mrb[0].mxu0
  %3534 = vmatprep.mubr.f32.mxu0 0.0
  %3535 = vmatmul.mubr.f32.gmra.mrb[0].mxu0 %v3387
  %v3536 = vpop.f32.mrb[0].mxu0
  %v3537 = vadd.f32 0.0, %v3536
  %v3538 = vpop.f32.mrb[0].mxu0
  %3539 = vmatprep.mubr.f32.mxu0 0.0
  %3540 = vmatmul.mubr.f32.gmra.mrb[0].mxu0 %v3390
  %v3541 = vpop.f32.mrb[0].mxu0
  %v3542 = vadd.f32 0.0, %v3541
  %v3543 = vpop.f32.mrb[0].mxu0
  %3544 = vmatprep.mubr.f32.mxu0 0.0
  %3545 = vmatmul.mubr.f32.gmra.mrb[0].mxu0 %v3393
  %v3546 = vpop.f32.mrb[0].mxu0
  %v3547 = vadd.f32 0.0, %v3546
  %v3548 = vpop.f32.mrb[0].mxu0
  %3549 = vmatprep.mubr.f32.mxu0 0.0
  %3550 = vmatmul.mubr.f32.gmra.mrb[0].mxu0 %v3396
  %v3551 = vpop.f32.mrb[0].mxu0
  %v3552 = vadd.f32 0.0, %v3551
  %v3553 = vpop.f32.mrb[0].mxu0
  %3554 = vmatprep.mubr.f32.mxu0 0.0
  %3555 = vmatmul.mubr.f32.gmra.mrb[0].mxu0 %v3399
  %v3556 = vpop.f32.mrb[0].mxu0
  %v3557 = vadd.f32 0.0, %v3556
  %v3558 = vpop.f32.mrb[0].mxu0
  %3559 = vmatprep.mubr.f32.mxu0 0.0
  %3560 = vmatmul.mubr.f32.gmra.mrb[0].mxu0 %v3402
  %v3561 = vpop.f32.mrb[0].mxu0
  %v3562 = vadd.f32 0.0, %v3561
  %v3563 = vpop.f32.mrb[0].mxu0
  %3564 = vmatprep.mubr.f32.mxu0 0.0
  %3565 = vmatmul.mubr.f32.gmra.mrb[0].mxu0 %v3405
  %v3566 = vpop.f32.mrb[0].mxu0
  %v3567 = vadd.f32 0.0, %v3566
  %v3568 = vpop.f32.mrb[0].mxu0
  %3569 = vmatprep.mubr.f32.mxu0 0.0
  %3570 = vmatmul.mubr.f32.gmra.mrb[0].mxu0 %v3408
  %v3571 = vpop.f32.mrb[0].mxu0
  %v3572 = vadd.f32 0.0, %v3571
  %v3573 = vpop.f32.mrb[0].mxu0
  %3574 = vmatprep.mubr.f32.mxu0 0.0
  %3575 = vmatmul.mubr.f32.gmra.mrb[0].mxu0 %v3411
  %v3576 = vpop.f32.mrb[0].mxu0
  %v3577 = vadd.f32 0.0, %v3576
  %v3578 = vpop.f32.mrb[0].mxu0
  %3579 = vmatprep.mubr.f32.mxu0 0.0
  %3580 = vmatmul.mubr.f32.gmra.mrb[0].mxu0 %v3414
  %v3581 = vpop.f32.mrb[0].mxu0
  %v3582 = vadd.f32 0.0, %v3581
  %v3583 = vpop.f32.mrb[0].mxu0
  %3584 = vmatprep.mubr.f32.mxu0 0.0
  %3585 = vmatmul.mubr.f32.gmra.mrb[0].mxu0 %v3417
  %v3586 = vpop.f32.mrb[0].mxu0
  %v3587 = vadd.f32 0.0, %v3586
  %v3588 = vpop.f32.mrb[0].mxu0
  %3589 = vmatprep.mubr.f32.mxu0 0.0
  %3590 = vmatmul.mubr.f32.gmra.mrb[0].mxu0 %v3420
  %v3591 = vpop.f32.mrb[0].mxu0
  %v3592 = vadd.f32 0.0, %v3591
  %v3593 = vpop.f32.mrb[0].mxu0
  %3594 = vmatprep.mubr.f32.mxu0 0.0
  %3595 = vmatmul.mubr.f32.gmra.mrb[0].mxu0 %v3423
  %v3596 = vpop.f32.mrb[0].mxu0
  %v3597 = vadd.f32 0.0, %v3596
  %v3598 = vpop.f32.mrb[0].mxu0
  %3599 = vmatprep.mubr.f32.mxu0 0.0
  %3600 = vmatmul.mubr.f32.gmra.mrb[0].mxu0 %v3426
  %v3601 = vpop.f32.mrb[0].mxu0
  %v3602 = vadd.f32 0.0, %v3601
  %v3603 = vpop.f32.mrb[0].mxu0
  %3604 = vmatprep.mubr.f32.mxu0 0.0
  %3605 = vmatmul.mubr.f32.gmra.mrb[0].mxu0 %v3429
  %v3606 = vpop.f32.mrb[0].mxu0
  %v3607 = vadd.f32 0.0, %v3606
  %v3608 = vpop.f32.mrb[0].mxu0
  %3609 = vmatprep.mubr.f32.mxu0 0.0
  %3610 = vmatmul.mubr.f32.gmra.mrb[0].mxu0 %v3432
  %v3611 = vpop.f32.mrb[0].mxu0
  %v3612 = vadd.f32 0.0, %v3611
  %v3613 = vpop.f32.mrb[0].mxu0
  %3614 = vmatprep.mubr.f32.mxu0 0.0
  %3615 = vmatmul.mubr.f32.gmra.mrb[0].mxu0 %v3435
  %v3616 = vpop.f32.mrb[0].mxu0
  %v3617 = vadd.f32 0.0, %v3616
  %v3618 = vpop.f32.mrb[0].mxu0
  %3619 = vmatprep.mubr.f32.mxu0 0.0
  %3620 = vmatmul.mubr.f32.gmra.mrb[0].mxu0 %v3438
  %v3621 = vpop.f32.mrb[0].mxu0
  %v3622 = vadd.f32 0.0, %v3621
  %v3623 = vpop.f32.mrb[0].mxu0
  %3624 = vmatprep.mubr.f32.mxu0 0.0
  %3625 = vmatmul.mubr.f32.gmra.mrb[0].mxu0 %v3441
  %v3626 = vpop.f32.mrb[0].mxu0
  %v3627 = vadd.f32 0.0, %v3626
  %v3628 = vpop.f32.mrb[0].mxu0
  %3629 = vmatprep.mubr.f32.mxu0 0.0
  %3630 = vmatmul.mubr.f32.gmra.mrb[0].mxu0 %v3444
  %v3631 = vpop.f32.mrb[0].mxu0
  %v3632 = vadd.f32 0.0, %v3631
  %v3633 = vpop.f32.mrb[0].mxu0
  %3634 = vmatprep.mubr.f32.mxu0 0.0
  %3635 = vmatmul.mubr.f32.gmra.mrb[0].mxu0 %v3447
  %v3636 = vpop.f32.mrb[0].mxu0
  %v3637 = vadd.f32 0.0, %v3636
  %v3638 = vpop.f32.mrb[0].mxu0
  %3639 = vmatprep.mubr.f32.mxu0 0.0
  %3640 = vmatmul.mubr.f32.gmra.mrb[0].mxu0 %v3450
  %v3641 = vpop.f32.mrb[0].mxu0
  %v3642 = vadd.f32 0.0, %v3641
  %v3643 = vpop.f32.mrb[0].mxu0
  %3644 = vmatprep.mubr.f32.mxu0 0.0
  %3645 = vmatmul.mubr.f32.gmra.mrb[0].mxu0 %v3453
  %v3646 = vpop.f32.mrb[0].mxu0
  %v3647 = vadd.f32 0.0, %v3646
  %v3648 = vpop.f32.mrb[0].mxu0
  %3649 = vdwg.mxu0
  %v3650 = vadd.f32 %v3323, %v3522
  %v3651 = vadd.f32 %v3324, %v3527
  %v3652 = vadd.f32 %v3325, %v3532
  %v3653 = vadd.f32 %v3326, %v3537
  %v3654 = vadd.f32 %v3327, %v3542
  %v3655 = vadd.f32 %v3328, %v3547
  %v3656 = vadd.f32 %v3329, %v3552
  %v3657 = vadd.f32 %v3330, %v3557
  %v3658 = vadd.f32 %v3331, %v3562
  %v3659 = vadd.f32 %v3332, %v3567
  %v3660 = vadd.f32 %v3333, %v3572
  %v3661 = vadd.f32 %v3334, %v3577
  %v3662 = vadd.f32 %v3335, %v3582
  %v3663 = vadd.f32 %v3336, %v3587
  %v3664 = vadd.f32 %v3337, %v3592
  %v3665 = vadd.f32 %v3338, %v3597
  %v3666 = vadd.f32 %v3339, %v3602
  %v3667 = vadd.f32 %v3340, %v3607
  %v3668 = vadd.f32 %v3341, %v3612
  %v3669 = vadd.f32 %v3342, %v3617
  %v3670 = vadd.f32 %v3343, %v3622
  %v3671 = vadd.f32 %v3344, %v3627
  %v3672 = vadd.f32 %v3345, %v3632
  %v3673 = vadd.f32 %v3346, %v3637
  %v3674 = vadd.f32 %v3347, %v3642
  %v3675 = vadd.f32 %v3348, %v3647
  %v3676 = vld [vmem:[#allocation4 + $0x16] sm:$0xff]
  %v3677 = vld [vmem:[#allocation4 + $0x1e] sm:$0xff]
  %v3678 = vld [vmem:[#allocation4 + $0x26] sm:$0xff]
  %v3679 = vld [vmem:[#allocation4 + $0x2e] sm:$0xff]
  %v3680 = vld [vmem:[#allocation4 + $0x36] sm:$0xff]
  %v3681 = vld [vmem:[#allocation4 + $0x3e] sm:$0xff]
  %v3682 = vld [vmem:[#allocation4 + $0x46] sm:$0xff]
  %v3683 = vld [vmem:[#allocation4 + $0x4e] sm:$0xff]
  %v3684 = vld [vmem:[#allocation4 + $0x56] sm:$0xff]
  %v3685 = vld [vmem:[#allocation4 + $0x5e] sm:$0xff]
  %v3686 = vld [vmem:[#allocation4 + $0x66] sm:$0xff]
  %v3687 = vld [vmem:[#allocation4 + $0x6e] sm:$0xff]
  %v3688 = vld [vmem:[#allocation4 + $0x76] sm:$0xff]
  %v3689 = vld [vmem:[#allocation4 + $0x7e] sm:$0xff]
  %v3690 = vld [vmem:[#allocation4 + $0x86] sm:$0xff]
  %v3691 = vld [vmem:[#allocation4 + $0x8e] sm:$0xff]
  %v3692 = vld [vmem:[#allocation4 + $0x96] sm:$0xff]
  %v3693 = vld [vmem:[#allocation4 + $0x9e] sm:$0xff]
  %v3694 = vld [vmem:[#allocation4 + $0xa6] sm:$0xff]
  %v3695 = vld [vmem:[#allocation4 + $0xae] sm:$0xff]
  %v3696 = vld [vmem:[#allocation4 + $0xb6] sm:$0xff]
  %v3697 = vld [vmem:[#allocation4 + $0xbe] sm:$0xff]
  %v3698 = vld [vmem:[#allocation4 + $0xc6] sm:$0xff]
  %v3699 = vld [vmem:[#allocation4 + $0xce] sm:$0xff]
  %v3700 = vld [vmem:[#allocation4 + $0xd6] sm:$0xff]
  %v3701 = vld [vmem:[#allocation4 + $0xde] sm:$0xff]
  %v3702 = vld [vmem:[%s3 + $0x80] sm:$0xff]
  %v3703 = vld [vmem:[%s3 + $0x88] sm:$0xff]
  %v3705 = vsel %vm766, %v3676, 0
  %v3708 = vsel %vm766, %v3677, 0
  %v3711 = vsel %vm766, %v3678, 0
  %v3714 = vsel %vm766, %v3679, 0
  %v3717 = vsel %vm766, %v3680, 0
  %v3720 = vsel %vm766, %v3681, 0
  %v3723 = vsel %vm766, %v3682, 0
  %v3726 = vsel %vm766, %v3683, 0
  %v3729 = vsel %vm766, %v3684, 0
  %v3732 = vsel %vm766, %v3685, 0
  %v3735 = vsel %vm766, %v3686, 0
  %v3738 = vsel %vm766, %v3687, 0
  %v3741 = vsel %vm766, %v3688, 0
  %v3744 = vsel %vm766, %v3689, 0
  %v3747 = vsel %vm766, %v3690, 0
  %v3750 = vsel %vm766, %v3691, 0
  %v3753 = vsel %vm766, %v3692, 0
  %v3756 = vsel %vm766, %v3693, 0
  %v3759 = vsel %vm766, %v3694, 0
  %v3762 = vsel %vm766, %v3695, 0
  %v3765 = vsel %vm766, %v3696, 0
  %v3768 = vsel %vm766, %v3697, 0
  %v3771 = vsel %vm766, %v3698, 0
  %v3774 = vsel %vm766, %v3699, 0
  %v3777 = vsel %vm766, %v3700, 0
  %v3780 = vsel %vm766, %v3701, 0
  %3782 = vmatprep.subr.mxu0 0.0
  %3783 = vmatpush1.msra.mxu0 %v3702
  %3784 = vmatprep.subr.mxu0 0.0
  %3785 = vmatpush1.msra.mxu0 %v3703
  %3786 = vmatprep.subr.mxu0 0.0
  %3787 = vmatpush1.msra.mxu0 0.0
  %3788 = vmatprep.subr.mxu0 0.0
  %3789 = vmatpush1.msra.mxu0 0.0
  %3790 = vmatprep.subr.mxu0 0.0
  %3791 = vmatpush1.msra.mxu0 0.0
  %3792 = vmatprep.subr.mxu0 0.0
  %3793 = vmatpush1.msra.mxu0 0.0
  %3794 = vmatprep.subr.mxu0 0.0
  %3795 = vmatpush1.msra.mxu0 0.0
  %3796 = vmatprep.subr.mxu0 0.0
  %3797 = vmatpush1.msra.mxu0 0.0
  %3798 = vmatprep.subr.mxu0 0.0
  %3799 = vmatpush1.msra.mxu0 0.0
  %3800 = vmatprep.subr.mxu0 0.0
  %3801 = vmatpush1.msra.mxu0 0.0
  %3802 = vmatprep.subr.mxu0 0.0
  %3803 = vmatpush1.msra.mxu0 0.0
  %3804 = vmatprep.subr.mxu0 0.0
  %3805 = vmatpush1.msra.mxu0 0.0
  %3806 = vmatprep.subr.mxu0 0.0
  %3807 = vmatpush1.msra.mxu0 0.0
  %3808 = vmatprep.subr.mxu0 0.0
  %3809 = vmatpush1.msra.mxu0 0.0
  %3810 = vmatprep.subr.mxu0 0.0
  %3811 = vmatpush1.msra.mxu0 0.0
  %3812 = vmatprep.subr.mxu0 0.0
  %3813 = vmatpush1.msra.mxu0 0.0
  %3814 = vmatprep.subr.mxu0 0.0
  %3815 = vmatpush1.msra.mxu0 0.0
  %3816 = vmatprep.subr.mxu0 0.0
  %3817 = vmatpush1.msra.mxu0 0.0
  %3818 = vmatprep.subr.mxu0 0.0
  %3819 = vmatpush1.msra.mxu0 0.0
  %3820 = vmatprep.subr.mxu0 0.0
  %3821 = vmatpush1.msra.mxu0 0.0
  %3822 = vmatprep.subr.mxu0 0.0
  %3823 = vmatpush1.msra.mxu0 0.0
  %3824 = vmatprep.subr.mxu0 0.0
  %3825 = vmatpush1.msra.mxu0 0.0
  %3826 = vmatprep.subr.mxu0 0.0
  %3827 = vmatpush1.msra.mxu0 0.0
  %3828 = vmatprep.subr.mxu0 0.0
  %3829 = vmatpush1.msra.mxu0 0.0
  %3830 = vmatprep.subr.mxu0 0.0
  %3831 = vmatpush1.msra.mxu0 0.0
  %3832 = vmatprep.subr.mxu0 0.0
  %3833 = vmatpush1.msra.mxu0 0.0
  %3834 = vmatprep.subr.mxu0 0.0
  %3835 = vmatpush1.msra.mxu0 0.0
  %3836 = vmatprep.subr.mxu0 0.0
  %3837 = vmatpush1.msra.mxu0 0.0
  %3838 = vmatprep.subr.mxu0 0.0
  %3839 = vmatpush1.msra.mxu0 0.0
  %3840 = vmatprep.subr.mxu0 0.0
  %3841 = vmatpush1.msra.mxu0 0.0
  %3842 = vmatprep.subr.mxu0 0.0
  %3843 = vmatpush1.msra.mxu0 0.0
  %3844 = vmatprep.subr.mxu0 0.0
  %3845 = vmatpush1.msra.mxu0 0.0
  %3846 = vmatprep.mubr.f32.mxu0 0.0
  %3847 = vmatmul.mubr.f32.gmra.mrb[0].mxu0 %v3705
  %v3848 = vpop.f32.mrb[0].mxu0
  %v3849 = vadd.f32 0.0, %v3848
  %v3850 = vpop.f32.mrb[0].mxu0
  %3851 = vmatprep.mubr.f32.mxu0 0.0
  %3852 = vmatmul.mubr.f32.gmra.mrb[0].mxu0 %v3708
  %v3853 = vpop.f32.mrb[0].mxu0
  %v3854 = vadd.f32 0.0, %v3853
  %v3855 = vpop.f32.mrb[0].mxu0
  %3856 = vmatprep.mubr.f32.mxu0 0.0
  %3857 = vmatmul.mubr.f32.gmra.mrb[0].mxu0 %v3711
  %v3858 = vpop.f32.mrb[0].mxu0
  %v3859 = vadd.f32 0.0, %v3858
  %v3860 = vpop.f32.mrb[0].mxu0
  %3861 = vmatprep.mubr.f32.mxu0 0.0
  %3862 = vmatmul.mubr.f32.gmra.mrb[0].mxu0 %v3714
  %v3863 = vpop.f32.mrb[0].mxu0
  %v3864 = vadd.f32 0.0, %v3863
  %v3865 = vpop.f32.mrb[0].mxu0
  %3866 = vmatprep.mubr.f32.mxu0 0.0
  %3867 = vmatmul.mubr.f32.gmra.mrb[0].mxu0 %v3717
  %v3868 = vpop.f32.mrb[0].mxu0
  %v3869 = vadd.f32 0.0, %v3868
  %v3870 = vpop.f32.mrb[0].mxu0
  %3871 = vmatprep.mubr.f32.mxu0 0.0
  %3872 = vmatmul.mubr.f32.gmra.mrb[0].mxu0 %v3720
  %v3873 = vpop.f32.mrb[0].mxu0
  %v3874 = vadd.f32 0.0, %v3873
  %v3875 = vpop.f32.mrb[0].mxu0
  %3876 = vmatprep.mubr.f32.mxu0 0.0
  %3877 = vmatmul.mubr.f32.gmra.mrb[0].mxu0 %v3723
  %v3878 = vpop.f32.mrb[0].mxu0
  %v3879 = vadd.f32 0.0, %v3878
  %v3880 = vpop.f32.mrb[0].mxu0
  %3881 = vmatprep.mubr.f32.mxu0 0.0
  %3882 = vmatmul.mubr.f32.gmra.mrb[0].mxu0 %v3726
  %v3883 = vpop.f32.mrb[0].mxu0
  %v3884 = vadd.f32 0.0, %v3883
  %v3885 = vpop.f32.mrb[0].mxu0
  %3886 = vmatprep.mubr.f32.mxu0 0.0
  %3887 = vmatmul.mubr.f32.gmra.mrb[0].mxu0 %v3729
  %v3888 = vpop.f32.mrb[0].mxu0
  %v3889 = vadd.f32 0.0, %v3888
  %v3890 = vpop.f32.mrb[0].mxu0
  %3891 = vmatprep.mubr.f32.mxu0 0.0
  %3892 = vmatmul.mubr.f32.gmra.mrb[0].mxu0 %v3732
  %v3893 = vpop.f32.mrb[0].mxu0
  %v3894 = vadd.f32 0.0, %v3893
  %v3895 = vpop.f32.mrb[0].mxu0
  %3896 = vmatprep.mubr.f32.mxu0 0.0
  %3897 = vmatmul.mubr.f32.gmra.mrb[0].mxu0 %v3735
  %v3898 = vpop.f32.mrb[0].mxu0
  %v3899 = vadd.f32 0.0, %v3898
  %v3900 = vpop.f32.mrb[0].mxu0
  %3901 = vmatprep.mubr.f32.mxu0 0.0
  %3902 = vmatmul.mubr.f32.gmra.mrb[0].mxu0 %v3738
  %v3903 = vpop.f32.mrb[0].mxu0
  %v3904 = vadd.f32 0.0, %v3903
  %v3905 = vpop.f32.mrb[0].mxu0
  %3906 = vmatprep.mubr.f32.mxu0 0.0
  %3907 = vmatmul.mubr.f32.gmra.mrb[0].mxu0 %v3741
  %v3908 = vpop.f32.mrb[0].mxu0
  %v3909 = vadd.f32 0.0, %v3908
  %v3910 = vpop.f32.mrb[0].mxu0
  %3911 = vmatprep.mubr.f32.mxu0 0.0
  %3912 = vmatmul.mubr.f32.gmra.mrb[0].mxu0 %v3744
  %v3913 = vpop.f32.mrb[0].mxu0
  %v3914 = vadd.f32 0.0, %v3913
  %v3915 = vpop.f32.mrb[0].mxu0
  %3916 = vmatprep.mubr.f32.mxu0 0.0
  %3917 = vmatmul.mubr.f32.gmra.mrb[0].mxu0 %v3747
  %v3918 = vpop.f32.mrb[0].mxu0
  %v3919 = vadd.f32 0.0, %v3918
  %v3920 = vpop.f32.mrb[0].mxu0
  %3921 = vmatprep.mubr.f32.mxu0 0.0
  %3922 = vmatmul.mubr.f32.gmra.mrb[0].mxu0 %v3750
  %v3923 = vpop.f32.mrb[0].mxu0
  %v3924 = vadd.f32 0.0, %v3923
  %v3925 = vpop.f32.mrb[0].mxu0
  %3926 = vmatprep.mubr.f32.mxu0 0.0
  %3927 = vmatmul.mubr.f32.gmra.mrb[0].mxu0 %v3753
  %v3928 = vpop.f32.mrb[0].mxu0
  %v3929 = vadd.f32 0.0, %v3928
  %v3930 = vpop.f32.mrb[0].mxu0
  %3931 = vmatprep.mubr.f32.mxu0 0.0
  %3932 = vmatmul.mubr.f32.gmra.mrb[0].mxu0 %v3756
  %v3933 = vpop.f32.mrb[0].mxu0
  %v3934 = vadd.f32 0.0, %v3933
  %v3935 = vpop.f32.mrb[0].mxu0
  %3936 = vmatprep.mubr.f32.mxu0 0.0
  %3937 = vmatmul.mubr.f32.gmra.mrb[0].mxu0 %v3759
  %v3938 = vpop.f32.mrb[0].mxu0
  %v3939 = vadd.f32 0.0, %v3938
  %v3940 = vpop.f32.mrb[0].mxu0
  %3941 = vmatprep.mubr.f32.mxu0 0.0
  %3942 = vmatmul.mubr.f32.gmra.mrb[0].mxu0 %v3762
  %v3943 = vpop.f32.mrb[0].mxu0
  %v3944 = vadd.f32 0.0, %v3943
  %v3945 = vpop.f32.mrb[0].mxu0
  %3946 = vmatprep.mubr.f32.mxu0 0.0
  %3947 = vmatmul.mubr.f32.gmra.mrb[0].mxu0 %v3765
  %v3948 = vpop.f32.mrb[0].mxu0
  %v3949 = vadd.f32 0.0, %v3948
  %v3950 = vpop.f32.mrb[0].mxu0
  %3951 = vmatprep.mubr.f32.mxu0 0.0
  %3952 = vmatmul.mubr.f32.gmra.mrb[0].mxu0 %v3768
  %v3953 = vpop.f32.mrb[0].mxu0
  %v3954 = vadd.f32 0.0, %v3953
  %v3955 = vpop.f32.mrb[0].mxu0
  %3956 = vmatprep.mubr.f32.mxu0 0.0
  %3957 = vmatmul.mubr.f32.gmra.mrb[0].mxu0 %v3771
  %v3958 = vpop.f32.mrb[0].mxu0
  %v3959 = vadd.f32 0.0, %v3958
  %v3960 = vpop.f32.mrb[0].mxu0
  %3961 = vmatprep.mubr.f32.mxu0 0.0
  %3962 = vmatmul.mubr.f32.gmra.mrb[0].mxu0 %v3774
  %v3963 = vpop.f32.mrb[0].mxu0
  %v3964 = vadd.f32 0.0, %v3963
  %v3965 = vpop.f32.mrb[0].mxu0
  %3966 = vmatprep.mubr.f32.mxu0 0.0
  %3967 = vmatmul.mubr.f32.gmra.mrb[0].mxu0 %v3777
  %v3968 = vpop.f32.mrb[0].mxu0
  %v3969 = vadd.f32 0.0, %v3968
  %v3970 = vpop.f32.mrb[0].mxu0
  %3971 = vmatprep.mubr.f32.mxu0 0.0
  %3972 = vmatmul.mubr.f32.gmra.mrb[0].mxu0 %v3780
  %v3973 = vpop.f32.mrb[0].mxu0
  %v3974 = vadd.f32 0.0, %v3973
  %v3975 = vpop.f32.mrb[0].mxu0
  %3976 = vdwg.mxu0
  %v3977 = vadd.f32 %v3650, %v3849
  %v3978 = vadd.f32 %v3651, %v3854
  %v3979 = vadd.f32 %v3652, %v3859
  %v3980 = vadd.f32 %v3653, %v3864
  %v3981 = vadd.f32 %v3654, %v3869
  %v3982 = vadd.f32 %v3655, %v3874
  %v3983 = vadd.f32 %v3656, %v3879
  %v3984 = vadd.f32 %v3657, %v3884
  %v3985 = vadd.f32 %v3658, %v3889
  %v3986 = vadd.f32 %v3659, %v3894
  %v3987 = vadd.f32 %v3660, %v3899
  %v3988 = vadd.f32 %v3661, %v3904
  %v3989 = vadd.f32 %v3662, %v3909
  %v3990 = vadd.f32 %v3663, %v3914
  %v3991 = vadd.f32 %v3664, %v3919
  %v3992 = vadd.f32 %v3665, %v3924
  %v3993 = vadd.f32 %v3666, %v3929
  %v3994 = vadd.f32 %v3667, %v3934
  %v3995 = vadd.f32 %v3668, %v3939
  %v3996 = vadd.f32 %v3669, %v3944
  %v3997 = vadd.f32 %v3670, %v3949
  %v3998 = vadd.f32 %v3671, %v3954
  %v3999 = vadd.f32 %v3672, %v3959
  %v4000 = vadd.f32 %v3673, %v3964
  %v4001 = vadd.f32 %v3674, %v3969
  %v4002 = vadd.f32 %v3675, %v3974
  %v4003 = vld [vmem:[%s4] sm:$0x1]
  %v4005 = vlaneseq
  %v4006 = vshrl.u32 %v4005, 7
  %v4007 = vsub.s32 0, %v4006
  %v4008 = vrot.slane %v4003, %v4007
  %v4010 = vadd.f32 %v3977, %v4008
  %v4011 = vadd.f32 %v3978, %v4008
  %v4012 = vadd.f32 %v3979, %v4008
  %v4013 = vadd.f32 %v3980, %v4008
  %v4014 = vadd.f32 %v3981, %v4008
  %v4015 = vadd.f32 %v3982, %v4008
  %v4016 = vadd.f32 %v3983, %v4008
  %v4017 = vadd.f32 %v3984, %v4008
  %v4018 = vadd.f32 %v3985, %v4008
  %v4019 = vadd.f32 %v3986, %v4008
  %v4020 = vadd.f32 %v3987, %v4008
  %v4021 = vadd.f32 %v3988, %v4008
  %v4022 = vadd.f32 %v3989, %v4008
  %v4023 = vadd.f32 %v3990, %v4008
  %v4024 = vadd.f32 %v3991, %v4008
  %v4025 = vadd.f32 %v3992, %v4008
  %v4026 = vadd.f32 %v3993, %v4008
  %v4027 = vadd.f32 %v3994, %v4008
  %v4028 = vadd.f32 %v3995, %v4008
  %v4029 = vadd.f32 %v3996, %v4008
  %v4030 = vadd.f32 %v3997, %v4008
  %v4031 = vadd.f32 %v3998, %v4008
  %v4032 = vadd.f32 %v3999, %v4008
  %v4033 = vadd.f32 %v4000, %v4008
  %v4034 = vadd.f32 %v4001, %v4008
  %v4035 = vadd.f32 %v4002, %v4008
  %v4036 = vmax.f32 %v4010, 0.0
  %v4037 = vmax.f32 %v4011, 0.0
  %v4038 = vmax.f32 %v4012, 0.0
  %v4039 = vmax.f32 %v4013, 0.0
  %v4040 = vmax.f32 %v4014, 0.0
  %v4041 = vmax.f32 %v4015, 0.0
  %v4042 = vmax.f32 %v4016, 0.0
  %v4043 = vmax.f32 %v4017, 0.0
  %v4044 = vmax.f32 %v4018, 0.0
  %v4045 = vmax.f32 %v4019, 0.0
  %v4046 = vmax.f32 %v4020, 0.0
  %v4047 = vmax.f32 %v4021, 0.0
  %v4048 = vmax.f32 %v4022, 0.0
  %v4049 = vmax.f32 %v4023, 0.0
  %v4050 = vmax.f32 %v4024, 0.0
  %v4051 = vmax.f32 %v4025, 0.0
  %v4052 = vmax.f32 %v4026, 0.0
  %v4053 = vmax.f32 %v4027, 0.0
  %v4054 = vmax.f32 %v4028, 0.0
  %v4055 = vmax.f32 %v4029, 0.0
  %v4056 = vmax.f32 %v4030, 0.0
  %v4057 = vmax.f32 %v4031, 0.0
  %v4058 = vmax.f32 %v4032, 0.0
  %v4059 = vmax.f32 %v4033, 0.0
  %v4060 = vmax.f32 %v4034, 0.0
  %v4061 = vmax.f32 %v4035, 0.0
  %vm4062 = vcmask 261120
  %4063 = vst.msk [vmem:[#allocation5] sm:$0xff] %vm4062, %v4036
  %4064 = vst.msk [vmem:[#allocation5 + $0x8] sm:$0xff] %vm4062, %v4037
  %4065 = vst.msk [vmem:[#allocation5 + $0x10] sm:$0xff] %vm4062, %v4038
  %4066 = vst.msk [vmem:[#allocation5 + $0x18] sm:$0xff] %vm4062, %v4039
  %4067 = vst.msk [vmem:[#allocation5 + $0x20] sm:$0xff] %vm4062, %v4040
  %4068 = vst.msk [vmem:[#allocation5 + $0x28] sm:$0xff] %vm4062, %v4041
  %4069 = vst.msk [vmem:[#allocation5 + $0x30] sm:$0xff] %vm4062, %v4042
  %4070 = vst.msk [vmem:[#allocation5 + $0x38] sm:$0xff] %vm4062, %v4043
  %4071 = vst.msk [vmem:[#allocation5 + $0x40] sm:$0xff] %vm4062, %v4044
  %4072 = vst.msk [vmem:[#allocation5 + $0x48] sm:$0xff] %vm4062, %v4045
  %4073 = vst.msk [vmem:[#allocation5 + $0x50] sm:$0xff] %vm4062, %v4046
  %4074 = vst.msk [vmem:[#allocation5 + $0x58] sm:$0xff] %vm4062, %v4047
  %4075 = vst.msk [vmem:[#allocation5 + $0x60] sm:$0xff] %vm4062, %v4048
  %4076 = vst.msk [vmem:[#allocation5 + $0x68] sm:$0xff] %vm4062, %v4049
  %4077 = vst.msk [vmem:[#allocation5 + $0x70] sm:$0xff] %vm4062, %v4050
  %4078 = vst.msk [vmem:[#allocation5 + $0x78] sm:$0xff] %vm4062, %v4051
  %4079 = vst.msk [vmem:[#allocation5 + $0x80] sm:$0xff] %vm4062, %v4052
  %4080 = vst.msk [vmem:[#allocation5 + $0x88] sm:$0xff] %vm4062, %v4053
  %4081 = vst.msk [vmem:[#allocation5 + $0x90] sm:$0xff] %vm4062, %v4054
  %4082 = vst.msk [vmem:[#allocation5 + $0x98] sm:$0xff] %vm4062, %v4055
  %4083 = vst.msk [vmem:[#allocation5 + $0xa0] sm:$0xff] %vm4062, %v4056
  %4084 = vst.msk [vmem:[#allocation5 + $0xa8] sm:$0xff] %vm4062, %v4057
  %4085 = vst.msk [vmem:[#allocation5 + $0xb0] sm:$0xff] %vm4062, %v4058
  %4086 = vst.msk [vmem:[#allocation5 + $0xb8] sm:$0xff] %vm4062, %v4059
  %4087 = vst.msk [vmem:[#allocation5 + $0xc0] sm:$0xff] %vm4062, %v4060
  %4088 = vst.msk [vmem:[#allocation5 + $0xc8] sm:$0xff] %vm4062, %v4061
  %v4089 = vld [vmem:[#allocation5] ss:$2 sm:$0xff]
  %s4090 = scalar_lea.vmem [#allocation5], 16
  %v4091 = vld [vmem:[%s4090] ss:$2 sm:$0xff]
  %s4092 = scalar_lea.vmem [#allocation5], 32
  %v4093 = vld [vmem:[%s4092] ss:$2 sm:$0xff]
  %s4094 = scalar_lea.vmem [#allocation5], 48
  %v4095 = vld [vmem:[%s4094] ss:$2 sm:$0xff]
  %s4096 = scalar_lea.vmem [#allocation5], 64
  %v4097 = vld [vmem:[%s4096] ss:$2 sm:$0xff]
  %s4098 = scalar_lea.vmem [#allocation5], 80
  %v4099 = vld [vmem:[%s4098] ss:$2 sm:$0xff]
  %s4100 = scalar_lea.vmem [#allocation5], 96
  %v4101 = vld [vmem:[%s4100] ss:$2 sm:$0xff]
  %s4102 = scalar_lea.vmem [#allocation5], 112
  %v4103 = vld [vmem:[%s4102] ss:$2 sm:$0xff]
  %s4104 = scalar_lea.vmem [#allocation5], 128
  %v4105 = vld [vmem:[%s4104] ss:$2 sm:$0xff]
  %s4106 = scalar_lea.vmem [#allocation5], 144
  %v4107 = vld [vmem:[%s4106] ss:$2 sm:$0xff]
  %s4108 = scalar_lea.vmem [#allocation5], 160
  %v4109 = vld [vmem:[%s4108] ss:$2 sm:$0xff]
  %s4110 = scalar_lea.vmem [#allocation5], 1
  %v4111 = vld [vmem:[%s4110] ss:$2 sm:$0xff]
  %s4112 = scalar_lea.vmem [#allocation5], 17
  %v4113 = vld [vmem:[%s4112] ss:$2 sm:$0xff]
  %s4114 = scalar_lea.vmem [#allocation5], 33
  %v4115 = vld [vmem:[%s4114] ss:$2 sm:$0xff]
  %s4116 = scalar_lea.vmem [#allocation5], 49
  %v4117 = vld [vmem:[%s4116] ss:$2 sm:$0xff]
  %s4118 = scalar_lea.vmem [#allocation5], 65
  %v4119 = vld [vmem:[%s4118] ss:$2 sm:$0xff]
  %s4120 = scalar_lea.vmem [#allocation5], 81
  %v4121 = vld [vmem:[%s4120] ss:$2 sm:$0xff]
  %s4122 = scalar_lea.vmem [#allocation5], 97
  %v4123 = vld [vmem:[%s4122] ss:$2 sm:$0xff]
  %s4124 = scalar_lea.vmem [#allocation5], 113
  %v4125 = vld [vmem:[%s4124] ss:$2 sm:$0xff]
  %s4126 = scalar_lea.vmem [#allocation5], 129
  %v4127 = vld [vmem:[%s4126] ss:$2 sm:$0xff]
  %s4128 = scalar_lea.vmem [#allocation5], 145
  %v4129 = vld [vmem:[%s4128] ss:$2 sm:$0xff]
  %s4130 = scalar_lea.vmem [#allocation5], 161
  %v4131 = vld [vmem:[%s4130] ss:$2 sm:$0xff]
  %s4132 = scalar_lea.vmem [#allocation5], 10
  %v4133 = vld [vmem:[%s4132] ss:$2 sm:$0xff]
  %s4134 = scalar_lea.vmem [#allocation5], 26
  %v4135 = vld [vmem:[%s4134] ss:$2 sm:$0xff]
  %s4136 = scalar_lea.vmem [#allocation5], 42
  %v4137 = vld [vmem:[%s4136] ss:$2 sm:$0xff]
  %s4138 = scalar_lea.vmem [#allocation5], 58
  %v4139 = vld [vmem:[%s4138] ss:$2 sm:$0xff]
  %s4140 = scalar_lea.vmem [#allocation5], 74
  %v4141 = vld [vmem:[%s4140] ss:$2 sm:$0xff]
  %s4142 = scalar_lea.vmem [#allocation5], 90
  %v4143 = vld [vmem:[%s4142] ss:$2 sm:$0xff]
  %s4144 = scalar_lea.vmem [#allocation5], 106
  %v4145 = vld [vmem:[%s4144] ss:$2 sm:$0xff]
  %s4146 = scalar_lea.vmem [#allocation5], 122
  %v4147 = vld [vmem:[%s4146] ss:$2 sm:$0xff]
  %s4148 = scalar_lea.vmem [#allocation5], 138
  %v4149 = vld [vmem:[%s4148] ss:$2 sm:$0xff]
  %s4150 = scalar_lea.vmem [#allocation5], 154
  %v4151 = vld [vmem:[%s4150] ss:$2 sm:$0xff]
  %s4152 = scalar_lea.vmem [#allocation5], 170
  %v4153 = vld [vmem:[%s4152] ss:$2 sm:$0xff]
  %s4154 = scalar_lea.vmem [#allocation5], 11
  %v4155 = vld [vmem:[%s4154] ss:$2 sm:$0xff]
  %s4156 = scalar_lea.vmem [#allocation5], 27
  %v4157 = vld [vmem:[%s4156] ss:$2 sm:$0xff]
  %s4158 = scalar_lea.vmem [#allocation5], 43
  %v4159 = vld [vmem:[%s4158] ss:$2 sm:$0xff]
  %s4160 = scalar_lea.vmem [#allocation5], 59
  %v4161 = vld [vmem:[%s4160] ss:$2 sm:$0xff]
  %s4162 = scalar_lea.vmem [#allocation5], 75
  %v4163 = vld [vmem:[%s4162] ss:$2 sm:$0xff]
  %s4164 = scalar_lea.vmem [#allocation5], 91
  %v4165 = vld [vmem:[%s4164] ss:$2 sm:$0xff]
  %s4166 = scalar_lea.vmem [#allocation5], 107
  %v4167 = vld [vmem:[%s4166] ss:$2 sm:$0xff]
  %s4168 = scalar_lea.vmem [#allocation5], 123
  %v4169 = vld [vmem:[%s4168] ss:$2 sm:$0xff]
  %s4170 = scalar_lea.vmem [#allocation5], 139
  %v4171 = vld [vmem:[%s4170] ss:$2 sm:$0xff]
  %s4172 = scalar_lea.vmem [#allocation5], 155
  %v4173 = vld [vmem:[%s4172] ss:$2 sm:$0xff]
  %s4174 = scalar_lea.vmem [#allocation5], 171
  %v4175 = vld [vmem:[%s4174] ss:$2 sm:$0xff]
  %v4176 = vmax.f32 %v4089, %v4111
  %v4177 = vmax.f32 %v4091, %v4113
  %v4178 = vmax.f32 %v4093, %v4115
  %v4179 = vmax.f32 %v4095, %v4117
  %v4180 = vmax.f32 %v4097, %v4119
  %v4181 = vmax.f32 %v4099, %v4121
  %v4182 = vmax.f32 %v4101, %v4123
  %v4183 = vmax.f32 %v4103, %v4125
  %v4184 = vmax.f32 %v4105, %v4127
  %v4185 = vmax.f32 %v4107, %v4129
  %v4186 = vmax.f32 %v4109, %v4131
  %v4187 = vmax.f32 %v4133, %v4155
  %v4188 = vmax.f32 %v4135, %v4157
  %v4189 = vmax.f32 %v4137, %v4159
  %v4190 = vmax.f32 %v4139, %v4161
  %v4191 = vmax.f32 %v4141, %v4163
  %v4192 = vmax.f32 %v4143, %v4165
  %v4193 = vmax.f32 %v4145, %v4167
  %v4194 = vmax.f32 %v4147, %v4169
  %v4195 = vmax.f32 %v4149, %v4171
  %v4196 = vmax.f32 %v4151, %v4173
  %v4197 = vmax.f32 %v4153, %v4175
  %v4198 = vmax.f32 %v4176, %v4187
  %v4199 = vmax.f32 %v4177, %v4188
  %v4200 = vmax.f32 %v4178, %v4189
  %v4201 = vmax.f32 %v4179, %v4190
  %v4202 = vmax.f32 %v4180, %v4191
  %v4203 = vmax.f32 %v4181, %v4192
  %v4204 = vmax.f32 %v4182, %v4193
  %v4205 = vmax.f32 %v4183, %v4194
  %v4206 = vmax.f32 %v4184, %v4195
  %v4207 = vmax.f32 %v4185, %v4196
  %v4208 = vmax.f32 %v4186, %v4197
  %4209 = vst.msk [vmem:[#allocation6] sm:$0xff] %vm4062, %v4198
  %4210 = vst.msk [vmem:[#allocation6 + $0x8] sm:$0xff] %vm4062, %v4199
  %4211 = vst.msk [vmem:[#allocation6 + $0x10] sm:$0xff] %vm4062, %v4200
  %4212 = vst.msk [vmem:[#allocation6 + $0x18] sm:$0xff] %vm4062, %v4201
  %4213 = vst.msk [vmem:[#allocation6 + $0x20] sm:$0xff] %vm4062, %v4202
  %4214 = vst.msk [vmem:[#allocation6 + $0x28] sm:$0xff] %vm4062, %v4203
  %4215 = vst.msk [vmem:[#allocation6 + $0x30] sm:$0xff] %vm4062, %v4204
  %4216 = vst.msk [vmem:[#allocation6 + $0x38] sm:$0xff] %vm4062, %v4205
  %4217 = vst.msk [vmem:[#allocation6 + $0x40] sm:$0xff] %vm4062, %v4206
  %4218 = vst.msk [vmem:[#allocation6 + $0x48] sm:$0xff] %vm4062, %v4207
  %4219 = vst.msk [vmem:[#allocation6 + $0x50] sm:$0xff] %vm4062, %v4208
  %vm4220 = vcmask 260096
  %4221 = vst.msk [vmem:[#allocation7] sm:$0x7f] %vm4220, 0.0
  %vm4222 = vcmask 254976
  %4223 = vst.msk [vmem:[#allocation7 + $0xb] sm:$0x3] %vm4222, 0.0
  %4224 = vst.msk [vmem:[#allocation7 + $0x11] sm:$0x3] %vm4222, 0.0
  %4225 = vst.msk [vmem:[#allocation7 + $0x17] sm:$0x3] %vm4222, 0.0
  %4226 = vst.msk [vmem:[#allocation7 + $0x1d] sm:$0xff] %vm4062, 0.0
  %vm4227 = vcmask 256000
  %4228 = vst.msk [vmem:[#allocation7 + $0x25] sm:$0x7] %vm4227, 0.0
  %v4229 = vld [vmem:[#allocation6] sm:$0xf]
  %vm4230 = vcmask 257024
  %4231 = vst.msk [vmem:[#allocation7 + $0x7] sm:$0xf] %vm4230, %v4229
  %v4232 = vld [vmem:[#allocation6 + $0xa] sm:$0xf]
  %4233 = vst.msk [vmem:[#allocation7 + $0xd] sm:$0xf] %vm4230, %v4232
  %v4234 = vld [vmem:[#allocation6 + $0x14] sm:$0xf]
  %4235 = vst.msk [vmem:[#allocation7 + $0x13] sm:$0xf] %vm4230, %v4234
  %v4236 = vld [vmem:[#allocation6 + $0x1e] sm:$0xf]
  %4237 = vst.msk [vmem:[#allocation7 + $0x19] sm:$0xf] %vm4230, %v4236
  %4238 = vst.msk [vmem:[#allocation7 + $0x28] sm:$0x7f] %vm4220, 0.0
  %4239 = vst.msk [vmem:[#allocation7 + $0x33] sm:$0x3] %vm4222, 0.0
  %4240 = vst.msk [vmem:[#allocation7 + $0x39] sm:$0x3] %vm4222, 0.0
  %4241 = vst.msk [vmem:[#allocation7 + $0x3f] sm:$0x3] %vm4222, 0.0
  %4242 = vst.msk [vmem:[#allocation7 + $0x45] sm:$0xff] %vm4062, 0.0
  %4243 = vst.msk [vmem:[#allocation7 + $0x4d] sm:$0x7] %vm4227, 0.0
  %v4244 = vld [vmem:[#allocation6 + $0x34] sm:$0xf]
  %4245 = vst.msk [vmem:[#allocation7 + $0x2f] sm:$0xf] %vm4230, %v4244
  %v4246 = vld [vmem:[#allocation6 + $0x3e] sm:$0xf]
  %4247 = vst.msk [vmem:[#allocation7 + $0x35] sm:$0xf] %vm4230, %v4246
  %v4248 = vld [vmem:[#allocation6 + $0x48] sm:$0xf]
  %4249 = vst.msk [vmem:[#allocation7 + $0x3b] sm:$0xf] %vm4230, %v4248
  %v4250 = vld [vmem:[#allocation6 + $0x52] sm:$0xf]
  %4251 = vst.msk [vmem:[#allocation7 + $0x41] sm:$0xf] %vm4230, %v4250
  %4252 = vst.msk [vmem:[#allocation7 + $0x50] sm:$0xff] %vm4062, 0.0
  %4253 = vst.msk [vmem:[#allocation7 + $0x58] sm:$0xff] %vm4062, 0.0
  %v4254 = vld [vmem:[#allocation7] sm:$0xff]
  %v4255 = vld [vmem:[#allocation7 + $0x8] sm:$0xff]
  %v4256 = vld [vmem:[#allocation7 + $0x10] sm:$0xff]
  %v4257 = vld [vmem:[#allocation7 + $0x18] sm:$0xff]
  %v4258 = vld [vmem:[#allocation7 + $0x20] sm:$0xff]
  %v4259 = vld [vmem:[#allocation7 + $0x28] sm:$0xff]
  %v4260 = vld [vmem:[#allocation7 + $0x30] sm:$0xff]
  %v4261 = vld [vmem:[#allocation7 + $0x38] sm:$0xff]
  %v4262 = vld [vmem:[#allocation7 + $0x40] sm:$0xff]
  %v4263 = vld [vmem:[#allocation7 + $0x48] sm:$0xff]
  %v4264 = vld [vmem:[%s5] sm:$0xff]
  %v4265 = vld [vmem:[%s5 + $0x8] sm:$0xff]
  %v4266 = vld [vmem:[%s5 + $0x10] sm:$0xff]
  %v4267 = vld [vmem:[%s5 + $0x18] sm:$0xff]
  %v4268 = vld [vmem:[#allocation7 + $0x1] sm:$0xff]
  %v4269 = vld [vmem:[#allocation7 + $0x9] sm:$0xff]
  %v4270 = vld [vmem:[#allocation7 + $0x11] sm:$0xff]
  %v4271 = vld [vmem:[#allocation7 + $0x19] sm:$0xff]
  %v4272 = vld [vmem:[#allocation7 + $0x21] sm:$0xff]
  %v4273 = vld [vmem:[#allocation7 + $0x29] sm:$0xff]
  %v4274 = vld [vmem:[#allocation7 + $0x31] sm:$0xff]
  %v4275 = vld [vmem:[#allocation7 + $0x39] sm:$0xff]
  %v4276 = vld [vmem:[#allocation7 + $0x41] sm:$0xff]
  %v4277 = vld [vmem:[#allocation7 + $0x49] sm:$0xff]
  %v4278 = vld [vmem:[%s5 + $0x20] sm:$0xff]
  %v4279 = vld [vmem:[%s5 + $0x28] sm:$0xff]
  %v4280 = vld [vmem:[%s5 + $0x30] sm:$0xff]
  %v4281 = vld [vmem:[%s5 + $0x38] sm:$0xff]
  %v4283 = vsel %vm4062, %v4268, 0
  %v4286 = vsel %vm4062, %v4269, 0
  %v4289 = vsel %vm4062, %v4270, 0
  %v4292 = vsel %vm4062, %v4271, 0
  %v4295 = vsel %vm4062, %v4272, 0
  %v4298 = vsel %vm4062, %v4273, 0
  %v4301 = vsel %vm4062, %v4274, 0
  %v4304 = vsel %vm4062, %v4275, 0
  %v4307 = vsel %vm4062, %v4276, 0
  %v4310 = vsel %vm4062, %v4277, 0
  %4312 = vmatprep.subr.mxu0 0.0
  %4313 = vmatpush1.msra.mxu0 %v4278
  %4314 = vmatprep.subr.mxu0 0.0
  %4315 = vmatpush1.msra.mxu0 %v4279
  %4316 = vmatprep.subr.mxu0 0.0
  %4317 = vmatpush1.msra.mxu0 %v4280
  %4318 = vmatprep.subr.mxu0 0.0
  %4319 = vmatpush1.msra.mxu0 %v4281
  %4320 = vmatprep.subr.mxu0 0.0
  %4321 = vmatpush1.msra.mxu0 0.0
  %4322 = vmatprep.subr.mxu0 0.0
  %4323 = vmatpush1.msra.mxu0 0.0
  %4324 = vmatprep.subr.mxu0 0.0
  %4325 = vmatpush1.msra.mxu0 0.0
  %4326 = vmatprep.subr.mxu0 0.0
  %4327 = vmatpush1.msra.mxu0 0.0
  %4328 = vmatprep.subr.mxu0 0.0
  %4329 = vmatpush1.msra.mxu0 0.0
  %4330 = vmatprep.subr.mxu0 0.0
  %4331 = vmatpush1.msra.mxu0 0.0
  %4332 = vmatprep.subr.mxu0 0.0
  %4333 = vmatpush1.msra.mxu0 0.0
  %4334 = vmatprep.subr.mxu0 0.0
  %4335 = vmatpush1.msra.mxu0 0.0
  %4336 = vmatprep.subr.mxu0 0.0
  %4337 = vmatpush1.msra.mxu0 0.0
  %4338 = vmatprep.subr.mxu0 0.0
  %4339 = vmatpush1.msra.mxu0 0.0
  %4340 = vmatprep.subr.mxu0 0.0
  %4341 = vmatpush1.msra.mxu0 0.0
  %4342 = vmatprep.subr.mxu0 0.0
  %4343 = vmatpush1.msra.mxu0 0.0
  %4344 = vmatprep.subr.mxu0 0.0
  %4345 = vmatpush1.msra.mxu0 0.0
  %4346 = vmatprep.subr.mxu0 0.0
  %4347 = vmatpush1.msra.mxu0 0.0
  %4348 = vmatprep.subr.mxu0 0.0
  %4349 = vmatpush1.msra.mxu0 0.0
  %4350 = vmatprep.subr.mxu0 0.0
  %4351 = vmatpush1.msra.mxu0 0.0
  %4352 = vmatprep.subr.mxu0 0.0
  %4353 = vmatpush1.msra.mxu0 0.0
  %4354 = vmatprep.subr.mxu0 0.0
  %4355 = vmatpush1.msra.mxu0 0.0
  %4356 = vmatprep.subr.mxu0 0.0
  %4357 = vmatpush1.msra.mxu0 0.0
  %4358 = vmatprep.subr.mxu0 0.0
  %4359 = vmatpush1.msra.mxu0 0.0
  %4360 = vmatprep.subr.mxu0 0.0
  %4361 = vmatpush1.msra.mxu0 0.0
  %4362 = vmatprep.subr.mxu0 0.0
  %4363 = vmatpush1.msra.mxu0 0.0
  %4364 = vmatprep.subr.mxu0 0.0
  %4365 = vmatpush1.msra.mxu0 0.0
  %4366 = vmatprep.subr.mxu0 0.0
  %4367 = vmatpush1.msra.mxu0 0.0
  %4368 = vmatprep.subr.mxu0 0.0
  %4369 = vmatpush1.msra.mxu0 0.0
  %4370 = vmatprep.subr.mxu0 0.0
  %4371 = vmatpush1.msra.mxu0 0.0
  %4372 = vmatprep.subr.mxu0 0.0
  %4373 = vmatpush1.msra.mxu0 0.0
  %4374 = vmatprep.subr.mxu0 0.0
  %4375 = vmatpush1.msra.mxu0 0.0
  %4376 = vmatprep.mubr.f32.mxu0 0.0
  %4377 = vmatmul.mubr.f32.gmra.mrb[0].mxu0 %v4283
  %v4378 = vpop.f32.mrb[0].mxu0
  %v4379 = vadd.f32 0.0, %v4378
  %v4380 = vpop.f32.mrb[0].mxu0
  %4381 = vmatprep.mubr.f32.mxu0 0.0
  %4382 = vmatmul.mubr.f32.gmra.mrb[0].mxu0 %v4286
  %v4383 = vpop.f32.mrb[0].mxu0
  %v4384 = vadd.f32 0.0, %v4383
  %v4385 = vpop.f32.mrb[0].mxu0
  %4386 = vmatprep.mubr.f32.mxu0 0.0
  %4387 = vmatmul.mubr.f32.gmra.mrb[0].mxu0 %v4289
  %v4388 = vpop.f32.mrb[0].mxu0
  %v4389 = vadd.f32 0.0, %v4388
  %v4390 = vpop.f32.mrb[0].mxu0
  %4391 = vmatprep.mubr.f32.mxu0 0.0
  %4392 = vmatmul.mubr.f32.gmra.mrb[0].mxu0 %v4292
  %v4393 = vpop.f32.mrb[0].mxu0
  %v4394 = vadd.f32 0.0, %v4393
  %v4395 = vpop.f32.mrb[0].mxu0
  %4396 = vmatprep.mubr.f32.mxu0 0.0
  %4397 = vmatmul.mubr.f32.gmra.mrb[0].mxu0 %v4295
  %v4398 = vpop.f32.mrb[0].mxu0
  %v4399 = vadd.f32 0.0, %v4398
  %v4400 = vpop.f32.mrb[0].mxu0
  %4401 = vmatprep.mubr.f32.mxu0 0.0
  %4402 = vmatmul.mubr.f32.gmra.mrb[0].mxu0 %v4298
  %v4403 = vpop.f32.mrb[0].mxu0
  %v4404 = vadd.f32 0.0, %v4403
  %v4405 = vpop.f32.mrb[0].mxu0
  %4406 = vmatprep.mubr.f32.mxu0 0.0
  %4407 = vmatmul.mubr.f32.gmra.mrb[0].mxu0 %v4301
  %v4408 = vpop.f32.mrb[0].mxu0
  %v4409 = vadd.f32 0.0, %v4408
  %v4410 = vpop.f32.mrb[0].mxu0
  %4411 = vmatprep.mubr.f32.mxu0 0.0
  %4412 = vmatmul.mubr.f32.gmra.mrb[0].mxu0 %v4304
  %v4413 = vpop.f32.mrb[0].mxu0
  %v4414 = vadd.f32 0.0, %v4413
  %v4415 = vpop.f32.mrb[0].mxu0
  %4416 = vmatprep.mubr.f32.mxu0 0.0
  %4417 = vmatmul.mubr.f32.gmra.mrb[0].mxu0 %v4307
  %v4418 = vpop.f32.mrb[0].mxu0
  %v4419 = vadd.f32 0.0, %v4418
  %v4420 = vpop.f32.mrb[0].mxu0
  %4421 = vmatprep.mubr.f32.mxu0 0.0
  %4422 = vmatmul.mubr.f32.gmra.mrb[0].mxu0 %v4310
  %v4423 = vpop.f32.mrb[0].mxu0
  %v4424 = vadd.f32 0.0, %v4423
  %v4425 = vpop.f32.mrb[0].mxu0
  %4426 = vdwg.mxu0
  %v4428 = vsel %vm4062, %v4254, 0
  %v4431 = vsel %vm4062, %v4255, 0
  %v4434 = vsel %vm4062, %v4256, 0
  %v4437 = vsel %vm4062, %v4257, 0
  %v4440 = vsel %vm4062, %v4258, 0
  %v4443 = vsel %vm4062, %v4259, 0
  %v4446 = vsel %vm4062, %v4260, 0
  %v4449 = vsel %vm4062, %v4261, 0
  %v4452 = vsel %vm4062, %v4262, 0
  %v4455 = vsel %vm4062, %v4263, 0
  %4457 = vmatprep.subr.mxu0 0.0
  %4458 = vmatpush1.msra.mxu0 %v4264
  %4459 = vmatprep.subr.mxu0 0.0
  %4460 = vmatpush1.msra.mxu0 %v4265
  %4461 = vmatprep.subr.mxu0 0.0
  %4462 = vmatpush1.msra.mxu0 %v4266
  %4463 = vmatprep.subr.mxu0 0.0
  %4464 = vmatpush1.msra.mxu0 %v4267
  %4465 = vmatprep.subr.mxu0 0.0
  %4466 = vmatpush1.msra.mxu0 0.0
  %4467 = vmatprep.subr.mxu0 0.0
  %4468 = vmatpush1.msra.mxu0 0.0
  %4469 = vmatprep.subr.mxu0 0.0
  %4470 = vmatpush1.msra.mxu0 0.0
  %4471 = vmatprep.subr.mxu0 0.0
  %4472 = vmatpush1.msra.mxu0 0.0
  %4473 = vmatprep.subr.mxu0 0.0
  %4474 = vmatpush1.msra.mxu0 0.0
  %4475 = vmatprep.subr.mxu0 0.0
  %4476 = vmatpush1.msra.mxu0 0.0
  %4477 = vmatprep.subr.mxu0 0.0
  %4478 = vmatpush1.msra.mxu0 0.0
  %4479 = vmatprep.subr.mxu0 0.0
  %4480 = vmatpush1.msra.mxu0 0.0
  %4481 = vmatprep.subr.mxu0 0.0
  %4482 = vmatpush1.msra.mxu0 0.0
  %4483 = vmatprep.subr.mxu0 0.0
  %4484 = vmatpush1.msra.mxu0 0.0
  %4485 = vmatprep.subr.mxu0 0.0
  %4486 = vmatpush1.msra.mxu0 0.0
  %4487 = vmatprep.subr.mxu0 0.0
  %4488 = vmatpush1.msra.mxu0 0.0
  %4489 = vmatprep.subr.mxu0 0.0
  %4490 = vmatpush1.msra.mxu0 0.0
  %4491 = vmatprep.subr.mxu0 0.0
  %4492 = vmatpush1.msra.mxu0 0.0
  %4493 = vmatprep.subr.mxu0 0.0
  %4494 = vmatpush1.msra.mxu0 0.0
  %4495 = vmatprep.subr.mxu0 0.0
  %4496 = vmatpush1.msra.mxu0 0.0
  %4497 = vmatprep.subr.mxu0 0.0
  %4498 = vmatpush1.msra.mxu0 0.0
  %4499 = vmatprep.subr.mxu0 0.0
  %4500 = vmatpush1.msra.mxu0 0.0
  %4501 = vmatprep.subr.mxu0 0.0
  %4502 = vmatpush1.msra.mxu0 0.0
  %4503 = vmatprep.subr.mxu0 0.0
  %4504 = vmatpush1.msra.mxu0 0.0
  %4505 = vmatprep.subr.mxu0 0.0
  %4506 = vmatpush1.msra.mxu0 0.0
  %4507 = vmatprep.subr.mxu0 0.0
  %4508 = vmatpush1.msra.mxu0 0.0
  %4509 = vmatprep.subr.mxu0 0.0
  %4510 = vmatpush1.msra.mxu0 0.0
  %4511 = vmatprep.subr.mxu0 0.0
  %4512 = vmatpush1.msra.mxu0 0.0
  %4513 = vmatprep.subr.mxu0 0.0
  %4514 = vmatpush1.msra.mxu0 0.0
  %4515 = vmatprep.subr.mxu0 0.0
  %4516 = vmatpush1.msra.mxu0 0.0
  %4517 = vmatprep.subr.mxu0 0.0
  %4518 = vmatpush1.msra.mxu0 0.0
  %4519 = vmatprep.subr.mxu0 0.0
  %4520 = vmatpush1.msra.mxu0 0.0
  %4521 = vmatprep.mubr.f32.mxu0 0.0
  %4522 = vmatmul.mubr.f32.gmra.mrb[0].mxu0 %v4428
  %v4523 = vpop.f32.mrb[0].mxu0
  %v4524 = vadd.f32 %v4379, %v4523
  %v4525 = vpop.f32.mrb[0].mxu0
  %4526 = vmatprep.mubr.f32.mxu0 0.0
  %4527 = vmatmul.mubr.f32.gmra.mrb[0].mxu0 %v4431
  %v4528 = vpop.f32.mrb[0].mxu0
  %v4529 = vadd.f32 %v4384, %v4528
  %v4530 = vpop.f32.mrb[0].mxu0
  %4531 = vmatprep.mubr.f32.mxu0 0.0
  %4532 = vmatmul.mubr.f32.gmra.mrb[0].mxu0 %v4434
  %v4533 = vpop.f32.mrb[0].mxu0
  %v4534 = vadd.f32 %v4389, %v4533
  %v4535 = vpop.f32.mrb[0].mxu0
  %4536 = vmatprep.mubr.f32.mxu0 0.0
  %4537 = vmatmul.mubr.f32.gmra.mrb[0].mxu0 %v4437
  %v4538 = vpop.f32.mrb[0].mxu0
  %v4539 = vadd.f32 %v4394, %v4538
  %v4540 = vpop.f32.mrb[0].mxu0
  %4541 = vmatprep.mubr.f32.mxu0 0.0
  %4542 = vmatmul.mubr.f32.gmra.mrb[0].mxu0 %v4440
  %v4543 = vpop.f32.mrb[0].mxu0
  %v4544 = vadd.f32 %v4399, %v4543
  %v4545 = vpop.f32.mrb[0].mxu0
  %4546 = vmatprep.mubr.f32.mxu0 0.0
  %4547 = vmatmul.mubr.f32.gmra.mrb[0].mxu0 %v4443
  %v4548 = vpop.f32.mrb[0].mxu0
  %v4549 = vadd.f32 %v4404, %v4548
  %v4550 = vpop.f32.mrb[0].mxu0
  %4551 = vmatprep.mubr.f32.mxu0 0.0
  %4552 = vmatmul.mubr.f32.gmra.mrb[0].mxu0 %v4446
  %v4553 = vpop.f32.mrb[0].mxu0
  %v4554 = vadd.f32 %v4409, %v4553
  %v4555 = vpop.f32.mrb[0].mxu0
  %4556 = vmatprep.mubr.f32.mxu0 0.0
  %4557 = vmatmul.mubr.f32.gmra.mrb[0].mxu0 %v4449
  %v4558 = vpop.f32.mrb[0].mxu0
  %v4559 = vadd.f32 %v4414, %v4558
  %v4560 = vpop.f32.mrb[0].mxu0
  %4561 = vmatprep.mubr.f32.mxu0 0.0
  %4562 = vmatmul.mubr.f32.gmra.mrb[0].mxu0 %v4452
  %v4563 = vpop.f32.mrb[0].mxu0
  %v4564 = vadd.f32 %v4419, %v4563
  %v4565 = vpop.f32.mrb[0].mxu0
  %4566 = vmatprep.mubr.f32.mxu0 0.0
  %4567 = vmatmul.mubr.f32.gmra.mrb[0].mxu0 %v4455
  %v4568 = vpop.f32.mrb[0].mxu0
  %v4569 = vadd.f32 %v4424, %v4568
  %v4570 = vpop.f32.mrb[0].mxu0
  %4571 = vdwg.mxu0
  %v4572 = vld [vmem:[#allocation7 + $0x2] sm:$0xff]
  %v4573 = vld [vmem:[#allocation7 + $0xa] sm:$0xff]
  %v4574 = vld [vmem:[#allocation7 + $0x12] sm:$0xff]
  %v4575 = vld [vmem:[#allocation7 + $0x1a] sm:$0xff]
  %v4576 = vld [vmem:[#allocation7 + $0x22] sm:$0xff]
  %v4577 = vld [vmem:[#allocation7 + $0x2a] sm:$0xff]
  %v4578 = vld [vmem:[#allocation7 + $0x32] sm:$0xff]
  %v4579 = vld [vmem:[#allocation7 + $0x3a] sm:$0xff]
  %v4580 = vld [vmem:[#allocation7 + $0x42] sm:$0xff]
  %v4581 = vld [vmem:[#allocation7 + $0x4a] sm:$0xff]
  %v4582 = vld [vmem:[%s5 + $0x40] sm:$0xff]
  %v4583 = vld [vmem:[%s5 + $0x48] sm:$0xff]
  %v4584 = vld [vmem:[%s5 + $0x50] sm:$0xff]
  %v4585 = vld [vmem:[%s5 + $0x58] sm:$0xff]
  %v4587 = vsel %vm4062, %v4572, 0
  %v4590 = vsel %vm4062, %v4573, 0
  %v4593 = vsel %vm4062, %v4574, 0
  %v4596 = vsel %vm4062, %v4575, 0
  %v4599 = vsel %vm4062, %v4576, 0
  %v4602 = vsel %vm4062, %v4577, 0
  %v4605 = vsel %vm4062, %v4578, 0
  %v4608 = vsel %vm4062, %v4579, 0
  %v4611 = vsel %vm4062, %v4580, 0
  %v4614 = vsel %vm4062, %v4581, 0
  %4616 = vmatprep.subr.mxu0 0.0
  %4617 = vmatpush1.msra.mxu0 %v4582
  %4618 = vmatprep.subr.mxu0 0.0
  %4619 = vmatpush1.msra.mxu0 %v4583
  %4620 = vmatprep.subr.mxu0 0.0
  %4621 = vmatpush1.msra.mxu0 %v4584
  %4622 = vmatprep.subr.mxu0 0.0
  %4623 = vmatpush1.msra.mxu0 %v4585
  %4624 = vmatprep.subr.mxu0 0.0
  %4625 = vmatpush1.msra.mxu0 0.0
  %4626 = vmatprep.subr.mxu0 0.0
  %4627 = vmatpush1.msra.mxu0 0.0
  %4628 = vmatprep.subr.mxu0 0.0
  %4629 = vmatpush1.msra.mxu0 0.0
  %4630 = vmatprep.subr.mxu0 0.0
  %4631 = vmatpush1.msra.mxu0 0.0
  %4632 = vmatprep.subr.mxu0 0.0
  %4633 = vmatpush1.msra.mxu0 0.0
  %4634 = vmatprep.subr.mxu0 0.0
  %4635 = vmatpush1.msra.mxu0 0.0
  %4636 = vmatprep.subr.mxu0 0.0
  %4637 = vmatpush1.msra.mxu0 0.0
  %4638 = vmatprep.subr.mxu0 0.0
  %4639 = vmatpush1.msra.mxu0 0.0
  %4640 = vmatprep.subr.mxu0 0.0
  %4641 = vmatpush1.msra.mxu0 0.0
  %4642 = vmatprep.subr.mxu0 0.0
  %4643 = vmatpush1.msra.mxu0 0.0
  %4644 = vmatprep.subr.mxu0 0.0
  %4645 = vmatpush1.msra.mxu0 0.0
  %4646 = vmatprep.subr.mxu0 0.0
  %4647 = vmatpush1.msra.mxu0 0.0
  %4648 = vmatprep.subr.mxu0 0.0
  %4649 = vmatpush1.msra.mxu0 0.0
  %4650 = vmatprep.subr.mxu0 0.0
  %4651 = vmatpush1.msra.mxu0 0.0
  %4652 = vmatprep.subr.mxu0 0.0
  %4653 = vmatpush1.msra.mxu0 0.0
  %4654 = vmatprep.subr.mxu0 0.0
  %4655 = vmatpush1.msra.mxu0 0.0
  %4656 = vmatprep.subr.mxu0 0.0
  %4657 = vmatpush1.msra.mxu0 0.0
  %4658 = vmatprep.subr.mxu0 0.0
  %4659 = vmatpush1.msra.mxu0 0.0
  %4660 = vmatprep.subr.mxu0 0.0
  %4661 = vmatpush1.msra.mxu0 0.0
  %4662 = vmatprep.subr.mxu0 0.0
  %4663 = vmatpush1.msra.mxu0 0.0
  %4664 = vmatprep.subr.mxu0 0.0
  %4665 = vmatpush1.msra.mxu0 0.0
  %4666 = vmatprep.subr.mxu0 0.0
  %4667 = vmatpush1.msra.mxu0 0.0
  %4668 = vmatprep.subr.mxu0 0.0
  %4669 = vmatpush1.msra.mxu0 0.0
  %4670 = vmatprep.subr.mxu0 0.0
  %4671 = vmatpush1.msra.mxu0 0.0
  %4672 = vmatprep.subr.mxu0 0.0
  %4673 = vmatpush1.msra.mxu0 0.0
  %4674 = vmatprep.subr.mxu0 0.0
  %4675 = vmatpush1.msra.mxu0 0.0
  %4676 = vmatprep.subr.mxu0 0.0
  %4677 = vmatpush1.msra.mxu0 0.0
  %4678 = vmatprep.subr.mxu0 0.0
  %4679 = vmatpush1.msra.mxu0 0.0
  %4680 = vmatprep.mubr.f32.mxu0 0.0
  %4681 = vmatmul.mubr.f32.gmra.mrb[0].mxu0 %v4587
  %v4682 = vpop.f32.mrb[0].mxu0
  %v4683 = vadd.f32 0.0, %v4682
  %v4684 = vpop.f32.mrb[0].mxu0
  %4685 = vmatprep.mubr.f32.mxu0 0.0
  %4686 = vmatmul.mubr.f32.gmra.mrb[0].mxu0 %v4590
  %v4687 = vpop.f32.mrb[0].mxu0
  %v4688 = vadd.f32 0.0, %v4687
  %v4689 = vpop.f32.mrb[0].mxu0
  %4690 = vmatprep.mubr.f32.mxu0 0.0
  %4691 = vmatmul.mubr.f32.gmra.mrb[0].mxu0 %v4593
  %v4692 = vpop.f32.mrb[0].mxu0
  %v4693 = vadd.f32 0.0, %v4692
  %v4694 = vpop.f32.mrb[0].mxu0
  %4695 = vmatprep.mubr.f32.mxu0 0.0
  %4696 = vmatmul.mubr.f32.gmra.mrb[0].mxu0 %v4596
  %v4697 = vpop.f32.mrb[0].mxu0
  %v4698 = vadd.f32 0.0, %v4697
  %v4699 = vpop.f32.mrb[0].mxu0
  %4700 = vmatprep.mubr.f32.mxu0 0.0
  %4701 = vmatmul.mubr.f32.gmra.mrb[0].mxu0 %v4599
  %v4702 = vpop.f32.mrb[0].mxu0
  %v4703 = vadd.f32 0.0, %v4702
  %v4704 = vpop.f32.mrb[0].mxu0
  %4705 = vmatprep.mubr.f32.mxu0 0.0
  %4706 = vmatmul.mubr.f32.gmra.mrb[0].mxu0 %v4602
  %v4707 = vpop.f32.mrb[0].mxu0
  %v4708 = vadd.f32 0.0, %v4707
  %v4709 = vpop.f32.mrb[0].mxu0
  %4710 = vmatprep.mubr.f32.mxu0 0.0
  %4711 = vmatmul.mubr.f32.gmra.mrb[0].mxu0 %v4605
  %v4712 = vpop.f32.mrb[0].mxu0
  %v4713 = vadd.f32 0.0, %v4712
  %v4714 = vpop.f32.mrb[0].mxu0
  %4715 = vmatprep.mubr.f32.mxu0 0.0
  %4716 = vmatmul.mubr.f32.gmra.mrb[0].mxu0 %v4608
  %v4717 = vpop.f32.mrb[0].mxu0
  %v4718 = vadd.f32 0.0, %v4717
  %v4719 = vpop.f32.mrb[0].mxu0
  %4720 = vmatprep.mubr.f32.mxu0 0.0
  %4721 = vmatmul.mubr.f32.gmra.mrb[0].mxu0 %v4611
  %v4722 = vpop.f32.mrb[0].mxu0
  %v4723 = vadd.f32 0.0, %v4722
  %v4724 = vpop.f32.mrb[0].mxu0
  %4725 = vmatprep.mubr.f32.mxu0 0.0
  %4726 = vmatmul.mubr.f32.gmra.mrb[0].mxu0 %v4614
  %v4727 = vpop.f32.mrb[0].mxu0
  %v4728 = vadd.f32 0.0, %v4727
  %v4729 = vpop.f32.mrb[0].mxu0
  %4730 = vdwg.mxu0
  %v4731 = vadd.f32 %v4524, %v4683
  %v4732 = vadd.f32 %v4529, %v4688
  %v4733 = vadd.f32 %v4534, %v4693
  %v4734 = vadd.f32 %v4539, %v4698
  %v4735 = vadd.f32 %v4544, %v4703
  %v4736 = vadd.f32 %v4549, %v4708
  %v4737 = vadd.f32 %v4554, %v4713
  %v4738 = vadd.f32 %v4559, %v4718
  %v4739 = vadd.f32 %v4564, %v4723
  %v4740 = vadd.f32 %v4569, %v4728
  %v4741 = vld [vmem:[#allocation7 + $0x6] sm:$0xff]
  %v4742 = vld [vmem:[#allocation7 + $0xe] sm:$0xff]
  %v4743 = vld [vmem:[#allocation7 + $0x16] sm:$0xff]
  %v4744 = vld [vmem:[#allocation7 + $0x1e] sm:$0xff]
  %v4745 = vld [vmem:[#allocation7 + $0x26] sm:$0xff]
  %v4746 = vld [vmem:[#allocation7 + $0x2e] sm:$0xff]
  %v4747 = vld [vmem:[#allocation7 + $0x36] sm:$0xff]
  %v4748 = vld [vmem:[#allocation7 + $0x3e] sm:$0xff]
  %v4749 = vld [vmem:[#allocation7 + $0x46] sm:$0xff]
  %v4750 = vld [vmem:[#allocation7 + $0x4e] sm:$0xff]
  %v4751 = vld [vmem:[%s5 + $0x60] sm:$0xff]
  %v4752 = vld [vmem:[%s5 + $0x68] sm:$0xff]
  %v4753 = vld [vmem:[%s5 + $0x70] sm:$0xff]
  %v4754 = vld [vmem:[%s5 + $0x78] sm:$0xff]
  %v4756 = vsel %vm4062, %v4741, 0
  %v4759 = vsel %vm4062, %v4742, 0
  %v4762 = vsel %vm4062, %v4743, 0
  %v4765 = vsel %vm4062, %v4744, 0
  %v4768 = vsel %vm4062, %v4745, 0
  %v4771 = vsel %vm4062, %v4746, 0
  %v4774 = vsel %vm4062, %v4747, 0
  %v4777 = vsel %vm4062, %v4748, 0
  %v4780 = vsel %vm4062, %v4749, 0
  %v4783 = vsel %vm4062, %v4750, 0
  %4785 = vmatprep.subr.mxu0 0.0
  %4786 = vmatpush1.msra.mxu0 %v4751
  %4787 = vmatprep.subr.mxu0 0.0
  %4788 = vmatpush1.msra.mxu0 %v4752
  %4789 = vmatprep.subr.mxu0 0.0
  %4790 = vmatpush1.msra.mxu0 %v4753
  %4791 = vmatprep.subr.mxu0 0.0
  %4792 = vmatpush1.msra.mxu0 %v4754
  %4793 = vmatprep.subr.mxu0 0.0
  %4794 = vmatpush1.msra.mxu0 0.0
  %4795 = vmatprep.subr.mxu0 0.0
  %4796 = vmatpush1.msra.mxu0 0.0
  %4797 = vmatprep.subr.mxu0 0.0
  %4798 = vmatpush1.msra.mxu0 0.0
  %4799 = vmatprep.subr.mxu0 0.0
  %4800 = vmatpush1.msra.mxu0 0.0
  %4801 = vmatprep.subr.mxu0 0.0
  %4802 = vmatpush1.msra.mxu0 0.0
  %4803 = vmatprep.subr.mxu0 0.0
  %4804 = vmatpush1.msra.mxu0 0.0
  %4805 = vmatprep.subr.mxu0 0.0
  %4806 = vmatpush1.msra.mxu0 0.0
  %4807 = vmatprep.subr.mxu0 0.0
  %4808 = vmatpush1.msra.mxu0 0.0
  %4809 = vmatprep.subr.mxu0 0.0
  %4810 = vmatpush1.msra.mxu0 0.0
  %4811 = vmatprep.subr.mxu0 0.0
  %4812 = vmatpush1.msra.mxu0 0.0
  %4813 = vmatprep.subr.mxu0 0.0
  %4814 = vmatpush1.msra.mxu0 0.0
  %4815 = vmatprep.subr.mxu0 0.0
  %4816 = vmatpush1.msra.mxu0 0.0
  %4817 = vmatprep.subr.mxu0 0.0
  %4818 = vmatpush1.msra.mxu0 0.0
  %4819 = vmatprep.subr.mxu0 0.0
  %4820 = vmatpush1.msra.mxu0 0.0
  %4821 = vmatprep.subr.mxu0 0.0
  %4822 = vmatpush1.msra.mxu0 0.0
  %4823 = vmatprep.subr.mxu0 0.0
  %4824 = vmatpush1.msra.mxu0 0.0
  %4825 = vmatprep.subr.mxu0 0.0
  %4826 = vmatpush1.msra.mxu0 0.0
  %4827 = vmatprep.subr.mxu0 0.0
  %4828 = vmatpush1.msra.mxu0 0.0
  %4829 = vmatprep.subr.mxu0 0.0
  %4830 = vmatpush1.msra.mxu0 0.0
  %4831 = vmatprep.subr.mxu0 0.0
  %4832 = vmatpush1.msra.mxu0 0.0
  %4833 = vmatprep.subr.mxu0 0.0
  %4834 = vmatpush1.msra.mxu0 0.0
  %4835 = vmatprep.subr.mxu0 0.0
  %4836 = vmatpush1.msra.mxu0 0.0
  %4837 = vmatprep.subr.mxu0 0.0
  %4838 = vmatpush1.msra.mxu0 0.0
  %4839 = vmatprep.subr.mxu0 0.0
  %4840 = vmatpush1.msra.mxu0 0.0
  %4841 = vmatprep.subr.mxu0 0.0
  %4842 = vmatpush1.msra.mxu0 0.0
  %4843 = vmatprep.subr.mxu0 0.0
  %4844 = vmatpush1.msra.mxu0 0.0
  %4845 = vmatprep.subr.mxu0 0.0
  %4846 = vmatpush1.msra.mxu0 0.0
  %4847 = vmatprep.subr.mxu0 0.0
  %4848 = vmatpush1.msra.mxu0 0.0
  %4849 = vmatprep.mubr.f32.mxu0 0.0
  %4850 = vmatmul.mubr.f32.gmra.mrb[0].mxu0 %v4756
  %v4851 = vpop.f32.mrb[0].mxu0
  %v4852 = vadd.f32 0.0, %v4851
  %v4853 = vpop.f32.mrb[0].mxu0
  %4854 = vmatprep.mubr.f32.mxu0 0.0
  %4855 = vmatmul.mubr.f32.gmra.mrb[0].mxu0 %v4759
  %v4856 = vpop.f32.mrb[0].mxu0
  %v4857 = vadd.f32 0.0, %v4856
  %v4858 = vpop.f32.mrb[0].mxu0
  %4859 = vmatprep.mubr.f32.mxu0 0.0
  %4860 = vmatmul.mubr.f32.gmra.mrb[0].mxu0 %v4762
  %v4861 = vpop.f32.mrb[0].mxu0
  %v4862 = vadd.f32 0.0, %v4861
  %v4863 = vpop.f32.mrb[0].mxu0
  %4864 = vmatprep.mubr.f32.mxu0 0.0
  %4865 = vmatmul.mubr.f32.gmra.mrb[0].mxu0 %v4765
  %v4866 = vpop.f32.mrb[0].mxu0
  %v4867 = vadd.f32 0.0, %v4866
  %v4868 = vpop.f32.mrb[0].mxu0
  %4869 = vmatprep.mubr.f32.mxu0 0.0
  %4870 = vmatmul.mubr.f32.gmra.mrb[0].mxu0 %v4768
  %v4871 = vpop.f32.mrb[0].mxu0
  %v4872 = vadd.f32 0.0, %v4871
  %v4873 = vpop.f32.mrb[0].mxu0
  %4874 = vmatprep.mubr.f32.mxu0 0.0
  %4875 = vmatmul.mubr.f32.gmra.mrb[0].mxu0 %v4771
  %v4876 = vpop.f32.mrb[0].mxu0
  %v4877 = vadd.f32 0.0, %v4876
  %v4878 = vpop.f32.mrb[0].mxu0
  %4879 = vmatprep.mubr.f32.mxu0 0.0
  %4880 = vmatmul.mubr.f32.gmra.mrb[0].mxu0 %v4774
  %v4881 = vpop.f32.mrb[0].mxu0
  %v4882 = vadd.f32 0.0, %v4881
  %v4883 = vpop.f32.mrb[0].mxu0
  %4884 = vmatprep.mubr.f32.mxu0 0.0
  %4885 = vmatmul.mubr.f32.gmra.mrb[0].mxu0 %v4777
  %v4886 = vpop.f32.mrb[0].mxu0
  %v4887 = vadd.f32 0.0, %v4886
  %v4888 = vpop.f32.mrb[0].mxu0
  %4889 = vmatprep.mubr.f32.mxu0 0.0
  %4890 = vmatmul.mubr.f32.gmra.mrb[0].mxu0 %v4780
  %v4891 = vpop.f32.mrb[0].mxu0
  %v4892 = vadd.f32 0.0, %v4891
  %v4893 = vpop.f32.mrb[0].mxu0
  %4894 = vmatprep.mubr.f32.mxu0 0.0
  %4895 = vmatmul.mubr.f32.gmra.mrb[0].mxu0 %v4783
  %v4896 = vpop.f32.mrb[0].mxu0
  %v4897 = vadd.f32 0.0, %v4896
  %v4898 = vpop.f32.mrb[0].mxu0
  %4899 = vdwg.mxu0
  %v4900 = vadd.f32 %v4731, %v4852
  %v4901 = vadd.f32 %v4732, %v4857
  %v4902 = vadd.f32 %v4733, %v4862
  %v4903 = vadd.f32 %v4734, %v4867
  %v4904 = vadd.f32 %v4735, %v4872
  %v4905 = vadd.f32 %v4736, %v4877
  %v4906 = vadd.f32 %v4737, %v4882
  %v4907 = vadd.f32 %v4738, %v4887
  %v4908 = vadd.f32 %v4739, %v4892
  %v4909 = vadd.f32 %v4740, %v4897
  %v4910 = vld [vmem:[#allocation7 + $0x7] sm:$0xff]
  %v4911 = vld [vmem:[#allocation7 + $0xf] sm:$0xff]
  %v4912 = vld [vmem:[#allocation7 + $0x17] sm:$0xff]
  %v4913 = vld [vmem:[#allocation7 + $0x1f] sm:$0xff]
  %v4914 = vld [vmem:[#allocation7 + $0x27] sm:$0xff]
  %v4915 = vld [vmem:[#allocation7 + $0x2f] sm:$0xff]
  %v4916 = vld [vmem:[#allocation7 + $0x37] sm:$0xff]
  %v4917 = vld [vmem:[#allocation7 + $0x3f] sm:$0xff]
  %v4918 = vld [vmem:[#allocation7 + $0x47] sm:$0xff]
  %v4919 = vld [vmem:[#allocation7 + $0x4f] sm:$0xff]
  %v4920 = vld [vmem:[%s5 + $0x80] sm:$0xff]
  %v4921 = vld [vmem:[%s5 + $0x88] sm:$0xff]
  %v4922 = vld [vmem:[%s5 + $0x90] sm:$0xff]
  %v4923 = vld [vmem:[%s5 + $0x98] sm:$0xff]
  %v4925 = vsel %vm4062, %v4910, 0
  %v4928 = vsel %vm4062, %v4911, 0
  %v4931 = vsel %vm4062, %v4912, 0
  %v4934 = vsel %vm4062, %v4913, 0
  %v4937 = vsel %vm4062, %v4914, 0
  %v4940 = vsel %vm4062, %v4915, 0
  %v4943 = vsel %vm4062, %v4916, 0
  %v4946 = vsel %vm4062, %v4917, 0
  %v4949 = vsel %vm4062, %v4918, 0
  %v4952 = vsel %vm4062, %v4919, 0
  %4954 = vmatprep.subr.mxu0 0.0
  %4955 = vmatpush1.msra.mxu0 %v4920
  %4956 = vmatprep.subr.mxu0 0.0
  %4957 = vmatpush1.msra.mxu0 %v4921
  %4958 = vmatprep.subr.mxu0 0.0
  %4959 = vmatpush1.msra.mxu0 %v4922
  %4960 = vmatprep.subr.mxu0 0.0
  %4961 = vmatpush1.msra.mxu0 %v4923
  %4962 = vmatprep.subr.mxu0 0.0
  %4963 = vmatpush1.msra.mxu0 0.0
  %4964 = vmatprep.subr.mxu0 0.0
  %4965 = vmatpush1.msra.mxu0 0.0
  %4966 = vmatprep.subr.mxu0 0.0
  %4967 = vmatpush1.msra.mxu0 0.0
  %4968 = vmatprep.subr.mxu0 0.0
  %4969 = vmatpush1.msra.mxu0 0.0
  %4970 = vmatprep.subr.mxu0 0.0
  %4971 = vmatpush1.msra.mxu0 0.0
  %4972 = vmatprep.subr.mxu0 0.0
  %4973 = vmatpush1.msra.mxu0 0.0
  %4974 = vmatprep.subr.mxu0 0.0
  %4975 = vmatpush1.msra.mxu0 0.0
  %4976 = vmatprep.subr.mxu0 0.0
  %4977 = vmatpush1.msra.mxu0 0.0
  %4978 = vmatprep.subr.mxu0 0.0
  %4979 = vmatpush1.msra.mxu0 0.0
  %4980 = vmatprep.subr.mxu0 0.0
  %4981 = vmatpush1.msra.mxu0 0.0
  %4982 = vmatprep.subr.mxu0 0.0
  %4983 = vmatpush1.msra.mxu0 0.0
  %4984 = vmatprep.subr.mxu0 0.0
  %4985 = vmatpush1.msra.mxu0 0.0
  %4986 = vmatprep.subr.mxu0 0.0
  %4987 = vmatpush1.msra.mxu0 0.0
  %4988 = vmatprep.subr.mxu0 0.0
  %4989 = vmatpush1.msra.mxu0 0.0
  %4990 = vmatprep.subr.mxu0 0.0
  %4991 = vmatpush1.msra.mxu0 0.0
  %4992 = vmatprep.subr.mxu0 0.0
  %4993 = vmatpush1.msra.mxu0 0.0
  %4994 = vmatprep.subr.mxu0 0.0
  %4995 = vmatpush1.msra.mxu0 0.0
  %4996 = vmatprep.subr.mxu0 0.0
  %4997 = vmatpush1.msra.mxu0 0.0
  %4998 = vmatprep.subr.mxu0 0.0
  %4999 = vmatpush1.msra.mxu0 0.0
  %5000 = vmatprep.subr.mxu0 0.0
  %5001 = vmatpush1.msra.mxu0 0.0
  %5002 = vmatprep.subr.mxu0 0.0
  %5003 = vmatpush1.msra.mxu0 0.0
  %5004 = vmatprep.subr.mxu0 0.0
  %5005 = vmatpush1.msra.mxu0 0.0
  %5006 = vmatprep.subr.mxu0 0.0
  %5007 = vmatpush1.msra.mxu0 0.0
  %5008 = vmatprep.subr.mxu0 0.0
  %5009 = vmatpush1.msra.mxu0 0.0
  %5010 = vmatprep.subr.mxu0 0.0
  %5011 = vmatpush1.msra.mxu0 0.0
  %5012 = vmatprep.subr.mxu0 0.0
  %5013 = vmatpush1.msra.mxu0 0.0
  %5014 = vmatprep.subr.mxu0 0.0
  %5015 = vmatpush1.msra.mxu0 0.0
  %5016 = vmatprep.subr.mxu0 0.0
  %5017 = vmatpush1.msra.mxu0 0.0
  %5018 = vmatprep.mubr.f32.mxu0 0.0
  %5019 = vmatmul.mubr.f32.gmra.mrb[0].mxu0 %v4925
  %v5020 = vpop.f32.mrb[0].mxu0
  %v5021 = vadd.f32 0.0, %v5020
  %v5022 = vpop.f32.mrb[0].mxu0
  %5023 = vmatprep.mubr.f32.mxu0 0.0
  %5024 = vmatmul.mubr.f32.gmra.mrb[0].mxu0 %v4928
  %v5025 = vpop.f32.mrb[0].mxu0
  %v5026 = vadd.f32 0.0, %v5025
  %v5027 = vpop.f32.mrb[0].mxu0
  %5028 = vmatprep.mubr.f32.mxu0 0.0
  %5029 = vmatmul.mubr.f32.gmra.mrb[0].mxu0 %v4931
  %v5030 = vpop.f32.mrb[0].mxu0
  %v5031 = vadd.f32 0.0, %v5030
  %v5032 = vpop.f32.mrb[0].mxu0
  %5033 = vmatprep.mubr.f32.mxu0 0.0
  %5034 = vmatmul.mubr.f32.gmra.mrb[0].mxu0 %v4934
  %v5035 = vpop.f32.mrb[0].mxu0
  %v5036 = vadd.f32 0.0, %v5035
  %v5037 = vpop.f32.mrb[0].mxu0
  %5038 = vmatprep.mubr.f32.mxu0 0.0
  %5039 = vmatmul.mubr.f32.gmra.mrb[0].mxu0 %v4937
  %v5040 = vpop.f32.mrb[0].mxu0
  %v5041 = vadd.f32 0.0, %v5040
  %v5042 = vpop.f32.mrb[0].mxu0
  %5043 = vmatprep.mubr.f32.mxu0 0.0
  %5044 = vmatmul.mubr.f32.gmra.mrb[0].mxu0 %v4940
  %v5045 = vpop.f32.mrb[0].mxu0
  %v5046 = vadd.f32 0.0, %v5045
  %v5047 = vpop.f32.mrb[0].mxu0
  %5048 = vmatprep.mubr.f32.mxu0 0.0
  %5049 = vmatmul.mubr.f32.gmra.mrb[0].mxu0 %v4943
  %v5050 = vpop.f32.mrb[0].mxu0
  %v5051 = vadd.f32 0.0, %v5050
  %v5052 = vpop.f32.mrb[0].mxu0
  %5053 = vmatprep.mubr.f32.mxu0 0.0
  %5054 = vmatmul.mubr.f32.gmra.mrb[0].mxu0 %v4946
  %v5055 = vpop.f32.mrb[0].mxu0
  %v5056 = vadd.f32 0.0, %v5055
  %v5057 = vpop.f32.mrb[0].mxu0
  %5058 = vmatprep.mubr.f32.mxu0 0.0
  %5059 = vmatmul.mubr.f32.gmra.mrb[0].mxu0 %v4949
  %v5060 = vpop.f32.mrb[0].mxu0
  %v5061 = vadd.f32 0.0, %v5060
  %v5062 = vpop.f32.mrb[0].mxu0
  %5063 = vmatprep.mubr.f32.mxu0 0.0
  %5064 = vmatmul.mubr.f32.gmra.mrb[0].mxu0 %v4952
  %v5065 = vpop.f32.mrb[0].mxu0
  %v5066 = vadd.f32 0.0, %v5065
  %v5067 = vpop.f32.mrb[0].mxu0
  %5068 = vdwg.mxu0
  %v5069 = vadd.f32 %v4900, %v5021
  %v5070 = vadd.f32 %v4901, %v5026
  %v5071 = vadd.f32 %v4902, %v5031
  %v5072 = vadd.f32 %v4903, %v5036
  %v5073 = vadd.f32 %v4904, %v5041
  %v5074 = vadd.f32 %v4905, %v5046
  %v5075 = vadd.f32 %v4906, %v5051
  %v5076 = vadd.f32 %v4907, %v5056
  %v5077 = vadd.f32 %v4908, %v5061
  %v5078 = vadd.f32 %v4909, %v5066
  %v5079 = vld [vmem:[#allocation7 + $0x8] sm:$0xff]
  %v5080 = vld [vmem:[#allocation7 + $0x10] sm:$0xff]
  %v5081 = vld [vmem:[#allocation7 + $0x18] sm:$0xff]
  %v5082 = vld [vmem:[#allocation7 + $0x20] sm:$0xff]
  %v5083 = vld [vmem:[#allocation7 + $0x28] sm:$0xff]
  %v5084 = vld [vmem:[#allocation7 + $0x30] sm:$0xff]
  %v5085 = vld [vmem:[#allocation7 + $0x38] sm:$0xff]
  %v5086 = vld [vmem:[#allocation7 + $0x40] sm:$0xff]
  %v5087 = vld [vmem:[#allocation7 + $0x48] sm:$0xff]
  %v5088 = vld [vmem:[#allocation7 + $0x50] sm:$0xff]
  %v5089 = vld [vmem:[%s5 + $0xa0] sm:$0xff]
  %v5090 = vld [vmem:[%s5 + $0xa8] sm:$0xff]
  %v5091 = vld [vmem:[%s5 + $0xb0] sm:$0xff]
  %v5092 = vld [vmem:[%s5 + $0xb8] sm:$0xff]
  %v5094 = vsel %vm4062, %v5079, 0
  %v5097 = vsel %vm4062, %v5080, 0
  %v5100 = vsel %vm4062, %v5081, 0
  %v5103 = vsel %vm4062, %v5082, 0
  %v5106 = vsel %vm4062, %v5083, 0
  %v5109 = vsel %vm4062, %v5084, 0
  %v5112 = vsel %vm4062, %v5085, 0
  %v5115 = vsel %vm4062, %v5086, 0
  %v5118 = vsel %vm4062, %v5087, 0
  %v5121 = vsel %vm4062, %v5088, 0
  %5123 = vmatprep.subr.mxu0 0.0
  %5124 = vmatpush1.msra.mxu0 %v5089
  %5125 = vmatprep.subr.mxu0 0.0
  %5126 = vmatpush1.msra.mxu0 %v5090
  %5127 = vmatprep.subr.mxu0 0.0
  %5128 = vmatpush1.msra.mxu0 %v5091
  %5129 = vmatprep.subr.mxu0 0.0
  %5130 = vmatpush1.msra.mxu0 %v5092
  %5131 = vmatprep.subr.mxu0 0.0
  %5132 = vmatpush1.msra.mxu0 0.0
  %5133 = vmatprep.subr.mxu0 0.0
  %5134 = vmatpush1.msra.mxu0 0.0
  %5135 = vmatprep.subr.mxu0 0.0
  %5136 = vmatpush1.msra.mxu0 0.0
  %5137 = vmatprep.subr.mxu0 0.0
  %5138 = vmatpush1.msra.mxu0 0.0
  %5139 = vmatprep.subr.mxu0 0.0
  %5140 = vmatpush1.msra.mxu0 0.0
  %5141 = vmatprep.subr.mxu0 0.0
  %5142 = vmatpush1.msra.mxu0 0.0
  %5143 = vmatprep.subr.mxu0 0.0
  %5144 = vmatpush1.msra.mxu0 0.0
  %5145 = vmatprep.subr.mxu0 0.0
  %5146 = vmatpush1.msra.mxu0 0.0
  %5147 = vmatprep.subr.mxu0 0.0
  %5148 = vmatpush1.msra.mxu0 0.0
  %5149 = vmatprep.subr.mxu0 0.0
  %5150 = vmatpush1.msra.mxu0 0.0
  %5151 = vmatprep.subr.mxu0 0.0
  %5152 = vmatpush1.msra.mxu0 0.0
  %5153 = vmatprep.subr.mxu0 0.0
  %5154 = vmatpush1.msra.mxu0 0.0
  %5155 = vmatprep.subr.mxu0 0.0
  %5156 = vmatpush1.msra.mxu0 0.0
  %5157 = vmatprep.subr.mxu0 0.0
  %5158 = vmatpush1.msra.mxu0 0.0
  %5159 = vmatprep.subr.mxu0 0.0
  %5160 = vmatpush1.msra.mxu0 0.0
  %5161 = vmatprep.subr.mxu0 0.0
  %5162 = vmatpush1.msra.mxu0 0.0
  %5163 = vmatprep.subr.mxu0 0.0
  %5164 = vmatpush1.msra.mxu0 0.0
  %5165 = vmatprep.subr.mxu0 0.0
  %5166 = vmatpush1.msra.mxu0 0.0
  %5167 = vmatprep.subr.mxu0 0.0
  %5168 = vmatpush1.msra.mxu0 0.0
  %5169 = vmatprep.subr.mxu0 0.0
  %5170 = vmatpush1.msra.mxu0 0.0
  %5171 = vmatprep.subr.mxu0 0.0
  %5172 = vmatpush1.msra.mxu0 0.0
  %5173 = vmatprep.subr.mxu0 0.0
  %5174 = vmatpush1.msra.mxu0 0.0
  %5175 = vmatprep.subr.mxu0 0.0
  %5176 = vmatpush1.msra.mxu0 0.0
  %5177 = vmatprep.subr.mxu0 0.0
  %5178 = vmatpush1.msra.mxu0 0.0
  %5179 = vmatprep.subr.mxu0 0.0
  %5180 = vmatpush1.msra.mxu0 0.0
  %5181 = vmatprep.subr.mxu0 0.0
  %5182 = vmatpush1.msra.mxu0 0.0
  %5183 = vmatprep.subr.mxu0 0.0
  %5184 = vmatpush1.msra.mxu0 0.0
  %5185 = vmatprep.subr.mxu0 0.0
  %5186 = vmatpush1.msra.mxu0 0.0
  %5187 = vmatprep.mubr.f32.mxu0 0.0
  %5188 = vmatmul.mubr.f32.gmra.mrb[0].mxu0 %v5094
  %v5189 = vpop.f32.mrb[0].mxu0
  %v5190 = vadd.f32 0.0, %v5189
  %v5191 = vpop.f32.mrb[0].mxu0
  %5192 = vmatprep.mubr.f32.mxu0 0.0
  %5193 = vmatmul.mubr.f32.gmra.mrb[0].mxu0 %v5097
  %v5194 = vpop.f32.mrb[0].mxu0
  %v5195 = vadd.f32 0.0, %v5194
  %v5196 = vpop.f32.mrb[0].mxu0
  %5197 = vmatprep.mubr.f32.mxu0 0.0
  %5198 = vmatmul.mubr.f32.gmra.mrb[0].mxu0 %v5100
  %v5199 = vpop.f32.mrb[0].mxu0
  %v5200 = vadd.f32 0.0, %v5199
  %v5201 = vpop.f32.mrb[0].mxu0
  %5202 = vmatprep.mubr.f32.mxu0 0.0
  %5203 = vmatmul.mubr.f32.gmra.mrb[0].mxu0 %v5103
  %v5204 = vpop.f32.mrb[0].mxu0
  %v5205 = vadd.f32 0.0, %v5204
  %v5206 = vpop.f32.mrb[0].mxu0
  %5207 = vmatprep.mubr.f32.mxu0 0.0
  %5208 = vmatmul.mubr.f32.gmra.mrb[0].mxu0 %v5106
  %v5209 = vpop.f32.mrb[0].mxu0
  %v5210 = vadd.f32 0.0, %v5209
  %v5211 = vpop.f32.mrb[0].mxu0
  %5212 = vmatprep.mubr.f32.mxu0 0.0
  %5213 = vmatmul.mubr.f32.gmra.mrb[0].mxu0 %v5109
  %v5214 = vpop.f32.mrb[0].mxu0
  %v5215 = vadd.f32 0.0, %v5214
  %v5216 = vpop.f32.mrb[0].mxu0
  %5217 = vmatprep.mubr.f32.mxu0 0.0
  %5218 = vmatmul.mubr.f32.gmra.mrb[0].mxu0 %v5112
  %v5219 = vpop.f32.mrb[0].mxu0
  %v5220 = vadd.f32 0.0, %v5219
  %v5221 = vpop.f32.mrb[0].mxu0
  %5222 = vmatprep.mubr.f32.mxu0 0.0
  %5223 = vmatmul.mubr.f32.gmra.mrb[0].mxu0 %v5115
  %v5224 = vpop.f32.mrb[0].mxu0
  %v5225 = vadd.f32 0.0, %v5224
  %v5226 = vpop.f32.mrb[0].mxu0
  %5227 = vmatprep.mubr.f32.mxu0 0.0
  %5228 = vmatmul.mubr.f32.gmra.mrb[0].mxu0 %v5118
  %v5229 = vpop.f32.mrb[0].mxu0
  %v5230 = vadd.f32 0.0, %v5229
  %v5231 = vpop.f32.mrb[0].mxu0
  %5232 = vmatprep.mubr.f32.mxu0 0.0
  %5233 = vmatmul.mubr.f32.gmra.mrb[0].mxu0 %v5121
  %v5234 = vpop.f32.mrb[0].mxu0
  %v5235 = vadd.f32 0.0, %v5234
  %v5236 = vpop.f32.mrb[0].mxu0
  %5237 = vdwg.mxu0
  %v5238 = vadd.f32 %v5069, %v5190
  %v5239 = vadd.f32 %v5070, %v5195
  %v5240 = vadd.f32 %v5071, %v5200
  %v5241 = vadd.f32 %v5072, %v5205
  %v5242 = vadd.f32 %v5073, %v5210
  %v5243 = vadd.f32 %v5074, %v5215
  %v5244 = vadd.f32 %v5075, %v5220
  %v5245 = vadd.f32 %v5076, %v5225
  %v5246 = vadd.f32 %v5077, %v5230
  %v5247 = vadd.f32 %v5078, %v5235
  %v5248 = vld [vmem:[#allocation7 + $0xc] sm:$0xff]
  %v5249 = vld [vmem:[#allocation7 + $0x14] sm:$0xff]
  %v5250 = vld [vmem:[#allocation7 + $0x1c] sm:$0xff]
  %v5251 = vld [vmem:[#allocation7 + $0x24] sm:$0xff]
  %v5252 = vld [vmem:[#allocation7 + $0x2c] sm:$0xff]
  %v5253 = vld [vmem:[#allocation7 + $0x34] sm:$0xff]
  %v5254 = vld [vmem:[#allocation7 + $0x3c] sm:$0xff]
  %v5255 = vld [vmem:[#allocation7 + $0x44] sm:$0xff]
  %v5256 = vld [vmem:[#allocation7 + $0x4c] sm:$0xff]
  %v5257 = vld [vmem:[#allocation7 + $0x54] sm:$0xff]
  %v5258 = vld [vmem:[%s5 + $0xc0] sm:$0xff]
  %v5259 = vld [vmem:[%s5 + $0xc8] sm:$0xff]
  %v5260 = vld [vmem:[%s5 + $0xd0] sm:$0xff]
  %v5261 = vld [vmem:[%s5 + $0xd8] sm:$0xff]
  %v5263 = vsel %vm4062, %v5248, 0
  %v5266 = vsel %vm4062, %v5249, 0
  %v5269 = vsel %vm4062, %v5250, 0
  %v5272 = vsel %vm4062, %v5251, 0
  %v5275 = vsel %vm4062, %v5252, 0
  %v5278 = vsel %vm4062, %v5253, 0
  %v5281 = vsel %vm4062, %v5254, 0
  %v5284 = vsel %vm4062, %v5255, 0
  %v5287 = vsel %vm4062, %v5256, 0
  %v5290 = vsel %vm4062, %v5257, 0
  %5292 = vmatprep.subr.mxu0 0.0
  %5293 = vmatpush1.msra.mxu0 %v5258
  %5294 = vmatprep.subr.mxu0 0.0
  %5295 = vmatpush1.msra.mxu0 %v5259
  %5296 = vmatprep.subr.mxu0 0.0
  %5297 = vmatpush1.msra.mxu0 %v5260
  %5298 = vmatprep.subr.mxu0 0.0
  %5299 = vmatpush1.msra.mxu0 %v5261
  %5300 = vmatprep.subr.mxu0 0.0
  %5301 = vmatpush1.msra.mxu0 0.0
  %5302 = vmatprep.subr.mxu0 0.0
  %5303 = vmatpush1.msra.mxu0 0.0
  %5304 = vmatprep.subr.mxu0 0.0
  %5305 = vmatpush1.msra.mxu0 0.0
  %5306 = vmatprep.subr.mxu0 0.0
  %5307 = vmatpush1.msra.mxu0 0.0
  %5308 = vmatprep.subr.mxu0 0.0
  %5309 = vmatpush1.msra.mxu0 0.0
  %5310 = vmatprep.subr.mxu0 0.0
  %5311 = vmatpush1.msra.mxu0 0.0
  %5312 = vmatprep.subr.mxu0 0.0
  %5313 = vmatpush1.msra.mxu0 0.0
  %5314 = vmatprep.subr.mxu0 0.0
  %5315 = vmatpush1.msra.mxu0 0.0
  %5316 = vmatprep.subr.mxu0 0.0
  %5317 = vmatpush1.msra.mxu0 0.0
  %5318 = vmatprep.subr.mxu0 0.0
  %5319 = vmatpush1.msra.mxu0 0.0
  %5320 = vmatprep.subr.mxu0 0.0
  %5321 = vmatpush1.msra.mxu0 0.0
  %5322 = vmatprep.subr.mxu0 0.0
  %5323 = vmatpush1.msra.mxu0 0.0
  %5324 = vmatprep.subr.mxu0 0.0
  %5325 = vmatpush1.msra.mxu0 0.0
  %5326 = vmatprep.subr.mxu0 0.0
  %5327 = vmatpush1.msra.mxu0 0.0
  %5328 = vmatprep.subr.mxu0 0.0
  %5329 = vmatpush1.msra.mxu0 0.0
  %5330 = vmatprep.subr.mxu0 0.0
  %5331 = vmatpush1.msra.mxu0 0.0
  %5332 = vmatprep.subr.mxu0 0.0
  %5333 = vmatpush1.msra.mxu0 0.0
  %5334 = vmatprep.subr.mxu0 0.0
  %5335 = vmatpush1.msra.mxu0 0.0
  %5336 = vmatprep.subr.mxu0 0.0
  %5337 = vmatpush1.msra.mxu0 0.0
  %5338 = vmatprep.subr.mxu0 0.0
  %5339 = vmatpush1.msra.mxu0 0.0
  %5340 = vmatprep.subr.mxu0 0.0
  %5341 = vmatpush1.msra.mxu0 0.0
  %5342 = vmatprep.subr.mxu0 0.0
  %5343 = vmatpush1.msra.mxu0 0.0
  %5344 = vmatprep.subr.mxu0 0.0
  %5345 = vmatpush1.msra.mxu0 0.0
  %5346 = vmatprep.subr.mxu0 0.0
  %5347 = vmatpush1.msra.mxu0 0.0
  %5348 = vmatprep.subr.mxu0 0.0
  %5349 = vmatpush1.msra.mxu0 0.0
  %5350 = vmatprep.subr.mxu0 0.0
  %5351 = vmatpush1.msra.mxu0 0.0
  %5352 = vmatprep.subr.mxu0 0.0
  %5353 = vmatpush1.msra.mxu0 0.0
  %5354 = vmatprep.subr.mxu0 0.0
  %5355 = vmatpush1.msra.mxu0 0.0
  %5356 = vmatprep.mubr.f32.mxu0 0.0
  %5357 = vmatmul.mubr.f32.gmra.mrb[0].mxu0 %v5263
  %v5358 = vpop.f32.mrb[0].mxu0
  %v5359 = vadd.f32 0.0, %v5358
  %v5360 = vpop.f32.mrb[0].mxu0
  %5361 = vmatprep.mubr.f32.mxu0 0.0
  %5362 = vmatmul.mubr.f32.gmra.mrb[0].mxu0 %v5266
  %v5363 = vpop.f32.mrb[0].mxu0
  %v5364 = vadd.f32 0.0, %v5363
  %v5365 = vpop.f32.mrb[0].mxu0
  %5366 = vmatprep.mubr.f32.mxu0 0.0
  %5367 = vmatmul.mubr.f32.gmra.mrb[0].mxu0 %v5269
  %v5368 = vpop.f32.mrb[0].mxu0
  %v5369 = vadd.f32 0.0, %v5368
  %v5370 = vpop.f32.mrb[0].mxu0
  %5371 = vmatprep.mubr.f32.mxu0 0.0
  %5372 = vmatmul.mubr.f32.gmra.mrb[0].mxu0 %v5272
  %v5373 = vpop.f32.mrb[0].mxu0
  %v5374 = vadd.f32 0.0, %v5373
  %v5375 = vpop.f32.mrb[0].mxu0
  %5376 = vmatprep.mubr.f32.mxu0 0.0
  %5377 = vmatmul.mubr.f32.gmra.mrb[0].mxu0 %v5275
  %v5378 = vpop.f32.mrb[0].mxu0
  %v5379 = vadd.f32 0.0, %v5378
  %v5380 = vpop.f32.mrb[0].mxu0
  %5381 = vmatprep.mubr.f32.mxu0 0.0
  %5382 = vmatmul.mubr.f32.gmra.mrb[0].mxu0 %v5278
  %v5383 = vpop.f32.mrb[0].mxu0
  %v5384 = vadd.f32 0.0, %v5383
  %v5385 = vpop.f32.mrb[0].mxu0
  %5386 = vmatprep.mubr.f32.mxu0 0.0
  %5387 = vmatmul.mubr.f32.gmra.mrb[0].mxu0 %v5281
  %v5388 = vpop.f32.mrb[0].mxu0
  %v5389 = vadd.f32 0.0, %v5388
  %v5390 = vpop.f32.mrb[0].mxu0
  %5391 = vmatprep.mubr.f32.mxu0 0.0
  %5392 = vmatmul.mubr.f32.gmra.mrb[0].mxu0 %v5284
  %v5393 = vpop.f32.mrb[0].mxu0
  %v5394 = vadd.f32 0.0, %v5393
  %v5395 = vpop.f32.mrb[0].mxu0
  %5396 = vmatprep.mubr.f32.mxu0 0.0
  %5397 = vmatmul.mubr.f32.gmra.mrb[0].mxu0 %v5287
  %v5398 = vpop.f32.mrb[0].mxu0
  %v5399 = vadd.f32 0.0, %v5398
  %v5400 = vpop.f32.mrb[0].mxu0
  %5401 = vmatprep.mubr.f32.mxu0 0.0
  %5402 = vmatmul.mubr.f32.gmra.mrb[0].mxu0 %v5290
  %v5403 = vpop.f32.mrb[0].mxu0
  %v5404 = vadd.f32 0.0, %v5403
  %v5405 = vpop.f32.mrb[0].mxu0
  %5406 = vdwg.mxu0
  %v5407 = vadd.f32 %v5238, %v5359
  %v5408 = vadd.f32 %v5239, %v5364
  %v5409 = vadd.f32 %v5240, %v5369
  %v5410 = vadd.f32 %v5241, %v5374
  %v5411 = vadd.f32 %v5242, %v5379
  %v5412 = vadd.f32 %v5243, %v5384
  %v5413 = vadd.f32 %v5244, %v5389
  %v5414 = vadd.f32 %v5245, %v5394
  %v5415 = vadd.f32 %v5246, %v5399
  %v5416 = vadd.f32 %v5247, %v5404
  %v5417 = vld [vmem:[#allocation7 + $0xd] sm:$0xff]
  %v5418 = vld [vmem:[#allocation7 + $0x15] sm:$0xff]
  %v5419 = vld [vmem:[#allocation7 + $0x1d] sm:$0xff]
  %v5420 = vld [vmem:[#allocation7 + $0x25] sm:$0xff]
  %v5421 = vld [vmem:[#allocation7 + $0x2d] sm:$0xff]
  %v5422 = vld [vmem:[#allocation7 + $0x35] sm:$0xff]
  %v5423 = vld [vmem:[#allocation7 + $0x3d] sm:$0xff]
  %v5424 = vld [vmem:[#allocation7 + $0x45] sm:$0xff]
  %v5425 = vld [vmem:[#allocation7 + $0x4d] sm:$0xff]
  %v5426 = vld [vmem:[#allocation7 + $0x55] sm:$0xff]
  %v5427 = vld [vmem:[%s5 + $0xe0] sm:$0xff]
  %v5428 = vld [vmem:[%s5 + $0xe8] sm:$0xff]
  %v5429 = vld [vmem:[%s5 + $0xf0] sm:$0xff]
  %v5430 = vld [vmem:[%s5 + $0xf8] sm:$0xff]
  %v5432 = vsel %vm4062, %v5417, 0
  %v5435 = vsel %vm4062, %v5418, 0
  %v5438 = vsel %vm4062, %v5419, 0
  %v5441 = vsel %vm4062, %v5420, 0
  %v5444 = vsel %vm4062, %v5421, 0
  %v5447 = vsel %vm4062, %v5422, 0
  %v5450 = vsel %vm4062, %v5423, 0
  %v5453 = vsel %vm4062, %v5424, 0
  %v5456 = vsel %vm4062, %v5425, 0
  %v5459 = vsel %vm4062, %v5426, 0
  %5461 = vmatprep.subr.mxu0 0.0
  %5462 = vmatpush1.msra.mxu0 %v5427
  %5463 = vmatprep.subr.mxu0 0.0
  %5464 = vmatpush1.msra.mxu0 %v5428
  %5465 = vmatprep.subr.mxu0 0.0
  %5466 = vmatpush1.msra.mxu0 %v5429
  %5467 = vmatprep.subr.mxu0 0.0
  %5468 = vmatpush1.msra.mxu0 %v5430
  %5469 = vmatprep.subr.mxu0 0.0
  %5470 = vmatpush1.msra.mxu0 0.0
  %5471 = vmatprep.subr.mxu0 0.0
  %5472 = vmatpush1.msra.mxu0 0.0
  %5473 = vmatprep.subr.mxu0 0.0
  %5474 = vmatpush1.msra.mxu0 0.0
  %5475 = vmatprep.subr.mxu0 0.0
  %5476 = vmatpush1.msra.mxu0 0.0
  %5477 = vmatprep.subr.mxu0 0.0
  %5478 = vmatpush1.msra.mxu0 0.0
  %5479 = vmatprep.subr.mxu0 0.0
  %5480 = vmatpush1.msra.mxu0 0.0
  %5481 = vmatprep.subr.mxu0 0.0
  %5482 = vmatpush1.msra.mxu0 0.0
  %5483 = vmatprep.subr.mxu0 0.0
  %5484 = vmatpush1.msra.mxu0 0.0
  %5485 = vmatprep.subr.mxu0 0.0
  %5486 = vmatpush1.msra.mxu0 0.0
  %5487 = vmatprep.subr.mxu0 0.0
  %5488 = vmatpush1.msra.mxu0 0.0
  %5489 = vmatprep.subr.mxu0 0.0
  %5490 = vmatpush1.msra.mxu0 0.0
  %5491 = vmatprep.subr.mxu0 0.0
  %5492 = vmatpush1.msra.mxu0 0.0
  %5493 = vmatprep.subr.mxu0 0.0
  %5494 = vmatpush1.msra.mxu0 0.0
  %5495 = vmatprep.subr.mxu0 0.0
  %5496 = vmatpush1.msra.mxu0 0.0
  %5497 = vmatprep.subr.mxu0 0.0
  %5498 = vmatpush1.msra.mxu0 0.0
  %5499 = vmatprep.subr.mxu0 0.0
  %5500 = vmatpush1.msra.mxu0 0.0
  %5501 = vmatprep.subr.mxu0 0.0
  %5502 = vmatpush1.msra.mxu0 0.0
  %5503 = vmatprep.subr.mxu0 0.0
  %5504 = vmatpush1.msra.mxu0 0.0
  %5505 = vmatprep.subr.mxu0 0.0
  %5506 = vmatpush1.msra.mxu0 0.0
  %5507 = vmatprep.subr.mxu0 0.0
  %5508 = vmatpush1.msra.mxu0 0.0
  %5509 = vmatprep.subr.mxu0 0.0
  %5510 = vmatpush1.msra.mxu0 0.0
  %5511 = vmatprep.subr.mxu0 0.0
  %5512 = vmatpush1.msra.mxu0 0.0
  %5513 = vmatprep.subr.mxu0 0.0
  %5514 = vmatpush1.msra.mxu0 0.0
  %5515 = vmatprep.subr.mxu0 0.0
  %5516 = vmatpush1.msra.mxu0 0.0
  %5517 = vmatprep.subr.mxu0 0.0
  %5518 = vmatpush1.msra.mxu0 0.0
  %5519 = vmatprep.subr.mxu0 0.0
  %5520 = vmatpush1.msra.mxu0 0.0
  %5521 = vmatprep.subr.mxu0 0.0
  %5522 = vmatpush1.msra.mxu0 0.0
  %5523 = vmatprep.subr.mxu0 0.0
  %5524 = vmatpush1.msra.mxu0 0.0
  %5525 = vmatprep.mubr.f32.mxu0 0.0
  %5526 = vmatmul.mubr.f32.gmra.mrb[0].mxu0 %v5432
  %v5527 = vpop.f32.mrb[0].mxu0
  %v5528 = vadd.f32 0.0, %v5527
  %v5529 = vpop.f32.mrb[0].mxu0
  %5530 = vmatprep.mubr.f32.mxu0 0.0
  %5531 = vmatmul.mubr.f32.gmra.mrb[0].mxu0 %v5435
  %v5532 = vpop.f32.mrb[0].mxu0
  %v5533 = vadd.f32 0.0, %v5532
  %v5534 = vpop.f32.mrb[0].mxu0
  %5535 = vmatprep.mubr.f32.mxu0 0.0
  %5536 = vmatmul.mubr.f32.gmra.mrb[0].mxu0 %v5438
  %v5537 = vpop.f32.mrb[0].mxu0
  %v5538 = vadd.f32 0.0, %v5537
  %v5539 = vpop.f32.mrb[0].mxu0
  %5540 = vmatprep.mubr.f32.mxu0 0.0
  %5541 = vmatmul.mubr.f32.gmra.mrb[0].mxu0 %v5441
  %v5542 = vpop.f32.mrb[0].mxu0
  %v5543 = vadd.f32 0.0, %v5542
  %v5544 = vpop.f32.mrb[0].mxu0
  %5545 = vmatprep.mubr.f32.mxu0 0.0
  %5546 = vmatmul.mubr.f32.gmra.mrb[0].mxu0 %v5444
  %v5547 = vpop.f32.mrb[0].mxu0
  %v5548 = vadd.f32 0.0, %v5547
  %v5549 = vpop.f32.mrb[0].mxu0
  %5550 = vmatprep.mubr.f32.mxu0 0.0
  %5551 = vmatmul.mubr.f32.gmra.mrb[0].mxu0 %v5447
  %v5552 = vpop.f32.mrb[0].mxu0
  %v5553 = vadd.f32 0.0, %v5552
  %v5554 = vpop.f32.mrb[0].mxu0
  %5555 = vmatprep.mubr.f32.mxu0 0.0
  %5556 = vmatmul.mubr.f32.gmra.mrb[0].mxu0 %v5450
  %v5557 = vpop.f32.mrb[0].mxu0
  %v5558 = vadd.f32 0.0, %v5557
  %v5559 = vpop.f32.mrb[0].mxu0
  %5560 = vmatprep.mubr.f32.mxu0 0.0
  %5561 = vmatmul.mubr.f32.gmra.mrb[0].mxu0 %v5453
  %v5562 = vpop.f32.mrb[0].mxu0
  %v5563 = vadd.f32 0.0, %v5562
  %v5564 = vpop.f32.mrb[0].mxu0
  %5565 = vmatprep.mubr.f32.mxu0 0.0
  %5566 = vmatmul.mubr.f32.gmra.mrb[0].mxu0 %v5456
  %v5567 = vpop.f32.mrb[0].mxu0
  %v5568 = vadd.f32 0.0, %v5567
  %v5569 = vpop.f32.mrb[0].mxu0
  %5570 = vmatprep.mubr.f32.mxu0 0.0
  %5571 = vmatmul.mubr.f32.gmra.mrb[0].mxu0 %v5459
  %v5572 = vpop.f32.mrb[0].mxu0
  %v5573 = vadd.f32 0.0, %v5572
  %v5574 = vpop.f32.mrb[0].mxu0
  %5575 = vdwg.mxu0
  %v5576 = vadd.f32 %v5407, %v5528
  %v5577 = vadd.f32 %v5408, %v5533
  %v5578 = vadd.f32 %v5409, %v5538
  %v5579 = vadd.f32 %v5410, %v5543
  %v5580 = vadd.f32 %v5411, %v5548
  %v5581 = vadd.f32 %v5412, %v5553
  %v5582 = vadd.f32 %v5413, %v5558
  %v5583 = vadd.f32 %v5414, %v5563
  %v5584 = vadd.f32 %v5415, %v5568
  %v5585 = vadd.f32 %v5416, %v5573
  %v5586 = vld [vmem:[#allocation7 + $0xe] sm:$0xff]
  %v5587 = vld [vmem:[#allocation7 + $0x16] sm:$0xff]
  %v5588 = vld [vmem:[#allocation7 + $0x1e] sm:$0xff]
  %v5589 = vld [vmem:[#allocation7 + $0x26] sm:$0xff]
  %v5590 = vld [vmem:[#allocation7 + $0x2e] sm:$0xff]
  %v5591 = vld [vmem:[#allocation7 + $0x36] sm:$0xff]
  %v5592 = vld [vmem:[#allocation7 + $0x3e] sm:$0xff]
  %v5593 = vld [vmem:[#allocation7 + $0x46] sm:$0xff]
  %v5594 = vld [vmem:[#allocation7 + $0x4e] sm:$0xff]
  %v5595 = vld [vmem:[#allocation7 + $0x56] sm:$0xff]
  %v5596 = vld [vmem:[%s5 + $0x100] sm:$0xff]
  %v5597 = vld [vmem:[%s5 + $0x108] sm:$0xff]
  %v5598 = vld [vmem:[%s5 + $0x110] sm:$0xff]
  %v5599 = vld [vmem:[%s5 + $0x118] sm:$0xff]
  %v5601 = vsel %vm4062, %v5586, 0
  %v5604 = vsel %vm4062, %v5587, 0
  %v5607 = vsel %vm4062, %v5588, 0
  %v5610 = vsel %vm4062, %v5589, 0
  %v5613 = vsel %vm4062, %v5590, 0
  %v5616 = vsel %vm4062, %v5591, 0
  %v5619 = vsel %vm4062, %v5592, 0
  %v5622 = vsel %vm4062, %v5593, 0
  %v5625 = vsel %vm4062, %v5594, 0
  %v5628 = vsel %vm4062, %v5595, 0
  %5630 = vmatprep.subr.mxu0 0.0
  %5631 = vmatpush1.msra.mxu0 %v5596
  %5632 = vmatprep.subr.mxu0 0.0
  %5633 = vmatpush1.msra.mxu0 %v5597
  %5634 = vmatprep.subr.mxu0 0.0
  %5635 = vmatpush1.msra.mxu0 %v5598
  %5636 = vmatprep.subr.mxu0 0.0
  %5637 = vmatpush1.msra.mxu0 %v5599
  %5638 = vmatprep.subr.mxu0 0.0
  %5639 = vmatpush1.msra.mxu0 0.0
  %5640 = vmatprep.subr.mxu0 0.0
  %5641 = vmatpush1.msra.mxu0 0.0
  %5642 = vmatprep.subr.mxu0 0.0
  %5643 = vmatpush1.msra.mxu0 0.0
  %5644 = vmatprep.subr.mxu0 0.0
  %5645 = vmatpush1.msra.mxu0 0.0
  %5646 = vmatprep.subr.mxu0 0.0
  %5647 = vmatpush1.msra.mxu0 0.0
  %5648 = vmatprep.subr.mxu0 0.0
  %5649 = vmatpush1.msra.mxu0 0.0
  %5650 = vmatprep.subr.mxu0 0.0
  %5651 = vmatpush1.msra.mxu0 0.0
  %5652 = vmatprep.subr.mxu0 0.0
  %5653 = vmatpush1.msra.mxu0 0.0
  %5654 = vmatprep.subr.mxu0 0.0
  %5655 = vmatpush1.msra.mxu0 0.0
  %5656 = vmatprep.subr.mxu0 0.0
  %5657 = vmatpush1.msra.mxu0 0.0
  %5658 = vmatprep.subr.mxu0 0.0
  %5659 = vmatpush1.msra.mxu0 0.0
  %5660 = vmatprep.subr.mxu0 0.0
  %5661 = vmatpush1.msra.mxu0 0.0
  %5662 = vmatprep.subr.mxu0 0.0
  %5663 = vmatpush1.msra.mxu0 0.0
  %5664 = vmatprep.subr.mxu0 0.0
  %5665 = vmatpush1.msra.mxu0 0.0
  %5666 = vmatprep.subr.mxu0 0.0
  %5667 = vmatpush1.msra.mxu0 0.0
  %5668 = vmatprep.subr.mxu0 0.0
  %5669 = vmatpush1.msra.mxu0 0.0
  %5670 = vmatprep.subr.mxu0 0.0
  %5671 = vmatpush1.msra.mxu0 0.0
  %5672 = vmatprep.subr.mxu0 0.0
  %5673 = vmatpush1.msra.mxu0 0.0
  %5674 = vmatprep.subr.mxu0 0.0
  %5675 = vmatpush1.msra.mxu0 0.0
  %5676 = vmatprep.subr.mxu0 0.0
  %5677 = vmatpush1.msra.mxu0 0.0
  %5678 = vmatprep.subr.mxu0 0.0
  %5679 = vmatpush1.msra.mxu0 0.0
  %5680 = vmatprep.subr.mxu0 0.0
  %5681 = vmatpush1.msra.mxu0 0.0
  %5682 = vmatprep.subr.mxu0 0.0
  %5683 = vmatpush1.msra.mxu0 0.0
  %5684 = vmatprep.subr.mxu0 0.0
  %5685 = vmatpush1.msra.mxu0 0.0
  %5686 = vmatprep.subr.mxu0 0.0
  %5687 = vmatpush1.msra.mxu0 0.0
  %5688 = vmatprep.subr.mxu0 0.0
  %5689 = vmatpush1.msra.mxu0 0.0
  %5690 = vmatprep.subr.mxu0 0.0
  %5691 = vmatpush1.msra.mxu0 0.0
  %5692 = vmatprep.subr.mxu0 0.0
  %5693 = vmatpush1.msra.mxu0 0.0
  %5694 = vmatprep.mubr.f32.mxu0 0.0
  %5695 = vmatmul.mubr.f32.gmra.mrb[0].mxu0 %v5601
  %v5696 = vpop.f32.mrb[0].mxu0
  %v5697 = vadd.f32 0.0, %v5696
  %v5698 = vpop.f32.mrb[0].mxu0
  %5699 = vmatprep.mubr.f32.mxu0 0.0
  %5700 = vmatmul.mubr.f32.gmra.mrb[0].mxu0 %v5604
  %v5701 = vpop.f32.mrb[0].mxu0
  %v5702 = vadd.f32 0.0, %v5701
  %v5703 = vpop.f32.mrb[0].mxu0
  %5704 = vmatprep.mubr.f32.mxu0 0.0
  %5705 = vmatmul.mubr.f32.gmra.mrb[0].mxu0 %v5607
  %v5706 = vpop.f32.mrb[0].mxu0
  %v5707 = vadd.f32 0.0, %v5706
  %v5708 = vpop.f32.mrb[0].mxu0
  %5709 = vmatprep.mubr.f32.mxu0 0.0
  %5710 = vmatmul.mubr.f32.gmra.mrb[0].mxu0 %v5610
  %v5711 = vpop.f32.mrb[0].mxu0
  %v5712 = vadd.f32 0.0, %v5711
  %v5713 = vpop.f32.mrb[0].mxu0
  %5714 = vmatprep.mubr.f32.mxu0 0.0
  %5715 = vmatmul.mubr.f32.gmra.mrb[0].mxu0 %v5613
  %v5716 = vpop.f32.mrb[0].mxu0
  %v5717 = vadd.f32 0.0, %v5716
  %v5718 = vpop.f32.mrb[0].mxu0
  %5719 = vmatprep.mubr.f32.mxu0 0.0
  %5720 = vmatmul.mubr.f32.gmra.mrb[0].mxu0 %v5616
  %v5721 = vpop.f32.mrb[0].mxu0
  %v5722 = vadd.f32 0.0, %v5721
  %v5723 = vpop.f32.mrb[0].mxu0
  %5724 = vmatprep.mubr.f32.mxu0 0.0
  %5725 = vmatmul.mubr.f32.gmra.mrb[0].mxu0 %v5619
  %v5726 = vpop.f32.mrb[0].mxu0
  %v5727 = vadd.f32 0.0, %v5726
  %v5728 = vpop.f32.mrb[0].mxu0
  %5729 = vmatprep.mubr.f32.mxu0 0.0
  %5730 = vmatmul.mubr.f32.gmra.mrb[0].mxu0 %v5622
  %v5731 = vpop.f32.mrb[0].mxu0
  %v5732 = vadd.f32 0.0, %v5731
  %v5733 = vpop.f32.mrb[0].mxu0
  %5734 = vmatprep.mubr.f32.mxu0 0.0
  %5735 = vmatmul.mubr.f32.gmra.mrb[0].mxu0 %v5625
  %v5736 = vpop.f32.mrb[0].mxu0
  %v5737 = vadd.f32 0.0, %v5736
  %v5738 = vpop.f32.mrb[0].mxu0
  %5739 = vmatprep.mubr.f32.mxu0 0.0
  %5740 = vmatmul.mubr.f32.gmra.mrb[0].mxu0 %v5628
  %v5741 = vpop.f32.mrb[0].mxu0
  %v5742 = vadd.f32 0.0, %v5741
  %v5743 = vpop.f32.mrb[0].mxu0
  %5744 = vdwg.mxu0
  %v5745 = vadd.f32 %v5576, %v5697
  %v5746 = vadd.f32 %v5577, %v5702
  %v5747 = vadd.f32 %v5578, %v5707
  %v5748 = vadd.f32 %v5579, %v5712
  %v5749 = vadd.f32 %v5580, %v5717
  %v5750 = vadd.f32 %v5581, %v5722
  %v5751 = vadd.f32 %v5582, %v5727
  %v5752 = vadd.f32 %v5583, %v5732
  %v5753 = vadd.f32 %v5584, %v5737
  %v5754 = vadd.f32 %v5585, %v5742
  %v5755 = vld [vmem:[%s6] sm:$0x1]
  %v5757 = vlaneseq
  %v5758 = vshrl.u32 %v5757, 7
  %v5759 = vsub.s32 0, %v5758
  %v5760 = vrot.slane %v5755, %v5759
  %v5762 = vadd.f32 %v5745, %v5760
  %v5763 = vadd.f32 %v5746, %v5760
  %v5764 = vadd.f32 %v5747, %v5760
  %v5765 = vadd.f32 %v5748, %v5760
  %v5766 = vadd.f32 %v5749, %v5760
  %v5767 = vadd.f32 %v5750, %v5760
  %v5768 = vadd.f32 %v5751, %v5760
  %v5769 = vadd.f32 %v5752, %v5760
  %v5770 = vadd.f32 %v5753, %v5760
  %v5771 = vadd.f32 %v5754, %v5760
  %v5772 = vmax.f32 %v5762, 0.0
  %v5773 = vmax.f32 %v5763, 0.0
  %v5774 = vmax.f32 %v5764, 0.0
  %v5775 = vmax.f32 %v5765, 0.0
  %v5776 = vmax.f32 %v5766, 0.0
  %v5777 = vmax.f32 %v5767, 0.0
  %v5778 = vmax.f32 %v5768, 0.0
  %v5779 = vmax.f32 %v5769, 0.0
  %v5780 = vmax.f32 %v5770, 0.0
  %v5781 = vmax.f32 %v5771, 0.0
  %5782 = vst.msk [vmem:[#allocation8] sm:$0xff] %vm4062, %v5772
  %5783 = vst.msk [vmem:[#allocation8 + $0x8] sm:$0xff] %vm4062, %v5773
  %5784 = vst.msk [vmem:[#allocation8 + $0x10] sm:$0xff] %vm4062, %v5774
  %5785 = vst.msk [vmem:[#allocation8 + $0x18] sm:$0xff] %vm4062, %v5775
  %5786 = vst.msk [vmem:[#allocation8 + $0x20] sm:$0xff] %vm4062, %v5776
  %5787 = vst.msk [vmem:[#allocation8 + $0x28] sm:$0xff] %vm4062, %v5777
  %5788 = vst.msk [vmem:[#allocation8 + $0x30] sm:$0xff] %vm4062, %v5778
  %5789 = vst.msk [vmem:[#allocation8 + $0x38] sm:$0xff] %vm4062, %v5779
  %5790 = vst.msk [vmem:[#allocation8 + $0x40] sm:$0xff] %vm4062, %v5780
  %5791 = vst.msk [vmem:[#allocation8 + $0x48] sm:$0xff] %vm4062, %v5781
  %v5792 = vld [vmem:[#allocation8] ss:$40 sm:$0x3]
  %s5793 = scalar_lea.vmem [#allocation8], 1
  %v5794 = vld [vmem:[%s5793] ss:$40 sm:$0x3]
  %s5795 = scalar_lea.vmem [#allocation8], 2
  %v5796 = vld [vmem:[%s5795] ss:$40 sm:$0x3]
  %s5797 = scalar_lea.vmem [#allocation8], 3
  %v5798 = vld [vmem:[%s5797] ss:$40 sm:$0x3]
  %s5799 = scalar_lea.vmem [#allocation8], 6
  %v5800 = vld [vmem:[%s5799] ss:$40 sm:$0x3]
  %s5801 = scalar_lea.vmem [#allocation8], 7
  %v5802 = vld [vmem:[%s5801] ss:$40 sm:$0x3]
  %s5803 = scalar_lea.vmem [#allocation8], 8
  %v5804 = vld [vmem:[%s5803] ss:$40 sm:$0x3]
  %s5805 = scalar_lea.vmem [#allocation8], 9
  %v5806 = vld [vmem:[%s5805] ss:$40 sm:$0x3]
  %s5807 = scalar_lea.vmem [#allocation8], 12
  %v5808 = vld [vmem:[%s5807] ss:$40 sm:$0x3]
  %s5809 = scalar_lea.vmem [#allocation8], 13
  %v5810 = vld [vmem:[%s5809] ss:$40 sm:$0x3]
  %s5811 = scalar_lea.vmem [#allocation8], 14
  %v5812 = vld [vmem:[%s5811] ss:$40 sm:$0x3]
  %s5813 = scalar_lea.vmem [#allocation8], 15
  %v5814 = vld [vmem:[%s5813] ss:$40 sm:$0x3]
  %s5815 = scalar_lea.vmem [#allocation8], 18
  %v5816 = vld [vmem:[%s5815] ss:$40 sm:$0x3]
  %s5817 = scalar_lea.vmem [#allocation8], 19
  %v5818 = vld [vmem:[%s5817] ss:$40 sm:$0x3]
  %s5819 = scalar_lea.vmem [#allocation8], 20
  %v5820 = vld [vmem:[%s5819] ss:$40 sm:$0x3]
  %s5821 = scalar_lea.vmem [#allocation8], 21
  %v5822 = vld [vmem:[%s5821] ss:$40 sm:$0x3]
  %v5823 = vmax.f32 %v5792, %v5794
  %v5824 = vmax.f32 %v5800, %v5802
  %v5825 = vmax.f32 %v5823, %v5824
  %v5826 = vmax.f32 %v5796, %v5798
  %v5827 = vmax.f32 %v5804, %v5806
  %v5828 = vmax.f32 %v5826, %v5827
  %v5829 = vmax.f32 %v5808, %v5810
  %v5830 = vmax.f32 %v5816, %v5818
  %v5831 = vmax.f32 %v5829, %v5830
  %v5832 = vmax.f32 %v5812, %v5814
  %v5833 = vmax.f32 %v5820, %v5822
  %v5834 = vmax.f32 %v5832, %v5833
  %v5835 = vmax.f32 %v5825, %v5828
  %v5836 = vmax.f32 %v5831, %v5834
  %v5837 = vmax.f32 %v5835, %v5836
  %5839 = vrot.lane.b32.xlu0 %v5794, 32
  %v5840 = vpop.permute.xlu0 %5839
  %5843 = vrot.lane.b32.xlu0 %v5796, 64
  %v5844 = vpop.permute.xlu0 %5843
  %5847 = vrot.lane.b32.xlu0 %v5798, 96
  %v5848 = vpop.permute.xlu0 %5847
  %5851 = vrot.lane.b32.xlu0 %v5802, 32
  %v5852 = vpop.permute.xlu0 %5851
  %5855 = vrot.lane.b32.xlu0 %v5804, 64
  %v5856 = vpop.permute.xlu0 %5855
  %5859 = vrot.lane.b32.xlu0 %v5806, 96
  %v5860 = vpop.permute.xlu0 %5859
  %5863 = vrot.lane.b32.xlu0 %v5810, 32
  %v5864 = vpop.permute.xlu0 %5863
  %5867 = vrot.lane.b32.xlu0 %v5812, 64
  %v5868 = vpop.permute.xlu0 %5867
  %5871 = vrot.lane.b32.xlu0 %v5814, 96
  %v5872 = vpop.permute.xlu0 %5871
  %5875 = vrot.lane.b32.xlu0 %v5818, 32
  %v5876 = vpop.permute.xlu0 %5875
  %5879 = vrot.lane.b32.xlu0 %v5820, 64
  %v5880 = vpop.permute.xlu0 %5879
  %5883 = vrot.lane.b32.xlu0 %v5822, 96
  %v5884 = vpop.permute.xlu0 %5883
  %v5886 = vsel %vm4062, %v5792, %v5840
  %vm5887 = vcmask 523264
  %v5888 = vsel %vm5887, %v5886, %v5844
  %vm5889 = vcmask 785408
  %v5890 = vsel %vm5889, %v5888, %v5848
  %v5891 = vsel %vm4062, %v5800, %v5852
  %v5892 = vsel %vm5887, %v5891, %v5856
  %v5893 = vsel %vm5889, %v5892, %v5860
  %v5894 = vsel %vm4062, %v5808, %v5864
  %v5895 = vsel %vm5887, %v5894, %v5868
  %v5896 = vsel %vm5889, %v5895, %v5872
  %v5897 = vsel %vm4062, %v5816, %v5876
  %v5898 = vsel %vm5887, %v5897, %v5880
  %v5899 = vsel %vm5889, %v5898, %v5884
  %5901 = vrot.lane.b32.xlu0 %v5828, 32
  %v5902 = vpop.permute.xlu0 %5901
  %5905 = vrot.lane.b32.xlu0 %v5831, 64
  %v5906 = vpop.permute.xlu0 %5905
  %5909 = vrot.lane.b32.xlu0 %v5834, 96
  %v5910 = vpop.permute.xlu0 %5909
  %v5912 = vsel %vm4062, %v5825, %v5902
  %v5913 = vsel %vm5887, %v5912, %v5906
  %v5914 = vsel %vm5889, %v5913, %v5910
  %v5915 = vld [vmem:[%s7] sm:$0xff]
  %v5916 = vld [vmem:[%s7 + $0x8] sm:$0xff]
  %v5917 = vld [vmem:[%s7 + $0x10] sm:$0xff]
  %v5918 = vld [vmem:[%s7 + $0x18] sm:$0xff]
  %v5919 = vld [vmem:[%s7 + $0x20] sm:$0xff]
  %v5920 = vld [vmem:[%s7 + $0x28] sm:$0xff]
  %v5921 = vld [vmem:[%s7 + $0x30] sm:$0xff]
  %v5922 = vld [vmem:[%s7 + $0x38] sm:$0xff]
  %v5923 = vld [vmem:[%s7 + $0x40] sm:$0xff]
  %v5924 = vld [vmem:[%s7 + $0x48] sm:$0xff]
  %v5925 = vld [vmem:[%s7 + $0x50] sm:$0xff]
  %v5926 = vld [vmem:[%s7 + $0x58] sm:$0xff]
  %v5927 = vld [vmem:[%s7 + $0x60] sm:$0xff]
  %v5928 = vld [vmem:[%s7 + $0x68] sm:$0xff]
  %v5929 = vld [vmem:[%s7 + $0x70] sm:$0xff]
  %v5930 = vld [vmem:[%s7 + $0x78] sm:$0xff]
  %v5931 = vld [vmem:[%s7 + $0x80] sm:$0xff]
  %v5932 = vld [vmem:[%s7 + $0x88] sm:$0xff]
  %v5933 = vld [vmem:[%s7 + $0x90] sm:$0xff]
  %v5934 = vld [vmem:[%s7 + $0x98] sm:$0xff]
  %v5935 = vld [vmem:[%s7 + $0xa0] sm:$0xff]
  %v5936 = vld [vmem:[%s7 + $0xa8] sm:$0xff]
  %v5937 = vld [vmem:[%s7 + $0xb0] sm:$0xff]
  %v5938 = vld [vmem:[%s7 + $0xb8] sm:$0xff]
  %v5939 = vld [vmem:[%s7 + $0xc0] sm:$0xff]
  %v5940 = vld [vmem:[%s7 + $0xc8] sm:$0xff]
  %v5941 = vld [vmem:[%s7 + $0xd0] sm:$0xff]
  %v5942 = vld [vmem:[%s7 + $0xd8] sm:$0xff]
  %v5943 = vld [vmem:[%s7 + $0xe0] sm:$0xff]
  %v5944 = vld [vmem:[%s7 + $0xe8] sm:$0xff]
  %v5945 = vld [vmem:[%s7 + $0xf0] sm:$0xff]
  %v5946 = vld [vmem:[%s7 + $0xf8] sm:$0xff]
  %v5947 = vld [vmem:[%s7 + $0x100] sm:$0xff]
  %v5948 = vld [vmem:[%s7 + $0x108] sm:$0xff]
  %v5949 = vld [vmem:[%s7 + $0x110] sm:$0xff]
  %v5950 = vld [vmem:[%s7 + $0x118] sm:$0xff]
  %v5951 = vld [vmem:[%s7 + $0x120] sm:$0xff]
  %v5952 = vld [vmem:[%s7 + $0x128] sm:$0xff]
  %v5953 = vld [vmem:[%s7 + $0x130] sm:$0xff]
  %v5954 = vld [vmem:[%s7 + $0x138] sm:$0xff]
  %v5955 = vld [vmem:[%s7 + $0x140] sm:$0xff]
  %v5956 = vld [vmem:[%s7 + $0x148] sm:$0xff]
  %v5957 = vld [vmem:[%s7 + $0x150] sm:$0xff]
  %v5958 = vld [vmem:[%s7 + $0x158] sm:$0xff]
  %v5959 = vld [vmem:[%s7 + $0x160] sm:$0xff]
  %v5960 = vld [vmem:[%s7 + $0x168] sm:$0xff]
  %v5961 = vld [vmem:[%s7 + $0x170] sm:$0xff]
  %v5962 = vld [vmem:[%s7 + $0x178] sm:$0xff]
  %v5963 = vld [vmem:[%s7 + $0x180] sm:$0xff]
  %v5964 = vld [vmem:[%s7 + $0x188] sm:$0xff]
  %v5965 = vld [vmem:[%s7 + $0x190] sm:$0xff]
  %v5966 = vld [vmem:[%s7 + $0x198] sm:$0xff]
  %v5967 = vld [vmem:[%s7 + $0x1a0] sm:$0xff]
  %v5968 = vld [vmem:[%s7 + $0x1a8] sm:$0xff]
  %v5969 = vld [vmem:[%s7 + $0x1b0] sm:$0xff]
  %v5970 = vld [vmem:[%s7 + $0x1b8] sm:$0xff]
  %v5971 = vld [vmem:[%s7 + $0x1c0] sm:$0xff]
  %v5972 = vld [vmem:[%s7 + $0x1c8] sm:$0xff]
  %v5973 = vld [vmem:[%s7 + $0x1d0] sm:$0xff]
  %v5974 = vld [vmem:[%s7 + $0x1d8] sm:$0xff]
  %v5975 = vld [vmem:[%s7 + $0x1e0] sm:$0xff]
  %v5976 = vld [vmem:[%s7 + $0x1e8] sm:$0xff]
  %v5977 = vld [vmem:[%s7 + $0x1f0] sm:$0xff]
  %v5978 = vld [vmem:[%s7 + $0x1f8] sm:$0xff]
  %v5979 = vld [vmem:[%s7 + $0x200] sm:$0xff]
  %v5980 = vld [vmem:[%s7 + $0x208] sm:$0xff]
  %v5981 = vld [vmem:[%s7 + $0x210] sm:$0xff]
  %v5982 = vld [vmem:[%s7 + $0x218] sm:$0xff]
  %v5983 = vld [vmem:[%s7 + $0x220] sm:$0xff]
  %v5984 = vld [vmem:[%s7 + $0x228] sm:$0xff]
  %v5985 = vld [vmem:[%s7 + $0x230] sm:$0xff]
  %v5986 = vld [vmem:[%s7 + $0x238] sm:$0xff]
  %v5987 = vld [vmem:[%s7 + $0x240] sm:$0xff]
  %v5988 = vld [vmem:[%s7 + $0x248] sm:$0xff]
  %v5989 = vld [vmem:[%s7 + $0x250] sm:$0xff]
  %v5990 = vld [vmem:[%s7 + $0x258] sm:$0xff]
  %v5991 = vld [vmem:[%s7 + $0x260] sm:$0xff]
  %v5992 = vld [vmem:[%s7 + $0x268] sm:$0xff]
  %v5993 = vld [vmem:[%s7 + $0x270] sm:$0xff]
  %v5994 = vld [vmem:[%s7 + $0x278] sm:$0xff]
  %v5995 = vld [vmem:[%s7 + $0x280] sm:$0xff]
  %v5996 = vld [vmem:[%s7 + $0x288] sm:$0xff]
  %v5997 = vld [vmem:[%s7 + $0x290] sm:$0xff]
  %v5998 = vld [vmem:[%s7 + $0x298] sm:$0xff]
  %v5999 = vld [vmem:[%s8] sm:$0x1]
  %v6001 = vlaneseq
  %v6002 = vshrl.u32 %v6001, 7
  %v6003 = vsub.s32 0, %v6002
  %v6004 = vrot.slane %v5999, %v6003
  %v6007 = vsel %vm4062, %v5837, 0
  %6009 = vmatprep.subr.mxu0 0.0
  %6010 = vmatpush1.msra.mxu0 %v5915
  %6011 = vmatprep.subr.mxu0 0.0
  %6012 = vmatpush1.msra.mxu0 %v5916
  %6013 = vmatprep.subr.mxu0 0.0
  %6014 = vmatpush1.msra.mxu0 %v5917
  %6015 = vmatprep.subr.mxu0 0.0
  %6016 = vmatpush1.msra.mxu0 %v5918
  %6017 = vmatprep.subr.mxu0 0.0
  %6018 = vmatpush1.msra.mxu0 %v5919
  %6019 = vmatprep.subr.mxu0 0.0
  %6020 = vmatpush1.msra.mxu0 %v5920
  %6021 = vmatprep.subr.mxu0 0.0
  %6022 = vmatpush1.msra.mxu0 %v5921
  %6023 = vmatprep.subr.mxu0 0.0
  %6024 = vmatpush1.msra.mxu0 %v5922
  %6025 = vmatprep.subr.mxu0 0.0
  %6026 = vmatpush1.msra.mxu0 %v5923
  %6027 = vmatprep.subr.mxu0 0.0
  %6028 = vmatpush1.msra.mxu0 %v5924
  %6029 = vmatprep.subr.mxu0 0.0
  %6030 = vmatpush1.msra.mxu0 %v5925
  %6031 = vmatprep.subr.mxu0 0.0
  %6032 = vmatpush1.msra.mxu0 %v5926
  %6033 = vmatprep.subr.mxu0 0.0
  %6034 = vmatpush1.msra.mxu0 %v5927
  %6035 = vmatprep.subr.mxu0 0.0
  %6036 = vmatpush1.msra.mxu0 %v5928
  %6037 = vmatprep.subr.mxu0 0.0
  %6038 = vmatpush1.msra.mxu0 %v5929
  %6039 = vmatprep.subr.mxu0 0.0
  %6040 = vmatpush1.msra.mxu0 %v5930
  %6041 = vmatprep.subr.mxu0 0.0
  %6042 = vmatpush1.msra.mxu0 %v5931
  %6043 = vmatprep.subr.mxu0 0.0
  %6044 = vmatpush1.msra.mxu0 %v5932
  %6045 = vmatprep.subr.mxu0 0.0
  %6046 = vmatpush1.msra.mxu0 %v5933
  %6047 = vmatprep.subr.mxu0 0.0
  %6048 = vmatpush1.msra.mxu0 %v5934
  %6049 = vmatprep.subr.mxu0 0.0
  %6050 = vmatpush1.msra.mxu0 %v5935
  %6051 = vmatprep.subr.mxu0 0.0
  %6052 = vmatpush1.msra.mxu0 %v5936
  %6053 = vmatprep.subr.mxu0 0.0
  %6054 = vmatpush1.msra.mxu0 %v5937
  %6055 = vmatprep.subr.mxu0 0.0
  %6056 = vmatpush1.msra.mxu0 %v5938
  %6057 = vmatprep.subr.mxu0 0.0
  %6058 = vmatpush1.msra.mxu0 %v5939
  %6059 = vmatprep.subr.mxu0 0.0
  %6060 = vmatpush1.msra.mxu0 %v5940
  %6061 = vmatprep.subr.mxu0 0.0
  %6062 = vmatpush1.msra.mxu0 %v5941
  %6063 = vmatprep.subr.mxu0 0.0
  %6064 = vmatpush1.msra.mxu0 %v5942
  %6065 = vmatprep.subr.mxu0 0.0
  %6066 = vmatpush1.msra.mxu0 %v5943
  %6067 = vmatprep.subr.mxu0 0.0
  %6068 = vmatpush1.msra.mxu0 %v5944
  %6069 = vmatprep.subr.mxu0 0.0
  %6070 = vmatpush1.msra.mxu0 %v5945
  %6071 = vmatprep.subr.mxu0 0.0
  %6072 = vmatpush1.msra.mxu0 %v5946
  %6073 = vmatprep.mubr.f32.mxu0 %v5893
  %6074 = vmatmul.mubr.f32.gmra.mrb[0].mxu0 %v5890
  %v6075 = vpop.f32.mrb[0].mxu0
  %v6076 = vadd.f32 %v6004, %v6075
  %v6077 = vpop.f32.mrb[0].mxu0
  %6078 = vdwg.mxu0
  %6079 = vmatprep.subr.mxu0 0.0
  %6080 = vmatpush1.msra.mxu0 %v5947
  %6081 = vmatprep.subr.mxu0 0.0
  %6082 = vmatpush1.msra.mxu0 %v5948
  %6083 = vmatprep.subr.mxu0 0.0
  %6084 = vmatpush1.msra.mxu0 %v5949
  %6085 = vmatprep.subr.mxu0 0.0
  %6086 = vmatpush1.msra.mxu0 %v5950
  %6087 = vmatprep.subr.mxu0 0.0
  %6088 = vmatpush1.msra.mxu0 %v5951
  %6089 = vmatprep.subr.mxu0 0.0
  %6090 = vmatpush1.msra.mxu0 %v5952
  %6091 = vmatprep.subr.mxu0 0.0
  %6092 = vmatpush1.msra.mxu0 %v5953
  %6093 = vmatprep.subr.mxu0 0.0
  %6094 = vmatpush1.msra.mxu0 %v5954
  %6095 = vmatprep.subr.mxu0 0.0
  %6096 = vmatpush1.msra.mxu0 %v5955
  %6097 = vmatprep.subr.mxu0 0.0
  %6098 = vmatpush1.msra.mxu0 %v5956
  %6099 = vmatprep.subr.mxu0 0.0
  %6100 = vmatpush1.msra.mxu0 %v5957
  %6101 = vmatprep.subr.mxu0 0.0
  %6102 = vmatpush1.msra.mxu0 %v5958
  %6103 = vmatprep.subr.mxu0 0.0
  %6104 = vmatpush1.msra.mxu0 %v5959
  %6105 = vmatprep.subr.mxu0 0.0
  %6106 = vmatpush1.msra.mxu0 %v5960
  %6107 = vmatprep.subr.mxu0 0.0
  %6108 = vmatpush1.msra.mxu0 %v5961
  %6109 = vmatprep.subr.mxu0 0.0
  %6110 = vmatpush1.msra.mxu0 %v5962
  %6111 = vmatprep.subr.mxu0 0.0
  %6112 = vmatpush1.msra.mxu0 %v5963
  %6113 = vmatprep.subr.mxu0 0.0
  %6114 = vmatpush1.msra.mxu0 %v5964
  %6115 = vmatprep.subr.mxu0 0.0
  %6116 = vmatpush1.msra.mxu0 %v5965
  %6117 = vmatprep.subr.mxu0 0.0
  %6118 = vmatpush1.msra.mxu0 %v5966
  %6119 = vmatprep.subr.mxu0 0.0
  %6120 = vmatpush1.msra.mxu0 %v5967
  %6121 = vmatprep.subr.mxu0 0.0
  %6122 = vmatpush1.msra.mxu0 %v5968
  %6123 = vmatprep.subr.mxu0 0.0
  %6124 = vmatpush1.msra.mxu0 %v5969
  %6125 = vmatprep.subr.mxu0 0.0
  %6126 = vmatpush1.msra.mxu0 %v5970
  %6127 = vmatprep.subr.mxu0 0.0
  %6128 = vmatpush1.msra.mxu0 %v5971
  %6129 = vmatprep.subr.mxu0 0.0
  %6130 = vmatpush1.msra.mxu0 %v5972
  %6131 = vmatprep.subr.mxu0 0.0
  %6132 = vmatpush1.msra.mxu0 %v5973
  %6133 = vmatprep.subr.mxu0 0.0
  %6134 = vmatpush1.msra.mxu0 %v5974
  %6135 = vmatprep.subr.mxu0 0.0
  %6136 = vmatpush1.msra.mxu0 %v5975
  %6137 = vmatprep.subr.mxu0 0.0
  %6138 = vmatpush1.msra.mxu0 %v5976
  %6139 = vmatprep.subr.mxu0 0.0
  %6140 = vmatpush1.msra.mxu0 %v5977
  %6141 = vmatprep.subr.mxu0 0.0
  %6142 = vmatpush1.msra.mxu0 %v5978
  %6143 = vmatprep.mubr.f32.mxu0 %v5899
  %6144 = vmatmul.mubr.f32.gmra.mrb[0].mxu0 %v5896
  %v6145 = vpop.f32.mrb[0].mxu0
  %v6146 = vadd.f32 %v6076, %v6145
  %v6147 = vpop.f32.mrb[0].mxu0
  %6148 = vdwg.mxu0
  %6149 = vmatprep.subr.mxu0 0.0
  %6150 = vmatpush1.msra.mxu0 %v5979
  %6151 = vmatprep.subr.mxu0 0.0
  %6152 = vmatpush1.msra.mxu0 %v5980
  %6153 = vmatprep.subr.mxu0 0.0
  %6154 = vmatpush1.msra.mxu0 %v5981
  %6155 = vmatprep.subr.mxu0 0.0
  %6156 = vmatpush1.msra.mxu0 %v5982
  %6157 = vmatprep.subr.mxu0 0.0
  %6158 = vmatpush1.msra.mxu0 %v5983
  %6159 = vmatprep.subr.mxu0 0.0
  %6160 = vmatpush1.msra.mxu0 %v5984
  %6161 = vmatprep.subr.mxu0 0.0
  %6162 = vmatpush1.msra.mxu0 %v5985
  %6163 = vmatprep.subr.mxu0 0.0
  %6164 = vmatpush1.msra.mxu0 %v5986
  %6165 = vmatprep.subr.mxu0 0.0
  %6166 = vmatpush1.msra.mxu0 %v5987
  %6167 = vmatprep.subr.mxu0 0.0
  %6168 = vmatpush1.msra.mxu0 %v5988
  %6169 = vmatprep.subr.mxu0 0.0
  %6170 = vmatpush1.msra.mxu0 %v5989
  %6171 = vmatprep.subr.mxu0 0.0
  %6172 = vmatpush1.msra.mxu0 %v5990
  %6173 = vmatprep.subr.mxu0 0.0
  %6174 = vmatpush1.msra.mxu0 %v5991
  %6175 = vmatprep.subr.mxu0 0.0
  %6176 = vmatpush1.msra.mxu0 %v5992
  %6177 = vmatprep.subr.mxu0 0.0
  %6178 = vmatpush1.msra.mxu0 %v5993
  %6179 = vmatprep.subr.mxu0 0.0
  %6180 = vmatpush1.msra.mxu0 %v5994
  %6181 = vmatprep.subr.mxu0 0.0
  %6182 = vmatpush1.msra.mxu0 %v5995
  %6183 = vmatprep.subr.mxu0 0.0
  %6184 = vmatpush1.msra.mxu0 %v5996
  %6185 = vmatprep.subr.mxu0 0.0
  %6186 = vmatpush1.msra.mxu0 %v5997
  %6187 = vmatprep.subr.mxu0 0.0
  %6188 = vmatpush1.msra.mxu0 %v5998
  %6189 = vmatprep.subr.mxu0 0.0
  %6190 = vmatpush1.msra.mxu0 0.0
  %6191 = vmatprep.subr.mxu0 0.0
  %6192 = vmatpush1.msra.mxu0 0.0
  %6193 = vmatprep.subr.mxu0 0.0
  %6194 = vmatpush1.msra.mxu0 0.0
  %6195 = vmatprep.subr.mxu0 0.0
  %6196 = vmatpush1.msra.mxu0 0.0
  %6197 = vmatprep.subr.mxu0 0.0
  %6198 = vmatpush1.msra.mxu0 0.0
  %6199 = vmatprep.subr.mxu0 0.0
  %6200 = vmatpush1.msra.mxu0 0.0
  %6201 = vmatprep.subr.mxu0 0.0
  %6202 = vmatpush1.msra.mxu0 0.0
  %6203 = vmatprep.subr.mxu0 0.0
  %6204 = vmatpush1.msra.mxu0 0.0
  %6205 = vmatprep.subr.mxu0 0.0
  %6206 = vmatpush1.msra.mxu0 0.0
  %6207 = vmatprep.subr.mxu0 0.0
  %6208 = vmatpush1.msra.mxu0 0.0
  %6209 = vmatprep.subr.mxu0 0.0
  %6210 = vmatpush1.msra.mxu0 0.0
  %6211 = vmatprep.subr.mxu0 0.0
  %6212 = vmatpush1.msra.mxu0 0.0
  %6213 = vmatprep.mubr.f32.mxu0 %v6007
  %6214 = vmatmul.mubr.f32.gmra.mrb[0].mxu0 %v5914
  %v6215 = vpop.f32.mrb[0].mxu0
  %v6216 = vadd.f32 %v6146, %v6215
  %v6217 = vpop.f32.mrb[0].mxu0
  %6218 = vdwg.mxu0
  %v6219 = vmax.f32 %v6216, 0.0
  %v6220 = vld [vmem:[%s9] sm:$0xff]
  %v6221 = vld [vmem:[%s9 + $0x8] sm:$0xff]
  %v6222 = vld [vmem:[%s9 + $0x10] sm:$0xff]
  %v6223 = vld [vmem:[%s9 + $0x18] sm:$0xff]
  %v6224 = vld [vmem:[%s9 + $0x20] sm:$0xff]
  %v6225 = vld [vmem:[%s9 + $0x28] sm:$0xff]
  %v6226 = vld [vmem:[%s9 + $0x30] sm:$0xff]
  %v6227 = vld [vmem:[%s9 + $0x38] sm:$0xff]
  %v6228 = vld [vmem:[%s9 + $0x40] sm:$0xff]
  %v6229 = vld [vmem:[%s9 + $0x48] sm:$0xff]
  %v6230 = vld [vmem:[%s9 + $0x50] sm:$0xff]
  %v6231 = vld [vmem:[%s9 + $0x58] sm:$0xff]
  %v6232 = vld [vmem:[%s9 + $0x60] sm:$0xff]
  %v6233 = vld [vmem:[%s9 + $0x68] sm:$0xff]
  %v6234 = vld [vmem:[%s9 + $0x70] sm:$0xff]
  %v6235 = vld [vmem:[%s9 + $0x78] sm:$0xff]
  %v6236 = vld [vmem:[%s10] sm:$0x1]
  %v6238 = vlaneseq
  %v6239 = vshrl.u32 %v6238, 7
  %v6240 = vsub.s32 0, %v6239
  %v6241 = vrot.slane %v6236, %v6240
  %6243 = vmatprep.subr.mxu0 0.0
  %6244 = vmatpush1.msra.mxu0 %v6220
  %6245 = vmatprep.subr.mxu0 0.0
  %6246 = vmatpush1.msra.mxu0 %v6221
  %6247 = vmatprep.subr.mxu0 0.0
  %6248 = vmatpush1.msra.mxu0 %v6222
  %6249 = vmatprep.subr.mxu0 0.0
  %6250 = vmatpush1.msra.mxu0 %v6223
  %6251 = vmatprep.subr.mxu0 0.0
  %6252 = vmatpush1.msra.mxu0 %v6224
  %6253 = vmatprep.subr.mxu0 0.0
  %6254 = vmatpush1.msra.mxu0 %v6225
  %6255 = vmatprep.subr.mxu0 0.0
  %6256 = vmatpush1.msra.mxu0 %v6226
  %6257 = vmatprep.subr.mxu0 0.0
  %6258 = vmatpush1.msra.mxu0 %v6227
  %6259 = vmatprep.subr.mxu0 0.0
  %6260 = vmatpush1.msra.mxu0 %v6228
  %6261 = vmatprep.subr.mxu0 0.0
  %6262 = vmatpush1.msra.mxu0 %v6229
  %6263 = vmatprep.subr.mxu0 0.0
  %6264 = vmatpush1.msra.mxu0 %v6230
  %6265 = vmatprep.subr.mxu0 0.0
  %6266 = vmatpush1.msra.mxu0 %v6231
  %6267 = vmatprep.subr.mxu0 0.0
  %6268 = vmatpush1.msra.mxu0 %v6232
  %6269 = vmatprep.subr.mxu0 0.0
  %6270 = vmatpush1.msra.mxu0 %v6233
  %6271 = vmatprep.subr.mxu0 0.0
  %6272 = vmatpush1.msra.mxu0 %v6234
  %6273 = vmatprep.subr.mxu0 0.0
  %6274 = vmatpush1.msra.mxu0 %v6235
  %6275 = vmatprep.subr.mxu0 0.0
  %6276 = vmatpush1.msra.mxu0 0.0
  %6277 = vmatprep.subr.mxu0 0.0
  %6278 = vmatpush1.msra.mxu0 0.0
  %6279 = vmatprep.subr.mxu0 0.0
  %6280 = vmatpush1.msra.mxu0 0.0
  %6281 = vmatprep.subr.mxu0 0.0
  %6282 = vmatpush1.msra.mxu0 0.0
  %6283 = vmatprep.subr.mxu0 0.0
  %6284 = vmatpush1.msra.mxu0 0.0
  %6285 = vmatprep.subr.mxu0 0.0
  %6286 = vmatpush1.msra.mxu0 0.0
  %6287 = vmatprep.subr.mxu0 0.0
  %6288 = vmatpush1.msra.mxu0 0.0
  %6289 = vmatprep.subr.mxu0 0.0
  %6290 = vmatpush1.msra.mxu0 0.0
  %6291 = vmatprep.subr.mxu0 0.0
  %6292 = vmatpush1.msra.mxu0 0.0
  %6293 = vmatprep.subr.mxu0 0.0
  %6294 = vmatpush1.msra.mxu0 0.0
  %6295 = vmatprep.subr.mxu0 0.0
  %6296 = vmatpush1.msra.mxu0 0.0
  %6297 = vmatprep.subr.mxu0 0.0
  %6298 = vmatpush1.msra.mxu0 0.0
  %6299 = vmatprep.subr.mxu0 0.0
  %6300 = vmatpush1.msra.mxu0 0.0
  %6301 = vmatprep.subr.mxu0 0.0
  %6302 = vmatpush1.msra.mxu0 0.0
  %6303 = vmatprep.subr.mxu0 0.0
  %6304 = vmatpush1.msra.mxu0 0.0
  %6305 = vmatprep.subr.mxu0 0.0
  %6306 = vmatpush1.msra.mxu0 0.0
  %6307 = vmatprep.mubr.f32.mxu0 0.0
  %6308 = vmatmul.mubr.f32.gmra.mrb[0].mxu0 %v6219
  %v6309 = vpop.f32.mrb[0].mxu0
  %v6310 = vadd.f32 %v6241, %v6309
  %v6311 = vpop.f32.mrb[0].mxu0
  %6312 = vdwg.mxu0
  %v6313 = vmax.f32 %v6310, 0.0
  %v6314 = vld [vmem:[%s11] sm:$0xff]
  %v6315 = vld [vmem:[%s11 + $0x8] sm:$0xff]
  %v6316 = vld [vmem:[%s11 + $0x10] sm:$0xff]
  %v6317 = vld [vmem:[%s11 + $0x18] sm:$0xff]
  %v6318 = vld [vmem:[%s11 + $0x20] sm:$0xff]
  %v6319 = vld [vmem:[%s11 + $0x28] sm:$0xff]
  %v6320 = vld [vmem:[%s11 + $0x30] sm:$0xff]
  %v6321 = vld [vmem:[%s11 + $0x38] sm:$0xff]
  %v6322 = vld [vmem:[%s11 + $0x40] sm:$0xff]
  %v6323 = vld [vmem:[%s11 + $0x48] sm:$0xff]
  %v6324 = vld [vmem:[%s11 + $0x50] sm:$0xff]
  %v6325 = vld [vmem:[%s11 + $0x58] sm:$0xff]
  %v6326 = vld [vmem:[%s11 + $0x60] sm:$0xff]
  %v6327 = vld [vmem:[%s11 + $0x68] sm:$0xff]
  %v6328 = vld [vmem:[%s11 + $0x70] sm:$0xff]
  %v6329 = vld [vmem:[%s11 + $0x78] sm:$0xff]
  %v6330 = vld [vmem:[%s12] sm:$0x1]
  %v6332 = vlaneseq
  %v6333 = vshrl.u32 %v6332, 7
  %v6334 = vsub.s32 0, %v6333
  %v6335 = vrot.slane %v6330, %v6334
  %6337 = vmatprep.subr.mxu0 0.0
  %6338 = vmatpush1.msra.mxu0 %v6314
  %6339 = vmatprep.subr.mxu0 0.0
  %6340 = vmatpush1.msra.mxu0 %v6315
  %6341 = vmatprep.subr.mxu0 0.0
  %6342 = vmatpush1.msra.mxu0 %v6316
  %6343 = vmatprep.subr.mxu0 0.0
  %6344 = vmatpush1.msra.mxu0 %v6317
  %6345 = vmatprep.subr.mxu0 0.0
  %6346 = vmatpush1.msra.mxu0 %v6318
  %6347 = vmatprep.subr.mxu0 0.0
  %6348 = vmatpush1.msra.mxu0 %v6319
  %6349 = vmatprep.subr.mxu0 0.0
  %6350 = vmatpush1.msra.mxu0 %v6320
  %6351 = vmatprep.subr.mxu0 0.0
  %6352 = vmatpush1.msra.mxu0 %v6321
  %6353 = vmatprep.subr.mxu0 0.0
  %6354 = vmatpush1.msra.mxu0 %v6322
  %6355 = vmatprep.subr.mxu0 0.0
  %6356 = vmatpush1.msra.mxu0 %v6323
  %6357 = vmatprep.subr.mxu0 0.0
  %6358 = vmatpush1.msra.mxu0 %v6324
  %6359 = vmatprep.subr.mxu0 0.0
  %6360 = vmatpush1.msra.mxu0 %v6325
  %6361 = vmatprep.subr.mxu0 0.0
  %6362 = vmatpush1.msra.mxu0 %v6326
  %6363 = vmatprep.subr.mxu0 0.0
  %6364 = vmatpush1.msra.mxu0 %v6327
  %6365 = vmatprep.subr.mxu0 0.0
  %6366 = vmatpush1.msra.mxu0 %v6328
  %6367 = vmatprep.subr.mxu0 0.0
  %6368 = vmatpush1.msra.mxu0 %v6329
  %6369 = vmatprep.subr.mxu0 0.0
  %6370 = vmatpush1.msra.mxu0 0.0
  %6371 = vmatprep.subr.mxu0 0.0
  %6372 = vmatpush1.msra.mxu0 0.0
  %6373 = vmatprep.subr.mxu0 0.0
  %6374 = vmatpush1.msra.mxu0 0.0
  %6375 = vmatprep.subr.mxu0 0.0
  %6376 = vmatpush1.msra.mxu0 0.0
  %6377 = vmatprep.subr.mxu0 0.0
  %6378 = vmatpush1.msra.mxu0 0.0
  %6379 = vmatprep.subr.mxu0 0.0
  %6380 = vmatpush1.msra.mxu0 0.0
  %6381 = vmatprep.subr.mxu0 0.0
  %6382 = vmatpush1.msra.mxu0 0.0
  %6383 = vmatprep.subr.mxu0 0.0
  %6384 = vmatpush1.msra.mxu0 0.0
  %6385 = vmatprep.subr.mxu0 0.0
  %6386 = vmatpush1.msra.mxu0 0.0
  %6387 = vmatprep.subr.mxu0 0.0
  %6388 = vmatpush1.msra.mxu0 0.0
  %6389 = vmatprep.subr.mxu0 0.0
  %6390 = vmatpush1.msra.mxu0 0.0
  %6391 = vmatprep.subr.mxu0 0.0
  %6392 = vmatpush1.msra.mxu0 0.0
  %6393 = vmatprep.subr.mxu0 0.0
  %6394 = vmatpush1.msra.mxu0 0.0
  %6395 = vmatprep.subr.mxu0 0.0
  %6396 = vmatpush1.msra.mxu0 0.0
  %6397 = vmatprep.subr.mxu0 0.0
  %6398 = vmatpush1.msra.mxu0 0.0
  %6399 = vmatprep.subr.mxu0 0.0
  %6400 = vmatpush1.msra.mxu0 0.0
  %6401 = vmatprep.mubr.f32.mxu0 0.0
  %6402 = vmatmul.mubr.f32.gmra.mrb[0].mxu0 %v6313
  %v6403 = vpop.f32.mrb[0].mxu0
  %v6404 = vadd.f32 %v6335, %v6403
  %v6405 = vpop.f32.mrb[0].mxu0
  %6406 = vdwg.mxu0
  %vm6407 = vcmask 9216
  %v6408 = vsel %vm6407, %v6404, -inf
  %6409 = vmax.xlane.f32.xlu0 %v6408
  %v6410 = vpop.xlane.xlu0 %6409
  %v6411 = vsub.f32 %v6404, %v6410
  %v6412 = vmul.f32 %v6411, 1.442695
  %v6413 = vpow.pop %v6412
  %v6414 = vsel %vm6407, %v6413, 0.0
  %6415 = vadd.xlane.f32.xlu0 %v6414
  %v6416 = vpop.xlane.xlu0 %6415
  %v6417 = vlog2.pop %v6416
  %v6418 = vmul.f32 %v6417, 0.6931472
  %v6419 = vsub.f32 %v6411, %v6418
  %v6420 = vmul.f32 %v6419, 1.442695
  %v6421 = vpow.pop %v6420
  %6423 = vrot.lane.b32.xlu0 %v6419, 2
  %v6424 = vpop.permute.xlu0 %6423
  %vm6426 = vcmask 15360
  %v6427 = vsel %vm6426, %v6421, %v6424
  %vm6428 = vcmask 25600
  %6429 = vst.msk [vmem:[%s13] sm:$0x3] %vm6428, %v6427
  // Predicated region
  $region54: #{degenerate_slice_detector_forward.1} parent=0 // pred_check
    _
  $region55: #{degenerate_slice_detector_forward.1} parent=0 // pred_check_branch
    %6431 = sbr.rel (0) target = $region57
  $region56: #{degenerate_slice_detector_forward.1} parent=0 // pred_region
    _
  $region57: #{degenerate_slice_detector_forward.1} parent=0 // pred_fallthru
    _
  // Predicated region
  $region58: #{degenerate_slice_detector_forward.1} parent=0 // pred_check
    _
  $region59: #{degenerate_slice_detector_forward.1} parent=0 // pred_check_branch
    %6433 = sbr.rel (0) target = $region61
  $region60: #{degenerate_slice_detector_forward.1} parent=0 // pred_region
    _
  $region61: #{degenerate_slice_detector_forward.1} parent=0 // pred_fallthru
    _

</llo_original>
